<compile_context>
chip_gen: v7x
topology: tpu7x:2x2x1
jax: 0.10.0
libtpu: 0.0.40
codegen_flags: <defaults>
</compile_context>

<pallas_src>
import functools
import math

import numpy as np
import jax
import jax.numpy as jnp
from jax import lax
from jax.experimental import pallas as pl
from jax.experimental.pallas import tpu as pltpu

_BF16 = jnp.bfloat16
_NEG_INF = -1e30


# ----------------------------------------------------------------------------
# Tiling helpers
# ----------------------------------------------------------------------------
def _round_up(x, m):
    return ((x + m - 1) // m) * m


def _seq_plan(L, pref=256):
    """Padded sequence length: multiple of 8, and guaranteed to have a
    128-aligned divisor <= pref (so every kernel gets bounded, aligned tiles)."""
    Lp = _round_up(L, 8)
    if Lp <= pref:
        return Lp
    for t in range(pref, 127, -128):
        if Lp % t == 0:
            return Lp
    return _round_up(L, pref)


def _ltile(L, pref):
    """Largest 128-aligned tile <= pref dividing L (or L itself when small)."""
    if L <= pref:
        return L
    for t in range(pref - pref % 128, 127, -128):
        if L % t == 0:
            return t
    return L


def _tile_prefs():
    """Generation-aware tile preferences (v7x has 64 MiB VMEM vs 128 MiB)."""
    try:
        vmem = pltpu.get_tpu_info().vmem_capacity_bytes
    except Exception:
        vmem = 64 << 20
    small = vmem <= (64 << 20)
    return {"proj": 256 if small else 512,
            "attn_q": 256,
            "attn_kv": 256 if small else 512,
            "filt": 256 if small else 512}


def _bytes(*shape_itemsize):
    return sum(int(np.prod(s)) * it for s, it in shape_itemsize)


def _vmem_limit(block_bytes):
    # double-buffered pipeline footprint + slack, clamped to sane bounds
    return int(min(max(2 * block_bytes + (8 << 20), 32 << 20), 96 << 20))


# ----------------------------------------------------------------------------
# Pallas kernels
# ----------------------------------------------------------------------------
def _qkv_proj_kernel(x_ref, wq_ref, bq_ref, wkv_ref, bkv_ref, q_ref, kv_ref):
    # x: (TL, C) channels-last bf16.  One activation read feeds both matmuls.
    x = x_ref[...]
    q_ref[...] = (jnp.dot(x, wq_ref[...], preferred_element_type=jnp.float32)
                  + bq_ref[...]).astype(q_ref.dtype)
    kv_ref[...] = (jnp.dot(x, wkv_ref[...], preferred_element_type=jnp.float32)
                   + bkv_ref[...]).astype(kv_ref.dtype)


def _attn_mh_flash_kernel(q_ref, kv_ref, wmh_ref, bmh_ref, o_ref,
                          acc_ref, m_ref, l_ref,
                          *, head, head_dim, kv_tile, kv_valid, kv_padded):
    # Flash-style online softmax over KV tiles; all heads handled per grid cell.
    # q:  (TN, C) bf16 head-major, pre-scaled by 1/sqrt(D)
    # kv: (TKV, 2C) bf16 head-major, [K | V]
    # Fused on the last KV tile: per-head normalize, head concat (scratch slab),
    # mh_filter projection -> (TN, C) lane-dense output block.
    C = head * head_dim
    k_idx = pl.program_id(2)

    @pl.when(k_idx == 0)
    def _():
        acc_ref[...] = jnp.zeros_like(acc_ref)
        m_ref[...] = jnp.full_like(m_ref, _NEG_INF)
        l_ref[...] = jnp.zeros_like(l_ref)

    q = q_ref[...]
    kv = kv_ref[...]

    need_mask = kv_padded != kv_valid  # static
    if need_mask:
        col = k_idx * kv_tile + lax.broadcasted_iota(jnp.int32, (1, kv_tile), 1)
        col_ok = col < kv_valid

    for h in range(head):
        lo, hi = h * head_dim, (h + 1) * head_dim
        qh = q[:, lo:hi]                       # (TN, D)
        kh = kv[:, lo:hi]                      # (TKV, D)
        vh = kv[:, C + lo:C + hi]              # (TKV, D)
        s = lax.dot_general(qh, kh, (((1,), (1,)), ((), ())),
                            preferred_element_type=jnp.float32)   # (TN, TKV)
        if need_mask:
            s = jnp.where(col_ok, s, _NEG_INF)
        m_prev = m_ref[h]                                          # (TN, 1)
        m_new = jnp.maximum(m_prev, jnp.max(s, axis=-1, keepdims=True))
        alpha = jnp.exp(m_prev - m_new)
        # bf16 exp (EUP throughput) and bf16 probabilities for the MXU;
        # the row-sum / accumulators stay f32.
        p = jnp.exp((s - m_new).astype(_BF16))
        l_ref[h] = (alpha * l_ref[h]
                    + jnp.sum(p.astype(jnp.float32), axis=-1, keepdims=True))
        acc_ref[:, lo:hi] = (alpha * acc_ref[:, lo:hi]
                             + jnp.dot(p, vh, preferred_element_type=jnp.float32))
        m_ref[h] = m_new

    @pl.when(k_idx == pl.num_programs(2) - 1)
    def _():
        for h in range(head):
            lo, hi = h * head_dim, (h + 1) * head_dim
            acc_ref[:, lo:hi] = acc_ref[:, lo:hi] * pl.reciprocal(l_ref[h], approx=True)
        attn = acc_ref[...].astype(_BF16)      # (TN, C) head-major scratch slab
        o_ref[...] = (jnp.dot(attn, wmh_ref[...], preferred_element_type=jnp.float32)
                      + bmh_ref[...]).astype(o_ref.dtype)


def _attf_stats_kernel(fea_ref, add_ref, w1a_ref, w1b_ref, b1_ref,
                       y_ref, stats_ref, *, tile_l, l_valid, l_padded):
    # Concat-free first conv: y = fea @ W1a + add @ W1b + b1 (channels-last),
    # plus a per-batch resident sum / sum-of-squares accumulator (f32 stats,
    # bf16 y written to HBM).
    y = (jnp.dot(fea_ref[...], w1a_ref[...], preferred_element_type=jnp.float32)
         + jnp.dot(add_ref[...], w1b_ref[...], preferred_element_type=jnp.float32)
         + b1_ref[...])
    y_ref[...] = y.astype(y_ref.dtype)

    @pl.when(pl.program_id(1) == 0)
    def _():
        stats_ref[...] = jnp.zeros_like(stats_ref)

    if l_padded != l_valid:  # static: mask padded rows out of the BN statistics
        row = (pl.program_id(1) * tile_l
               + lax.broadcasted_iota(jnp.int32, (tile_l, 1), 0))
        y = jnp.where(row < l_valid, y, 0.0)
    s = jnp.sum(y, axis=0, keepdims=True)       # (1, 2C)
    sq = jnp.sum(y * y, axis=0, keepdims=True)  # (1, 2C)
    stats_ref[...] += jnp.concatenate([s, sq], axis=0)


def _attf_apply_kernel(y_ref, fea_ref, sc_ref, sh_ref, w2_ref, b2_ref, o_ref):
    # BN (precomputed per-channel scale/shift) + ReLU + second conv + residual.
    # The conv is emitted directly in the original (C, L) layout:
    #   out[c, l] = fea[c, l] + sum_k w2[c, k] * h[l, k] + b2[c]
    h = jnp.maximum(y_ref[...].astype(jnp.float32) * sc_ref[...] + sh_ref[...], 0.0)
    o_ref[...] = (fea_ref[...]
                  + lax.dot_general(w2_ref[...], h.astype(_BF16),
                                    (((1,), (1,)), ((), ())),
                                    preferred_element_type=jnp.float32)
                  + b2_ref[...])


# ----------------------------------------------------------------------------
# Wrappers around pallas_call
# ----------------------------------------------------------------------------
def qkv_project(x, wq_t, bq_r, wkv_t, bkv_r, *, tile_pref):
    B, L, C = x.shape
    C2 = wkv_t.shape[1]
    tl = _ltile(L, tile_pref)
    blk = _bytes(((tl, C), 2), ((C, C), 2), ((1, C), 4), ((C, C2), 2), ((1, C2), 4),
                 ((tl, C), 2), ((tl, C2), 2))
    return pl.pallas_call(
        _qkv_proj_kernel,
        out_shape=(jax.ShapeDtypeStruct((B, L, C), _BF16),
                   jax.ShapeDtypeStruct((B, L, C2), _BF16)),
        grid=(B, L // tl),
        in_specs=[
            pl.BlockSpec((None, tl, C), lambda b, l: (b, l, 0)),
            pl.BlockSpec((C, C), lambda b, l: (0, 0)),
            pl.BlockSpec((1, C), lambda b, l: (0, 0)),
            pl.BlockSpec((C, C2), lambda b, l: (0, 0)),
            pl.BlockSpec((1, C2), lambda b, l: (0, 0)),
        ],
        out_specs=(pl.BlockSpec((None, tl, C), lambda b, l: (b, l, 0)),
                   pl.BlockSpec((None, tl, C2), lambda b, l: (b, l, 0))),
        compiler_params=pltpu.CompilerParams(
            dimension_semantics=("parallel", "parallel"),
            vmem_limit_bytes=_vmem_limit(blk)),
    )(x, wq_t, bq_r, wkv_t, bkv_r)


def attention_mh(q_side, kv_side, wmh_t, bmh_r, *, head, kv_valid,
                 q_tile_pref, kv_tile_pref):
    B, Np, C = q_side.shape
    Mp = kv_side.shape[1]
    D = C // head
    tn = _ltile(Np, q_tile_pref)
    tkv = _ltile(Mp, kv_tile_pref)
    blk = _bytes(((tn, C), 2), ((tkv, 2 * C), 2), ((C, C), 2), ((1, C), 4),
                 ((tn, C), 2), ((tn, C), 4), ((tn, tkv), 4), ((2 * head, tn), 4))
    return pl.pallas_call(
        functools.partial(_attn_mh_flash_kernel, head=head, head_dim=D,
                          kv_tile=tkv, kv_valid=kv_valid, kv_padded=Mp),
        out_shape=jax.ShapeDtypeStruct((B, Np, C), _BF16),
        grid=(B, Np // tn, Mp // tkv),
        in_specs=[
            pl.BlockSpec((None, tn, C), lambda b, n, k: (b, n, 0)),
            pl.BlockSpec((None, tkv, 2 * C), lambda b, n, k: (b, k, 0)),
            pl.BlockSpec((C, C), lambda b, n, k: (0, 0)),
            pl.BlockSpec((1, C), lambda b, n, k: (0, 0)),
        ],
        out_specs=pl.BlockSpec((None, tn, C), lambda b, n, k: (b, n, 0)),
        scratch_shapes=[pltpu.VMEM((tn, C), jnp.float32),       # acc slab
                        pltpu.VMEM((head, tn, 1), jnp.float32),  # running max
                        pltpu.VMEM((head, tn, 1), jnp.float32)], # running denom
        compiler_params=pltpu.CompilerParams(
            dimension_semantics=("parallel", "parallel", "arbitrary"),
            vmem_limit_bytes=_vmem_limit(blk)),
    )(q_side, kv_side, wmh_t, bmh_r)


def att_filter(fea_nlc, fea_ncl, add, afp, *, l_valid, tile_pref, eps=1e-5):
    B, Lp, C = fea_nlc.shape
    C2 = 2 * C
    tl = _ltile(Lp, tile_pref)
    lt = Lp // tl

    # Pass 1: fused dual matmul + per-batch partial channel stats (batch axis
    # stays megacore-parallel; only the L axis is an accumulation axis).
    blk1 = _bytes(((tl, C), 2), ((tl, C), 2), ((C, C2), 2), ((C, C2), 2),
                  ((1, C2), 4), ((tl, C2), 2), ((2, C2), 4))
    y, stats = pl.pallas_call(
        functools.partial(_attf_stats_kernel, tile_l=tl, l_valid=l_valid, l_padded=Lp),
        out_shape=(jax.ShapeDtypeStruct((B, Lp, C2), _BF16),
                   jax.ShapeDtypeStruct((B, 2, C2), jnp.float32)),
        grid=(B, lt),
        in_specs=[
            pl.BlockSpec((None, tl, C), lambda b, l: (b, l, 0)),
            pl.BlockSpec((None, tl, C), lambda b, l: (b, l, 0)),
            pl.BlockSpec((C, C2), lambda b, l: (0, 0)),
            pl.BlockSpec((C, C2), lambda b, l: (0, 0)),
            pl.BlockSpec((1, C2), lambda b, l: (0, 0)),
        ],
        out_specs=(pl.BlockSpec((None, tl, C2), lambda b, l: (b, l, 0)),
                   pl.BlockSpec((None, 2, C2), lambda b, l: (b, 0, 0))),
        compiler_params=pltpu.CompilerParams(
            dimension_semantics=("parallel", "arbitrary"),
            vmem_limit_bytes=_vmem_limit(blk1)),
    )(fea_nlc, add, afp["w1a_t"], afp["w1b_t"], afp["b1_r"])

    # Tiny cross-batch reduction -> fold BN into per-channel scale/shift.
    cnt = float(B * l_valid)
    tot = jnp.sum(stats, axis=0)                     # (2, 2C)
    mean = tot[0] / cnt
    var = jnp.maximum(tot[1] / cnt - mean * mean, 0.0)
    rstd = lax.rsqrt(var + eps)
    sc = (afp["gamma"] * rstd).reshape(1, C2)
    sh = (afp["beta"] - afp["gamma"] * rstd * mean).reshape(1, C2)

    # Pass 2: BN + ReLU + second conv + residual; output directly in (B, C, L).
    blk2 = _bytes(((tl, C2), 2), ((C, tl), 4), ((1, C2), 4), ((1, C2), 4),
                  ((C, C2), 2), ((C, 1), 4), ((C, tl), 4))
    return pl.pallas_call(
        _attf_apply_kernel,
        out_shape=jax.ShapeDtypeStruct((B, C, Lp), jnp.float32),
        grid=(B, lt),
        in_specs=[
            pl.BlockSpec((None, tl, C2), lambda b, l: (b, l, 0)),
            pl.BlockSpec((None, C, tl), lambda b, l: (b, 0, l)),
            pl.BlockSpec((1, C2), lambda b, l: (0, 0)),
            pl.BlockSpec((1, C2), lambda b, l: (0, 0)),
            pl.BlockSpec((C, C2), lambda b, l: (0, 0)),
            pl.BlockSpec((C, 1), lambda b, l: (0, 0)),
        ],
        out_specs=pl.BlockSpec((None, C, tl), lambda b, l: (b, 0, l)),
        compiler_params=pltpu.CompilerParams(
            dimension_semantics=("parallel", "parallel"),
            vmem_limit_bytes=_vmem_limit(blk2)),
    )(y, fea_ncl, sc, sh, afp["w2"], afp["b2_c"])


# ----------------------------------------------------------------------------
# Forward pass (Pallas path)
# ----------------------------------------------------------------------------
def attention_block_forward(params, fea1, fea2, *, head, att_type):
    assert att_type in ("self", "cross")
    B, C, N = fea1.shape
    M = fea2.shape[2]
    D = C // head
    scale = 1.0 / math.sqrt(D)
    prefs = _tile_prefs()

    # Bounded, aligned tiles for awkward L: pad and mask instead of full-L blocks.
    Np = _seq_plan(N)
    Mp = _seq_plan(M)
    fea1_p = jnp.pad(fea1, ((0, 0), (0, 0), (0, Np - N))) if Np != N else fea1
    fea2_p = jnp.pad(fea2, ((0, 0), (0, 0), (0, Mp - M))) if Mp != M else fea2

    # Head-major channel permutation: new channel c' = h*D + d  <-  old c = d*H + h
    perm = (np.arange(D)[None, :] * head + np.arange(head)[:, None]).reshape(-1)

    # Fused / permuted weights; head split and the 1/sqrt(D) softmax scale are
    # absorbed here.  MXU operands are bf16; biases / BN params stay f32.
    wq_t = (params["wq"][perm, :] * scale).T.astype(_BF16)                  # (C, C)
    bq_r = (params["bq"][perm, 0] * scale).reshape(1, C)
    wkv_t = jnp.concatenate([params["wk"][perm, :],
                             params["wv"][perm, :]], axis=0).T.astype(_BF16)  # (C, 2C)
    bkv_r = jnp.concatenate([params["bk"][perm, 0],
                             params["bv"][perm, 0]]).reshape(1, 2 * C)
    wmh_t = params["w_mh"][:, perm].T.astype(_BF16)                          # (C, C)
    bmh_r = params["b_mh"][:, 0].reshape(1, C)

    afp = {
        "w1a_t": params["w_a1"][:, :C].T.astype(_BF16),   # (C, 2C) acts on fea
        "w1b_t": params["w_a1"][:, C:].T.astype(_BF16),   # (C, 2C) acts on add
        "b1_r": params["b_a1"][:, 0].reshape(1, 2 * C),
        "w2": params["w_a2"].astype(_BF16),               # (C, 2C) rhs-transposed in-kernel
        "b2_c": params["b_a2"],                           # (C, 1)
        "gamma": params["bn_gamma"][:, 0],
        "beta": params["bn_beta"][:, 0],
    }

    # One NCW->NLC transpose per input, done in bf16 (half the traffic).  The
    # last kernel emits NCW directly, so there are no output transposes.
    f1 = jnp.transpose(fea1_p.astype(_BF16), (0, 2, 1))    # (B, Np, C)
    f2 = jnp.transpose(fea2_p.astype(_BF16), (0, 2, 1))    # (B, Mp, C)

    q1, kv1 = qkv_project(f1, wq_t, bq_r, wkv_t, bkv_r, tile_pref=prefs["proj"])
    q2, kv2 = qkv_project(f2, wq_t, bq_r, wkv_t, bkv_r, tile_pref=prefs["proj"])

    attn = functools.partial(attention_mh, wmh_t=wmh_t, bmh_r=bmh_r, head=head,
                             q_tile_pref=prefs["attn_q"],
                             kv_tile_pref=prefs["attn_kv"])
    if att_type == "self":
        add1 = attn(q1, kv1, kv_valid=N)
        add2 = attn(q2, kv2, kv_valid=M)
    else:
        add1 = attn(q1, kv2, kv_valid=M)
        add2 = attn(q2, kv1, kv_valid=N)

    out1 = att_filter(f1, fea1_p, add1, afp, l_valid=N, tile_pref=prefs["filt"])
    out2 = att_filter(f2, fea2_p, add2, afp, l_valid=M, tile_pref=prefs["filt"])

    return out1[:, :, :N], out2[:, :, :M]


# ----------------------------------------------------------------------------
# Pure-JAX reference (mirrors the PyTorch forward, f32)
# ----------------------------------------------------------------------------
def reference_forward(params, fea1, fea2, *, head, att_type):
    B, C, N = fea1.shape
    M = fea2.shape[2]
    D = C // head

    def conv(w, b, x):
        return jnp.einsum("oc,bcl->bol", w, x, precision="highest") + b[None]

    def qkv(fea):
        return (
            conv(params["wq"], params["bq"], fea).reshape(B, D, head, -1),
            conv(params["wk"], params["bk"], fea).reshape(B, D, head, -1),
            conv(params["wv"], params["bv"], fea).reshape(B, D, head, -1),
        )

    q1, k1, v1 = qkv(fea1)
    q2, k2, v2 = qkv(fea2)
    scale = D**0.5
    if att_type == "self":
        s1 = jax.nn.softmax(jnp.einsum("bdhn,bdhm->bhnm", q1, k1, precision="highest") / scale, axis=-1)
        s2 = jax.nn.softmax(jnp.einsum("bdhn,bdhm->bhnm", q2, k2, precision="highest") / scale, axis=-1)
        a1 = jnp.einsum("bhnm,bdhm->bdhn", s1, v1, precision="highest")
        a2 = jnp.einsum("bhnm,bdhm->bdhn", s2, v2, precision="highest")
    else:
        s1 = jax.nn.softmax(jnp.einsum("bdhn,bdhm->bhnm", q1, k2, precision="highest") / scale, axis=-1)
        s2 = jax.nn.softmax(jnp.einsum("bdhn,bdhm->bhnm", q2, k1, precision="highest") / scale, axis=-1)
        a1 = jnp.einsum("bhnm,bdhm->bdhn", s1, v2, precision="highest")
        a2 = jnp.einsum("bhnm,bdhm->bdhn", s2, v1, precision="highest")
    a1 = conv(params["w_mh"], params["b_mh"], a1.reshape(B, C, N))
    a2 = conv(params["w_mh"], params["b_mh"], a2.reshape(B, C, M))

    def att_filter_ref(fea, add):
        x = jnp.concatenate([fea, add], axis=1)
        y = conv(params["w_a1"], params["b_a1"], x)
        mean = jnp.mean(y, axis=(0, 2), keepdims=True)
        var = jnp.mean((y - mean) ** 2, axis=(0, 2), keepdims=True)
        yn = (y - mean) / jnp.sqrt(var + 1e-5)
        yn = yn * params["bn_gamma"][None] + params["bn_beta"][None]
        yn = jnp.maximum(yn, 0.0)
        return fea + conv(params["w_a2"], params["b_a2"], yn)

    return att_filter_ref(fea1, a1), att_filter_ref(fea2, a2)


# ----------------------------------------------------------------------------
# Deterministic parameter init (shapes from attention_block.__init__)
# ----------------------------------------------------------------------------
def init_params(key, channels):
    C, C2 = channels, 2 * channels
    ks = jax.random.split(key, 12)

    def w(k, cout, cin):
        bound = 1.0 / math.sqrt(cin)
        return jax.random.uniform(k, (cout, cin), jnp.float32, -bound, bound)

    def b(k, cout, cin):
        bound = 1.0 / math.sqrt(cin)
        return jax.random.uniform(k, (cout, 1), jnp.float32, -bound, bound)

    return {
        "wq": w(ks[0], C, C), "bq": b(ks[1], C, C),
        "wk": w(ks[2], C, C), "bk": b(ks[3], C, C),
        "wv": w(ks[4], C, C), "bv": b(ks[5], C, C),
        "w_mh": w(ks[6], C, C), "b_mh": b(ks[7], C, C),
        "w_a1": w(ks[8], C2, C2), "b_a1": b(ks[9], C2, C2),
        "bn_gamma": jnp.ones((C2, 1), jnp.float32),
        "bn_beta": jnp.zeros((C2, 1), jnp.float32),
        "w_a2": w(ks[10], C, C2), "b_a2": b(ks[11], C, C2),
    }


if __name__ == "__main__":
    B, C, HEAD = 2, 32, 4
    N, M = 16, 12          # M is deliberately not a multiple of 8: exercises pad + mask path
    ATT_TYPE = "cross"

    root = jax.random.PRNGKey(0)
    k_params, k_f1, k_f2 = jax.random.split(root, 3)
    params = init_params(k_params, C)
    fea1 = jax.random.normal(k_f1, (B, C, N), jnp.float32)
    fea2 = jax.random.normal(k_f2, (B, C, M), jnp.float32)

    fwd = jax.jit(
        functools.partial(attention_block_forward, head=HEAD, att_type=ATT_TYPE)
    )
    out1, out2 = fwd(params, fea1, fea2)
    jax.block_until_ready((out1, out2))

    ref1, ref2 = reference_forward(params, fea1, fea2, head=HEAD, att_type=ATT_TYPE)

    def _errs(a, b):
        d = a.astype(jnp.float32) - b
        max_abs = float(jnp.max(jnp.abs(d)))
        rel = float(jnp.linalg.norm(d.ravel()) / jnp.linalg.norm(b.ravel()))
        return max_abs, rel

    e1, r1 = _errs(out1, ref1)
    e2, r2 = _errs(out2, ref2)
    # bf16 MXU operands + approx softmax reciprocal => bf16-level tolerances.
    assert max(r1, r2) < 3e-2 and max(e1, e2) < 2.5e-1, (e1, r1, e2, r2)
    print("KERNEL_OK")
</pallas_src>

<mosaic_0001>
module attributes {stable_mosaic.version = 11 : i64} {
  func.func @_qkv_proj_kernel(%arg0: i32, %arg1: i32, %arg2: memref<1x16x32xbf16, #tpu.memory_space<vmem>>, %arg3: memref<32x32xbf16, #tpu.memory_space<vmem>>, %arg4: memref<1x32xf32, #tpu.memory_space<vmem>>, %arg5: memref<32x64xbf16, #tpu.memory_space<vmem>>, %arg6: memref<1x64xf32, #tpu.memory_space<vmem>>, %arg7: memref<1x16x32xbf16, #tpu.memory_space<vmem>>, %arg8: memref<1x16x64xbf16, #tpu.memory_space<vmem>>) attributes {dimension_semantics = [#tpu.dimension_semantics<parallel>, #tpu.dimension_semantics<parallel>], iteration_bounds = array<i64: 2, 1>, scalar_prefetch = 0 : i64, scratch_operands = 0 : i64, tpu.core_type = #tpu.core_type<tc>, window_params = [{transform_indices = @transform_0, window_bounds = array<i64: 1, 16, 32>}, {pipeline_mode = #tpu.pipeline_mode<synchronous>, transform_indices = @transform_1, window_bounds = array<i64: 32, 32>}, {pipeline_mode = #tpu.pipeline_mode<synchronous>, transform_indices = @transform_2, window_bounds = array<i64: 1, 32>}, {pipeline_mode = #tpu.pipeline_mode<synchronous>, transform_indices = @transform_3, window_bounds = array<i64: 32, 64>}, {pipeline_mode = #tpu.pipeline_mode<synchronous>, transform_indices = @transform_4, window_bounds = array<i64: 1, 64>}, {transform_indices = @transform_5, window_bounds = array<i64: 1, 16, 32>}, {transform_indices = @transform_6, window_bounds = array<i64: 1, 16, 64>}]} {
    %c0 = arith.constant 0 : index
    %c0_0 = arith.constant 0 : index
    %c0_1 = arith.constant 0 : index
    %0 = vector.load %arg2[%c0, %c0_0, %c0_1] : memref<1x16x32xbf16, #tpu.memory_space<vmem>>, vector<1x16x32xbf16>
    %1 = vector.shape_cast %0 : vector<1x16x32xbf16> to vector<16x32xbf16>
    %c0_2 = arith.constant 0 : index
    %c0_3 = arith.constant 0 : index
    %2 = vector.load %arg3[%c0_2, %c0_3] : memref<32x32xbf16, #tpu.memory_space<vmem>>, vector<32x32xbf16>
    %cst = arith.constant dense<0.000000e+00> : vector<16x32xf32>
    %3 = tpu.matmul %1, %2, %cst {dimension_numbers = #tpu.dot_dimension_numbers<[1], [0], [0], [1], [0, 0, 1, 1], [], []>} : vector<16x32xbf16>, vector<32x32xbf16>, vector<16x32xf32> -> vector<16x32xf32>
    %c0_4 = arith.constant 0 : index
    %c0_5 = arith.constant 0 : index
    %4 = vector.load %arg4[%c0_4, %c0_5] : memref<1x32xf32, #tpu.memory_space<vmem>>, vector<1x32xf32>
    %5 = vector.broadcast %4 : vector<1x32xf32> to vector<16x32xf32>
    %6 = arith.addf %3, %5 : vector<16x32xf32>
    %7 = arith.truncf %6 : vector<16x32xf32> to vector<16x32xbf16>
    %c0_6 = arith.constant 0 : index
    %c0_7 = arith.constant 0 : index
    %c0_8 = arith.constant 0 : index
    %8 = vector.load %arg7[%c0_6, %c0_7, %c0_8] : memref<1x16x32xbf16, #tpu.memory_space<vmem>>, vector<1x16x32xbf16>
    %9 = vector.shape_cast %8 : vector<1x16x32xbf16> to vector<16x32xbf16>
    %10 = vector.shape_cast %7 : vector<16x32xbf16> to vector<1x16x32xbf16>
    tpu.vector_store %arg7[%c0_6, %c0_7, %c0_8], %10 {strides = array<i32>} : memref<1x16x32xbf16, #tpu.memory_space<vmem>>, vector<1x16x32xbf16>,
    %c0_9 = arith.constant 0 : index
    %c0_10 = arith.constant 0 : index
    %11 = vector.load %arg5[%c0_9, %c0_10] : memref<32x64xbf16, #tpu.memory_space<vmem>>, vector<32x64xbf16>
    %cst_11 = arith.constant dense<0.000000e+00> : vector<16x64xf32>
    %12 = tpu.matmul %1, %11, %cst_11 {dimension_numbers = #tpu.dot_dimension_numbers<[1], [0], [0], [1], [0, 0, 1, 1], [], []>} : vector<16x32xbf16>, vector<32x64xbf16>, vector<16x64xf32> -> vector<16x64xf32>
    %c0_12 = arith.constant 0 : index
    %c0_13 = arith.constant 0 : index
    %13 = vector.load %arg6[%c0_12, %c0_13] : memref<1x64xf32, #tpu.memory_space<vmem>>, vector<1x64xf32>
    %14 = vector.broadcast %13 : vector<1x64xf32> to vector<16x64xf32>
    %15 = arith.addf %12, %14 : vector<16x64xf32>
    %16 = arith.truncf %15 : vector<16x64xf32> to vector<16x64xbf16>
    %c0_14 = arith.constant 0 : index
    %c0_15 = arith.constant 0 : index
    %c0_16 = arith.constant 0 : index
    %17 = vector.load %arg8[%c0_14, %c0_15, %c0_16] : memref<1x16x64xbf16, #tpu.memory_space<vmem>>, vector<1x16x64xbf16>
    %18 = vector.shape_cast %17 : vector<1x16x64xbf16> to vector<16x64xbf16>
    %19 = vector.shape_cast %16 : vector<16x64xbf16> to vector<1x16x64xbf16>
    tpu.vector_store %arg8[%c0_14, %c0_15, %c0_16], %19 {strides = array<i32>} : memref<1x16x64xbf16, #tpu.memory_space<vmem>>, vector<1x16x64xbf16>,
    return
  }
  func.func @transform_0(%arg0: i32, %arg1: i32) -> (i32, i32, i32) {
    %c0_i32 = arith.constant 0 : i32
    %c0_i32_0 = arith.constant 0 : i32
    return %arg0, %arg1, %c0_i32 : i32, i32, i32
  }
  func.func @transform_1(%arg0: i32, %arg1: i32) -> (i32, i32) {
    %c0_i32 = arith.constant 0 : i32
    %c0_i32_0 = arith.constant 0 : i32
    %c0_i32_1 = arith.constant 0 : i32
    return %c0_i32, %c0_i32_0 : i32, i32
  }
  func.func @transform_2(%arg0: i32, %arg1: i32) -> (i32, i32) {
    %c0_i32 = arith.constant 0 : i32
    %c0_i32_0 = arith.constant 0 : i32
    %c0_i32_1 = arith.constant 0 : i32
    return %c0_i32, %c0_i32_0 : i32, i32
  }
  func.func @transform_3(%arg0: i32, %arg1: i32) -> (i32, i32) {
    %c0_i32 = arith.constant 0 : i32
    %c0_i32_0 = arith.constant 0 : i32
    %c0_i32_1 = arith.constant 0 : i32
    return %c0_i32, %c0_i32_0 : i32, i32
  }
  func.func @transform_4(%arg0: i32, %arg1: i32) -> (i32, i32) {
    %c0_i32 = arith.constant 0 : i32
    %c0_i32_0 = arith.constant 0 : i32
    %c0_i32_1 = arith.constant 0 : i32
    return %c0_i32, %c0_i32_0 : i32, i32
  }
  func.func @transform_5(%arg0: i32, %arg1: i32) -> (i32, i32, i32) {
    %c0_i32 = arith.constant 0 : i32
    %c0_i32_0 = arith.constant 0 : i32
    return %arg0, %arg1, %c0_i32 : i32, i32, i32
  }
  func.func @transform_6(%arg0: i32, %arg1: i32) -> (i32, i32, i32) {
    %c0_i32 = arith.constant 0 : i32
    %c0_i32_0 = arith.constant 0 : i32
    return %arg0, %arg1, %c0_i32 : i32, i32, i32
  }
}

module attributes {stable_mosaic.version = 11 : i64} {
  func.func @_attn_mh_flash_kernel(%arg0: i32, %arg1: i32, %arg2: i32, %arg3: memref<1x16x32xbf16, #tpu.memory_space<vmem>>, %arg4: memref<1x16x64xbf16, #tpu.memory_space<vmem>>, %arg5: memref<32x32xbf16, #tpu.memory_space<vmem>>, %arg6: memref<1x32xf32, #tpu.memory_space<vmem>>, %arg7: memref<1x16x32xbf16, #tpu.memory_space<vmem>>, %arg8: memref<16x32xf32, #tpu.memory_space<vmem>>, %arg9: memref<4x16x1xf32, #tpu.memory_space<vmem>>, %arg10: memref<4x16x1xf32, #tpu.memory_space<vmem>>) attributes {dimension_semantics = [#tpu.dimension_semantics<parallel>, #tpu.dimension_semantics<parallel>, #tpu.dimension_semantics<arbitrary>], iteration_bounds = array<i64: 2, 1, 1>, scalar_prefetch = 0 : i64, scratch_operands = 3 : i64, tpu.core_type = #tpu.core_type<tc>, window_params = [{transform_indices = @transform_0, window_bounds = array<i64: 1, 16, 32>}, {transform_indices = @transform_1, window_bounds = array<i64: 1, 16, 64>}, {pipeline_mode = #tpu.pipeline_mode<synchronous>, transform_indices = @transform_2, window_bounds = array<i64: 32, 32>}, {pipeline_mode = #tpu.pipeline_mode<synchronous>, transform_indices = @transform_3, window_bounds = array<i64: 1, 32>}, {transform_indices = @transform_4, window_bounds = array<i64: 1, 16, 32>}]} {
    %c0_i32 = arith.constant 0 : i32
    %0 = arith.cmpi eq, %arg2, %c0_i32 : i32
    %1 = arith.extui %0 : i1 to i32
    %c0_i32_0 = arith.constant 0 : i32
    %2 = arith.cmpi ne, %1, %c0_i32_0 : i32
    scf.if %2 {
      %cst_81 = arith.constant 0.000000e+00 : f32
      %146 = vector.broadcast %cst_81 : f32 to vector<16x32xf32>
      %c0_82 = arith.constant 0 : index
      %c0_83 = arith.constant 0 : index
      %147 = vector.load %arg8[%c0_82, %c0_83] : memref<16x32xf32, #tpu.memory_space<vmem>>, vector<16x32xf32>
      tpu.vector_store %arg8[%c0_82, %c0_83], %146 {strides = array<i32>} : memref<16x32xf32, #tpu.memory_space<vmem>>, vector<16x32xf32>,
      %cst_84 = arith.constant -1.000000e+30 : f32
      %148 = vector.broadcast %cst_84 : f32 to vector<4x16x1xf32>
      %c0_85 = arith.constant 0 : index
      %c0_86 = arith.constant 0 : index
      %c0_87 = arith.constant 0 : index
      %149 = vector.load %arg9[%c0_85, %c0_86, %c0_87] : memref<4x16x1xf32, #tpu.memory_space<vmem>>, vector<4x16x1xf32>
      tpu.vector_store %arg9[%c0_85, %c0_86, %c0_87], %148 {strides = array<i32>} : memref<4x16x1xf32, #tpu.memory_space<vmem>>, vector<4x16x1xf32>,
      %cst_88 = arith.constant 0.000000e+00 : f32
      %150 = vector.broadcast %cst_88 : f32 to vector<4x16x1xf32>
      %c0_89 = arith.constant 0 : index
      %c0_90 = arith.constant 0 : index
      %c0_91 = arith.constant 0 : index
      %151 = vector.load %arg10[%c0_89, %c0_90, %c0_91] : memref<4x16x1xf32, #tpu.memory_space<vmem>>, vector<4x16x1xf32>
      tpu.vector_store %arg10[%c0_89, %c0_90, %c0_91], %150 {strides = array<i32>} : memref<4x16x1xf32, #tpu.memory_space<vmem>>, vector<4x16x1xf32>,
    } else {
    }
    %c0 = arith.constant 0 : index
    %c0_1 = arith.constant 0 : index
    %c0_2 = arith.constant 0 : index
    %3 = vector.load %arg3[%c0, %c0_1, %c0_2] : memref<1x16x32xbf16, #tpu.memory_space<vmem>>, vector<1x16x32xbf16>
    %4 = vector.shape_cast %3 : vector<1x16x32xbf16> to vector<16x32xbf16>
    %c0_3 = arith.constant 0 : index
    %c0_4 = arith.constant 0 : index
    %c0_5 = arith.constant 0 : index
    %5 = vector.load %arg4[%c0_3, %c0_4, %c0_5] : memref<1x16x64xbf16, #tpu.memory_space<vmem>>, vector<1x16x64xbf16>
    %6 = vector.shape_cast %5 : vector<1x16x64xbf16> to vector<16x64xbf16>
    %7 = vector.extract_strided_slice %4 {offsets = [0, 0], sizes = [16, 8], strides = [1, 1]} : vector<16x32xbf16> to vector<16x8xbf16>
    %8 = vector.extract_strided_slice %6 {offsets = [0, 0], sizes = [16, 8], strides = [1, 1]} : vector<16x64xbf16> to vector<16x8xbf16>
    %9 = vector.extract_strided_slice %6 {offsets = [0, 32], sizes = [16, 8], strides = [1, 1]} : vector<16x64xbf16> to vector<16x8xbf16>
    %cst = arith.constant dense<0.000000e+00> : vector<16x16xf32>
    %10 = tpu.matmul %7, %8, %cst {dimension_numbers = #tpu.dot_dimension_numbers<[1], [1], [0], [0], [0, 0, 1, 0], [], []>} : vector<16x8xbf16>, vector<16x8xbf16>, vector<16x16xf32> -> vector<16x16xf32>
    %c0_6 = arith.constant 0 : index
    %c0_7 = arith.constant 0 : index
    %c0_8 = arith.constant 0 : index
    %11 = vector.load %arg9[%c0_6, %c0_7, %c0_8] : memref<4x16x1xf32, #tpu.memory_space<vmem>>, vector<1x16x1xf32>
    %12 = vector.shape_cast %11 : vector<1x16x1xf32> to vector<16x1xf32>
    %cst_9 = arith.constant dense<0xFF800000> : vector<16xf32>
    %13 = vector.multi_reduction <maximumf>, %10, %cst_9 [1] : vector<16x16xf32> to vector<16xf32>
    %14 = vector.shape_cast %13 : vector<16xf32> to vector<16x1xf32>
    %15 = arith.maximumf %12, %14 : vector<16x1xf32>
    %16 = arith.subf %12, %15 : vector<16x1xf32>
    %17 = math.exp %16 : vector<16x1xf32>
    %18 = vector.broadcast %15 : vector<16x1xf32> to vector<16x16xf32>
    %19 = arith.subf %10, %18 : vector<16x16xf32>
    %20 = arith.truncf %19 : vector<16x16xf32> to vector<16x16xbf16>
    %21 = math.exp %20 : vector<16x16xbf16>
    %c0_10 = arith.constant 0 : index
    %c0_11 = arith.constant 0 : index
    %c0_12 = arith.constant 0 : index
    %22 = vector.load %arg10[%c0_10, %c0_11, %c0_12] : memref<4x16x1xf32, #tpu.memory_space<vmem>>, vector<1x16x1xf32>
    %23 = vector.shape_cast %22 : vector<1x16x1xf32> to vector<16x1xf32>
    %24 = arith.mulf %17, %23 : vector<16x1xf32>
    %25 = arith.extf %21 : vector<16x16xbf16> to vector<16x16xf32>
    %cst_13 = arith.constant dense<0.000000e+00> : vector<16xf32>
    %26 = vector.multi_reduction <add>, %25, %cst_13 [1] : vector<16x16xf32> to vector<16xf32>
    %27 = vector.shape_cast %26 : vector<16xf32> to vector<16x1xf32>
    %28 = arith.addf %24, %27 : vector<16x1xf32>
    %c0_14 = arith.constant 0 : index
    %c0_15 = arith.constant 0 : index
    %c0_16 = arith.constant 0 : index
    %29 = vector.load %arg10[%c0_14, %c0_15, %c0_16] : memref<4x16x1xf32, #tpu.memory_space<vmem>>, vector<1x16x1xf32>
    %30 = vector.shape_cast %29 : vector<1x16x1xf32> to vector<16x1xf32>
    %31 = vector.shape_cast %28 : vector<16x1xf32> to vector<1x16x1xf32>
    tpu.vector_store %arg10[%c0_14, %c0_15, %c0_16], %31 {strides = array<i32>} : memref<4x16x1xf32, #tpu.memory_space<vmem>>, vector<1x16x1xf32>,
    %c0_17 = arith.constant 0 : index
    %c0_18 = arith.constant 0 : index
    %32 = vector.load %arg8[%c0_17, %c0_18] : memref<16x32xf32, #tpu.memory_space<vmem>>, vector<16x8xf32>
    %33 = vector.broadcast %17 : vector<16x1xf32> to vector<16x8xf32>
    %34 = arith.mulf %33, %32 : vector<16x8xf32>
    %cst_19 = arith.constant dense<0.000000e+00> : vector<16x8xf32>
    %35 = tpu.matmul %21, %9, %cst_19 {dimension_numbers = #tpu.dot_dimension_numbers<[1], [0], [0], [1], [0, 0, 1, 1], [], []>} : vector<16x16xbf16>, vector<16x8xbf16>, vector<16x8xf32> -> vector<16x8xf32>
    %36 = arith.addf %34, %35 : vector<16x8xf32>
    %c0_20 = arith.constant 0 : index
    %c0_21 = arith.constant 0 : index
    %37 = vector.load %arg8[%c0_20, %c0_21] : memref<16x32xf32, #tpu.memory_space<vmem>>, vector<16x8xf32>
    tpu.vector_store %arg8[%c0_20, %c0_21], %36 {strides = array<i32>} : memref<16x32xf32, #tpu.memory_space<vmem>>, vector<16x8xf32>,
    %c0_22 = arith.constant 0 : index
    %c0_23 = arith.constant 0 : index
    %c0_24 = arith.constant 0 : index
    %38 = vector.load %arg9[%c0_22, %c0_23, %c0_24] : memref<4x16x1xf32, #tpu.memory_space<vmem>>, vector<1x16x1xf32>
    %39 = vector.shape_cast %38 : vector<1x16x1xf32> to vector<16x1xf32>
    %40 = vector.shape_cast %15 : vector<16x1xf32> to vector<1x16x1xf32>
    tpu.vector_store %arg9[%c0_22, %c0_23, %c0_24], %40 {strides = array<i32>} : memref<4x16x1xf32, #tpu.memory_space<vmem>>, vector<1x16x1xf32>,
    %41 = vector.extract_strided_slice %4 {offsets = [0, 8], sizes = [16, 8], strides = [1, 1]} : vector<16x32xbf16> to vector<16x8xbf16>
    %42 = vector.extract_strided_slice %6 {offsets = [0, 8], sizes = [16, 8], strides = [1, 1]} : vector<16x64xbf16> to vector<16x8xbf16>
    %43 = vector.extract_strided_slice %6 {offsets = [0, 40], sizes = [16, 8], strides = [1, 1]} : vector<16x64xbf16> to vector<16x8xbf16>
    %cst_25 = arith.constant dense<0.000000e+00> : vector<16x16xf32>
    %44 = tpu.matmul %41, %42, %cst_25 {dimension_numbers = #tpu.dot_dimension_numbers<[1], [1], [0], [0], [0, 0, 1, 0], [], []>} : vector<16x8xbf16>, vector<16x8xbf16>, vector<16x16xf32> -> vector<16x16xf32>
    %c1 = arith.constant 1 : index
    %c0_26 = arith.constant 0 : index
    %c0_27 = arith.constant 0 : index
    %45 = vector.load %arg9[%c1, %c0_26, %c0_27] : memref<4x16x1xf32, #tpu.memory_space<vmem>>, vector<1x16x1xf32>
    %46 = vector.shape_cast %45 : vector<1x16x1xf32> to vector<16x1xf32>
    %cst_28 = arith.constant dense<0xFF800000> : vector<16xf32>
    %47 = vector.multi_reduction <maximumf>, %44, %cst_28 [1] : vector<16x16xf32> to vector<16xf32>
    %48 = vector.shape_cast %47 : vector<16xf32> to vector<16x1xf32>
    %49 = arith.maximumf %46, %48 : vector<16x1xf32>
    %50 = arith.subf %46, %49 : vector<16x1xf32>
    %51 = math.exp %50 : vector<16x1xf32>
    %52 = vector.broadcast %49 : vector<16x1xf32> to vector<16x16xf32>
    %53 = arith.subf %44, %52 : vector<16x16xf32>
    %54 = arith.truncf %53 : vector<16x16xf32> to vector<16x16xbf16>
    %55 = math.exp %54 : vector<16x16xbf16>
    %c1_29 = arith.constant 1 : index
    %c0_30 = arith.constant 0 : index
    %c0_31 = arith.constant 0 : index
    %56 = vector.load %arg10[%c1_29, %c0_30, %c0_31] : memref<4x16x1xf32, #tpu.memory_space<vmem>>, vector<1x16x1xf32>
    %57 = vector.shape_cast %56 : vector<1x16x1xf32> to vector<16x1xf32>
    %58 = arith.mulf %51, %57 : vector<16x1xf32>
    %59 = arith.extf %55 : vector<16x16xbf16> to vector<16x16xf32>
    %cst_32 = arith.constant dense<0.000000e+00> : vector<16xf32>
    %60 = vector.multi_reduction <add>, %59, %cst_32 [1] : vector<16x16xf32> to vector<16xf32>
    %61 = vector.shape_cast %60 : vector<16xf32> to vector<16x1xf32>
    %62 = arith.addf %58, %61 : vector<16x1xf32>
    %c1_33 = arith.constant 1 : index
    %c0_34 = arith.constant 0 : index
    %c0_35 = arith.constant 0 : index
    %63 = vector.load %arg10[%c1_33, %c0_34, %c0_35] : memref<4x16x1xf32, #tpu.memory_space<vmem>>, vector<1x16x1xf32>
    %64 = vector.shape_cast %63 : vector<1x16x1xf32> to vector<16x1xf32>
    %65 = vector.shape_cast %62 : vector<16x1xf32> to vector<1x16x1xf32>
    tpu.vector_store %arg10[%c1_33, %c0_34, %c0_35], %65 {strides = array<i32>} : memref<4x16x1xf32, #tpu.memory_space<vmem>>, vector<1x16x1xf32>,
    %c0_36 = arith.constant 0 : index
    %c8 = arith.constant 8 : index
    %66 = vector.load %arg8[%c0_36, %c8] : memref<16x32xf32, #tpu.memory_space<vmem>>, vector<16x8xf32>
    %67 = vector.broadcast %51 : vector<16x1xf32> to vector<16x8xf32>
    %68 = arith.mulf %67, %66 : vector<16x8xf32>
    %cst_37 = arith.constant dense<0.000000e+00> : vector<16x8xf32>
    %69 = tpu.matmul %55, %43, %cst_37 {dimension_numbers = #tpu.dot_dimension_numbers<[1], [0], [0], [1], [0, 0, 1, 1], [], []>} : vector<16x16xbf16>, vector<16x8xbf16>, vector<16x8xf32> -> vector<16x8xf32>
    %70 = arith.addf %68, %69 : vector<16x8xf32>
    %c0_38 = arith.constant 0 : index
    %c8_39 = arith.constant 8 : index
    %71 = vector.load %arg8[%c0_38, %c8_39] : memref<16x32xf32, #tpu.memory_space<vmem>>, vector<16x8xf32>
    tpu.vector_store %arg8[%c0_38, %c8_39], %70 {strides = array<i32>} : memref<16x32xf32, #tpu.memory_space<vmem>>, vector<16x8xf32>,
    %c1_40 = arith.constant 1 : index
    %c0_41 = arith.constant 0 : index
    %c0_42 = arith.constant 0 : index
    %72 = vector.load %arg9[%c1_40, %c0_41, %c0_42] : memref<4x16x1xf32, #tpu.memory_space<vmem>>, vector<1x16x1xf32>
    %73 = vector.shape_cast %72 : vector<1x16x1xf32> to vector<16x1xf32>
    %74 = vector.shape_cast %49 : vector<16x1xf32> to vector<1x16x1xf32>
    tpu.vector_store %arg9[%c1_40, %c0_41, %c0_42], %74 {strides = array<i32>} : memref<4x16x1xf32, #tpu.memory_space<vmem>>, vector<1x16x1xf32>,
    %75 = vector.extract_strided_slice %4 {offsets = [0, 16], sizes = [16, 8], strides = [1, 1]} : vector<16x32xbf16> to vector<16x8xbf16>
    %76 = vector.extract_strided_slice %6 {offsets = [0, 16], sizes = [16, 8], strides = [1, 1]} : vector<16x64xbf16> to vector<16x8xbf16>
    %77 = vector.extract_strided_slice %6 {offsets = [0, 48], sizes = [16, 8], strides = [1, 1]} : vector<16x64xbf16> to vector<16x8xbf16>
    %cst_43 = arith.constant dense<0.000000e+00> : vector<16x16xf32>
    %78 = tpu.matmul %75, %76, %cst_43 {dimension_numbers = #tpu.dot_dimension_numbers<[1], [1], [0], [0], [0, 0, 1, 0], [], []>} : vector<16x8xbf16>, vector<16x8xbf16>, vector<16x16xf32> -> vector<16x16xf32>
    %c2 = arith.constant 2 : index
    %c0_44 = arith.constant 0 : index
    %c0_45 = arith.constant 0 : index
    %79 = vector.load %arg9[%c2, %c0_44, %c0_45] : memref<4x16x1xf32, #tpu.memory_space<vmem>>, vector<1x16x1xf32>
    %80 = vector.shape_cast %79 : vector<1x16x1xf32> to vector<16x1xf32>
    %cst_46 = arith.constant dense<0xFF800000> : vector<16xf32>
    %81 = vector.multi_reduction <maximumf>, %78, %cst_46 [1] : vector<16x16xf32> to vector<16xf32>
    %82 = vector.shape_cast %81 : vector<16xf32> to vector<16x1xf32>
    %83 = arith.maximumf %80, %82 : vector<16x1xf32>
    %84 = arith.subf %80, %83 : vector<16x1xf32>
    %85 = math.exp %84 : vector<16x1xf32>
    %86 = vector.broadcast %83 : vector<16x1xf32> to vector<16x16xf32>
    %87 = arith.subf %78, %86 : vector<16x16xf32>
    %88 = arith.truncf %87 : vector<16x16xf32> to vector<16x16xbf16>
    %89 = math.exp %88 : vector<16x16xbf16>
    %c2_47 = arith.constant 2 : index
    %c0_48 = arith.constant 0 : index
    %c0_49 = arith.constant 0 : index
    %90 = vector.load %arg10[%c2_47, %c0_48, %c0_49] : memref<4x16x1xf32, #tpu.memory_space<vmem>>, vector<1x16x1xf32>
    %91 = vector.shape_cast %90 : vector<1x16x1xf32> to vector<16x1xf32>
    %92 = arith.mulf %85, %91 : vector<16x1xf32>
    %93 = arith.extf %89 : vector<16x16xbf16> to vector<16x16xf32>
    %cst_50 = arith.constant dense<0.000000e+00> : vector<16xf32>
    %94 = vector.multi_reduction <add>, %93, %cst_50 [1] : vector<16x16xf32> to vector<16xf32>
    %95 = vector.shape_cast %94 : vector<16xf32> to vector<16x1xf32>
    %96 = arith.addf %92, %95 : vector<16x1xf32>
    %c2_51 = arith.constant 2 : index
    %c0_52 = arith.constant 0 : index
    %c0_53 = arith.constant 0 : index
    %97 = vector.load %arg10[%c2_51, %c0_52, %c0_53] : memref<4x16x1xf32, #tpu.memory_space<vmem>>, vector<1x16x1xf32>
    %98 = vector.shape_cast %97 : vector<1x16x1xf32> to vector<16x1xf32>
    %99 = vector.shape_cast %96 : vector<16x1xf32> to vector<1x16x1xf32>
    tpu.vector_store %arg10[%c2_51, %c0_52, %c0_53], %99 {strides = array<i32>} : memref<4x16x1xf32, #tpu.memory_space<vmem>>, vector<1x16x1xf32>,
    %c0_54 = arith.constant 0 : index
    %c16 = arith.constant 16 : index
    %100 = vector.load %arg8[%c0_54, %c16] : memref<16x32xf32, #tpu.memory_space<vmem>>, vector<16x8xf32>
    %101 = vector.broadcast %85 : vector<16x1xf32> to vector<16x8xf32>
    %102 = arith.mulf %101, %100 : vector<16x8xf32>
    %cst_55 = arith.constant dense<0.000000e+00> : vector<16x8xf32>
    %103 = tpu.matmul %89, %77, %cst_55 {dimension_numbers = #tpu.dot_dimension_numbers<[1], [0], [0], [1], [0, 0, 1, 1], [], []>} : vector<16x16xbf16>, vector<16x8xbf16>, vector<16x8xf32> -> vector<16x8xf32>
    %104 = arith.addf %102, %103 : vector<16x8xf32>
    %c0_56 = arith.constant 0 : index
    %c16_57 = arith.constant 16 : index
    %105 = vector.load %arg8[%c0_56, %c16_57] : memref<16x32xf32, #tpu.memory_space<vmem>>, vector<16x8xf32>
    tpu.vector_store %arg8[%c0_56, %c16_57], %104 {strides = array<i32>} : memref<16x32xf32, #tpu.memory_space<vmem>>, vector<16x8xf32>,
    %c2_58 = arith.constant 2 : index
    %c0_59 = arith.constant 0 : index
    %c0_60 = arith.constant 0 : index
    %106 = vector.load %arg9[%c2_58, %c0_59, %c0_60] : memref<4x16x1xf32, #tpu.memory_space<vmem>>, vector<1x16x1xf32>
    %107 = vector.shape_cast %106 : vector<1x16x1xf32> to vector<16x1xf32>
    %108 = vector.shape_cast %83 : vector<16x1xf32> to vector<1x16x1xf32>
    tpu.vector_store %arg9[%c2_58, %c0_59, %c0_60], %108 {strides = array<i32>} : memref<4x16x1xf32, #tpu.memory_space<vmem>>, vector<1x16x1xf32>,
    %109 = vector.extract_strided_slice %4 {offsets = [0, 24], sizes = [16, 8], strides = [1, 1]} : vector<16x32xbf16> to vector<16x8xbf16>
    %110 = vector.extract_strided_slice %6 {offsets = [0, 24], sizes = [16, 8], strides = [1, 1]} : vector<16x64xbf16> to vector<16x8xbf16>
    %111 = vector.extract_strided_slice %6 {offsets = [0, 56], sizes = [16, 8], strides = [1, 1]} : vector<16x64xbf16> to vector<16x8xbf16>
    %cst_61 = arith.constant dense<0.000000e+00> : vector<16x16xf32>
    %112 = tpu.matmul %109, %110, %cst_61 {dimension_numbers = #tpu.dot_dimension_numbers<[1], [1], [0], [0], [0, 0, 1, 0], [], []>} : vector<16x8xbf16>, vector<16x8xbf16>, vector<16x16xf32> -> vector<16x16xf32>
    %c3 = arith.constant 3 : index
    %c0_62 = arith.constant 0 : index
    %c0_63 = arith.constant 0 : index
    %113 = vector.load %arg9[%c3, %c0_62, %c0_63] : memref<4x16x1xf32, #tpu.memory_space<vmem>>, vector<1x16x1xf32>
    %114 = vector.shape_cast %113 : vector<1x16x1xf32> to vector<16x1xf32>
    %cst_64 = arith.constant dense<0xFF800000> : vector<16xf32>
    %115 = vector.multi_reduction <maximumf>, %112, %cst_64 [1] : vector<16x16xf32> to vector<16xf32>
    %116 = vector.shape_cast %115 : vector<16xf32> to vector<16x1xf32>
    %117 = arith.maximumf %114, %116 : vector<16x1xf32>
    %118 = arith.subf %114, %117 : vector<16x1xf32>
    %119 = math.exp %118 : vector<16x1xf32>
    %120 = vector.broadcast %117 : vector<16x1xf32> to vector<16x16xf32>
    %121 = arith.subf %112, %120 : vector<16x16xf32>
    %122 = arith.truncf %121 : vector<16x16xf32> to vector<16x16xbf16>
    %123 = math.exp %122 : vector<16x16xbf16>
    %c3_65 = arith.constant 3 : index
    %c0_66 = arith.constant 0 : index
    %c0_67 = arith.constant 0 : index
    %124 = vector.load %arg10[%c3_65, %c0_66, %c0_67] : memref<4x16x1xf32, #tpu.memory_space<vmem>>, vector<1x16x1xf32>
    %125 = vector.shape_cast %124 : vector<1x16x1xf32> to vector<16x1xf32>
    %126 = arith.mulf %119, %125 : vector<16x1xf32>
    %127 = arith.extf %123 : vector<16x16xbf16> to vector<16x16xf32>
    %cst_68 = arith.constant dense<0.000000e+00> : vector<16xf32>
    %128 = vector.multi_reduction <add>, %127, %cst_68 [1] : vector<16x16xf32> to vector<16xf32>
    %129 = vector.shape_cast %128 : vector<16xf32> to vector<16x1xf32>
    %130 = arith.addf %126, %129 : vector<16x1xf32>
    %c3_69 = arith.constant 3 : index
    %c0_70 = arith.constant 0 : index
    %c0_71 = arith.constant 0 : index
    %131 = vector.load %arg10[%c3_69, %c0_70, %c0_71] : memref<4x16x1xf32, #tpu.memory_space<vmem>>, vector<1x16x1xf32>
    %132 = vector.shape_cast %131 : vector<1x16x1xf32> to vector<16x1xf32>
    %133 = vector.shape_cast %130 : vector<16x1xf32> to vector<1x16x1xf32>
    tpu.vector_store %arg10[%c3_69, %c0_70, %c0_71], %133 {strides = array<i32>} : memref<4x16x1xf32, #tpu.memory_space<vmem>>, vector<1x16x1xf32>,
    %c0_72 = arith.constant 0 : index
    %c24 = arith.constant 24 : index
    %134 = vector.load %arg8[%c0_72, %c24] : memref<16x32xf32, #tpu.memory_space<vmem>>, vector<16x8xf32>
    %135 = vector.broadcast %119 : vector<16x1xf32> to vector<16x8xf32>
    %136 = arith.mulf %135, %134 : vector<16x8xf32>
    %cst_73 = arith.constant dense<0.000000e+00> : vector<16x8xf32>
    %137 = tpu.matmul %123, %111, %cst_73 {dimension_numbers = #tpu.dot_dimension_numbers<[1], [0], [0], [1], [0, 0, 1, 1], [], []>} : vector<16x16xbf16>, vector<16x8xbf16>, vector<16x8xf32> -> vector<16x8xf32>
    %138 = arith.addf %136, %137 : vector<16x8xf32>
    %c0_74 = arith.constant 0 : index
    %c24_75 = arith.constant 24 : index
    %139 = vector.load %arg8[%c0_74, %c24_75] : memref<16x32xf32, #tpu.memory_space<vmem>>, vector<16x8xf32>
    tpu.vector_store %arg8[%c0_74, %c24_75], %138 {strides = array<i32>} : memref<16x32xf32, #tpu.memory_space<vmem>>, vector<16x8xf32>,
    %c3_76 = arith.constant 3 : index
    %c0_77 = arith.constant 0 : index
    %c0_78 = arith.constant 0 : index
    %140 = vector.load %arg9[%c3_76, %c0_77, %c0_78] : memref<4x16x1xf32, #tpu.memory_space<vmem>>, vector<1x16x1xf32>
    %141 = vector.shape_cast %140 : vector<1x16x1xf32> to vector<16x1xf32>
    %142 = vector.shape_cast %117 : vector<16x1xf32> to vector<1x16x1xf32>
    tpu.vector_store %arg9[%c3_76, %c0_77, %c0_78], %142 {strides = array<i32>} : memref<4x16x1xf32, #tpu.memory_space<vmem>>, vector<1x16x1xf32>,
    %c0_i32_79 = arith.constant 0 : i32
    %143 = arith.cmpi eq, %arg2, %c0_i32_79 : i32
    %144 = arith.extui %143 : i1 to i32
    %c0_i32_80 = arith.constant 0 : i32
    %145 = arith.cmpi ne, %144, %c0_i32_80 : i32
    scf.if %145 {
      %c0_81 = arith.constant 0 : index
      %c0_82 = arith.constant 0 : index
      %146 = vector.load %arg8[%c0_81, %c0_82] : memref<16x32xf32, #tpu.memory_space<vmem>>, vector<16x8xf32>
      %c0_83 = arith.constant 0 : index
      %c0_84 = arith.constant 0 : index
      %c0_85 = arith.constant 0 : index
      %147 = vector.load %arg10[%c0_83, %c0_84, %c0_85] : memref<4x16x1xf32, #tpu.memory_space<vmem>>, vector<1x16x1xf32>
      %148 = vector.shape_cast %147 : vector<1x16x1xf32> to vector<16x1xf32>
      %149 = tpu.reciprocal %148 {approx = true} : vector<16x1xf32> -> vector<16x1xf32>
      %150 = vector.broadcast %149 : vector<16x1xf32> to vector<16x8xf32>
      %151 = arith.mulf %146, %150 : vector<16x8xf32>
      %c0_86 = arith.constant 0 : index
      %c0_87 = arith.constant 0 : index
      %152 = vector.load %arg8[%c0_86, %c0_87] : memref<16x32xf32, #tpu.memory_space<vmem>>, vector<16x8xf32>
      tpu.vector_store %arg8[%c0_86, %c0_87], %151 {strides = array<i32>} : memref<16x32xf32, #tpu.memory_space<vmem>>, vector<16x8xf32>,
      %c0_88 = arith.constant 0 : index
      %c8_89 = arith.constant 8 : index
      %153 = vector.load %arg8[%c0_88, %c8_89] : memref<16x32xf32, #tpu.memory_space<vmem>>, vector<16x8xf32>
      %c1_90 = arith.constant 1 : index
      %c0_91 = arith.constant 0 : index
      %c0_92 = arith.constant 0 : index
      %154 = vector.load %arg10[%c1_90, %c0_91, %c0_92] : memref<4x16x1xf32, #tpu.memory_space<vmem>>, vector<1x16x1xf32>
      %155 = vector.shape_cast %154 : vector<1x16x1xf32> to vector<16x1xf32>
      %156 = tpu.reciprocal %155 {approx = true} : vector<16x1xf32> -> vector<16x1xf32>
      %157 = vector.broadcast %156 : vector<16x1xf32> to vector<16x8xf32>
      %158 = arith.mulf %153, %157 : vector<16x8xf32>
      %c0_93 = arith.constant 0 : index
      %c8_94 = arith.constant 8 : index
      %159 = vector.load %arg8[%c0_93, %c8_94] : memref<16x32xf32, #tpu.memory_space<vmem>>, vector<16x8xf32>
      tpu.vector_store %arg8[%c0_93, %c8_94], %158 {strides = array<i32>} : memref<16x32xf32, #tpu.memory_space<vmem>>, vector<16x8xf32>,
      %c0_95 = arith.constant 0 : index
      %c16_96 = arith.constant 16 : index
      %160 = vector.load %arg8[%c0_95, %c16_96] : memref<16x32xf32, #tpu.memory_space<vmem>>, vector<16x8xf32>
      %c2_97 = arith.constant 2 : index
      %c0_98 = arith.constant 0 : index
      %c0_99 = arith.constant 0 : index
      %161 = vector.load %arg10[%c2_97, %c0_98, %c0_99] : memref<4x16x1xf32, #tpu.memory_space<vmem>>, vector<1x16x1xf32>
      %162 = vector.shape_cast %161 : vector<1x16x1xf32> to vector<16x1xf32>
      %163 = tpu.reciprocal %162 {approx = true} : vector<16x1xf32> -> vector<16x1xf32>
      %164 = vector.broadcast %163 : vector<16x1xf32> to vector<16x8xf32>
      %165 = arith.mulf %160, %164 : vector<16x8xf32>
      %c0_100 = arith.constant 0 : index
      %c16_101 = arith.constant 16 : index
      %166 = vector.load %arg8[%c0_100, %c16_101] : memref<16x32xf32, #tpu.memory_space<vmem>>, vector<16x8xf32>
      tpu.vector_store %arg8[%c0_100, %c16_101], %165 {strides = array<i32>} : memref<16x32xf32, #tpu.memory_space<vmem>>, vector<16x8xf32>,
      %c0_102 = arith.constant 0 : index
      %c24_103 = arith.constant 24 : index
      %167 = vector.load %arg8[%c0_102, %c24_103] : memref<16x32xf32, #tpu.memory_space<vmem>>, vector<16x8xf32>
      %c3_104 = arith.constant 3 : index
      %c0_105 = arith.constant 0 : index
      %c0_106 = arith.constant 0 : index
      %168 = vector.load %arg10[%c3_104, %c0_105, %c0_106] : memref<4x16x1xf32, #tpu.memory_space<vmem>>, vector<1x16x1xf32>
      %169 = vector.shape_cast %168 : vector<1x16x1xf32> to vector<16x1xf32>
      %170 = tpu.reciprocal %169 {approx = true} : vector<16x1xf32> -> vector<16x1xf32>
      %171 = vector.broadcast %170 : vector<16x1xf32> to vector<16x8xf32>
      %172 = arith.mulf %167, %171 : vector<16x8xf32>
      %c0_107 = arith.constant 0 : index
      %c24_108 = arith.constant 24 : index
      %173 = vector.load %arg8[%c0_107, %c24_108] : memref<16x32xf32, #tpu.memory_space<vmem>>, vector<16x8xf32>
      tpu.vector_store %arg8[%c0_107, %c24_108], %172 {strides = array<i32>} : memref<16x32xf32, #tpu.memory_space<vmem>>, vector<16x8xf32>,
      %c0_109 = arith.constant 0 : index
      %c0_110 = arith.constant 0 : index
      %174 = vector.load %arg8[%c0_109, %c0_110] : memref<16x32xf32, #tpu.memory_space<vmem>>, vector<16x32xf32>
      %175 = arith.truncf %174 : vector<16x32xf32> to vector<16x32xbf16>
      %c0_111 = arith.constant 0 : index
      %c0_112 = arith.constant 0 : index
      %176 = vector.load %arg5[%c0_111, %c0_112] : memref<32x32xbf16, #tpu.memory_space<vmem>>, vector<32x32xbf16>
      %cst_113 = arith.constant dense<0.000000e+00> : vector<16x32xf32>
      %177 = tpu.matmul %175, %176, %cst_113 {dimension_numbers = #tpu.dot_dimension_numbers<[1], [0], [0], [1], [0, 0, 1, 1], [], []>} : vector<16x32xbf16>, vector<32x32xbf16>, vector<16x32xf32> -> vector<16x32xf32>
      %c0_114 = arith.constant 0 : index
      %c0_115 = arith.constant 0 : index
      %178 = vector.load %arg6[%c0_114, %c0_115] : memref<1x32xf32, #tpu.memory_space<vmem>>, vector<1x32xf32>
      %179 = vector.broadcast %178 : vector<1x32xf32> to vector<16x32xf32>
      %180 = arith.addf %177, %179 : vector<16x32xf32>
      %181 = arith.truncf %180 : vector<16x32xf32> to vector<16x32xbf16>
      %c0_116 = arith.constant 0 : index
      %c0_117 = arith.constant 0 : index
      %c0_118 = arith.constant 0 : index
      %182 = vector.load %arg7[%c0_116, %c0_117, %c0_118] : memref<1x16x32xbf16, #tpu.memory_space<vmem>>, vector<1x16x32xbf16>
      %183 = vector.shape_cast %182 : vector<1x16x32xbf16> to vector<16x32xbf16>
      %184 = vector.shape_cast %181 : vector<16x32xbf16> to vector<1x16x32xbf16>
      tpu.vector_store %arg7[%c0_116, %c0_117, %c0_118], %184 {strides = array<i32>} : memref<1x16x32xbf16, #tpu.memory_space<vmem>>, vector<1x16x32xbf16>,
    } else {
    }
    return
  }
  func.func @transform_0(%arg0: i32, %arg1: i32, %arg2: i32) -> (i32, i32, i32) {
    %c0_i32 = arith.constant 0 : i32
    %c0_i32_0 = arith.constant 0 : i32
    return %arg0, %arg1, %c0_i32 : i32, i32, i32
  }
  func.func @transform_1(%arg0: i32, %arg1: i32, %arg2: i32) -> (i32, i32, i32) {
    %c0_i32 = arith.constant 0 : i32
    %c0_i32_0 = arith.constant 0 : i32
    return %arg0, %arg2, %c0_i32 : i32, i32, i32
  }
  func.func @transform_2(%arg0: i32, %arg1: i32, %arg2: i32) -> (i32, i32) {
    %c0_i32 = arith.constant 0 : i32
    %c0_i32_0 = arith.constant 0 : i32
    %c0_i32_1 = arith.constant 0 : i32
    return %c0_i32, %c0_i32_0 : i32, i32
  }
  func.func @transform_3(%arg0: i32, %arg1: i32, %arg2: i32) -> (i32, i32) {
    %c0_i32 = arith.constant 0 : i32
    %c0_i32_0 = arith.constant 0 : i32
    %c0_i32_1 = arith.constant 0 : i32
    return %c0_i32, %c0_i32_0 : i32, i32
  }
  func.func @transform_4(%arg0: i32, %arg1: i32, %arg2: i32) -> (i32, i32, i32) {
    %c0_i32 = arith.constant 0 : i32
    %c0_i32_0 = arith.constant 0 : i32
    return %arg0, %arg1, %c0_i32 : i32, i32, i32
  }
}

module attributes {stable_mosaic.version = 11 : i64} {
  func.func @_attf_stats_kernel(%arg0: i32, %arg1: i32, %arg2: memref<1x16x32xbf16, #tpu.memory_space<vmem>>, %arg3: memref<1x16x32xbf16, #tpu.memory_space<vmem>>, %arg4: memref<32x64xbf16, #tpu.memory_space<vmem>>, %arg5: memref<32x64xbf16, #tpu.memory_space<vmem>>, %arg6: memref<1x64xf32, #tpu.memory_space<vmem>>, %arg7: memref<1x16x64xbf16, #tpu.memory_space<vmem>>, %arg8: memref<1x2x64xf32, #tpu.memory_space<vmem>>) attributes {dimension_semantics = [#tpu.dimension_semantics<parallel>, #tpu.dimension_semantics<arbitrary>], iteration_bounds = array<i64: 2, 1>, scalar_prefetch = 0 : i64, scratch_operands = 0 : i64, tpu.core_type = #tpu.core_type<tc>, window_params = [{transform_indices = @transform_0, window_bounds = array<i64: 1, 16, 32>}, {transform_indices = @transform_1, window_bounds = array<i64: 1, 16, 32>}, {pipeline_mode = #tpu.pipeline_mode<synchronous>, transform_indices = @transform_2, window_bounds = array<i64: 32, 64>}, {pipeline_mode = #tpu.pipeline_mode<synchronous>, transform_indices = @transform_3, window_bounds = array<i64: 32, 64>}, {pipeline_mode = #tpu.pipeline_mode<synchronous>, transform_indices = @transform_4, window_bounds = array<i64: 1, 64>}, {transform_indices = @transform_5, window_bounds = array<i64: 1, 16, 64>}, {transform_indices = @transform_6, window_bounds = array<i64: 1, 2, 64>}]} {
    %c0 = arith.constant 0 : index
    %c0_0 = arith.constant 0 : index
    %c0_1 = arith.constant 0 : index
    %0 = vector.load %arg2[%c0, %c0_0, %c0_1] : memref<1x16x32xbf16, #tpu.memory_space<vmem>>, vector<1x16x32xbf16>
    %1 = vector.shape_cast %0 : vector<1x16x32xbf16> to vector<16x32xbf16>
    %c0_2 = arith.constant 0 : index
    %c0_3 = arith.constant 0 : index
    %2 = vector.load %arg4[%c0_2, %c0_3] : memref<32x64xbf16, #tpu.memory_space<vmem>>, vector<32x64xbf16>
    %cst = arith.constant dense<0.000000e+00> : vector<16x64xf32>
    %3 = tpu.matmul %1, %2, %cst {dimension_numbers = #tpu.dot_dimension_numbers<[1], [0], [0], [1], [0, 0, 1, 1], [], []>} : vector<16x32xbf16>, vector<32x64xbf16>, vector<16x64xf32> -> vector<16x64xf32>
    %c0_4 = arith.constant 0 : index
    %c0_5 = arith.constant 0 : index
    %c0_6 = arith.constant 0 : index
    %4 = vector.load %arg3[%c0_4, %c0_5, %c0_6] : memref<1x16x32xbf16, #tpu.memory_space<vmem>>, vector<1x16x32xbf16>
    %5 = vector.shape_cast %4 : vector<1x16x32xbf16> to vector<16x32xbf16>
    %c0_7 = arith.constant 0 : index
    %c0_8 = arith.constant 0 : index
    %6 = vector.load %arg5[%c0_7, %c0_8] : memref<32x64xbf16, #tpu.memory_space<vmem>>, vector<32x64xbf16>
    %cst_9 = arith.constant dense<0.000000e+00> : vector<16x64xf32>
    %7 = tpu.matmul %5, %6, %cst_9 {dimension_numbers = #tpu.dot_dimension_numbers<[1], [0], [0], [1], [0, 0, 1, 1], [], []>} : vector<16x32xbf16>, vector<32x64xbf16>, vector<16x64xf32> -> vector<16x64xf32>
    %8 = arith.addf %3, %7 : vector<16x64xf32>
    %c0_10 = arith.constant 0 : index
    %c0_11 = arith.constant 0 : index
    %9 = vector.load %arg6[%c0_10, %c0_11] : memref<1x64xf32, #tpu.memory_space<vmem>>, vector<1x64xf32>
    %10 = vector.broadcast %9 : vector<1x64xf32> to vector<16x64xf32>
    %11 = arith.addf %8, %10 : vector<16x64xf32>
    %12 = arith.truncf %11 : vector<16x64xf32> to vector<16x64xbf16>
    %c0_12 = arith.constant 0 : index
    %c0_13 = arith.constant 0 : index
    %c0_14 = arith.constant 0 : index
    %13 = vector.load %arg7[%c0_12, %c0_13, %c0_14] : memref<1x16x64xbf16, #tpu.memory_space<vmem>>, vector<1x16x64xbf16>
    %14 = vector.shape_cast %13 : vector<1x16x64xbf16> to vector<16x64xbf16>
    %15 = vector.shape_cast %12 : vector<16x64xbf16> to vector<1x16x64xbf16>
    tpu.vector_store %arg7[%c0_12, %c0_13, %c0_14], %15 {strides = array<i32>} : memref<1x16x64xbf16, #tpu.memory_space<vmem>>, vector<1x16x64xbf16>,
    %c0_i32 = arith.constant 0 : i32
    %16 = arith.cmpi eq, %arg1, %c0_i32 : i32
    %17 = arith.extui %16 : i1 to i32
    %c0_i32_15 = arith.constant 0 : i32
    %18 = arith.cmpi ne, %17, %c0_i32_15 : i32
    scf.if %18 {
      %cst_25 = arith.constant 0.000000e+00 : f32
      %41 = vector.broadcast %cst_25 : f32 to vector<2x64xf32>
      %c0_26 = arith.constant 0 : index
      %c0_27 = arith.constant 0 : index
      %c0_28 = arith.constant 0 : index
      %42 = vector.load %arg8[%c0_26, %c0_27, %c0_28] : memref<1x2x64xf32, #tpu.memory_space<vmem>>, vector<1x2x64xf32>
      %43 = vector.shape_cast %42 : vector<1x2x64xf32> to vector<2x64xf32>
      %44 = vector.shape_cast %41 : vector<2x64xf32> to vector<1x2x64xf32>
      tpu.vector_store %arg8[%c0_26, %c0_27, %c0_28], %44 {strides = array<i32>} : memref<1x2x64xf32, #tpu.memory_space<vmem>>, vector<1x2x64xf32>,
    } else {
    }
    %c16_i32 = arith.constant 16 : i32
    %19 = arith.muli %arg1, %c16_i32 : i32
    %20 = tpu.iota {dimensions = array<i32: 0>} : vector<16x1xi32>
    %21 = vector.broadcast %19 : i32 to vector<16x1xi32>
    %22 = arith.addi %21, %20 : vector<16x1xi32>
    %c12_i32 = arith.constant 12 : i32
    %23 = vector.broadcast %c12_i32 : i32 to vector<16x1xi32>
    %24 = arith.cmpi slt, %22, %23 : vector<16x1xi32>
    %cst_16 = arith.constant 0.000000e+00 : f32
    %25 = vector.shape_cast %24 : vector<16x1xi1> to vector<16x1xi1>
    %26 = vector.broadcast %25 : vector<16x1xi1> to vector<16x64xi1>
    %27 = vector.broadcast %cst_16 : f32 to vector<16x64xf32>
    %28 = arith.select %26, %11, %27 : vector<16x64xi1>, vector<16x64xf32>
    %cst_17 = arith.constant dense<0.000000e+00> : vector<64xf32>
    %29 = vector.multi_reduction <add>, %28, %cst_17 [0] : vector<16x64xf32> to vector<64xf32>
    %30 = vector.shape_cast %29 : vector<64xf32> to vector<1x64xf32>
    %31 = arith.mulf %28, %28 : vector<16x64xf32>
    %cst_18 = arith.constant dense<0.000000e+00> : vector<64xf32>
    %32 = vector.multi_reduction <add>, %31, %cst_18 [0] : vector<16x64xf32> to vector<64xf32>
    %33 = vector.shape_cast %32 : vector<64xf32> to vector<1x64xf32>
    %c0_19 = arith.constant 0 : index
    %c0_20 = arith.constant 0 : index
    %c0_21 = arith.constant 0 : index
    %34 = vector.load %arg8[%c0_19, %c0_20, %c0_21] : memref<1x2x64xf32, #tpu.memory_space<vmem>>, vector<1x2x64xf32>
    %35 = vector.shape_cast %34 : vector<1x2x64xf32> to vector<2x64xf32>
    %36 = tpu.concatenate %30, %33 in 0 : vector<1x64xf32>, vector<1x64xf32> -> vector<2x64xf32>
    %37 = arith.addf %35, %36 : vector<2x64xf32>
    %c0_22 = arith.constant 0 : index
    %c0_23 = arith.constant 0 : index
    %c0_24 = arith.constant 0 : index
    %38 = vector.load %arg8[%c0_22, %c0_23, %c0_24] : memref<1x2x64xf32, #tpu.memory_space<vmem>>, vector<1x2x64xf32>
    %39 = vector.shape_cast %38 : vector<1x2x64xf32> to vector<2x64xf32>
    %40 = vector.shape_cast %37 : vector<2x64xf32> to vector<1x2x64xf32>
    tpu.vector_store %arg8[%c0_22, %c0_23, %c0_24], %40 {strides = array<i32>} : memref<1x2x64xf32, #tpu.memory_space<vmem>>, vector<1x2x64xf32>,
    return
  }
  func.func @transform_0(%arg0: i32, %arg1: i32) -> (i32, i32, i32) {
    %c0_i32 = arith.constant 0 : i32
    %c0_i32_0 = arith.constant 0 : i32
    return %arg0, %arg1, %c0_i32 : i32, i32, i32
  }
  func.func @transform_1(%arg0: i32, %arg1: i32) -> (i32, i32, i32) {
    %c0_i32 = arith.constant 0 : i32
    %c0_i32_0 = arith.constant 0 : i32
    return %arg0, %arg1, %c0_i32 : i32, i32, i32
  }
  func.func @transform_2(%arg0: i32, %arg1: i32) -> (i32, i32) {
    %c0_i32 = arith.constant 0 : i32
    %c0_i32_0 = arith.constant 0 : i32
    %c0_i32_1 = arith.constant 0 : i32
    return %c0_i32, %c0_i32_0 : i32, i32
  }
  func.func @transform_3(%arg0: i32, %arg1: i32) -> (i32, i32) {
    %c0_i32 = arith.constant 0 : i32
    %c0_i32_0 = arith.constant 0 : i32
    %c0_i32_1 = arith.constant 0 : i32
    return %c0_i32, %c0_i32_0 : i32, i32
  }
  func.func @transform_4(%arg0: i32, %arg1: i32) -> (i32, i32) {
    %c0_i32 = arith.constant 0 : i32
    %c0_i32_0 = arith.constant 0 : i32
    %c0_i32_1 = arith.constant 0 : i32
    return %c0_i32, %c0_i32_0 : i32, i32
  }
  func.func @transform_5(%arg0: i32, %arg1: i32) -> (i32, i32, i32) {
    %c0_i32 = arith.constant 0 : i32
    %c0_i32_0 = arith.constant 0 : i32
    return %arg0, %arg1, %c0_i32 : i32, i32, i32
  }
  func.func @transform_6(%arg0: i32, %arg1: i32) -> (i32, i32, i32) {
    %c0_i32 = arith.constant 0 : i32
    %c0_i32_0 = arith.constant 0 : i32
    %c0_i32_1 = arith.constant 0 : i32
    return %arg0, %c0_i32, %c0_i32_0 : i32, i32, i32
  }
}

module attributes {stable_mosaic.version = 11 : i64} {
  func.func @_attn_mh_flash_kernel(%arg0: i32, %arg1: i32, %arg2: i32, %arg3: memref<1x16x32xbf16, #tpu.memory_space<vmem>>, %arg4: memref<1x16x64xbf16, #tpu.memory_space<vmem>>, %arg5: memref<32x32xbf16, #tpu.memory_space<vmem>>, %arg6: memref<1x32xf32, #tpu.memory_space<vmem>>, %arg7: memref<1x16x32xbf16, #tpu.memory_space<vmem>>, %arg8: memref<16x32xf32, #tpu.memory_space<vmem>>, %arg9: memref<4x16x1xf32, #tpu.memory_space<vmem>>, %arg10: memref<4x16x1xf32, #tpu.memory_space<vmem>>) attributes {dimension_semantics = [#tpu.dimension_semantics<parallel>, #tpu.dimension_semantics<parallel>, #tpu.dimension_semantics<arbitrary>], iteration_bounds = array<i64: 2, 1, 1>, scalar_prefetch = 0 : i64, scratch_operands = 3 : i64, tpu.core_type = #tpu.core_type<tc>, window_params = [{transform_indices = @transform_0, window_bounds = array<i64: 1, 16, 32>}, {transform_indices = @transform_1, window_bounds = array<i64: 1, 16, 64>}, {pipeline_mode = #tpu.pipeline_mode<synchronous>, transform_indices = @transform_2, window_bounds = array<i64: 32, 32>}, {pipeline_mode = #tpu.pipeline_mode<synchronous>, transform_indices = @transform_3, window_bounds = array<i64: 1, 32>}, {transform_indices = @transform_4, window_bounds = array<i64: 1, 16, 32>}]} {
    %c0_i32 = arith.constant 0 : i32
    %0 = arith.cmpi eq, %arg2, %c0_i32 : i32
    %1 = arith.extui %0 : i1 to i32
    %c0_i32_0 = arith.constant 0 : i32
    %2 = arith.cmpi ne, %1, %c0_i32_0 : i32
    scf.if %2 {
      %cst_85 = arith.constant 0.000000e+00 : f32
      %168 = vector.broadcast %cst_85 : f32 to vector<16x32xf32>
      %c0_86 = arith.constant 0 : index
      %c0_87 = arith.constant 0 : index
      %169 = vector.load %arg8[%c0_86, %c0_87] : memref<16x32xf32, #tpu.memory_space<vmem>>, vector<16x32xf32>
      tpu.vector_store %arg8[%c0_86, %c0_87], %168 {strides = array<i32>} : memref<16x32xf32, #tpu.memory_space<vmem>>, vector<16x32xf32>,
      %cst_88 = arith.constant -1.000000e+30 : f32
      %170 = vector.broadcast %cst_88 : f32 to vector<4x16x1xf32>
      %c0_89 = arith.constant 0 : index
      %c0_90 = arith.constant 0 : index
      %c0_91 = arith.constant 0 : index
      %171 = vector.load %arg9[%c0_89, %c0_90, %c0_91] : memref<4x16x1xf32, #tpu.memory_space<vmem>>, vector<4x16x1xf32>
      tpu.vector_store %arg9[%c0_89, %c0_90, %c0_91], %170 {strides = array<i32>} : memref<4x16x1xf32, #tpu.memory_space<vmem>>, vector<4x16x1xf32>,
      %cst_92 = arith.constant 0.000000e+00 : f32
      %172 = vector.broadcast %cst_92 : f32 to vector<4x16x1xf32>
      %c0_93 = arith.constant 0 : index
      %c0_94 = arith.constant 0 : index
      %c0_95 = arith.constant 0 : index
      %173 = vector.load %arg10[%c0_93, %c0_94, %c0_95] : memref<4x16x1xf32, #tpu.memory_space<vmem>>, vector<4x16x1xf32>
      tpu.vector_store %arg10[%c0_93, %c0_94, %c0_95], %172 {strides = array<i32>} : memref<4x16x1xf32, #tpu.memory_space<vmem>>, vector<4x16x1xf32>,
    } else {
    }
    %c0 = arith.constant 0 : index
    %c0_1 = arith.constant 0 : index
    %c0_2 = arith.constant 0 : index
    %3 = vector.load %arg3[%c0, %c0_1, %c0_2] : memref<1x16x32xbf16, #tpu.memory_space<vmem>>, vector<1x16x32xbf16>
    %4 = vector.shape_cast %3 : vector<1x16x32xbf16> to vector<16x32xbf16>
    %c0_3 = arith.constant 0 : index
    %c0_4 = arith.constant 0 : index
    %c0_5 = arith.constant 0 : index
    %5 = vector.load %arg4[%c0_3, %c0_4, %c0_5] : memref<1x16x64xbf16, #tpu.memory_space<vmem>>, vector<1x16x64xbf16>
    %6 = vector.shape_cast %5 : vector<1x16x64xbf16> to vector<16x64xbf16>
    %c16_i32 = arith.constant 16 : i32
    %7 = arith.muli %arg2, %c16_i32 : i32
    %8 = tpu.iota {dimensions = array<i32: 1>} : vector<1x16xi32>
    %9 = vector.broadcast %7 : i32 to vector<1x16xi32>
    %10 = arith.addi %9, %8 : vector<1x16xi32>
    %c12_i32 = arith.constant 12 : i32
    %11 = vector.broadcast %c12_i32 : i32 to vector<1x16xi32>
    %12 = arith.cmpi slt, %10, %11 : vector<1x16xi32>
    %13 = vector.extract_strided_slice %4 {offsets = [0, 0], sizes = [16, 8], strides = [1, 1]} : vector<16x32xbf16> to vector<16x8xbf16>
    %14 = vector.extract_strided_slice %6 {offsets = [0, 0], sizes = [16, 8], strides = [1, 1]} : vector<16x64xbf16> to vector<16x8xbf16>
    %15 = vector.extract_strided_slice %6 {offsets = [0, 32], sizes = [16, 8], strides = [1, 1]} : vector<16x64xbf16> to vector<16x8xbf16>
    %cst = arith.constant dense<0.000000e+00> : vector<16x16xf32>
    %16 = tpu.matmul %13, %14, %cst {dimension_numbers = #tpu.dot_dimension_numbers<[1], [1], [0], [0], [0, 0, 1, 0], [], []>} : vector<16x8xbf16>, vector<16x8xbf16>, vector<16x16xf32> -> vector<16x16xf32>
    %cst_6 = arith.constant -1.000000e+30 : f32
    %17 = vector.shape_cast %12 : vector<1x16xi1> to vector<1x16xi1>
    %18 = vector.broadcast %17 : vector<1x16xi1> to vector<16x16xi1>
    %19 = vector.broadcast %cst_6 : f32 to vector<16x16xf32>
    %20 = arith.select %18, %16, %19 : vector<16x16xi1>, vector<16x16xf32>
    %c0_7 = arith.constant 0 : index
    %c0_8 = arith.constant 0 : index
    %c0_9 = arith.constant 0 : index
    %21 = vector.load %arg9[%c0_7, %c0_8, %c0_9] : memref<4x16x1xf32, #tpu.memory_space<vmem>>, vector<1x16x1xf32>
    %22 = vector.shape_cast %21 : vector<1x16x1xf32> to vector<16x1xf32>
    %cst_10 = arith.constant dense<0xFF800000> : vector<16xf32>
    %23 = vector.multi_reduction <maximumf>, %20, %cst_10 [1] : vector<16x16xf32> to vector<16xf32>
    %24 = vector.shape_cast %23 : vector<16xf32> to vector<16x1xf32>
    %25 = arith.maximumf %22, %24 : vector<16x1xf32>
    %26 = arith.subf %22, %25 : vector<16x1xf32>
    %27 = math.exp %26 : vector<16x1xf32>
    %28 = vector.broadcast %25 : vector<16x1xf32> to vector<16x16xf32>
    %29 = arith.subf %20, %28 : vector<16x16xf32>
    %30 = arith.truncf %29 : vector<16x16xf32> to vector<16x16xbf16>
    %31 = math.exp %30 : vector<16x16xbf16>
    %c0_11 = arith.constant 0 : index
    %c0_12 = arith.constant 0 : index
    %c0_13 = arith.constant 0 : index
    %32 = vector.load %arg10[%c0_11, %c0_12, %c0_13] : memref<4x16x1xf32, #tpu.memory_space<vmem>>, vector<1x16x1xf32>
    %33 = vector.shape_cast %32 : vector<1x16x1xf32> to vector<16x1xf32>
    %34 = arith.mulf %27, %33 : vector<16x1xf32>
    %35 = arith.extf %31 : vector<16x16xbf16> to vector<16x16xf32>
    %cst_14 = arith.constant dense<0.000000e+00> : vector<16xf32>
    %36 = vector.multi_reduction <add>, %35, %cst_14 [1] : vector<16x16xf32> to vector<16xf32>
    %37 = vector.shape_cast %36 : vector<16xf32> to vector<16x1xf32>
    %38 = arith.addf %34, %37 : vector<16x1xf32>
    %c0_15 = arith.constant 0 : index
    %c0_16 = arith.constant 0 : index
    %c0_17 = arith.constant 0 : index
    %39 = vector.load %arg10[%c0_15, %c0_16, %c0_17] : memref<4x16x1xf32, #tpu.memory_space<vmem>>, vector<1x16x1xf32>
    %40 = vector.shape_cast %39 : vector<1x16x1xf32> to vector<16x1xf32>
    %41 = vector.shape_cast %38 : vector<16x1xf32> to vector<1x16x1xf32>
    tpu.vector_store %arg10[%c0_15, %c0_16, %c0_17], %41 {strides = array<i32>} : memref<4x16x1xf32, #tpu.memory_space<vmem>>, vector<1x16x1xf32>,
    %c0_18 = arith.constant 0 : index
    %c0_19 = arith.constant 0 : index
    %42 = vector.load %arg8[%c0_18, %c0_19] : memref<16x32xf32, #tpu.memory_space<vmem>>, vector<16x8xf32>
    %43 = vector.broadcast %27 : vector<16x1xf32> to vector<16x8xf32>
    %44 = arith.mulf %43, %42 : vector<16x8xf32>
    %cst_20 = arith.constant dense<0.000000e+00> : vector<16x8xf32>
    %45 = tpu.matmul %31, %15, %cst_20 {dimension_numbers = #tpu.dot_dimension_numbers<[1], [0], [0], [1], [0, 0, 1, 1], [], []>} : vector<16x16xbf16>, vector<16x8xbf16>, vector<16x8xf32> -> vector<16x8xf32>
    %46 = arith.addf %44, %45 : vector<16x8xf32>
    %c0_21 = arith.constant 0 : index
    %c0_22 = arith.constant 0 : index
    %47 = vector.load %arg8[%c0_21, %c0_22] : memref<16x32xf32, #tpu.memory_space<vmem>>, vector<16x8xf32>
    tpu.vector_store %arg8[%c0_21, %c0_22], %46 {strides = array<i32>} : memref<16x32xf32, #tpu.memory_space<vmem>>, vector<16x8xf32>,
    %c0_23 = arith.constant 0 : index
    %c0_24 = arith.constant 0 : index
    %c0_25 = arith.constant 0 : index
    %48 = vector.load %arg9[%c0_23, %c0_24, %c0_25] : memref<4x16x1xf32, #tpu.memory_space<vmem>>, vector<1x16x1xf32>
    %49 = vector.shape_cast %48 : vector<1x16x1xf32> to vector<16x1xf32>
    %50 = vector.shape_cast %25 : vector<16x1xf32> to vector<1x16x1xf32>
    tpu.vector_store %arg9[%c0_23, %c0_24, %c0_25], %50 {strides = array<i32>} : memref<4x16x1xf32, #tpu.memory_space<vmem>>, vector<1x16x1xf32>,
    %51 = vector.extract_strided_slice %4 {offsets = [0, 8], sizes = [16, 8], strides = [1, 1]} : vector<16x32xbf16> to vector<16x8xbf16>
    %52 = vector.extract_strided_slice %6 {offsets = [0, 8], sizes = [16, 8], strides = [1, 1]} : vector<16x64xbf16> to vector<16x8xbf16>
    %53 = vector.extract_strided_slice %6 {offsets = [0, 40], sizes = [16, 8], strides = [1, 1]} : vector<16x64xbf16> to vector<16x8xbf16>
    %cst_26 = arith.constant dense<0.000000e+00> : vector<16x16xf32>
    %54 = tpu.matmul %51, %52, %cst_26 {dimension_numbers = #tpu.dot_dimension_numbers<[1], [1], [0], [0], [0, 0, 1, 0], [], []>} : vector<16x8xbf16>, vector<16x8xbf16>, vector<16x16xf32> -> vector<16x16xf32>
    %cst_27 = arith.constant -1.000000e+30 : f32
    %55 = vector.shape_cast %12 : vector<1x16xi1> to vector<1x16xi1>
    %56 = vector.broadcast %55 : vector<1x16xi1> to vector<16x16xi1>
    %57 = vector.broadcast %cst_27 : f32 to vector<16x16xf32>
    %58 = arith.select %56, %54, %57 : vector<16x16xi1>, vector<16x16xf32>
    %c1 = arith.constant 1 : index
    %c0_28 = arith.constant 0 : index
    %c0_29 = arith.constant 0 : index
    %59 = vector.load %arg9[%c1, %c0_28, %c0_29] : memref<4x16x1xf32, #tpu.memory_space<vmem>>, vector<1x16x1xf32>
    %60 = vector.shape_cast %59 : vector<1x16x1xf32> to vector<16x1xf32>
    %cst_30 = arith.constant dense<0xFF800000> : vector<16xf32>
    %61 = vector.multi_reduction <maximumf>, %58, %cst_30 [1] : vector<16x16xf32> to vector<16xf32>
    %62 = vector.shape_cast %61 : vector<16xf32> to vector<16x1xf32>
    %63 = arith.maximumf %60, %62 : vector<16x1xf32>
    %64 = arith.subf %60, %63 : vector<16x1xf32>
    %65 = math.exp %64 : vector<16x1xf32>
    %66 = vector.broadcast %63 : vector<16x1xf32> to vector<16x16xf32>
    %67 = arith.subf %58, %66 : vector<16x16xf32>
    %68 = arith.truncf %67 : vector<16x16xf32> to vector<16x16xbf16>
    %69 = math.exp %68 : vector<16x16xbf16>
    %c1_31 = arith.constant 1 : index
    %c0_32 = arith.constant 0 : index
    %c0_33 = arith.constant 0 : index
    %70 = vector.load %arg10[%c1_31, %c0_32, %c0_33] : memref<4x16x1xf32, #tpu.memory_space<vmem>>, vector<1x16x1xf32>
    %71 = vector.shape_cast %70 : vector<1x16x1xf32> to vector<16x1xf32>
    %72 = arith.mulf %65, %71 : vector<16x1xf32>
    %73 = arith.extf %69 : vector<16x16xbf16> to vector<16x16xf32>
    %cst_34 = arith.constant dense<0.000000e+00> : vector<16xf32>
    %74 = vector.multi_reduction <add>, %73, %cst_34 [1] : vector<16x16xf32> to vector<16xf32>
    %75 = vector.shape_cast %74 : vector<16xf32> to vector<16x1xf32>
    %76 = arith.addf %72, %75 : vector<16x1xf32>
    %c1_35 = arith.constant 1 : index
    %c0_36 = arith.constant 0 : index
    %c0_37 = arith.constant 0 : index
    %77 = vector.load %arg10[%c1_35, %c0_36, %c0_37] : memref<4x16x1xf32, #tpu.memory_space<vmem>>, vector<1x16x1xf32>
    %78 = vector.shape_cast %77 : vector<1x16x1xf32> to vector<16x1xf32>
    %79 = vector.shape_cast %76 : vector<16x1xf32> to vector<1x16x1xf32>
    tpu.vector_store %arg10[%c1_35, %c0_36, %c0_37], %79 {strides = array<i32>} : memref<4x16x1xf32, #tpu.memory_space<vmem>>, vector<1x16x1xf32>,
    %c0_38 = arith.constant 0 : index
    %c8 = arith.constant 8 : index
    %80 = vector.load %arg8[%c0_38, %c8] : memref<16x32xf32, #tpu.memory_space<vmem>>, vector<16x8xf32>
    %81 = vector.broadcast %65 : vector<16x1xf32> to vector<16x8xf32>
    %82 = arith.mulf %81, %80 : vector<16x8xf32>
    %cst_39 = arith.constant dense<0.000000e+00> : vector<16x8xf32>
    %83 = tpu.matmul %69, %53, %cst_39 {dimension_numbers = #tpu.dot_dimension_numbers<[1], [0], [0], [1], [0, 0, 1, 1], [], []>} : vector<16x16xbf16>, vector<16x8xbf16>, vector<16x8xf32> -> vector<16x8xf32>
    %84 = arith.addf %82, %83 : vector<16x8xf32>
    %c0_40 = arith.constant 0 : index
    %c8_41 = arith.constant 8 : index
    %85 = vector.load %arg8[%c0_40, %c8_41] : memref<16x32xf32, #tpu.memory_space<vmem>>, vector<16x8xf32>
    tpu.vector_store %arg8[%c0_40, %c8_41], %84 {strides = array<i32>} : memref<16x32xf32, #tpu.memory_space<vmem>>, vector<16x8xf32>,
    %c1_42 = arith.constant 1 : index
    %c0_43 = arith.constant 0 : index
    %c0_44 = arith.constant 0 : index
    %86 = vector.load %arg9[%c1_42, %c0_43, %c0_44] : memref<4x16x1xf32, #tpu.memory_space<vmem>>, vector<1x16x1xf32>
    %87 = vector.shape_cast %86 : vector<1x16x1xf32> to vector<16x1xf32>
    %88 = vector.shape_cast %63 : vector<16x1xf32> to vector<1x16x1xf32>
    tpu.vector_store %arg9[%c1_42, %c0_43, %c0_44], %88 {strides = array<i32>} : memref<4x16x1xf32, #tpu.memory_space<vmem>>, vector<1x16x1xf32>,
    %89 = vector.extract_strided_slice %4 {offsets = [0, 16], sizes = [16, 8], strides = [1, 1]} : vector<16x32xbf16> to vector<16x8xbf16>
    %90 = vector.extract_strided_slice %6 {offsets = [0, 16], sizes = [16, 8], strides = [1, 1]} : vector<16x64xbf16> to vector<16x8xbf16>
    %91 = vector.extract_strided_slice %6 {offsets = [0, 48], sizes = [16, 8], strides = [1, 1]} : vector<16x64xbf16> to vector<16x8xbf16>
    %cst_45 = arith.constant dense<0.000000e+00> : vector<16x16xf32>
    %92 = tpu.matmul %89, %90, %cst_45 {dimension_numbers = #tpu.dot_dimension_numbers<[1], [1], [0], [0], [0, 0, 1, 0], [], []>} : vector<16x8xbf16>, vector<16x8xbf16>, vector<16x16xf32> -> vector<16x16xf32>
    %cst_46 = arith.constant -1.000000e+30 : f32
    %93 = vector.shape_cast %12 : vector<1x16xi1> to vector<1x16xi1>
    %94 = vector.broadcast %93 : vector<1x16xi1> to vector<16x16xi1>
    %95 = vector.broadcast %cst_46 : f32 to vector<16x16xf32>
    %96 = arith.select %94, %92, %95 : vector<16x16xi1>, vector<16x16xf32>
    %c2 = arith.constant 2 : index
    %c0_47 = arith.constant 0 : index
    %c0_48 = arith.constant 0 : index
    %97 = vector.load %arg9[%c2, %c0_47, %c0_48] : memref<4x16x1xf32, #tpu.memory_space<vmem>>, vector<1x16x1xf32>
    %98 = vector.shape_cast %97 : vector<1x16x1xf32> to vector<16x1xf32>
    %cst_49 = arith.constant dense<0xFF800000> : vector<16xf32>
    %99 = vector.multi_reduction <maximumf>, %96, %cst_49 [1] : vector<16x16xf32> to vector<16xf32>
    %100 = vector.shape_cast %99 : vector<16xf32> to vector<16x1xf32>
    %101 = arith.maximumf %98, %100 : vector<16x1xf32>
    %102 = arith.subf %98, %101 : vector<16x1xf32>
    %103 = math.exp %102 : vector<16x1xf32>
    %104 = vector.broadcast %101 : vector<16x1xf32> to vector<16x16xf32>
    %105 = arith.subf %96, %104 : vector<16x16xf32>
    %106 = arith.truncf %105 : vector<16x16xf32> to vector<16x16xbf16>
    %107 = math.exp %106 : vector<16x16xbf16>
    %c2_50 = arith.constant 2 : index
    %c0_51 = arith.constant 0 : index
    %c0_52 = arith.constant 0 : index
    %108 = vector.load %arg10[%c2_50, %c0_51, %c0_52] : memref<4x16x1xf32, #tpu.memory_space<vmem>>, vector<1x16x1xf32>
    %109 = vector.shape_cast %108 : vector<1x16x1xf32> to vector<16x1xf32>
    %110 = arith.mulf %103, %109 : vector<16x1xf32>
    %111 = arith.extf %107 : vector<16x16xbf16> to vector<16x16xf32>
    %cst_53 = arith.constant dense<0.000000e+00> : vector<16xf32>
    %112 = vector.multi_reduction <add>, %111, %cst_53 [1] : vector<16x16xf32> to vector<16xf32>
    %113 = vector.shape_cast %112 : vector<16xf32> to vector<16x1xf32>
    %114 = arith.addf %110, %113 : vector<16x1xf32>
    %c2_54 = arith.constant 2 : index
    %c0_55 = arith.constant 0 : index
    %c0_56 = arith.constant 0 : index
    %115 = vector.load %arg10[%c2_54, %c0_55, %c0_56] : memref<4x16x1xf32, #tpu.memory_space<vmem>>, vector<1x16x1xf32>
    %116 = vector.shape_cast %115 : vector<1x16x1xf32> to vector<16x1xf32>
    %117 = vector.shape_cast %114 : vector<16x1xf32> to vector<1x16x1xf32>
    tpu.vector_store %arg10[%c2_54, %c0_55, %c0_56], %117 {strides = array<i32>} : memref<4x16x1xf32, #tpu.memory_space<vmem>>, vector<1x16x1xf32>,
    %c0_57 = arith.constant 0 : index
    %c16 = arith.constant 16 : index
    %118 = vector.load %arg8[%c0_57, %c16] : memref<16x32xf32, #tpu.memory_space<vmem>>, vector<16x8xf32>
    %119 = vector.broadcast %103 : vector<16x1xf32> to vector<16x8xf32>
    %120 = arith.mulf %119, %118 : vector<16x8xf32>
    %cst_58 = arith.constant dense<0.000000e+00> : vector<16x8xf32>
    %121 = tpu.matmul %107, %91, %cst_58 {dimension_numbers = #tpu.dot_dimension_numbers<[1], [0], [0], [1], [0, 0, 1, 1], [], []>} : vector<16x16xbf16>, vector<16x8xbf16>, vector<16x8xf32> -> vector<16x8xf32>
    %122 = arith.addf %120, %121 : vector<16x8xf32>
    %c0_59 = arith.constant 0 : index
    %c16_60 = arith.constant 16 : index
    %123 = vector.load %arg8[%c0_59, %c16_60] : memref<16x32xf32, #tpu.memory_space<vmem>>, vector<16x8xf32>
    tpu.vector_store %arg8[%c0_59, %c16_60], %122 {strides = array<i32>} : memref<16x32xf32, #tpu.memory_space<vmem>>, vector<16x8xf32>,
    %c2_61 = arith.constant 2 : index
    %c0_62 = arith.constant 0 : index
    %c0_63 = arith.constant 0 : index
    %124 = vector.load %arg9[%c2_61, %c0_62, %c0_63] : memref<4x16x1xf32, #tpu.memory_space<vmem>>, vector<1x16x1xf32>
    %125 = vector.shape_cast %124 : vector<1x16x1xf32> to vector<16x1xf32>
    %126 = vector.shape_cast %101 : vector<16x1xf32> to vector<1x16x1xf32>
    tpu.vector_store %arg9[%c2_61, %c0_62, %c0_63], %126 {strides = array<i32>} : memref<4x16x1xf32, #tpu.memory_space<vmem>>, vector<1x16x1xf32>,
    %127 = vector.extract_strided_slice %4 {offsets = [0, 24], sizes = [16, 8], strides = [1, 1]} : vector<16x32xbf16> to vector<16x8xbf16>
    %128 = vector.extract_strided_slice %6 {offsets = [0, 24], sizes = [16, 8], strides = [1, 1]} : vector<16x64xbf16> to vector<16x8xbf16>
    %129 = vector.extract_strided_slice %6 {offsets = [0, 56], sizes = [16, 8], strides = [1, 1]} : vector<16x64xbf16> to vector<16x8xbf16>
    %cst_64 = arith.constant dense<0.000000e+00> : vector<16x16xf32>
    %130 = tpu.matmul %127, %128, %cst_64 {dimension_numbers = #tpu.dot_dimension_numbers<[1], [1], [0], [0], [0, 0, 1, 0], [], []>} : vector<16x8xbf16>, vector<16x8xbf16>, vector<16x16xf32> -> vector<16x16xf32>
    %cst_65 = arith.constant -1.000000e+30 : f32
    %131 = vector.shape_cast %12 : vector<1x16xi1> to vector<1x16xi1>
    %132 = vector.broadcast %131 : vector<1x16xi1> to vector<16x16xi1>
    %133 = vector.broadcast %cst_65 : f32 to vector<16x16xf32>
    %134 = arith.select %132, %130, %133 : vector<16x16xi1>, vector<16x16xf32>
    %c3 = arith.constant 3 : index
    %c0_66 = arith.constant 0 : index
    %c0_67 = arith.constant 0 : index
    %135 = vector.load %arg9[%c3, %c0_66, %c0_67] : memref<4x16x1xf32, #tpu.memory_space<vmem>>, vector<1x16x1xf32>
    %136 = vector.shape_cast %135 : vector<1x16x1xf32> to vector<16x1xf32>
    %cst_68 = arith.constant dense<0xFF800000> : vector<16xf32>
    %137 = vector.multi_reduction <maximumf>, %134, %cst_68 [1] : vector<16x16xf32> to vector<16xf32>
    %138 = vector.shape_cast %137 : vector<16xf32> to vector<16x1xf32>
    %139 = arith.maximumf %136, %138 : vector<16x1xf32>
    %140 = arith.subf %136, %139 : vector<16x1xf32>
    %141 = math.exp %140 : vector<16x1xf32>
    %142 = vector.broadcast %139 : vector<16x1xf32> to vector<16x16xf32>
    %143 = arith.subf %134, %142 : vector<16x16xf32>
    %144 = arith.truncf %143 : vector<16x16xf32> to vector<16x16xbf16>
    %145 = math.exp %144 : vector<16x16xbf16>
    %c3_69 = arith.constant 3 : index
    %c0_70 = arith.constant 0 : index
    %c0_71 = arith.constant 0 : index
    %146 = vector.load %arg10[%c3_69, %c0_70, %c0_71] : memref<4x16x1xf32, #tpu.memory_space<vmem>>, vector<1x16x1xf32>
    %147 = vector.shape_cast %146 : vector<1x16x1xf32> to vector<16x1xf32>
    %148 = arith.mulf %141, %147 : vector<16x1xf32>
    %149 = arith.extf %145 : vector<16x16xbf16> to vector<16x16xf32>
    %cst_72 = arith.constant dense<0.000000e+00> : vector<16xf32>
    %150 = vector.multi_reduction <add>, %149, %cst_72 [1] : vector<16x16xf32> to vector<16xf32>
    %151 = vector.shape_cast %150 : vector<16xf32> to vector<16x1xf32>
    %152 = arith.addf %148, %151 : vector<16x1xf32>
    %c3_73 = arith.constant 3 : index
    %c0_74 = arith.constant 0 : index
    %c0_75 = arith.constant 0 : index
    %153 = vector.load %arg10[%c3_73, %c0_74, %c0_75] : memref<4x16x1xf32, #tpu.memory_space<vmem>>, vector<1x16x1xf32>
    %154 = vector.shape_cast %153 : vector<1x16x1xf32> to vector<16x1xf32>
    %155 = vector.shape_cast %152 : vector<16x1xf32> to vector<1x16x1xf32>
    tpu.vector_store %arg10[%c3_73, %c0_74, %c0_75], %155 {strides = array<i32>} : memref<4x16x1xf32, #tpu.memory_space<vmem>>, vector<1x16x1xf32>,
    %c0_76 = arith.constant 0 : index
    %c24 = arith.constant 24 : index
    %156 = vector.load %arg8[%c0_76, %c24] : memref<16x32xf32, #tpu.memory_space<vmem>>, vector<16x8xf32>
    %157 = vector.broadcast %141 : vector<16x1xf32> to vector<16x8xf32>
    %158 = arith.mulf %157, %156 : vector<16x8xf32>
    %cst_77 = arith.constant dense<0.000000e+00> : vector<16x8xf32>
    %159 = tpu.matmul %145, %129, %cst_77 {dimension_numbers = #tpu.dot_dimension_numbers<[1], [0], [0], [1], [0, 0, 1, 1], [], []>} : vector<16x16xbf16>, vector<16x8xbf16>, vector<16x8xf32> -> vector<16x8xf32>
    %160 = arith.addf %158, %159 : vector<16x8xf32>
    %c0_78 = arith.constant 0 : index
    %c24_79 = arith.constant 24 : index
    %161 = vector.load %arg8[%c0_78, %c24_79] : memref<16x32xf32, #tpu.memory_space<vmem>>, vector<16x8xf32>
    tpu.vector_store %arg8[%c0_78, %c24_79], %160 {strides = array<i32>} : memref<16x32xf32, #tpu.memory_space<vmem>>, vector<16x8xf32>,
    %c3_80 = arith.constant 3 : index
    %c0_81 = arith.constant 0 : index
    %c0_82 = arith.constant 0 : index
    %162 = vector.load %arg9[%c3_80, %c0_81, %c0_82] : memref<4x16x1xf32, #tpu.memory_space<vmem>>, vector<1x16x1xf32>
    %163 = vector.shape_cast %162 : vector<1x16x1xf32> to vector<16x1xf32>
    %164 = vector.shape_cast %139 : vector<16x1xf32> to vector<1x16x1xf32>
    tpu.vector_store %arg9[%c3_80, %c0_81, %c0_82], %164 {strides = array<i32>} : memref<4x16x1xf32, #tpu.memory_space<vmem>>, vector<1x16x1xf32>,
    %c0_i32_83 = arith.constant 0 : i32
    %165 = arith.cmpi eq, %arg2, %c0_i32_83 : i32
    %166 = arith.extui %165 : i1 to i32
    %c0_i32_84 = arith.constant 0 : i32
    %167 = arith.cmpi ne, %166, %c0_i32_84 : i32
    scf.if %167 {
      %c0_85 = arith.constant 0 : index
      %c0_86 = arith.constant 0 : index
      %168 = vector.load %arg8[%c0_85, %c0_86] : memref<16x32xf32, #tpu.memory_space<vmem>>, vector<16x8xf32>
      %c0_87 = arith.constant 0 : index
      %c0_88 = arith.constant 0 : index
      %c0_89 = arith.constant 0 : index
      %169 = vector.load %arg10[%c0_87, %c0_88, %c0_89] : memref<4x16x1xf32, #tpu.memory_space<vmem>>, vector<1x16x1xf32>
      %170 = vector.shape_cast %169 : vector<1x16x1xf32> to vector<16x1xf32>
      %171 = tpu.reciprocal %170 {approx = true} : vector<16x1xf32> -> vector<16x1xf32>
      %172 = vector.broadcast %171 : vector<16x1xf32> to vector<16x8xf32>
      %173 = arith.mulf %168, %172 : vector<16x8xf32>
      %c0_90 = arith.constant 0 : index
      %c0_91 = arith.constant 0 : index
      %174 = vector.load %arg8[%c0_90, %c0_91] : memref<16x32xf32, #tpu.memory_space<vmem>>, vector<16x8xf32>
      tpu.vector_store %arg8[%c0_90, %c0_91], %173 {strides = array<i32>} : memref<16x32xf32, #tpu.memory_space<vmem>>, vector<16x8xf32>,
      %c0_92 = arith.constant 0 : index
      %c8_93 = arith.constant 8 : index
      %175 = vector.load %arg8[%c0_92, %c8_93] : memref<16x32xf32, #tpu.memory_space<vmem>>, vector<16x8xf32>
      %c1_94 = arith.constant 1 : index
      %c0_95 = arith.constant 0 : index
      %c0_96 = arith.constant 0 : index
      %176 = vector.load %arg10[%c1_94, %c0_95, %c0_96] : memref<4x16x1xf32, #tpu.memory_space<vmem>>, vector<1x16x1xf32>
      %177 = vector.shape_cast %176 : vector<1x16x1xf32> to vector<16x1xf32>
      %178 = tpu.reciprocal %177 {approx = true} : vector<16x1xf32> -> vector<16x1xf32>
      %179 = vector.broadcast %178 : vector<16x1xf32> to vector<16x8xf32>
      %180 = arith.mulf %175, %179 : vector<16x8xf32>
      %c0_97 = arith.constant 0 : index
      %c8_98 = arith.constant 8 : index
      %181 = vector.load %arg8[%c0_97, %c8_98] : memref<16x32xf32, #tpu.memory_space<vmem>>, vector<16x8xf32>
      tpu.vector_store %arg8[%c0_97, %c8_98], %180 {strides = array<i32>} : memref<16x32xf32, #tpu.memory_space<vmem>>, vector<16x8xf32>,
      %c0_99 = arith.constant 0 : index
      %c16_100 = arith.constant 16 : index
      %182 = vector.load %arg8[%c0_99, %c16_100] : memref<16x32xf32, #tpu.memory_space<vmem>>, vector<16x8xf32>
      %c2_101 = arith.constant 2 : index
      %c0_102 = arith.constant 0 : index
      %c0_103 = arith.constant 0 : index
      %183 = vector.load %arg10[%c2_101, %c0_102, %c0_103] : memref<4x16x1xf32, #tpu.memory_space<vmem>>, vector<1x16x1xf32>
      %184 = vector.shape_cast %183 : vector<1x16x1xf32> to vector<16x1xf32>
      %185 = tpu.reciprocal %184 {approx = true} : vector<16x1xf32> -> vector<16x1xf32>
      %186 = vector.broadcast %185 : vector<16x1xf32> to vector<16x8xf32>
      %187 = arith.mulf %182, %186 : vector<16x8xf32>
      %c0_104 = arith.constant 0 : index
      %c16_105 = arith.constant 16 : index
      %188 = vector.load %arg8[%c0_104, %c16_105] : memref<16x32xf32, #tpu.memory_space<vmem>>, vector<16x8xf32>
      tpu.vector_store %arg8[%c0_104, %c16_105], %187 {strides = array<i32>} : memref<16x32xf32, #tpu.memory_space<vmem>>, vector<16x8xf32>,
      %c0_106 = arith.constant 0 : index
      %c24_107 = arith.constant 24 : index
      %189 = vector.load %arg8[%c0_106, %c24_107] : memref<16x32xf32, #tpu.memory_space<vmem>>, vector<16x8xf32>
      %c3_108 = arith.constant 3 : index
      %c0_109 = arith.constant 0 : index
      %c0_110 = arith.constant 0 : index
      %190 = vector.load %arg10[%c3_108, %c0_109, %c0_110] : memref<4x16x1xf32, #tpu.memory_space<vmem>>, vector<1x16x1xf32>
      %191 = vector.shape_cast %190 : vector<1x16x1xf32> to vector<16x1xf32>
      %192 = tpu.reciprocal %191 {approx = true} : vector<16x1xf32> -> vector<16x1xf32>
      %193 = vector.broadcast %192 : vector<16x1xf32> to vector<16x8xf32>
      %194 = arith.mulf %189, %193 : vector<16x8xf32>
      %c0_111 = arith.constant 0 : index
      %c24_112 = arith.constant 24 : index
      %195 = vector.load %arg8[%c0_111, %c24_112] : memref<16x32xf32, #tpu.memory_space<vmem>>, vector<16x8xf32>
      tpu.vector_store %arg8[%c0_111, %c24_112], %194 {strides = array<i32>} : memref<16x32xf32, #tpu.memory_space<vmem>>, vector<16x8xf32>,
      %c0_113 = arith.constant 0 : index
      %c0_114 = arith.constant 0 : index
      %196 = vector.load %arg8[%c0_113, %c0_114] : memref<16x32xf32, #tpu.memory_space<vmem>>, vector<16x32xf32>
      %197 = arith.truncf %196 : vector<16x32xf32> to vector<16x32xbf16>
      %c0_115 = arith.constant 0 : index
      %c0_116 = arith.constant 0 : index
      %198 = vector.load %arg5[%c0_115, %c0_116] : memref<32x32xbf16, #tpu.memory_space<vmem>>, vector<32x32xbf16>
      %cst_117 = arith.constant dense<0.000000e+00> : vector<16x32xf32>
      %199 = tpu.matmul %197, %198, %cst_117 {dimension_numbers = #tpu.dot_dimension_numbers<[1], [0], [0], [1], [0, 0, 1, 1], [], []>} : vector<16x32xbf16>, vector<32x32xbf16>, vector<16x32xf32> -> vector<16x32xf32>
      %c0_118 = arith.constant 0 : index
      %c0_119 = arith.constant 0 : index
      %200 = vector.load %arg6[%c0_118, %c0_119] : memref<1x32xf32, #tpu.memory_space<vmem>>, vector<1x32xf32>
      %201 = vector.broadcast %200 : vector<1x32xf32> to vector<16x32xf32>
      %202 = arith.addf %199, %201 : vector<16x32xf32>
      %203 = arith.truncf %202 : vector<16x32xf32> to vector<16x32xbf16>
      %c0_120 = arith.constant 0 : index
      %c0_121 = arith.constant 0 : index
      %c0_122 = arith.constant 0 : index
      %204 = vector.load %arg7[%c0_120, %c0_121, %c0_122] : memref<1x16x32xbf16, #tpu.memory_space<vmem>>, vector<1x16x32xbf16>
      %205 = vector.shape_cast %204 : vector<1x16x32xbf16> to vector<16x32xbf16>
      %206 = vector.shape_cast %203 : vector<16x32xbf16> to vector<1x16x32xbf16>
      tpu.vector_store %arg7[%c0_120, %c0_121, %c0_122], %206 {strides = array<i32>} : memref<1x16x32xbf16, #tpu.memory_space<vmem>>, vector<1x16x32xbf16>,
    } else {
    }
    return
  }
  func.func @transform_0(%arg0: i32, %arg1: i32, %arg2: i32) -> (i32, i32, i32) {
    %c0_i32 = arith.constant 0 : i32
    %c0_i32_0 = arith.constant 0 : i32
    return %arg0, %arg1, %c0_i32 : i32, i32, i32
  }
  func.func @transform_1(%arg0: i32, %arg1: i32, %arg2: i32) -> (i32, i32, i32) {
    %c0_i32 = arith.constant 0 : i32
    %c0_i32_0 = arith.constant 0 : i32
    return %arg0, %arg2, %c0_i32 : i32, i32, i32
  }
  func.func @transform_2(%arg0: i32, %arg1: i32, %arg2: i32) -> (i32, i32) {
    %c0_i32 = arith.constant 0 : i32
    %c0_i32_0 = arith.constant 0 : i32
    %c0_i32_1 = arith.constant 0 : i32
    return %c0_i32, %c0_i32_0 : i32, i32
  }
  func.func @transform_3(%arg0: i32, %arg1: i32, %arg2: i32) -> (i32, i32) {
    %c0_i32 = arith.constant 0 : i32
    %c0_i32_0 = arith.constant 0 : i32
    %c0_i32_1 = arith.constant 0 : i32
    return %c0_i32, %c0_i32_0 : i32, i32
  }
  func.func @transform_4(%arg0: i32, %arg1: i32, %arg2: i32) -> (i32, i32, i32) {
    %c0_i32 = arith.constant 0 : i32
    %c0_i32_0 = arith.constant 0 : i32
    return %arg0, %arg1, %c0_i32 : i32, i32, i32
  }
}

module attributes {stable_mosaic.version = 11 : i64} {
  func.func @_attf_stats_kernel(%arg0: i32, %arg1: i32, %arg2: memref<1x16x32xbf16, #tpu.memory_space<vmem>>, %arg3: memref<1x16x32xbf16, #tpu.memory_space<vmem>>, %arg4: memref<32x64xbf16, #tpu.memory_space<vmem>>, %arg5: memref<32x64xbf16, #tpu.memory_space<vmem>>, %arg6: memref<1x64xf32, #tpu.memory_space<vmem>>, %arg7: memref<1x16x64xbf16, #tpu.memory_space<vmem>>, %arg8: memref<1x2x64xf32, #tpu.memory_space<vmem>>) attributes {dimension_semantics = [#tpu.dimension_semantics<parallel>, #tpu.dimension_semantics<arbitrary>], iteration_bounds = array<i64: 2, 1>, scalar_prefetch = 0 : i64, scratch_operands = 0 : i64, tpu.core_type = #tpu.core_type<tc>, window_params = [{transform_indices = @transform_0, window_bounds = array<i64: 1, 16, 32>}, {transform_indices = @transform_1, window_bounds = array<i64: 1, 16, 32>}, {pipeline_mode = #tpu.pipeline_mode<synchronous>, transform_indices = @transform_2, window_bounds = array<i64: 32, 64>}, {pipeline_mode = #tpu.pipeline_mode<synchronous>, transform_indices = @transform_3, window_bounds = array<i64: 32, 64>}, {pipeline_mode = #tpu.pipeline_mode<synchronous>, transform_indices = @transform_4, window_bounds = array<i64: 1, 64>}, {transform_indices = @transform_5, window_bounds = array<i64: 1, 16, 64>}, {transform_indices = @transform_6, window_bounds = array<i64: 1, 2, 64>}]} {
    %c0 = arith.constant 0 : index
    %c0_0 = arith.constant 0 : index
    %c0_1 = arith.constant 0 : index
    %0 = vector.load %arg2[%c0, %c0_0, %c0_1] : memref<1x16x32xbf16, #tpu.memory_space<vmem>>, vector<1x16x32xbf16>
    %1 = vector.shape_cast %0 : vector<1x16x32xbf16> to vector<16x32xbf16>
    %c0_2 = arith.constant 0 : index
    %c0_3 = arith.constant 0 : index
    %2 = vector.load %arg4[%c0_2, %c0_3] : memref<32x64xbf16, #tpu.memory_space<vmem>>, vector<32x64xbf16>
    %cst = arith.constant dense<0.000000e+00> : vector<16x64xf32>
    %3 = tpu.matmul %1, %2, %cst {dimension_numbers = #tpu.dot_dimension_numbers<[1], [0], [0], [1], [0, 0, 1, 1], [], []>} : vector<16x32xbf16>, vector<32x64xbf16>, vector<16x64xf32> -> vector<16x64xf32>
    %c0_4 = arith.constant 0 : index
    %c0_5 = arith.constant 0 : index
    %c0_6 = arith.constant 0 : index
    %4 = vector.load %arg3[%c0_4, %c0_5, %c0_6] : memref<1x16x32xbf16, #tpu.memory_space<vmem>>, vector<1x16x32xbf16>
    %5 = vector.shape_cast %4 : vector<1x16x32xbf16> to vector<16x32xbf16>
    %c0_7 = arith.constant 0 : index
    %c0_8 = arith.constant 0 : index
    %6 = vector.load %arg5[%c0_7, %c0_8] : memref<32x64xbf16, #tpu.memory_space<vmem>>, vector<32x64xbf16>
    %cst_9 = arith.constant dense<0.000000e+00> : vector<16x64xf32>
    %7 = tpu.matmul %5, %6, %cst_9 {dimension_numbers = #tpu.dot_dimension_numbers<[1], [0], [0], [1], [0, 0, 1, 1], [], []>} : vector<16x32xbf16>, vector<32x64xbf16>, vector<16x64xf32> -> vector<16x64xf32>
    %8 = arith.addf %3, %7 : vector<16x64xf32>
    %c0_10 = arith.constant 0 : index
    %c0_11 = arith.constant 0 : index
    %9 = vector.load %arg6[%c0_10, %c0_11] : memref<1x64xf32, #tpu.memory_space<vmem>>, vector<1x64xf32>
    %10 = vector.broadcast %9 : vector<1x64xf32> to vector<16x64xf32>
    %11 = arith.addf %8, %10 : vector<16x64xf32>
    %12 = arith.truncf %11 : vector<16x64xf32> to vector<16x64xbf16>
    %c0_12 = arith.constant 0 : index
    %c0_13 = arith.constant 0 : index
    %c0_14 = arith.constant 0 : index
    %13 = vector.load %arg7[%c0_12, %c0_13, %c0_14] : memref<1x16x64xbf16, #tpu.memory_space<vmem>>, vector<1x16x64xbf16>
    %14 = vector.shape_cast %13 : vector<1x16x64xbf16> to vector<16x64xbf16>
    %15 = vector.shape_cast %12 : vector<16x64xbf16> to vector<1x16x64xbf16>
    tpu.vector_store %arg7[%c0_12, %c0_13, %c0_14], %15 {strides = array<i32>} : memref<1x16x64xbf16, #tpu.memory_space<vmem>>, vector<1x16x64xbf16>,
    %c0_i32 = arith.constant 0 : i32
    %16 = arith.cmpi eq, %arg1, %c0_i32 : i32
    %17 = arith.extui %16 : i1 to i32
    %c0_i32_15 = arith.constant 0 : i32
    %18 = arith.cmpi ne, %17, %c0_i32_15 : i32
    scf.if %18 {
      %cst_24 = arith.constant 0.000000e+00 : f32
      %31 = vector.broadcast %cst_24 : f32 to vector<2x64xf32>
      %c0_25 = arith.constant 0 : index
      %c0_26 = arith.constant 0 : index
      %c0_27 = arith.constant 0 : index
      %32 = vector.load %arg8[%c0_25, %c0_26, %c0_27] : memref<1x2x64xf32, #tpu.memory_space<vmem>>, vector<1x2x64xf32>
      %33 = vector.shape_cast %32 : vector<1x2x64xf32> to vector<2x64xf32>
      %34 = vector.shape_cast %31 : vector<2x64xf32> to vector<1x2x64xf32>
      tpu.vector_store %arg8[%c0_25, %c0_26, %c0_27], %34 {strides = array<i32>} : memref<1x2x64xf32, #tpu.memory_space<vmem>>, vector<1x2x64xf32>,
    } else {
    }
    %cst_16 = arith.constant dense<0.000000e+00> : vector<64xf32>
    %19 = vector.multi_reduction <add>, %11, %cst_16 [0] : vector<16x64xf32> to vector<64xf32>
    %20 = vector.shape_cast %19 : vector<64xf32> to vector<1x64xf32>
    %21 = arith.mulf %11, %11 : vector<16x64xf32>
    %cst_17 = arith.constant dense<0.000000e+00> : vector<64xf32>
    %22 = vector.multi_reduction <add>, %21, %cst_17 [0] : vector<16x64xf32> to vector<64xf32>
    %23 = vector.shape_cast %22 : vector<64xf32> to vector<1x64xf32>
    %c0_18 = arith.constant 0 : index
    %c0_19 = arith.constant 0 : index
    %c0_20 = arith.constant 0 : index
    %24 = vector.load %arg8[%c0_18, %c0_19, %c0_20] : memref<1x2x64xf32, #tpu.memory_space<vmem>>, vector<1x2x64xf32>
    %25 = vector.shape_cast %24 : vector<1x2x64xf32> to vector<2x64xf32>
    %26 = tpu.concatenate %20, %23 in 0 : vector<1x64xf32>, vector<1x64xf32> -> vector<2x64xf32>
    %27 = arith.addf %25, %26 : vector<2x64xf32>
    %c0_21 = arith.constant 0 : index
    %c0_22 = arith.constant 0 : index
    %c0_23 = arith.constant 0 : index
    %28 = vector.load %arg8[%c0_21, %c0_22, %c0_23] : memref<1x2x64xf32, #tpu.memory_space<vmem>>, vector<1x2x64xf32>
    %29 = vector.shape_cast %28 : vector<1x2x64xf32> to vector<2x64xf32>
    %30 = vector.shape_cast %27 : vector<2x64xf32> to vector<1x2x64xf32>
    tpu.vector_store %arg8[%c0_21, %c0_22, %c0_23], %30 {strides = array<i32>} : memref<1x2x64xf32, #tpu.memory_space<vmem>>, vector<1x2x64xf32>,
    return
  }
  func.func @transform_0(%arg0: i32, %arg1: i32) -> (i32, i32, i32) {
    %c0_i32 = arith.constant 0 : i32
    %c0_i32_0 = arith.constant 0 : i32
    return %arg0, %arg1, %c0_i32 : i32, i32, i32
  }
  func.func @transform_1(%arg0: i32, %arg1: i32) -> (i32, i32, i32) {
    %c0_i32 = arith.constant 0 : i32
    %c0_i32_0 = arith.constant 0 : i32
    return %arg0, %arg1, %c0_i32 : i32, i32, i32
  }
  func.func @transform_2(%arg0: i32, %arg1: i32) -> (i32, i32) {
    %c0_i32 = arith.constant 0 : i32
    %c0_i32_0 = arith.constant 0 : i32
    %c0_i32_1 = arith.constant 0 : i32
    return %c0_i32, %c0_i32_0 : i32, i32
  }
  func.func @transform_3(%arg0: i32, %arg1: i32) -> (i32, i32) {
    %c0_i32 = arith.constant 0 : i32
    %c0_i32_0 = arith.constant 0 : i32
    %c0_i32_1 = arith.constant 0 : i32
    return %c0_i32, %c0_i32_0 : i32, i32
  }
  func.func @transform_4(%arg0: i32, %arg1: i32) -> (i32, i32) {
    %c0_i32 = arith.constant 0 : i32
    %c0_i32_0 = arith.constant 0 : i32
    %c0_i32_1 = arith.constant 0 : i32
    return %c0_i32, %c0_i32_0 : i32, i32
  }
  func.func @transform_5(%arg0: i32, %arg1: i32) -> (i32, i32, i32) {
    %c0_i32 = arith.constant 0 : i32
    %c0_i32_0 = arith.constant 0 : i32
    return %arg0, %arg1, %c0_i32 : i32, i32, i32
  }
  func.func @transform_6(%arg0: i32, %arg1: i32) -> (i32, i32, i32) {
    %c0_i32 = arith.constant 0 : i32
    %c0_i32_0 = arith.constant 0 : i32
    %c0_i32_1 = arith.constant 0 : i32
    return %arg0, %c0_i32, %c0_i32_0 : i32, i32, i32
  }
}

module attributes {stable_mosaic.version = 11 : i64} {
  func.func @_attf_apply_kernel(%arg0: i32, %arg1: i32, %arg2: memref<1x16x64xbf16, #tpu.memory_space<vmem>>, %arg3: memref<1x32x16xf32, #tpu.memory_space<vmem>>, %arg4: memref<1x64xf32, #tpu.memory_space<vmem>>, %arg5: memref<1x64xf32, #tpu.memory_space<vmem>>, %arg6: memref<32x64xbf16, #tpu.memory_space<vmem>>, %arg7: memref<32x1xf32, #tpu.memory_space<vmem>>, %arg8: memref<1x32x16xf32, #tpu.memory_space<vmem>>) attributes {dimension_semantics = [#tpu.dimension_semantics<parallel>, #tpu.dimension_semantics<parallel>], iteration_bounds = array<i64: 2, 1>, scalar_prefetch = 0 : i64, scratch_operands = 0 : i64, tpu.core_type = #tpu.core_type<tc>, window_params = [{transform_indices = @transform_0, window_bounds = array<i64: 1, 16, 64>}, {transform_indices = @transform_1, window_bounds = array<i64: 1, 32, 16>}, {pipeline_mode = #tpu.pipeline_mode<synchronous>, transform_indices = @transform_2, window_bounds = array<i64: 1, 64>}, {pipeline_mode = #tpu.pipeline_mode<synchronous>, transform_indices = @transform_3, window_bounds = array<i64: 1, 64>}, {pipeline_mode = #tpu.pipeline_mode<synchronous>, transform_indices = @transform_4, window_bounds = array<i64: 32, 64>}, {pipeline_mode = #tpu.pipeline_mode<synchronous>, transform_indices = @transform_5, window_bounds = array<i64: 32, 1>}, {transform_indices = @transform_6, window_bounds = array<i64: 1, 32, 16>}]} {
    %c0 = arith.constant 0 : index
    %c0_0 = arith.constant 0 : index
    %c0_1 = arith.constant 0 : index
    %0 = vector.load %arg2[%c0, %c0_0, %c0_1] : memref<1x16x64xbf16, #tpu.memory_space<vmem>>, vector<1x16x64xbf16>
    %1 = vector.shape_cast %0 : vector<1x16x64xbf16> to vector<16x64xbf16>
    %2 = arith.extf %1 : vector<16x64xbf16> to vector<16x64xf32>
    %c0_2 = arith.constant 0 : index
    %c0_3 = arith.constant 0 : index
    %3 = vector.load %arg4[%c0_2, %c0_3] : memref<1x64xf32, #tpu.memory_space<vmem>>, vector<1x64xf32>
    %4 = vector.broadcast %3 : vector<1x64xf32> to vector<16x64xf32>
    %5 = arith.mulf %2, %4 : vector<16x64xf32>
    %c0_4 = arith.constant 0 : index
    %c0_5 = arith.constant 0 : index
    %6 = vector.load %arg5[%c0_4, %c0_5] : memref<1x64xf32, #tpu.memory_space<vmem>>, vector<1x64xf32>
    %7 = vector.broadcast %6 : vector<1x64xf32> to vector<16x64xf32>
    %8 = arith.addf %5, %7 : vector<16x64xf32>
    %cst = arith.constant 0.000000e+00 : f32
    %9 = vector.broadcast %cst : f32 to vector<16x64xf32>
    %10 = arith.maximumf %8, %9 : vector<16x64xf32>
    %c0_6 = arith.constant 0 : index
    %c0_7 = arith.constant 0 : index
    %c0_8 = arith.constant 0 : index
    %11 = vector.load %arg3[%c0_6, %c0_7, %c0_8] : memref<1x32x16xf32, #tpu.memory_space<vmem>>, vector<1x32x16xf32>
    %12 = vector.shape_cast %11 : vector<1x32x16xf32> to vector<32x16xf32>
    %c0_9 = arith.constant 0 : index
    %c0_10 = arith.constant 0 : index
    %13 = vector.load %arg6[%c0_9, %c0_10] : memref<32x64xbf16, #tpu.memory_space<vmem>>, vector<32x64xbf16>
    %14 = arith.truncf %10 : vector<16x64xf32> to vector<16x64xbf16>
    %cst_11 = arith.constant dense<0.000000e+00> : vector<32x16xf32>
    %15 = tpu.matmul %13, %14, %cst_11 {dimension_numbers = #tpu.dot_dimension_numbers<[1], [1], [0], [0], [0, 0, 1, 0], [], []>} : vector<32x64xbf16>, vector<16x64xbf16>, vector<32x16xf32> -> vector<32x16xf32>
    %16 = arith.addf %12, %15 : vector<32x16xf32>
    %c0_12 = arith.constant 0 : index
    %c0_13 = arith.constant 0 : index
    %17 = vector.load %arg7[%c0_12, %c0_13] : memref<32x1xf32, #tpu.memory_space<vmem>>, vector<32x1xf32>
    %18 = vector.broadcast %17 : vector<32x1xf32> to vector<32x16xf32>
    %19 = arith.addf %16, %18 : vector<32x16xf32>
    %c0_14 = arith.constant 0 : index
    %c0_15 = arith.constant 0 : index
    %c0_16 = arith.constant 0 : index
    %20 = vector.load %arg8[%c0_14, %c0_15, %c0_16] : memref<1x32x16xf32, #tpu.memory_space<vmem>>, vector<1x32x16xf32>
    %21 = vector.shape_cast %20 : vector<1x32x16xf32> to vector<32x16xf32>
    %22 = vector.shape_cast %19 : vector<32x16xf32> to vector<1x32x16xf32>
    tpu.vector_store %arg8[%c0_14, %c0_15, %c0_16], %22 {strides = array<i32>} : memref<1x32x16xf32, #tpu.memory_space<vmem>>, vector<1x32x16xf32>,
    return
  }
  func.func @transform_0(%arg0: i32, %arg1: i32) -> (i32, i32, i32) {
    %c0_i32 = arith.constant 0 : i32
    %c0_i32_0 = arith.constant 0 : i32
    return %arg0, %arg1, %c0_i32 : i32, i32, i32
  }
  func.func @transform_1(%arg0: i32, %arg1: i32) -> (i32, i32, i32) {
    %c0_i32 = arith.constant 0 : i32
    %c0_i32_0 = arith.constant 0 : i32
    return %arg0, %c0_i32, %arg1 : i32, i32, i32
  }
  func.func @transform_2(%arg0: i32, %arg1: i32) -> (i32, i32) {
    %c0_i32 = arith.constant 0 : i32
    %c0_i32_0 = arith.constant 0 : i32
    %c0_i32_1 = arith.constant 0 : i32
    return %c0_i32, %c0_i32_0 : i32, i32
  }
  func.func @transform_3(%arg0: i32, %arg1: i32) -> (i32, i32) {
    %c0_i32 = arith.constant 0 : i32
    %c0_i32_0 = arith.constant 0 : i32
    %c0_i32_1 = arith.constant 0 : i32
    return %c0_i32, %c0_i32_0 : i32, i32
  }
  func.func @transform_4(%arg0: i32, %arg1: i32) -> (i32, i32) {
    %c0_i32 = arith.constant 0 : i32
    %c0_i32_0 = arith.constant 0 : i32
    %c0_i32_1 = arith.constant 0 : i32
    return %c0_i32, %c0_i32_0 : i32, i32
  }
  func.func @transform_5(%arg0: i32, %arg1: i32) -> (i32, i32) {
    %c0_i32 = arith.constant 0 : i32
    %c0_i32_0 = arith.constant 0 : i32
    %c0_i32_1 = arith.constant 0 : i32
    return %c0_i32, %c0_i32_0 : i32, i32
  }
  func.func @transform_6(%arg0: i32, %arg1: i32) -> (i32, i32, i32) {
    %c0_i32 = arith.constant 0 : i32
    %c0_i32_0 = arith.constant 0 : i32
    return %arg0, %c0_i32, %arg1 : i32, i32, i32
  }
}

</mosaic_0001>

<llo_original>
// kernel: attention_block_forward.9
$region0: #{attention_block_forward.9}
  #allocation0 [shape = 'u32[]', space=smem, size = 0x4, offset = 0x4, fixed_abs, tag = 'smem constant byte address 0x4 - core index']
  #allocation1 [shape = 'u32[144,128]{1,0:T(1,128)}', space=vmem, size = 0x12000, scoped, tag = 'internal scratch']
  %s0 = inlined_call_operand.vmem [shape: bf16[2,16,32], index: 0, kind: input, shape index: {}]
  %s1 = inlined_call_operand.vmem [shape: bf16[32,32], index: 1, kind: input, shape index: {}]
  %s2 = inlined_call_operand.vmem [shape: f32[1,32], index: 2, kind: input, shape index: {}]
  %s3 = inlined_call_operand.vmem [shape: bf16[32,64], index: 3, kind: input, shape index: {}]
  %s4 = inlined_call_operand.vmem [shape: f32[1,64], index: 4, kind: input, shape index: {}]
  %s5 = inlined_call_operand.vmem [shape: bf16[2,16,32], index: 5, kind: output, shape index: {0}]
  %s6 = inlined_call_operand.vmem [shape: bf16[2,16,64], index: 6, kind: output, shape index: {1}]
  %7 = xla_tuple %s5, %s6
  %s8 = sld [smem:[#allocation0]]
  $region61: #{attention_block_forward.9} parent=0
    _
  %s10 = ssub.s32 1, %s8
  %s11 = scalar_select 0, %s10, %s8
  loop: start=0, step=1, limit=4
  $region2: #{attention_block_forward.9} parent=0 // loop_pre_header
    _
  $region3: #{attention_block_forward.9} parent=0 // loop_header
    %s13 = sphi 0, %s17
    %p14 = scmp.ge.s32.totalorder %s13, 4
    %s20 = sphi 0, %s32
    %s21 = sphi 0, %s28
    %s22 = sphi 0, %s20
    %s23 = sphi 0, %s21
    %s24 = sphi 0, %s22
    %s25 = sphi 0, %s23
    %s37 = sphi 0, %s39
    %s40 = sphi 0, %s37
    %s41 = sphi 0, %s40
    %s57 = sphi 0, %s41
    %s61 = sphi 0, %s61
    %s63 = sphi 0, %s61
    %s64 = sphi 0, %s63
    %s78 = sphi 0, %s64
    %s82 = sphi 0, %s82
    %s84 = sphi 0, %s82
    %s85 = sphi 0, %s84
    %s99 = sphi 0, %s85
    %s103 = sphi 0, %s103
    %s105 = sphi 0, %s103
    %s106 = sphi 0, %s105
    %s120 = sphi 0, %s106
    %s124 = sphi 0, %s124
    %s126 = sphi 0, %s124
    %s127 = sphi 0, %s126
    %s141 = sphi 0, %s127
    %s149 = sphi 0, %s151
    %s152 = sphi 0, %s149
    %s153 = sphi 0, %s152
    %s169 = sphi 0, %s153
    %s177 = sphi 0, %s179
    %s180 = sphi 0, %s177
    %s181 = sphi 0, %s180
    %s197 = sphi 0, %s181
  $region4: #{attention_block_forward.9} parent=0 // loop_header_branch
    %16 = sbr.rel (%p14) target = $region8
  $region5: #{attention_block_forward.9} parent=0 // loop_body
    %s18 = ssub.s32 %s13, 1
    %s19 = ssub.s32 %s13, 2
    %s26 = sadd.s32 1, %s21
    %p27 = scmp.ge.s32.totalorder %s26, 1
    %s28 = scalar_select %p27, 0, %s26
    %s29 = sadd.s32 1, %s20
    %s30 = scalar_select %p27, %s29, %s20
    %p31 = scmp.ge.s32.totalorder %s30, 2
    %s32 = scalar_select %p31, 0, %s30
    %s33 = ssub.s32 %s20, %s32
    %s34 = ssub.s32 %s21, %s28
    %s35 = sor.u32 %s33, %s34
    %p36 = scmp.eq.s32.totalorder %s35, 0
    %s38 = sadd.s32 %s37, 1
    %s39 = scalar_select %p36, %s37, %s38
    %p42 = pneg %p36
    %p43 = scmp.eq.s32.totalorder %s13, 1
    %p44 = por %p42, %p43
    %p45 = scmp.ne.s32.totalorder %s37, %s40
    %p46 = scmp.eq.s32.totalorder %s13, 0
    %p47 = por %p45, %p46
    %p48 = scmp.ne.s32.totalorder %s37, %s40
    %p49 = scmp.eq.s32.totalorder %s18, 1
    %p50 = por %p48, %p49
    %p51 = scmp.ne.s32.totalorder %s40, %s41
    %p52 = scmp.eq.s32.totalorder %s18, 0
    %p53 = por %p51, %p52
    %p54 = scmp.ne.s32.totalorder %s40, %s41
    %p55 = scmp.eq.s32.totalorder %s19, 1
    %p56 = por %p54, %p55
    %p58 = scmp.ne.s32.totalorder %s41, %s57
    %p59 = scmp.eq.s32.totalorder %s19, 0
    %p60 = por %p58, %p59
    %s62 = sadd.s32 %s61, 1
    %p65 = scmp.eq.s32.totalorder %s13, 1
    %p66 = scmp.ne.s32.totalorder %s61, %s63
    %p67 = scmp.eq.s32.totalorder %s13, 0
    %p68 = por %p66, %p67
    %p69 = scmp.ne.s32.totalorder %s61, %s63
    %p70 = scmp.eq.s32.totalorder %s18, 1
    %p71 = por %p69, %p70
    %p72 = scmp.ne.s32.totalorder %s63, %s64
    %p73 = scmp.eq.s32.totalorder %s18, 0
    %p74 = por %p72, %p73
    %p75 = scmp.ne.s32.totalorder %s63, %s64
    %p76 = scmp.eq.s32.totalorder %s19, 1
    %p77 = por %p75, %p76
    %p79 = scmp.ne.s32.totalorder %s64, %s78
    %p80 = scmp.eq.s32.totalorder %s19, 0
    %p81 = por %p79, %p80
    %s83 = sadd.s32 %s82, 1
    %p86 = scmp.eq.s32.totalorder %s13, 1
    %p87 = scmp.ne.s32.totalorder %s82, %s84
    %p88 = scmp.eq.s32.totalorder %s13, 0
    %p89 = por %p87, %p88
    %p90 = scmp.ne.s32.totalorder %s82, %s84
    %p91 = scmp.eq.s32.totalorder %s18, 1
    %p92 = por %p90, %p91
    %p93 = scmp.ne.s32.totalorder %s84, %s85
    %p94 = scmp.eq.s32.totalorder %s18, 0
    %p95 = por %p93, %p94
    %p96 = scmp.ne.s32.totalorder %s84, %s85
    %p97 = scmp.eq.s32.totalorder %s19, 1
    %p98 = por %p96, %p97
    %p100 = scmp.ne.s32.totalorder %s85, %s99
    %p101 = scmp.eq.s32.totalorder %s19, 0
    %p102 = por %p100, %p101
    %s104 = sadd.s32 %s103, 1
    %p107 = scmp.eq.s32.totalorder %s13, 1
    %p108 = scmp.ne.s32.totalorder %s103, %s105
    %p109 = scmp.eq.s32.totalorder %s13, 0
    %p110 = por %p108, %p109
    %p111 = scmp.ne.s32.totalorder %s103, %s105
    %p112 = scmp.eq.s32.totalorder %s18, 1
    %p113 = por %p111, %p112
    %p114 = scmp.ne.s32.totalorder %s105, %s106
    %p115 = scmp.eq.s32.totalorder %s18, 0
    %p116 = por %p114, %p115
    %p117 = scmp.ne.s32.totalorder %s105, %s106
    %p118 = scmp.eq.s32.totalorder %s19, 1
    %p119 = por %p117, %p118
    %p121 = scmp.ne.s32.totalorder %s106, %s120
    %p122 = scmp.eq.s32.totalorder %s19, 0
    %p123 = por %p121, %p122
    %s125 = sadd.s32 %s124, 1
    %p128 = scmp.eq.s32.totalorder %s13, 1
    %p129 = scmp.ne.s32.totalorder %s124, %s126
    %p130 = scmp.eq.s32.totalorder %s13, 0
    %p131 = por %p129, %p130
    %p132 = scmp.ne.s32.totalorder %s124, %s126
    %p133 = scmp.eq.s32.totalorder %s18, 1
    %p134 = por %p132, %p133
    %p135 = scmp.ne.s32.totalorder %s126, %s127
    %p136 = scmp.eq.s32.totalorder %s18, 0
    %p137 = por %p135, %p136
    %p138 = scmp.ne.s32.totalorder %s126, %s127
    %p139 = scmp.eq.s32.totalorder %s19, 1
    %p140 = por %p138, %p139
    %p142 = scmp.ne.s32.totalorder %s127, %s141
    %p143 = scmp.eq.s32.totalorder %s19, 0
    %p144 = por %p142, %p143
    %s145 = ssub.s32 %s20, %s32
    %s146 = ssub.s32 %s21, %s28
    %s147 = sor.u32 %s145, %s146
    %p148 = scmp.eq.s32.totalorder %s147, 0
    %s150 = sadd.s32 %s149, 1
    %s151 = scalar_select %p148, %s149, %s150
    %p154 = pneg %p148
    %p155 = scmp.eq.s32.totalorder %s13, 1
    %p156 = por %p154, %p155
    %p157 = scmp.ne.s32.totalorder %s149, %s152
    %p158 = scmp.eq.s32.totalorder %s13, 0
    %p159 = por %p157, %p158
    %p160 = scmp.ne.s32.totalorder %s149, %s152
    %p161 = scmp.eq.s32.totalorder %s18, 1
    %p162 = por %p160, %p161
    %p163 = scmp.ne.s32.totalorder %s152, %s153
    %p164 = scmp.eq.s32.totalorder %s18, 0
    %p165 = por %p163, %p164
    %p166 = scmp.ne.s32.totalorder %s152, %s153
    %p167 = scmp.eq.s32.totalorder %s19, 1
    %p168 = por %p166, %p167
    %p170 = scmp.ne.s32.totalorder %s153, %s169
    %p171 = scmp.eq.s32.totalorder %s19, 0
    %p172 = por %p170, %p171
    %s173 = ssub.s32 %s20, %s32
    %s174 = ssub.s32 %s21, %s28
    %s175 = sor.u32 %s173, %s174
    %p176 = scmp.eq.s32.totalorder %s175, 0
    %s178 = sadd.s32 %s177, 1
    %s179 = scalar_select %p176, %s177, %s178
    %p182 = pneg %p176
    %p183 = scmp.eq.s32.totalorder %s13, 1
    %p184 = por %p182, %p183
    %p185 = scmp.ne.s32.totalorder %s177, %s180
    %p186 = scmp.eq.s32.totalorder %s13, 0
    %p187 = por %p185, %p186
    %p188 = scmp.ne.s32.totalorder %s177, %s180
    %p189 = scmp.eq.s32.totalorder %s18, 1
    %p190 = por %p188, %p189
    %p191 = scmp.ne.s32.totalorder %s180, %s181
    %p192 = scmp.eq.s32.totalorder %s18, 0
    %p193 = por %p191, %p192
    %p194 = scmp.ne.s32.totalorder %s180, %s181
    %p195 = scmp.eq.s32.totalorder %s19, 1
    %p196 = por %p194, %p195
    %p198 = scmp.ne.s32.totalorder %s181, %s197
    %p199 = scmp.eq.s32.totalorder %s19, 0
    %p200 = por %p198, %p199
    %p201 = scmp.le.s32.totalorder 1, %s13
    %p202 = scmp.lt.s32.totalorder %s13, 3
    %p203 = pnand %p201, %p202
    %p204 = pneg %p203
    // Predicated region
    $region9: #{attention_block_forward.9} parent=5 // pred_check
      _
    $region10: #{attention_block_forward.9} parent=5 // pred_check_branch
      %206 = sbr.rel (%p203) target = $region12
    $region11: #{attention_block_forward.9} parent=5 // pred_region
      %s207 = ssub.s32 %s13, 1
      // Predicated region
      $region13: #{attention_block_forward.9} parent=11 // pred_check
        %p208 = pneg %p74
      $region14: #{attention_block_forward.9} parent=11 // pred_check_branch
        %210 = sbr.rel (%p208) target = $region16
      $region15: #{attention_block_forward.9} parent=11 // pred_region
        _
      $region16: #{attention_block_forward.9} parent=11 // pred_fallthru
        _
      // Predicated region
      $region17: #{attention_block_forward.9} parent=11 // pred_check
        %p211 = pneg %p95
      $region18: #{attention_block_forward.9} parent=11 // pred_check_branch
        %213 = sbr.rel (%p211) target = $region20
      $region19: #{attention_block_forward.9} parent=11 // pred_region
        _
      $region20: #{attention_block_forward.9} parent=11 // pred_fallthru
        _
      // Predicated region
      $region21: #{attention_block_forward.9} parent=11 // pred_check
        %p214 = pneg %p116
      $region22: #{attention_block_forward.9} parent=11 // pred_check_branch
        %216 = sbr.rel (%p214) target = $region24
      $region23: #{attention_block_forward.9} parent=11 // pred_region
        _
      $region24: #{attention_block_forward.9} parent=11 // pred_fallthru
        _
      // Predicated region
      $region25: #{attention_block_forward.9} parent=11 // pred_check
        %p217 = pneg %p137
      $region26: #{attention_block_forward.9} parent=11 // pred_check_branch
        %219 = sbr.rel (%p217) target = $region28
      $region27: #{attention_block_forward.9} parent=11 // pred_region
        _
      $region28: #{attention_block_forward.9} parent=11 // pred_fallthru
        _
    $region12: #{attention_block_forward.9} parent=5 // pred_fallthru
      _
    %p220 = scmp.lt.s32.totalorder %s13, 2
    // Predicated region
    $region29: #{attention_block_forward.9} parent=5 // pred_check
      %p221 = pneg %p220
    $region30: #{attention_block_forward.9} parent=5 // pred_check_branch
      %223 = sbr.rel (%p221) target = $region32
    $region31: #{attention_block_forward.9} parent=5 // pred_region
      // Predicated region
      $region33: #{attention_block_forward.9} parent=31 // pred_check
        %p224 = pneg %p47
      $region34: #{attention_block_forward.9} parent=31 // pred_check_branch
        %226 = sbr.rel (%p224) target = $region36
      $region35: #{attention_block_forward.9} parent=31 // pred_region
        %s227 = smul.u32 2, %s21
        %p228 = scmp.lt.s32.totalorder %s20, 1
        %s229 = scalar_select %p228, %s20, 1
        %p230 = scmp.lt.s32.totalorder %s227, 1
        %s231 = scalar_select %p230, %s227, 1
        %s232 = smul.addr %s229, 2
        %s233 = sadd.s32 %s231, %s232
        %s234 = smul.addr %s233, 4
        %s235 = scalar_lea.vmem %s0, %s234
        %s236 = smul.u32 2, %s21
      $region36: #{attention_block_forward.9} parent=31 // pred_fallthru
        _
    $region32: #{attention_block_forward.9} parent=5 // pred_fallthru
      _
    %p237 = scmp.le.s32.totalorder 1, %s13
    %p238 = scmp.lt.s32.totalorder %s13, 3
    %p239 = pnand %p237, %p238
    %p240 = pneg %p239
    // Predicated region
    $region37: #{attention_block_forward.9} parent=5 // pred_check
      _
    $region38: #{attention_block_forward.9} parent=5 // pred_check_branch
      %242 = sbr.rel (%p239) target = $region40
    $region39: #{attention_block_forward.9} parent=5 // pred_region
      %s243 = ssub.s32 %s13, 1
      %s244 = smul.u32 2, %s23
      %p245 = scmp.lt.s32.totalorder %s22, 1
      %s246 = scalar_select %p245, %s22, 1
      %p247 = scmp.lt.s32.totalorder %s244, 1
      %s248 = scalar_select %p247, %s244, 1
      %s249 = smul.addr %s246, 2
      %s250 = sadd.s32 %s248, %s249
      %s251 = smul.addr %s250, 4
      %s252 = scalar_lea.vmem %s0, %s251
      %p253 = pneg %p53
      %p254 = pneg %p50
      %p255 = pneg %p74
      %p256 = pneg %p71
      %p257 = pneg %p95
      %p258 = pneg %p92
      %p259 = pneg %p116
      %p260 = pneg %p113
      %p261 = pneg %p137
      %p262 = pneg %p134
      %p263 = pneg %p165
      %p264 = pneg %p162
      %s265 = smul.u32 2, %s23
      %p266 = scmp.lt.s32.totalorder %s22, 1
      %s267 = scalar_select %p266, %s22, 1
      %p268 = scmp.lt.s32.totalorder %s265, 1
      %s269 = scalar_select %p268, %s265, 1
      %s270 = smul.addr %s267, 2
      %s271 = sadd.s32 %s269, %s270
      %s272 = smul.addr %s271, 4
      %s273 = scalar_lea.vmem %s5, %s272
      %p274 = pneg %p193
      %p275 = pneg %p190
      %s276 = smul.u32 2, %s23
      %p277 = scmp.lt.s32.totalorder %s22, 1
      %s278 = scalar_select %p277, %s22, 1
      %p279 = scmp.lt.s32.totalorder %s276, 1
      %s280 = scalar_select %p279, %s276, 1
      %s281 = smul.addr %s278, 2
      %s282 = sadd.s32 %s280, %s281
      %s283 = smul.addr %s282, 4
      %s284 = scalar_lea.vmem %s6, %s283
      %s285 = smul.u32 2, %s23
      %p286 = scmp.lt.s32.totalorder %s22, 1
      %s287 = scalar_select %p286, %s22, 1
      %p288 = scmp.lt.s32.totalorder %s285, 1
      %s289 = scalar_select %p288, %s285, 1
      %s290 = smul.addr %s287, 2
      %s291 = sadd.s32 %s289, %s290
      %s292 = smul.addr %s291, 4
      %s293 = scalar_lea.vmem %s0, %s292
      %s294 = smul.u32 2, %s23
      %s295 = smul.u32 2, %s23
      %p296 = scmp.lt.s32.totalorder %s22, 1
      %s297 = scalar_select %p296, %s22, 1
      %p298 = scmp.lt.s32.totalorder %s295, 1
      %s299 = scalar_select %p298, %s295, 1
      %s300 = smul.addr %s297, 2
      %s301 = sadd.s32 %s299, %s300
      %s302 = smul.addr %s301, 4
      %s303 = scalar_lea.vmem %s5, %s302
      %s304 = smul.u32 2, %s23
      %s305 = smul.u32 2, %s23
      %p306 = scmp.lt.s32.totalorder %s22, 1
      %s307 = scalar_select %p306, %s22, 1
      %p308 = scmp.lt.s32.totalorder %s305, 1
      %s309 = scalar_select %p308, %s305, 1
      %s310 = smul.addr %s307, 2
      %s311 = sadd.s32 %s309, %s310
      %s312 = smul.addr %s311, 4
      %s313 = scalar_lea.vmem %s6, %s312
      %s314 = smul.u32 2, %s23
      %v316 = vld [vmem:[%s293] sm:$0xf]
      %v317 = vld [vmem:[%s293 + $0x4] sm:$0xf]
      %v318 = vld [vmem:[%s1] sm:$0xf]
      %v319 = vld [vmem:[%s1 + $0x4] sm:$0xf]
      %v320 = vld [vmem:[%s1 + $0x8] sm:$0xf]
      %v321 = vld [vmem:[%s1 + $0xc] sm:$0xf]
      %v322 = vld [vmem:[%s2] sm:$0x1]
      %v324 = vlaneseq
      %v325 = vshrl.u32 %v324, 7
      %v326 = vsub.s32 0, %v325
      %v327 = vrot.slane %v322, %v326
      %v331 = vunpack.c.l.b16 %v316
      %v332 = vunpack.c.l.b16 %v317
      %v333 = vpack.c.b16 %v332, %v331
      %v338 = vunpack.c.l.b16 %v318
      %v339 = vunpack.c.l.b16 %v319
      %v340 = vunpack.c.l.b16 %v320
      %v341 = vunpack.c.l.b16 %v321
      %v342 = vpack.c.b16 %v339, %v338
      %v343 = vpack.c.b16 %v341, %v340
      %vm346 = vcmask 261120
      %v348 = vsel %vm346, %v333, 0
      %350 = vmatprep.subr.bf16.mxu0 0
      %351 = vmatpush1.bf16.msra.mxu0 %v342
      %352 = vmatprep.subr.bf16.mxu0 0
      %353 = vmatpush1.bf16.msra.mxu0 %v343
      %354 = vmatprep.subr.bf16.mxu0 0
      %355 = vmatpush1.bf16.msra.mxu0 0
      %356 = vmatprep.subr.bf16.mxu0 0
      %357 = vmatpush1.bf16.msra.mxu0 0
      %358 = vmatprep.subr.bf16.mxu0 0
      %359 = vmatpush1.bf16.msra.mxu0 0
      %360 = vmatprep.subr.bf16.mxu0 0
      %361 = vmatpush1.bf16.msra.mxu0 0
      %362 = vmatprep.subr.bf16.mxu0 0
      %363 = vmatpush1.bf16.msra.mxu0 0
      %364 = vmatprep.subr.bf16.mxu0 0
      %365 = vmatpush1.bf16.msra.mxu0 0
      %366 = vmatprep.subr.bf16.mxu0 0
      %367 = vmatpush1.bf16.msra.mxu0 0
      %368 = vmatprep.subr.bf16.mxu0 0
      %369 = vmatpush1.bf16.msra.mxu0 0
      %370 = vmatprep.subr.bf16.mxu0 0
      %371 = vmatpush1.bf16.msra.mxu0 0
      %372 = vmatprep.subr.bf16.mxu0 0
      %373 = vmatpush1.bf16.msra.mxu0 0
      %374 = vmatprep.subr.bf16.mxu0 0
      %375 = vmatpush1.bf16.msra.mxu0 0
      %376 = vmatprep.subr.bf16.mxu0 0
      %377 = vmatpush1.bf16.msra.mxu0 0
      %378 = vmatprep.subr.bf16.mxu0 0
      %379 = vmatpush1.bf16.msra.mxu0 0
      %380 = vmatprep.subr.bf16.mxu0 0
      %381 = vmatpush1.bf16.msra.mxu0 0
      %382 = vmatprep.mubr.bf16.mxu0 0
      %383 = vmatmul.mubr.bf16.gmra.mrb[0].mxu0 %v348
      %v384 = vpop.f32.mrb[0].mxu0
      %v385 = vadd.f32 %v327, %v384
      %v386 = vpop.f32.mrb[0].mxu0
      %v387 = vpop.f32.mrb[0].mxu0
      %v388 = vadd.f32 %v327, %v387
      %v389 = vpop.f32.mrb[0].mxu0
      %390 = vdwg.mxu0
      %v391 = vpack.c.bf16 %v388, %v385
      %v393 = vunpack.c.l.b16 %v391
      %v394 = vunpack.c.h.b16 %v391
      %v395 = vpack.c.b16 %v393, %v393
      %v396 = vpack.c.b16 %v394, %v394
      %vm399 = vcmask 257024
      %400 = vst.msk [vmem:[%s303] sm:$0xf] %vm399, %v395
      %401 = vst.msk [vmem:[%s303 + $0x4] sm:$0xf] %vm399, %v396
      %v402 = vld [vmem:[%s3] sm:$0xf]
      %v403 = vld [vmem:[%s3 + $0x4] sm:$0xf]
      %v404 = vld [vmem:[%s3 + $0x8] sm:$0xf]
      %v405 = vld [vmem:[%s3 + $0xc] sm:$0xf]
      %v406 = vld [vmem:[%s4] sm:$0x1]
      %v408 = vlaneseq
      %v409 = vshrl.u32 %v408, 7
      %v410 = vsub.s32 0, %v409
      %v411 = vrot.slane %v406, %v410
      %v417 = vunpack.c.l.b16 %v402
      %v418 = vunpack.c.l.b16 %v403
      %v419 = vunpack.c.l.b16 %v404
      %v420 = vunpack.c.l.b16 %v405
      %v421 = vpack.c.b16 %v418, %v417
      %v422 = vpack.c.b16 %v420, %v419
      %425 = vmatprep.subr.bf16.mxu0 0
      %426 = vmatpush1.bf16.msra.mxu0 %v421
      %427 = vmatprep.subr.bf16.mxu0 0
      %428 = vmatpush1.bf16.msra.mxu0 %v422
      %429 = vmatprep.subr.bf16.mxu0 0
      %430 = vmatpush1.bf16.msra.mxu0 0
      %431 = vmatprep.subr.bf16.mxu0 0
      %432 = vmatpush1.bf16.msra.mxu0 0
      %433 = vmatprep.subr.bf16.mxu0 0
      %434 = vmatpush1.bf16.msra.mxu0 0
      %435 = vmatprep.subr.bf16.mxu0 0
      %436 = vmatpush1.bf16.msra.mxu0 0
      %437 = vmatprep.subr.bf16.mxu0 0
      %438 = vmatpush1.bf16.msra.mxu0 0
      %439 = vmatprep.subr.bf16.mxu0 0
      %440 = vmatpush1.bf16.msra.mxu0 0
      %441 = vmatprep.subr.bf16.mxu0 0
      %442 = vmatpush1.bf16.msra.mxu0 0
      %443 = vmatprep.subr.bf16.mxu0 0
      %444 = vmatpush1.bf16.msra.mxu0 0
      %445 = vmatprep.subr.bf16.mxu0 0
      %446 = vmatpush1.bf16.msra.mxu0 0
      %447 = vmatprep.subr.bf16.mxu0 0
      %448 = vmatpush1.bf16.msra.mxu0 0
      %449 = vmatprep.subr.bf16.mxu0 0
      %450 = vmatpush1.bf16.msra.mxu0 0
      %451 = vmatprep.subr.bf16.mxu0 0
      %452 = vmatpush1.bf16.msra.mxu0 0
      %453 = vmatprep.subr.bf16.mxu0 0
      %454 = vmatpush1.bf16.msra.mxu0 0
      %455 = vmatprep.subr.bf16.mxu0 0
      %456 = vmatpush1.bf16.msra.mxu0 0
      %457 = vmatprep.mubr.bf16.mxu0 0
      %458 = vmatmul.mubr.bf16.gmra.mrb[0].mxu0 %v348
      %v459 = vpop.f32.mrb[0].mxu0
      %v460 = vadd.f32 %v411, %v459
      %v461 = vpop.f32.mrb[0].mxu0
      %v462 = vpop.f32.mrb[0].mxu0
      %v463 = vadd.f32 %v411, %v462
      %v464 = vpop.f32.mrb[0].mxu0
      %465 = vdwg.mxu0
      %v466 = vpack.c.bf16 %v463, %v460
      %v468 = vunpack.c.l.b16 %v466
      %v469 = vunpack.c.h.b16 %v466
      %v470 = vpack.c.b16 %v468, %v468
      %v471 = vpack.c.b16 %v469, %v469
      %vm474 = vcmask 519168
      %475 = vst.msk [vmem:[%s313] sm:$0xf] %vm474, %v470
      %476 = vst.msk [vmem:[%s313 + $0x4] sm:$0xf] %vm474, %v471
      %s477 = smul.u32 2, %s23
      %p478 = scmp.lt.s32.totalorder %s22, 1
      %s479 = scalar_select %p478, %s22, 1
      %p480 = scmp.lt.s32.totalorder %s477, 1
      %s481 = scalar_select %p480, %s477, 1
      %s482 = smul.addr %s479, 2
      %s483 = sadd.s32 %s481, %s482
      %s484 = smul.addr %s483, 4
      %s485 = scalar_lea.vmem %s5, %s484
      %s486 = smul.u32 2, %s23
      %p487 = scmp.lt.s32.totalorder %s22, 1
      %s488 = scalar_select %p487, %s22, 1
      %p489 = scmp.lt.s32.totalorder %s486, 1
      %s490 = scalar_select %p489, %s486, 1
      %s491 = smul.addr %s488, 2
      %s492 = sadd.s32 %s490, %s491
      %s493 = smul.addr %s492, 4
      %s494 = scalar_lea.vmem %s6, %s493
      // Predicated region
      $region41: #{attention_block_forward.9} parent=39 // pred_check
        %p495 = pneg %p162
      $region42: #{attention_block_forward.9} parent=39 // pred_check_branch
        %497 = sbr.rel (%p495) target = $region44
      $region43: #{attention_block_forward.9} parent=39 // pred_region
        %s498 = smul.u32 2, %s23
      $region44: #{attention_block_forward.9} parent=39 // pred_fallthru
        _
      // Predicated region
      $region45: #{attention_block_forward.9} parent=39 // pred_check
        %p499 = pneg %p190
      $region46: #{attention_block_forward.9} parent=39 // pred_check_branch
        %501 = sbr.rel (%p499) target = $region48
      $region47: #{attention_block_forward.9} parent=39 // pred_region
        %s502 = smul.u32 2, %s23
      $region48: #{attention_block_forward.9} parent=39 // pred_fallthru
        _
    $region40: #{attention_block_forward.9} parent=5 // pred_fallthru
      _
    %p503 = scmp.le.s32.totalorder 2, %s13
    // Predicated region
    $region49: #{attention_block_forward.9} parent=5 // pred_check
      %p504 = pneg %p503
    $region50: #{attention_block_forward.9} parent=5 // pred_check_branch
      %506 = sbr.rel (%p504) target = $region52
    $region51: #{attention_block_forward.9} parent=5 // pred_region
      %s507 = ssub.s32 %s13, 2
      // Predicated region
      $region53: #{attention_block_forward.9} parent=51 // pred_check
        %p508 = pneg %p168
      $region54: #{attention_block_forward.9} parent=51 // pred_check_branch
        %510 = sbr.rel (%p508) target = $region56
      $region55: #{attention_block_forward.9} parent=51 // pred_region
        %s511 = smul.u32 2, %s25
        %p512 = scmp.lt.s32.totalorder %s24, 1
        %s513 = scalar_select %p512, %s24, 1
        %p514 = scmp.lt.s32.totalorder %s511, 1
        %s515 = scalar_select %p514, %s511, 1
        %s516 = smul.addr %s513, 2
        %s517 = sadd.s32 %s515, %s516
        %s518 = smul.addr %s517, 4
        %s519 = scalar_lea.vmem %s5, %s518
      $region56: #{attention_block_forward.9} parent=51 // pred_fallthru
        _
      // Predicated region
      $region57: #{attention_block_forward.9} parent=51 // pred_check
        %p520 = pneg %p196
      $region58: #{attention_block_forward.9} parent=51 // pred_check_branch
        %522 = sbr.rel (%p520) target = $region60
      $region59: #{attention_block_forward.9} parent=51 // pred_region
        %s523 = smul.u32 2, %s25
        %p524 = scmp.lt.s32.totalorder %s24, 1
        %s525 = scalar_select %p524, %s24, 1
        %p526 = scmp.lt.s32.totalorder %s523, 1
        %s527 = scalar_select %p526, %s523, 1
        %s528 = smul.addr %s525, 2
        %s529 = sadd.s32 %s527, %s528
        %s530 = smul.addr %s529, 4
        %s531 = scalar_lea.vmem %s6, %s530
      $region60: #{attention_block_forward.9} parent=51 // pred_fallthru
        _
    $region52: #{attention_block_forward.9} parent=5 // pred_fallthru
      _
  $region6: #{attention_block_forward.9} parent=0 // loop_footer
    %s17 = sadd.s32 1, %s13
  $region7: #{attention_block_forward.9} parent=0 // loop_footer_branch
    %12 = sbr.rel target = $region3
  $region8: #{attention_block_forward.9} parent=0 // loop_exit
    _

// kernel: attention_block_forward.14
$region0: #{attention_block_forward.14}
  #allocation0 [shape = 'u32[]', space=smem, size = 0x4, offset = 0x4, fixed_abs, tag = 'smem constant byte address 0x4 - core index']
  #allocation1 [shape = 'u32[144,128]{1,0:T(1,128)}', space=vmem, size = 0x12000, scoped, tag = 'internal scratch']
  %s0 = inlined_call_operand.vmem [shape: bf16[2,16,32], index: 0, kind: input, shape index: {}]
  %s1 = inlined_call_operand.vmem [shape: bf16[2,16,32], index: 1, kind: input, shape index: {}]
  %s2 = inlined_call_operand.vmem [shape: bf16[32,64], index: 2, kind: input, shape index: {}]
  %s3 = inlined_call_operand.vmem [shape: bf16[32,64], index: 3, kind: input, shape index: {}]
  %s4 = inlined_call_operand.vmem [shape: f32[1,64], index: 4, kind: input, shape index: {}]
  %s5 = inlined_call_operand.vmem [shape: bf16[2,16,64], index: 5, kind: output, shape index: {0}]
  %s6 = inlined_call_operand.vmem [shape: f32[2,2,64], index: 6, kind: output, shape index: {1}]
  %7 = xla_tuple %s5, %s6
  %s8 = sld [smem:[#allocation0]]
  $region65: #{attention_block_forward.14} parent=0
    _
  %s10 = ssub.s32 1, %s8
  %s11 = scalar_select 0, %s10, %s8
  loop: start=0, step=1, limit=4
  $region2: #{attention_block_forward.14} parent=0 // loop_pre_header
    _
  $region3: #{attention_block_forward.14} parent=0 // loop_header
    %s13 = sphi 0, %s17
    %p14 = scmp.ge.s32.totalorder %s13, 4
    %s20 = sphi 0, %s32
    %s21 = sphi 0, %s28
    %s22 = sphi 0, %s20
    %s23 = sphi 0, %s21
    %s24 = sphi 0, %s22
    %s25 = sphi 0, %s23
    %s37 = sphi 0, %s39
    %s40 = sphi 0, %s37
    %s41 = sphi 0, %s40
    %s57 = sphi 0, %s41
    %s65 = sphi 0, %s67
    %s68 = sphi 0, %s65
    %s69 = sphi 0, %s68
    %s85 = sphi 0, %s69
    %s89 = sphi 0, %s89
    %s91 = sphi 0, %s89
    %s92 = sphi 0, %s91
    %s106 = sphi 0, %s92
    %s110 = sphi 0, %s110
    %s112 = sphi 0, %s110
    %s113 = sphi 0, %s112
    %s127 = sphi 0, %s113
    %s131 = sphi 0, %s131
    %s133 = sphi 0, %s131
    %s134 = sphi 0, %s133
    %s148 = sphi 0, %s134
    %s156 = sphi 0, %s158
    %s159 = sphi 0, %s156
    %s160 = sphi 0, %s159
    %s176 = sphi 0, %s160
    %s182 = sphi 0, %s184
    %s185 = sphi 0, %s182
    %s186 = sphi 0, %s185
    %s202 = sphi 0, %s186
  $region4: #{attention_block_forward.14} parent=0 // loop_header_branch
    %16 = sbr.rel (%p14) target = $region8
  $region5: #{attention_block_forward.14} parent=0 // loop_body
    %s18 = ssub.s32 %s13, 1
    %s19 = ssub.s32 %s13, 2
    %s26 = sadd.s32 1, %s21
    %p27 = scmp.ge.s32.totalorder %s26, 1
    %s28 = scalar_select %p27, 0, %s26
    %s29 = sadd.s32 1, %s20
    %s30 = scalar_select %p27, %s29, %s20
    %p31 = scmp.ge.s32.totalorder %s30, 2
    %s32 = scalar_select %p31, 0, %s30
    %s33 = ssub.s32 %s20, %s32
    %s34 = ssub.s32 %s21, %s28
    %s35 = sor.u32 %s33, %s34
    %p36 = scmp.eq.s32.totalorder %s35, 0
    %s38 = sadd.s32 %s37, 1
    %s39 = scalar_select %p36, %s37, %s38
    %p42 = pneg %p36
    %p43 = scmp.eq.s32.totalorder %s13, 1
    %p44 = por %p42, %p43
    %p45 = scmp.ne.s32.totalorder %s37, %s40
    %p46 = scmp.eq.s32.totalorder %s13, 0
    %p47 = por %p45, %p46
    %p48 = scmp.ne.s32.totalorder %s37, %s40
    %p49 = scmp.eq.s32.totalorder %s18, 1
    %p50 = por %p48, %p49
    %p51 = scmp.ne.s32.totalorder %s40, %s41
    %p52 = scmp.eq.s32.totalorder %s18, 0
    %p53 = por %p51, %p52
    %p54 = scmp.ne.s32.totalorder %s40, %s41
    %p55 = scmp.eq.s32.totalorder %s19, 1
    %p56 = por %p54, %p55
    %p58 = scmp.ne.s32.totalorder %s41, %s57
    %p59 = scmp.eq.s32.totalorder %s19, 0
    %p60 = por %p58, %p59
    %s61 = ssub.s32 %s20, %s32
    %s62 = ssub.s32 %s21, %s28
    %s63 = sor.u32 %s61, %s62
    %p64 = scmp.eq.s32.totalorder %s63, 0
    %s66 = sadd.s32 %s65, 1
    %s67 = scalar_select %p64, %s65, %s66
    %p70 = pneg %p64
    %p71 = scmp.eq.s32.totalorder %s13, 1
    %p72 = por %p70, %p71
    %p73 = scmp.ne.s32.totalorder %s65, %s68
    %p74 = scmp.eq.s32.totalorder %s13, 0
    %p75 = por %p73, %p74
    %p76 = scmp.ne.s32.totalorder %s65, %s68
    %p77 = scmp.eq.s32.totalorder %s18, 1
    %p78 = por %p76, %p77
    %p79 = scmp.ne.s32.totalorder %s68, %s69
    %p80 = scmp.eq.s32.totalorder %s18, 0
    %p81 = por %p79, %p80
    %p82 = scmp.ne.s32.totalorder %s68, %s69
    %p83 = scmp.eq.s32.totalorder %s19, 1
    %p84 = por %p82, %p83
    %p86 = scmp.ne.s32.totalorder %s69, %s85
    %p87 = scmp.eq.s32.totalorder %s19, 0
    %p88 = por %p86, %p87
    %s90 = sadd.s32 %s89, 1
    %p93 = scmp.eq.s32.totalorder %s13, 1
    %p94 = scmp.ne.s32.totalorder %s89, %s91
    %p95 = scmp.eq.s32.totalorder %s13, 0
    %p96 = por %p94, %p95
    %p97 = scmp.ne.s32.totalorder %s89, %s91
    %p98 = scmp.eq.s32.totalorder %s18, 1
    %p99 = por %p97, %p98
    %p100 = scmp.ne.s32.totalorder %s91, %s92
    %p101 = scmp.eq.s32.totalorder %s18, 0
    %p102 = por %p100, %p101
    %p103 = scmp.ne.s32.totalorder %s91, %s92
    %p104 = scmp.eq.s32.totalorder %s19, 1
    %p105 = por %p103, %p104
    %p107 = scmp.ne.s32.totalorder %s92, %s106
    %p108 = scmp.eq.s32.totalorder %s19, 0
    %p109 = por %p107, %p108
    %s111 = sadd.s32 %s110, 1
    %p114 = scmp.eq.s32.totalorder %s13, 1
    %p115 = scmp.ne.s32.totalorder %s110, %s112
    %p116 = scmp.eq.s32.totalorder %s13, 0
    %p117 = por %p115, %p116
    %p118 = scmp.ne.s32.totalorder %s110, %s112
    %p119 = scmp.eq.s32.totalorder %s18, 1
    %p120 = por %p118, %p119
    %p121 = scmp.ne.s32.totalorder %s112, %s113
    %p122 = scmp.eq.s32.totalorder %s18, 0
    %p123 = por %p121, %p122
    %p124 = scmp.ne.s32.totalorder %s112, %s113
    %p125 = scmp.eq.s32.totalorder %s19, 1
    %p126 = por %p124, %p125
    %p128 = scmp.ne.s32.totalorder %s113, %s127
    %p129 = scmp.eq.s32.totalorder %s19, 0
    %p130 = por %p128, %p129
    %s132 = sadd.s32 %s131, 1
    %p135 = scmp.eq.s32.totalorder %s13, 1
    %p136 = scmp.ne.s32.totalorder %s131, %s133
    %p137 = scmp.eq.s32.totalorder %s13, 0
    %p138 = por %p136, %p137
    %p139 = scmp.ne.s32.totalorder %s131, %s133
    %p140 = scmp.eq.s32.totalorder %s18, 1
    %p141 = por %p139, %p140
    %p142 = scmp.ne.s32.totalorder %s133, %s134
    %p143 = scmp.eq.s32.totalorder %s18, 0
    %p144 = por %p142, %p143
    %p145 = scmp.ne.s32.totalorder %s133, %s134
    %p146 = scmp.eq.s32.totalorder %s19, 1
    %p147 = por %p145, %p146
    %p149 = scmp.ne.s32.totalorder %s134, %s148
    %p150 = scmp.eq.s32.totalorder %s19, 0
    %p151 = por %p149, %p150
    %s152 = ssub.s32 %s20, %s32
    %s153 = ssub.s32 %s21, %s28
    %s154 = sor.u32 %s152, %s153
    %p155 = scmp.eq.s32.totalorder %s154, 0
    %s157 = sadd.s32 %s156, 1
    %s158 = scalar_select %p155, %s156, %s157
    %p161 = pneg %p155
    %p162 = scmp.eq.s32.totalorder %s13, 1
    %p163 = por %p161, %p162
    %p164 = scmp.ne.s32.totalorder %s156, %s159
    %p165 = scmp.eq.s32.totalorder %s13, 0
    %p166 = por %p164, %p165
    %p167 = scmp.ne.s32.totalorder %s156, %s159
    %p168 = scmp.eq.s32.totalorder %s18, 1
    %p169 = por %p167, %p168
    %p170 = scmp.ne.s32.totalorder %s159, %s160
    %p171 = scmp.eq.s32.totalorder %s18, 0
    %p172 = por %p170, %p171
    %p173 = scmp.ne.s32.totalorder %s159, %s160
    %p174 = scmp.eq.s32.totalorder %s19, 1
    %p175 = por %p173, %p174
    %p177 = scmp.ne.s32.totalorder %s160, %s176
    %p178 = scmp.eq.s32.totalorder %s19, 0
    %p179 = por %p177, %p178
    %s180 = ssub.s32 %s20, %s32
    %p181 = scmp.eq.s32.totalorder %s180, 0
    %s183 = sadd.s32 %s182, 1
    %s184 = scalar_select %p181, %s182, %s183
    %p187 = pneg %p181
    %p188 = scmp.eq.s32.totalorder %s13, 1
    %p189 = por %p187, %p188
    %p190 = scmp.ne.s32.totalorder %s182, %s185
    %p191 = scmp.eq.s32.totalorder %s13, 0
    %p192 = por %p190, %p191
    %p193 = scmp.ne.s32.totalorder %s182, %s185
    %p194 = scmp.eq.s32.totalorder %s18, 1
    %p195 = por %p193, %p194
    %p196 = scmp.ne.s32.totalorder %s185, %s186
    %p197 = scmp.eq.s32.totalorder %s18, 0
    %p198 = por %p196, %p197
    %p199 = scmp.ne.s32.totalorder %s185, %s186
    %p200 = scmp.eq.s32.totalorder %s19, 1
    %p201 = por %p199, %p200
    %p203 = scmp.ne.s32.totalorder %s186, %s202
    %p204 = scmp.eq.s32.totalorder %s19, 0
    %p205 = por %p203, %p204
    %p206 = scmp.le.s32.totalorder 1, %s13
    %p207 = scmp.lt.s32.totalorder %s13, 3
    %p208 = pnand %p206, %p207
    %p209 = pneg %p208
    // Predicated region
    $region9: #{attention_block_forward.14} parent=5 // pred_check
      _
    $region10: #{attention_block_forward.14} parent=5 // pred_check_branch
      %211 = sbr.rel (%p208) target = $region12
    $region11: #{attention_block_forward.14} parent=5 // pred_region
      %s212 = ssub.s32 %s13, 1
      // Predicated region
      $region13: #{attention_block_forward.14} parent=11 // pred_check
        %p213 = pneg %p102
      $region14: #{attention_block_forward.14} parent=11 // pred_check_branch
        %215 = sbr.rel (%p213) target = $region16
      $region15: #{attention_block_forward.14} parent=11 // pred_region
        _
      $region16: #{attention_block_forward.14} parent=11 // pred_fallthru
        _
      // Predicated region
      $region17: #{attention_block_forward.14} parent=11 // pred_check
        %p216 = pneg %p123
      $region18: #{attention_block_forward.14} parent=11 // pred_check_branch
        %218 = sbr.rel (%p216) target = $region20
      $region19: #{attention_block_forward.14} parent=11 // pred_region
        _
      $region20: #{attention_block_forward.14} parent=11 // pred_fallthru
        _
      // Predicated region
      $region21: #{attention_block_forward.14} parent=11 // pred_check
        %p219 = pneg %p144
      $region22: #{attention_block_forward.14} parent=11 // pred_check_branch
        %221 = sbr.rel (%p219) target = $region24
      $region23: #{attention_block_forward.14} parent=11 // pred_region
        _
      $region24: #{attention_block_forward.14} parent=11 // pred_fallthru
        _
    $region12: #{attention_block_forward.14} parent=5 // pred_fallthru
      _
    %p222 = scmp.lt.s32.totalorder %s13, 2
    // Predicated region
    $region25: #{attention_block_forward.14} parent=5 // pred_check
      %p223 = pneg %p222
    $region26: #{attention_block_forward.14} parent=5 // pred_check_branch
      %225 = sbr.rel (%p223) target = $region28
    $region27: #{attention_block_forward.14} parent=5 // pred_region
      // Predicated region
      $region29: #{attention_block_forward.14} parent=27 // pred_check
        %p226 = pneg %p47
      $region30: #{attention_block_forward.14} parent=27 // pred_check_branch
        %228 = sbr.rel (%p226) target = $region32
      $region31: #{attention_block_forward.14} parent=27 // pred_region
        %s229 = smul.u32 2, %s21
        %p230 = scmp.lt.s32.totalorder %s20, 1
        %s231 = scalar_select %p230, %s20, 1
        %p232 = scmp.lt.s32.totalorder %s229, 1
        %s233 = scalar_select %p232, %s229, 1
        %s234 = smul.addr %s231, 2
        %s235 = sadd.s32 %s233, %s234
        %s236 = smul.addr %s235, 4
        %s237 = scalar_lea.vmem %s0, %s236
        %s238 = smul.u32 2, %s21
      $region32: #{attention_block_forward.14} parent=27 // pred_fallthru
        _
      // Predicated region
      $region33: #{attention_block_forward.14} parent=27 // pred_check
        %p239 = pneg %p75
      $region34: #{attention_block_forward.14} parent=27 // pred_check_branch
        %241 = sbr.rel (%p239) target = $region36
      $region35: #{attention_block_forward.14} parent=27 // pred_region
        %s242 = smul.u32 2, %s21
        %p243 = scmp.lt.s32.totalorder %s20, 1
        %s244 = scalar_select %p243, %s20, 1
        %p245 = scmp.lt.s32.totalorder %s242, 1
        %s246 = scalar_select %p245, %s242, 1
        %s247 = smul.addr %s244, 2
        %s248 = sadd.s32 %s246, %s247
        %s249 = smul.addr %s248, 4
        %s250 = scalar_lea.vmem %s1, %s249
        %s251 = smul.u32 2, %s21
      $region36: #{attention_block_forward.14} parent=27 // pred_fallthru
        _
    $region28: #{attention_block_forward.14} parent=5 // pred_fallthru
      _
    %p252 = scmp.le.s32.totalorder 1, %s13
    %p253 = scmp.lt.s32.totalorder %s13, 3
    %p254 = pnand %p252, %p253
    %p255 = pneg %p254
    // Predicated region
    $region37: #{attention_block_forward.14} parent=5 // pred_check
      _
    $region38: #{attention_block_forward.14} parent=5 // pred_check_branch
      %257 = sbr.rel (%p254) target = $region40
    $region39: #{attention_block_forward.14} parent=5 // pred_region
      %s258 = ssub.s32 %s13, 1
      %s259 = smul.u32 2, %s23
      %p260 = scmp.lt.s32.totalorder %s22, 1
      %s261 = scalar_select %p260, %s22, 1
      %p262 = scmp.lt.s32.totalorder %s259, 1
      %s263 = scalar_select %p262, %s259, 1
      %s264 = smul.addr %s261, 2
      %s265 = sadd.s32 %s263, %s264
      %s266 = smul.addr %s265, 4
      %s267 = scalar_lea.vmem %s0, %s266
      %p268 = pneg %p53
      %p269 = pneg %p50
      %s270 = smul.u32 2, %s23
      %p271 = scmp.lt.s32.totalorder %s22, 1
      %s272 = scalar_select %p271, %s22, 1
      %p273 = scmp.lt.s32.totalorder %s270, 1
      %s274 = scalar_select %p273, %s270, 1
      %s275 = smul.addr %s272, 2
      %s276 = sadd.s32 %s274, %s275
      %s277 = smul.addr %s276, 4
      %s278 = scalar_lea.vmem %s1, %s277
      %p279 = pneg %p81
      %p280 = pneg %p78
      %p281 = pneg %p102
      %p282 = pneg %p99
      %p283 = pneg %p123
      %p284 = pneg %p120
      %p285 = pneg %p144
      %p286 = pneg %p141
      %p287 = pneg %p172
      %p288 = pneg %p169
      %s289 = smul.u32 2, %s23
      %p290 = scmp.lt.s32.totalorder %s22, 1
      %s291 = scalar_select %p290, %s22, 1
      %p292 = scmp.lt.s32.totalorder %s289, 1
      %s293 = scalar_select %p292, %s289, 1
      %s294 = smul.addr %s291, 2
      %s295 = sadd.s32 %s293, %s294
      %s296 = smul.addr %s295, 4
      %s297 = scalar_lea.vmem %s5, %s296
      %p298 = pneg %p198
      %p299 = pneg %p195
      %p300 = scmp.lt.s32.totalorder %s22, 1
      %s301 = scalar_select %p300, %s22, 1
      %s302 = smul.addr %s301, 2
      %s303 = scalar_lea.vmem %s6, %s302
      %s304 = smul.u32 2, %s23
      %p305 = scmp.lt.s32.totalorder %s22, 1
      %s306 = scalar_select %p305, %s22, 1
      %p307 = scmp.lt.s32.totalorder %s304, 1
      %s308 = scalar_select %p307, %s304, 1
      %s309 = smul.addr %s306, 2
      %s310 = sadd.s32 %s308, %s309
      %s311 = smul.addr %s310, 4
      %s312 = scalar_lea.vmem %s0, %s311
      %s313 = smul.u32 2, %s23
      %s314 = smul.u32 2, %s23
      %p315 = scmp.lt.s32.totalorder %s22, 1
      %s316 = scalar_select %p315, %s22, 1
      %p317 = scmp.lt.s32.totalorder %s314, 1
      %s318 = scalar_select %p317, %s314, 1
      %s319 = smul.addr %s316, 2
      %s320 = sadd.s32 %s318, %s319
      %s321 = smul.addr %s320, 4
      %s322 = scalar_lea.vmem %s1, %s321
      %s323 = smul.u32 2, %s23
      %s324 = smul.u32 2, %s23
      %p325 = scmp.lt.s32.totalorder %s22, 1
      %s326 = scalar_select %p325, %s22, 1
      %p327 = scmp.lt.s32.totalorder %s324, 1
      %s328 = scalar_select %p327, %s324, 1
      %s329 = smul.addr %s326, 2
      %s330 = sadd.s32 %s328, %s329
      %s331 = smul.addr %s330, 4
      %s332 = scalar_lea.vmem %s5, %s331
      %s333 = smul.u32 2, %s23
      %p334 = scmp.lt.s32.totalorder %s22, 1
      %s335 = scalar_select %p334, %s22, 1
      %s336 = smul.addr %s335, 2
      %s337 = scalar_lea.vmem %s6, %s336
      %v339 = vld [vmem:[%s312] sm:$0xf]
      %v340 = vld [vmem:[%s312 + $0x4] sm:$0xf]
      %v341 = vld [vmem:[%s2] sm:$0xf]
      %v342 = vld [vmem:[%s2 + $0x4] sm:$0xf]
      %v343 = vld [vmem:[%s2 + $0x8] sm:$0xf]
      %v344 = vld [vmem:[%s2 + $0xc] sm:$0xf]
      %v345 = vld [vmem:[%s322] sm:$0xf]
      %v346 = vld [vmem:[%s322 + $0x4] sm:$0xf]
      %v347 = vld [vmem:[%s3] sm:$0xf]
      %v348 = vld [vmem:[%s3 + $0x4] sm:$0xf]
      %v349 = vld [vmem:[%s3 + $0x8] sm:$0xf]
      %v350 = vld [vmem:[%s3 + $0xc] sm:$0xf]
      %v353 = vunpack.c.l.b16 %v345
      %v354 = vunpack.c.l.b16 %v346
      %v355 = vpack.c.b16 %v354, %v353
      %v360 = vunpack.c.l.b16 %v347
      %v361 = vunpack.c.l.b16 %v348
      %v362 = vunpack.c.l.b16 %v349
      %v363 = vunpack.c.l.b16 %v350
      %v364 = vpack.c.b16 %v361, %v360
      %v365 = vpack.c.b16 %v363, %v362
      %vm368 = vcmask 261120
      %v370 = vsel %vm368, %v355, 0
      %372 = vmatprep.subr.bf16.mxu0 0
      %373 = vmatpush1.bf16.msra.mxu0 %v364
      %374 = vmatprep.subr.bf16.mxu0 0
      %375 = vmatpush1.bf16.msra.mxu0 %v365
      %376 = vmatprep.subr.bf16.mxu0 0
      %377 = vmatpush1.bf16.msra.mxu0 0
      %378 = vmatprep.subr.bf16.mxu0 0
      %379 = vmatpush1.bf16.msra.mxu0 0
      %380 = vmatprep.subr.bf16.mxu0 0
      %381 = vmatpush1.bf16.msra.mxu0 0
      %382 = vmatprep.subr.bf16.mxu0 0
      %383 = vmatpush1.bf16.msra.mxu0 0
      %384 = vmatprep.subr.bf16.mxu0 0
      %385 = vmatpush1.bf16.msra.mxu0 0
      %386 = vmatprep.subr.bf16.mxu0 0
      %387 = vmatpush1.bf16.msra.mxu0 0
      %388 = vmatprep.subr.bf16.mxu0 0
      %389 = vmatpush1.bf16.msra.mxu0 0
      %390 = vmatprep.subr.bf16.mxu0 0
      %391 = vmatpush1.bf16.msra.mxu0 0
      %392 = vmatprep.subr.bf16.mxu0 0
      %393 = vmatpush1.bf16.msra.mxu0 0
      %394 = vmatprep.subr.bf16.mxu0 0
      %395 = vmatpush1.bf16.msra.mxu0 0
      %396 = vmatprep.subr.bf16.mxu0 0
      %397 = vmatpush1.bf16.msra.mxu0 0
      %398 = vmatprep.subr.bf16.mxu0 0
      %399 = vmatpush1.bf16.msra.mxu0 0
      %400 = vmatprep.subr.bf16.mxu0 0
      %401 = vmatpush1.bf16.msra.mxu0 0
      %402 = vmatprep.subr.bf16.mxu0 0
      %403 = vmatpush1.bf16.msra.mxu0 0
      %404 = vmatprep.mubr.bf16.mxu0 0
      %405 = vmatmul.mubr.bf16.gmra.mrb[0].mxu0 %v370
      %v406 = vpop.f32.mrb[0].mxu0
      %v407 = vadd.f32 0.0, %v406
      %v408 = vpop.f32.mrb[0].mxu0
      %v409 = vpop.f32.mrb[0].mxu0
      %v410 = vadd.f32 0.0, %v409
      %v411 = vpop.f32.mrb[0].mxu0
      %412 = vdwg.mxu0
      %v415 = vunpack.c.l.b16 %v339
      %v416 = vunpack.c.l.b16 %v340
      %v417 = vpack.c.b16 %v416, %v415
      %v422 = vunpack.c.l.b16 %v341
      %v423 = vunpack.c.l.b16 %v342
      %v424 = vunpack.c.l.b16 %v343
      %v425 = vunpack.c.l.b16 %v344
      %v426 = vpack.c.b16 %v423, %v422
      %v427 = vpack.c.b16 %v425, %v424
      %v431 = vsel %vm368, %v417, 0
      %433 = vmatprep.subr.bf16.mxu0 0
      %434 = vmatpush1.bf16.msra.mxu0 %v426
      %435 = vmatprep.subr.bf16.mxu0 0
      %436 = vmatpush1.bf16.msra.mxu0 %v427
      %437 = vmatprep.subr.bf16.mxu0 0
      %438 = vmatpush1.bf16.msra.mxu0 0
      %439 = vmatprep.subr.bf16.mxu0 0
      %440 = vmatpush1.bf16.msra.mxu0 0
      %441 = vmatprep.subr.bf16.mxu0 0
      %442 = vmatpush1.bf16.msra.mxu0 0
      %443 = vmatprep.subr.bf16.mxu0 0
      %444 = vmatpush1.bf16.msra.mxu0 0
      %445 = vmatprep.subr.bf16.mxu0 0
      %446 = vmatpush1.bf16.msra.mxu0 0
      %447 = vmatprep.subr.bf16.mxu0 0
      %448 = vmatpush1.bf16.msra.mxu0 0
      %449 = vmatprep.subr.bf16.mxu0 0
      %450 = vmatpush1.bf16.msra.mxu0 0
      %451 = vmatprep.subr.bf16.mxu0 0
      %452 = vmatpush1.bf16.msra.mxu0 0
      %453 = vmatprep.subr.bf16.mxu0 0
      %454 = vmatpush1.bf16.msra.mxu0 0
      %455 = vmatprep.subr.bf16.mxu0 0
      %456 = vmatpush1.bf16.msra.mxu0 0
      %457 = vmatprep.subr.bf16.mxu0 0
      %458 = vmatpush1.bf16.msra.mxu0 0
      %459 = vmatprep.subr.bf16.mxu0 0
      %460 = vmatpush1.bf16.msra.mxu0 0
      %461 = vmatprep.subr.bf16.mxu0 0
      %462 = vmatpush1.bf16.msra.mxu0 0
      %463 = vmatprep.subr.bf16.mxu0 0
      %464 = vmatpush1.bf16.msra.mxu0 0
      %465 = vmatprep.mubr.bf16.mxu0 0
      %466 = vmatmul.mubr.bf16.gmra.mrb[0].mxu0 %v431
      %v467 = vpop.f32.mrb[0].mxu0
      %v468 = vadd.f32 %v407, %v467
      %v469 = vpop.f32.mrb[0].mxu0
      %v470 = vpop.f32.mrb[0].mxu0
      %v471 = vadd.f32 %v410, %v470
      %v472 = vpop.f32.mrb[0].mxu0
      %473 = vdwg.mxu0
      %v474 = vld [vmem:[%s4] sm:$0x1]
      %v476 = vlaneseq
      %v477 = vshrl.u32 %v476, 7
      %v478 = vsub.s32 0, %v477
      %v479 = vrot.slane %v474, %v478
      %v481 = vadd.f32 %v468, %v479
      %v482 = vadd.f32 %v471, %v479
      %v483 = vpack.c.bf16 %v482, %v481
      %v485 = vunpack.c.l.b16 %v483
      %v486 = vunpack.c.h.b16 %v483
      %v487 = vpack.c.b16 %v485, %v485
      %v488 = vpack.c.b16 %v486, %v486
      %vm491 = vcmask 519168
      %492 = vst.msk [vmem:[%s332] sm:$0xf] %vm491, %v487
      %493 = vst.msk [vmem:[%s332 + $0x4] sm:$0xf] %vm491, %v488
      %p494 = scmp.eq.s32.totalorder %s23, 0
      // Predicated region
      $region41: #{attention_block_forward.14} parent=39 // pred_check
        %p495 = pneg %p494
      $region42: #{attention_block_forward.14} parent=39 // pred_check_branch
        %497 = sbr.rel (%p495) target = $region44
      $region43: #{attention_block_forward.14} parent=39 // pred_region
        %vm498 = vcmask 517120
        %499 = vst.msk [vmem:[%s337] sm:$0x3] %vm498, 0.0
      $region44: #{attention_block_forward.14} parent=39 // pred_fallthru
        _
      %s500 = smul.u32 %s23, 16
      %v501 = vlaneseq
      %v502 = vshrl.u32 %v501, 7
      %v503 = vadd.s32 %v502, 8
      %v504 = vstv %s500
      %v505 = vadd.s32 %v504, %v502
      %v506 = vadd.s32 %v504, %v503
      %vm507 = vcmp.lt.s32.totalorder %v505, 12
      %vm508 = vcmp.lt.s32.totalorder %v506, 12
      %v509 = vsel %vm507, 1, 0
      %v510 = vsel %vm508, 1, 0
      %vm511 = vcmp.eq.s32.totalorder %v509, 1
      %vm512 = vcmp.eq.s32.totalorder %v510, 1
      %v513 = vsel %vm511, %v481, 0.0
      %v514 = vsel %vm512, %v482, 0.0
      %vm515 = vcmask 523264
      %v516 = vsel %vm515, %v513, 0.0
      %v517 = vsel %vm515, %v514, 0.0
      %v518 = vadd.f32 %v516, %v517
      %v519 = vrot.slane %v518, 4
      %v520 = vadd.f32 %v518, %v519
      %v521 = vrot.slane %v520, 2
      %v522 = vadd.f32 %v520, %v521
      %v523 = vrot.slane %v522, 1
      %v524 = vadd.f32 %v522, %v523
      %v525 = vmul.f32 %v513, %v513
      %v526 = vmul.f32 %v514, %v514
      %v527 = vsel %vm515, %v525, 0.0
      %v528 = vsel %vm515, %v526, 0.0
      %v529 = vadd.f32 %v527, %v528
      %v530 = vrot.slane %v529, 4
      %v531 = vadd.f32 %v529, %v530
      %v532 = vrot.slane %v531, 2
      %v533 = vadd.f32 %v531, %v532
      %v534 = vrot.slane %v533, 1
      %v535 = vadd.f32 %v533, %v534
      %v536 = vld [vmem:[%s337] sm:$0x3]
      %vm537 = vcmask 1040384
      %v538 = vsel %vm537, %v524, %v535
      %v539 = vadd.f32 %v536, %v538
      %vm540 = vcmask 517120
      %541 = vst.msk [vmem:[%s337] sm:$0x3] %vm540, %v539
      %s542 = smul.u32 2, %s23
      %p543 = scmp.lt.s32.totalorder %s22, 1
      %s544 = scalar_select %p543, %s22, 1
      %p545 = scmp.lt.s32.totalorder %s542, 1
      %s546 = scalar_select %p545, %s542, 1
      %s547 = smul.addr %s544, 2
      %s548 = sadd.s32 %s546, %s547
      %s549 = smul.addr %s548, 4
      %s550 = scalar_lea.vmem %s5, %s549
      %p551 = scmp.lt.s32.totalorder %s22, 1
      %s552 = scalar_select %p551, %s22, 1
      %s553 = smul.addr %s552, 2
      %s554 = scalar_lea.vmem %s6, %s553
      // Predicated region
      $region45: #{attention_block_forward.14} parent=39 // pred_check
        %p555 = pneg %p169
      $region46: #{attention_block_forward.14} parent=39 // pred_check_branch
        %557 = sbr.rel (%p555) target = $region48
      $region47: #{attention_block_forward.14} parent=39 // pred_region
        %s558 = smul.u32 2, %s23
      $region48: #{attention_block_forward.14} parent=39 // pred_fallthru
        _
      // Predicated region
      $region49: #{attention_block_forward.14} parent=39 // pred_check
        %p559 = pneg %p195
      $region50: #{attention_block_forward.14} parent=39 // pred_check_branch
        %561 = sbr.rel (%p559) target = $region52
      $region51: #{attention_block_forward.14} parent=39 // pred_region
        _
      $region52: #{attention_block_forward.14} parent=39 // pred_fallthru
        _
    $region40: #{attention_block_forward.14} parent=5 // pred_fallthru
      _
    %p562 = scmp.le.s32.totalorder 2, %s13
    // Predicated region
    $region53: #{attention_block_forward.14} parent=5 // pred_check
      %p563 = pneg %p562
    $region54: #{attention_block_forward.14} parent=5 // pred_check_branch
      %565 = sbr.rel (%p563) target = $region56
    $region55: #{attention_block_forward.14} parent=5 // pred_region
      %s566 = ssub.s32 %s13, 2
      // Predicated region
      $region57: #{attention_block_forward.14} parent=55 // pred_check
        %p567 = pneg %p175
      $region58: #{attention_block_forward.14} parent=55 // pred_check_branch
        %569 = sbr.rel (%p567) target = $region60
      $region59: #{attention_block_forward.14} parent=55 // pred_region
        %s570 = smul.u32 2, %s25
        %p571 = scmp.lt.s32.totalorder %s24, 1
        %s572 = scalar_select %p571, %s24, 1
        %p573 = scmp.lt.s32.totalorder %s570, 1
        %s574 = scalar_select %p573, %s570, 1
        %s575 = smul.addr %s572, 2
        %s576 = sadd.s32 %s574, %s575
        %s577 = smul.addr %s576, 4
        %s578 = scalar_lea.vmem %s5, %s577
      $region60: #{attention_block_forward.14} parent=55 // pred_fallthru
        _
      // Predicated region
      $region61: #{attention_block_forward.14} parent=55 // pred_check
        %p579 = pneg %p201
      $region62: #{attention_block_forward.14} parent=55 // pred_check_branch
        %581 = sbr.rel (%p579) target = $region64
      $region63: #{attention_block_forward.14} parent=55 // pred_region
        %p582 = scmp.lt.s32.totalorder %s24, 1
        %s583 = scalar_select %p582, %s24, 1
        %s584 = smul.addr %s583, 2
        %s585 = scalar_lea.vmem %s6, %s584
      $region64: #{attention_block_forward.14} parent=55 // pred_fallthru
        _
    $region56: #{attention_block_forward.14} parent=5 // pred_fallthru
      _
  $region6: #{attention_block_forward.14} parent=0 // loop_footer
    %s17 = sadd.s32 1, %s13
  $region7: #{attention_block_forward.14} parent=0 // loop_footer_branch
    %12 = sbr.rel target = $region3
  $region8: #{attention_block_forward.14} parent=0 // loop_exit
    _

// kernel: attention_block_forward.12
$region0: #{attention_block_forward.12}
  #allocation0 [shape = 'u32[]', space=smem, size = 0x4, offset = 0x4, fixed_abs, tag = 'smem constant byte address 0x4 - core index']
  #allocation1 [shape = 'u32[144,128]{1,0:T(1,128)}', space=vmem, size = 0x12000, scoped, tag = 'internal scratch']
  %s0 = inlined_call_operand.vmem [shape: bf16[2,16,32], index: 0, kind: input, shape index: {}]
  %s1 = inlined_call_operand.vmem [shape: bf16[2,16,32], index: 1, kind: input, shape index: {}]
  %s2 = inlined_call_operand.vmem [shape: bf16[32,64], index: 2, kind: input, shape index: {}]
  %s3 = inlined_call_operand.vmem [shape: bf16[32,64], index: 3, kind: input, shape index: {}]
  %s4 = inlined_call_operand.vmem [shape: f32[1,64], index: 4, kind: input, shape index: {}]
  %s5 = inlined_call_operand.vmem [shape: bf16[2,16,64], index: 5, kind: output, shape index: {0}]
  %s6 = inlined_call_operand.vmem [shape: f32[2,2,64], index: 6, kind: output, shape index: {1}]
  %7 = xla_tuple %s5, %s6
  %s8 = sld [smem:[#allocation0]]
  $region65: #{attention_block_forward.12} parent=0
    _
  %s10 = ssub.s32 1, %s8
  %s11 = scalar_select 0, %s10, %s8
  loop: start=0, step=1, limit=4
  $region2: #{attention_block_forward.12} parent=0 // loop_pre_header
    _
  $region3: #{attention_block_forward.12} parent=0 // loop_header
    %s13 = sphi 0, %s17
    %p14 = scmp.ge.s32.totalorder %s13, 4
    %s20 = sphi 0, %s32
    %s21 = sphi 0, %s28
    %s22 = sphi 0, %s20
    %s23 = sphi 0, %s21
    %s24 = sphi 0, %s22
    %s25 = sphi 0, %s23
    %s37 = sphi 0, %s39
    %s40 = sphi 0, %s37
    %s41 = sphi 0, %s40
    %s57 = sphi 0, %s41
    %s65 = sphi 0, %s67
    %s68 = sphi 0, %s65
    %s69 = sphi 0, %s68
    %s85 = sphi 0, %s69
    %s89 = sphi 0, %s89
    %s91 = sphi 0, %s89
    %s92 = sphi 0, %s91
    %s106 = sphi 0, %s92
    %s110 = sphi 0, %s110
    %s112 = sphi 0, %s110
    %s113 = sphi 0, %s112
    %s127 = sphi 0, %s113
    %s131 = sphi 0, %s131
    %s133 = sphi 0, %s131
    %s134 = sphi 0, %s133
    %s148 = sphi 0, %s134
    %s156 = sphi 0, %s158
    %s159 = sphi 0, %s156
    %s160 = sphi 0, %s159
    %s176 = sphi 0, %s160
    %s182 = sphi 0, %s184
    %s185 = sphi 0, %s182
    %s186 = sphi 0, %s185
    %s202 = sphi 0, %s186
  $region4: #{attention_block_forward.12} parent=0 // loop_header_branch
    %16 = sbr.rel (%p14) target = $region8
  $region5: #{attention_block_forward.12} parent=0 // loop_body
    %s18 = ssub.s32 %s13, 1
    %s19 = ssub.s32 %s13, 2
    %s26 = sadd.s32 1, %s21
    %p27 = scmp.ge.s32.totalorder %s26, 1
    %s28 = scalar_select %p27, 0, %s26
    %s29 = sadd.s32 1, %s20
    %s30 = scalar_select %p27, %s29, %s20
    %p31 = scmp.ge.s32.totalorder %s30, 2
    %s32 = scalar_select %p31, 0, %s30
    %s33 = ssub.s32 %s20, %s32
    %s34 = ssub.s32 %s21, %s28
    %s35 = sor.u32 %s33, %s34
    %p36 = scmp.eq.s32.totalorder %s35, 0
    %s38 = sadd.s32 %s37, 1
    %s39 = scalar_select %p36, %s37, %s38
    %p42 = pneg %p36
    %p43 = scmp.eq.s32.totalorder %s13, 1
    %p44 = por %p42, %p43
    %p45 = scmp.ne.s32.totalorder %s37, %s40
    %p46 = scmp.eq.s32.totalorder %s13, 0
    %p47 = por %p45, %p46
    %p48 = scmp.ne.s32.totalorder %s37, %s40
    %p49 = scmp.eq.s32.totalorder %s18, 1
    %p50 = por %p48, %p49
    %p51 = scmp.ne.s32.totalorder %s40, %s41
    %p52 = scmp.eq.s32.totalorder %s18, 0
    %p53 = por %p51, %p52
    %p54 = scmp.ne.s32.totalorder %s40, %s41
    %p55 = scmp.eq.s32.totalorder %s19, 1
    %p56 = por %p54, %p55
    %p58 = scmp.ne.s32.totalorder %s41, %s57
    %p59 = scmp.eq.s32.totalorder %s19, 0
    %p60 = por %p58, %p59
    %s61 = ssub.s32 %s20, %s32
    %s62 = ssub.s32 %s21, %s28
    %s63 = sor.u32 %s61, %s62
    %p64 = scmp.eq.s32.totalorder %s63, 0
    %s66 = sadd.s32 %s65, 1
    %s67 = scalar_select %p64, %s65, %s66
    %p70 = pneg %p64
    %p71 = scmp.eq.s32.totalorder %s13, 1
    %p72 = por %p70, %p71
    %p73 = scmp.ne.s32.totalorder %s65, %s68
    %p74 = scmp.eq.s32.totalorder %s13, 0
    %p75 = por %p73, %p74
    %p76 = scmp.ne.s32.totalorder %s65, %s68
    %p77 = scmp.eq.s32.totalorder %s18, 1
    %p78 = por %p76, %p77
    %p79 = scmp.ne.s32.totalorder %s68, %s69
    %p80 = scmp.eq.s32.totalorder %s18, 0
    %p81 = por %p79, %p80
    %p82 = scmp.ne.s32.totalorder %s68, %s69
    %p83 = scmp.eq.s32.totalorder %s19, 1
    %p84 = por %p82, %p83
    %p86 = scmp.ne.s32.totalorder %s69, %s85
    %p87 = scmp.eq.s32.totalorder %s19, 0
    %p88 = por %p86, %p87
    %s90 = sadd.s32 %s89, 1
    %p93 = scmp.eq.s32.totalorder %s13, 1
    %p94 = scmp.ne.s32.totalorder %s89, %s91
    %p95 = scmp.eq.s32.totalorder %s13, 0
    %p96 = por %p94, %p95
    %p97 = scmp.ne.s32.totalorder %s89, %s91
    %p98 = scmp.eq.s32.totalorder %s18, 1
    %p99 = por %p97, %p98
    %p100 = scmp.ne.s32.totalorder %s91, %s92
    %p101 = scmp.eq.s32.totalorder %s18, 0
    %p102 = por %p100, %p101
    %p103 = scmp.ne.s32.totalorder %s91, %s92
    %p104 = scmp.eq.s32.totalorder %s19, 1
    %p105 = por %p103, %p104
    %p107 = scmp.ne.s32.totalorder %s92, %s106
    %p108 = scmp.eq.s32.totalorder %s19, 0
    %p109 = por %p107, %p108
    %s111 = sadd.s32 %s110, 1
    %p114 = scmp.eq.s32.totalorder %s13, 1
    %p115 = scmp.ne.s32.totalorder %s110, %s112
    %p116 = scmp.eq.s32.totalorder %s13, 0
    %p117 = por %p115, %p116
    %p118 = scmp.ne.s32.totalorder %s110, %s112
    %p119 = scmp.eq.s32.totalorder %s18, 1
    %p120 = por %p118, %p119
    %p121 = scmp.ne.s32.totalorder %s112, %s113
    %p122 = scmp.eq.s32.totalorder %s18, 0
    %p123 = por %p121, %p122
    %p124 = scmp.ne.s32.totalorder %s112, %s113
    %p125 = scmp.eq.s32.totalorder %s19, 1
    %p126 = por %p124, %p125
    %p128 = scmp.ne.s32.totalorder %s113, %s127
    %p129 = scmp.eq.s32.totalorder %s19, 0
    %p130 = por %p128, %p129
    %s132 = sadd.s32 %s131, 1
    %p135 = scmp.eq.s32.totalorder %s13, 1
    %p136 = scmp.ne.s32.totalorder %s131, %s133
    %p137 = scmp.eq.s32.totalorder %s13, 0
    %p138 = por %p136, %p137
    %p139 = scmp.ne.s32.totalorder %s131, %s133
    %p140 = scmp.eq.s32.totalorder %s18, 1
    %p141 = por %p139, %p140
    %p142 = scmp.ne.s32.totalorder %s133, %s134
    %p143 = scmp.eq.s32.totalorder %s18, 0
    %p144 = por %p142, %p143
    %p145 = scmp.ne.s32.totalorder %s133, %s134
    %p146 = scmp.eq.s32.totalorder %s19, 1
    %p147 = por %p145, %p146
    %p149 = scmp.ne.s32.totalorder %s134, %s148
    %p150 = scmp.eq.s32.totalorder %s19, 0
    %p151 = por %p149, %p150
    %s152 = ssub.s32 %s20, %s32
    %s153 = ssub.s32 %s21, %s28
    %s154 = sor.u32 %s152, %s153
    %p155 = scmp.eq.s32.totalorder %s154, 0
    %s157 = sadd.s32 %s156, 1
    %s158 = scalar_select %p155, %s156, %s157
    %p161 = pneg %p155
    %p162 = scmp.eq.s32.totalorder %s13, 1
    %p163 = por %p161, %p162
    %p164 = scmp.ne.s32.totalorder %s156, %s159
    %p165 = scmp.eq.s32.totalorder %s13, 0
    %p166 = por %p164, %p165
    %p167 = scmp.ne.s32.totalorder %s156, %s159
    %p168 = scmp.eq.s32.totalorder %s18, 1
    %p169 = por %p167, %p168
    %p170 = scmp.ne.s32.totalorder %s159, %s160
    %p171 = scmp.eq.s32.totalorder %s18, 0
    %p172 = por %p170, %p171
    %p173 = scmp.ne.s32.totalorder %s159, %s160
    %p174 = scmp.eq.s32.totalorder %s19, 1
    %p175 = por %p173, %p174
    %p177 = scmp.ne.s32.totalorder %s160, %s176
    %p178 = scmp.eq.s32.totalorder %s19, 0
    %p179 = por %p177, %p178
    %s180 = ssub.s32 %s20, %s32
    %p181 = scmp.eq.s32.totalorder %s180, 0
    %s183 = sadd.s32 %s182, 1
    %s184 = scalar_select %p181, %s182, %s183
    %p187 = pneg %p181
    %p188 = scmp.eq.s32.totalorder %s13, 1
    %p189 = por %p187, %p188
    %p190 = scmp.ne.s32.totalorder %s182, %s185
    %p191 = scmp.eq.s32.totalorder %s13, 0
    %p192 = por %p190, %p191
    %p193 = scmp.ne.s32.totalorder %s182, %s185
    %p194 = scmp.eq.s32.totalorder %s18, 1
    %p195 = por %p193, %p194
    %p196 = scmp.ne.s32.totalorder %s185, %s186
    %p197 = scmp.eq.s32.totalorder %s18, 0
    %p198 = por %p196, %p197
    %p199 = scmp.ne.s32.totalorder %s185, %s186
    %p200 = scmp.eq.s32.totalorder %s19, 1
    %p201 = por %p199, %p200
    %p203 = scmp.ne.s32.totalorder %s186, %s202
    %p204 = scmp.eq.s32.totalorder %s19, 0
    %p205 = por %p203, %p204
    %p206 = scmp.le.s32.totalorder 1, %s13
    %p207 = scmp.lt.s32.totalorder %s13, 3
    %p208 = pnand %p206, %p207
    %p209 = pneg %p208
    // Predicated region
    $region9: #{attention_block_forward.12} parent=5 // pred_check
      _
    $region10: #{attention_block_forward.12} parent=5 // pred_check_branch
      %211 = sbr.rel (%p208) target = $region12
    $region11: #{attention_block_forward.12} parent=5 // pred_region
      %s212 = ssub.s32 %s13, 1
      // Predicated region
      $region13: #{attention_block_forward.12} parent=11 // pred_check
        %p213 = pneg %p102
      $region14: #{attention_block_forward.12} parent=11 // pred_check_branch
        %215 = sbr.rel (%p213) target = $region16
      $region15: #{attention_block_forward.12} parent=11 // pred_region
        _
      $region16: #{attention_block_forward.12} parent=11 // pred_fallthru
        _
      // Predicated region
      $region17: #{attention_block_forward.12} parent=11 // pred_check
        %p216 = pneg %p123
      $region18: #{attention_block_forward.12} parent=11 // pred_check_branch
        %218 = sbr.rel (%p216) target = $region20
      $region19: #{attention_block_forward.12} parent=11 // pred_region
        _
      $region20: #{attention_block_forward.12} parent=11 // pred_fallthru
        _
      // Predicated region
      $region21: #{attention_block_forward.12} parent=11 // pred_check
        %p219 = pneg %p144
      $region22: #{attention_block_forward.12} parent=11 // pred_check_branch
        %221 = sbr.rel (%p219) target = $region24
      $region23: #{attention_block_forward.12} parent=11 // pred_region
        _
      $region24: #{attention_block_forward.12} parent=11 // pred_fallthru
        _
    $region12: #{attention_block_forward.12} parent=5 // pred_fallthru
      _
    %p222 = scmp.lt.s32.totalorder %s13, 2
    // Predicated region
    $region25: #{attention_block_forward.12} parent=5 // pred_check
      %p223 = pneg %p222
    $region26: #{attention_block_forward.12} parent=5 // pred_check_branch
      %225 = sbr.rel (%p223) target = $region28
    $region27: #{attention_block_forward.12} parent=5 // pred_region
      // Predicated region
      $region29: #{attention_block_forward.12} parent=27 // pred_check
        %p226 = pneg %p47
      $region30: #{attention_block_forward.12} parent=27 // pred_check_branch
        %228 = sbr.rel (%p226) target = $region32
      $region31: #{attention_block_forward.12} parent=27 // pred_region
        %s229 = smul.u32 2, %s21
        %p230 = scmp.lt.s32.totalorder %s20, 1
        %s231 = scalar_select %p230, %s20, 1
        %p232 = scmp.lt.s32.totalorder %s229, 1
        %s233 = scalar_select %p232, %s229, 1
        %s234 = smul.addr %s231, 2
        %s235 = sadd.s32 %s233, %s234
        %s236 = smul.addr %s235, 4
        %s237 = scalar_lea.vmem %s0, %s236
        %s238 = smul.u32 2, %s21
      $region32: #{attention_block_forward.12} parent=27 // pred_fallthru
        _
      // Predicated region
      $region33: #{attention_block_forward.12} parent=27 // pred_check
        %p239 = pneg %p75
      $region34: #{attention_block_forward.12} parent=27 // pred_check_branch
        %241 = sbr.rel (%p239) target = $region36
      $region35: #{attention_block_forward.12} parent=27 // pred_region
        %s242 = smul.u32 2, %s21
        %p243 = scmp.lt.s32.totalorder %s20, 1
        %s244 = scalar_select %p243, %s20, 1
        %p245 = scmp.lt.s32.totalorder %s242, 1
        %s246 = scalar_select %p245, %s242, 1
        %s247 = smul.addr %s244, 2
        %s248 = sadd.s32 %s246, %s247
        %s249 = smul.addr %s248, 4
        %s250 = scalar_lea.vmem %s1, %s249
        %s251 = smul.u32 2, %s21
      $region36: #{attention_block_forward.12} parent=27 // pred_fallthru
        _
    $region28: #{attention_block_forward.12} parent=5 // pred_fallthru
      _
    %p252 = scmp.le.s32.totalorder 1, %s13
    %p253 = scmp.lt.s32.totalorder %s13, 3
    %p254 = pnand %p252, %p253
    %p255 = pneg %p254
    // Predicated region
    $region37: #{attention_block_forward.12} parent=5 // pred_check
      _
    $region38: #{attention_block_forward.12} parent=5 // pred_check_branch
      %257 = sbr.rel (%p254) target = $region40
    $region39: #{attention_block_forward.12} parent=5 // pred_region
      %s258 = ssub.s32 %s13, 1
      %s259 = smul.u32 2, %s23
      %p260 = scmp.lt.s32.totalorder %s22, 1
      %s261 = scalar_select %p260, %s22, 1
      %p262 = scmp.lt.s32.totalorder %s259, 1
      %s263 = scalar_select %p262, %s259, 1
      %s264 = smul.addr %s261, 2
      %s265 = sadd.s32 %s263, %s264
      %s266 = smul.addr %s265, 4
      %s267 = scalar_lea.vmem %s0, %s266
      %p268 = pneg %p53
      %p269 = pneg %p50
      %s270 = smul.u32 2, %s23
      %p271 = scmp.lt.s32.totalorder %s22, 1
      %s272 = scalar_select %p271, %s22, 1
      %p273 = scmp.lt.s32.totalorder %s270, 1
      %s274 = scalar_select %p273, %s270, 1
      %s275 = smul.addr %s272, 2
      %s276 = sadd.s32 %s274, %s275
      %s277 = smul.addr %s276, 4
      %s278 = scalar_lea.vmem %s1, %s277
      %p279 = pneg %p81
      %p280 = pneg %p78
      %p281 = pneg %p102
      %p282 = pneg %p99
      %p283 = pneg %p123
      %p284 = pneg %p120
      %p285 = pneg %p144
      %p286 = pneg %p141
      %p287 = pneg %p172
      %p288 = pneg %p169
      %s289 = smul.u32 2, %s23
      %p290 = scmp.lt.s32.totalorder %s22, 1
      %s291 = scalar_select %p290, %s22, 1
      %p292 = scmp.lt.s32.totalorder %s289, 1
      %s293 = scalar_select %p292, %s289, 1
      %s294 = smul.addr %s291, 2
      %s295 = sadd.s32 %s293, %s294
      %s296 = smul.addr %s295, 4
      %s297 = scalar_lea.vmem %s5, %s296
      %p298 = pneg %p198
      %p299 = pneg %p195
      %p300 = scmp.lt.s32.totalorder %s22, 1
      %s301 = scalar_select %p300, %s22, 1
      %s302 = smul.addr %s301, 2
      %s303 = scalar_lea.vmem %s6, %s302
      %s304 = smul.u32 2, %s23
      %p305 = scmp.lt.s32.totalorder %s22, 1
      %s306 = scalar_select %p305, %s22, 1
      %p307 = scmp.lt.s32.totalorder %s304, 1
      %s308 = scalar_select %p307, %s304, 1
      %s309 = smul.addr %s306, 2
      %s310 = sadd.s32 %s308, %s309
      %s311 = smul.addr %s310, 4
      %s312 = scalar_lea.vmem %s0, %s311
      %s313 = smul.u32 2, %s23
      %s314 = smul.u32 2, %s23
      %p315 = scmp.lt.s32.totalorder %s22, 1
      %s316 = scalar_select %p315, %s22, 1
      %p317 = scmp.lt.s32.totalorder %s314, 1
      %s318 = scalar_select %p317, %s314, 1
      %s319 = smul.addr %s316, 2
      %s320 = sadd.s32 %s318, %s319
      %s321 = smul.addr %s320, 4
      %s322 = scalar_lea.vmem %s1, %s321
      %s323 = smul.u32 2, %s23
      %s324 = smul.u32 2, %s23
      %p325 = scmp.lt.s32.totalorder %s22, 1
      %s326 = scalar_select %p325, %s22, 1
      %p327 = scmp.lt.s32.totalorder %s324, 1
      %s328 = scalar_select %p327, %s324, 1
      %s329 = smul.addr %s326, 2
      %s330 = sadd.s32 %s328, %s329
      %s331 = smul.addr %s330, 4
      %s332 = scalar_lea.vmem %s5, %s331
      %s333 = smul.u32 2, %s23
      %p334 = scmp.lt.s32.totalorder %s22, 1
      %s335 = scalar_select %p334, %s22, 1
      %s336 = smul.addr %s335, 2
      %s337 = scalar_lea.vmem %s6, %s336
      %v339 = vld [vmem:[%s312] sm:$0xf]
      %v340 = vld [vmem:[%s312 + $0x4] sm:$0xf]
      %v341 = vld [vmem:[%s2] sm:$0xf]
      %v342 = vld [vmem:[%s2 + $0x4] sm:$0xf]
      %v343 = vld [vmem:[%s2 + $0x8] sm:$0xf]
      %v344 = vld [vmem:[%s2 + $0xc] sm:$0xf]
      %v345 = vld [vmem:[%s322] sm:$0xf]
      %v346 = vld [vmem:[%s322 + $0x4] sm:$0xf]
      %v347 = vld [vmem:[%s3] sm:$0xf]
      %v348 = vld [vmem:[%s3 + $0x4] sm:$0xf]
      %v349 = vld [vmem:[%s3 + $0x8] sm:$0xf]
      %v350 = vld [vmem:[%s3 + $0xc] sm:$0xf]
      %v353 = vunpack.c.l.b16 %v345
      %v354 = vunpack.c.l.b16 %v346
      %v355 = vpack.c.b16 %v354, %v353
      %v360 = vunpack.c.l.b16 %v347
      %v361 = vunpack.c.l.b16 %v348
      %v362 = vunpack.c.l.b16 %v349
      %v363 = vunpack.c.l.b16 %v350
      %v364 = vpack.c.b16 %v361, %v360
      %v365 = vpack.c.b16 %v363, %v362
      %vm368 = vcmask 261120
      %v370 = vsel %vm368, %v355, 0
      %372 = vmatprep.subr.bf16.mxu0 0
      %373 = vmatpush1.bf16.msra.mxu0 %v364
      %374 = vmatprep.subr.bf16.mxu0 0
      %375 = vmatpush1.bf16.msra.mxu0 %v365
      %376 = vmatprep.subr.bf16.mxu0 0
      %377 = vmatpush1.bf16.msra.mxu0 0
      %378 = vmatprep.subr.bf16.mxu0 0
      %379 = vmatpush1.bf16.msra.mxu0 0
      %380 = vmatprep.subr.bf16.mxu0 0
      %381 = vmatpush1.bf16.msra.mxu0 0
      %382 = vmatprep.subr.bf16.mxu0 0
      %383 = vmatpush1.bf16.msra.mxu0 0
      %384 = vmatprep.subr.bf16.mxu0 0
      %385 = vmatpush1.bf16.msra.mxu0 0
      %386 = vmatprep.subr.bf16.mxu0 0
      %387 = vmatpush1.bf16.msra.mxu0 0
      %388 = vmatprep.subr.bf16.mxu0 0
      %389 = vmatpush1.bf16.msra.mxu0 0
      %390 = vmatprep.subr.bf16.mxu0 0
      %391 = vmatpush1.bf16.msra.mxu0 0
      %392 = vmatprep.subr.bf16.mxu0 0
      %393 = vmatpush1.bf16.msra.mxu0 0
      %394 = vmatprep.subr.bf16.mxu0 0
      %395 = vmatpush1.bf16.msra.mxu0 0
      %396 = vmatprep.subr.bf16.mxu0 0
      %397 = vmatpush1.bf16.msra.mxu0 0
      %398 = vmatprep.subr.bf16.mxu0 0
      %399 = vmatpush1.bf16.msra.mxu0 0
      %400 = vmatprep.subr.bf16.mxu0 0
      %401 = vmatpush1.bf16.msra.mxu0 0
      %402 = vmatprep.subr.bf16.mxu0 0
      %403 = vmatpush1.bf16.msra.mxu0 0
      %404 = vmatprep.mubr.bf16.mxu0 0
      %405 = vmatmul.mubr.bf16.gmra.mrb[0].mxu0 %v370
      %v406 = vpop.f32.mrb[0].mxu0
      %v407 = vadd.f32 0.0, %v406
      %v408 = vpop.f32.mrb[0].mxu0
      %v409 = vpop.f32.mrb[0].mxu0
      %v410 = vadd.f32 0.0, %v409
      %v411 = vpop.f32.mrb[0].mxu0
      %412 = vdwg.mxu0
      %v415 = vunpack.c.l.b16 %v339
      %v416 = vunpack.c.l.b16 %v340
      %v417 = vpack.c.b16 %v416, %v415
      %v422 = vunpack.c.l.b16 %v341
      %v423 = vunpack.c.l.b16 %v342
      %v424 = vunpack.c.l.b16 %v343
      %v425 = vunpack.c.l.b16 %v344
      %v426 = vpack.c.b16 %v423, %v422
      %v427 = vpack.c.b16 %v425, %v424
      %v431 = vsel %vm368, %v417, 0
      %433 = vmatprep.subr.bf16.mxu0 0
      %434 = vmatpush1.bf16.msra.mxu0 %v426
      %435 = vmatprep.subr.bf16.mxu0 0
      %436 = vmatpush1.bf16.msra.mxu0 %v427
      %437 = vmatprep.subr.bf16.mxu0 0
      %438 = vmatpush1.bf16.msra.mxu0 0
      %439 = vmatprep.subr.bf16.mxu0 0
      %440 = vmatpush1.bf16.msra.mxu0 0
      %441 = vmatprep.subr.bf16.mxu0 0
      %442 = vmatpush1.bf16.msra.mxu0 0
      %443 = vmatprep.subr.bf16.mxu0 0
      %444 = vmatpush1.bf16.msra.mxu0 0
      %445 = vmatprep.subr.bf16.mxu0 0
      %446 = vmatpush1.bf16.msra.mxu0 0
      %447 = vmatprep.subr.bf16.mxu0 0
      %448 = vmatpush1.bf16.msra.mxu0 0
      %449 = vmatprep.subr.bf16.mxu0 0
      %450 = vmatpush1.bf16.msra.mxu0 0
      %451 = vmatprep.subr.bf16.mxu0 0
      %452 = vmatpush1.bf16.msra.mxu0 0
      %453 = vmatprep.subr.bf16.mxu0 0
      %454 = vmatpush1.bf16.msra.mxu0 0
      %455 = vmatprep.subr.bf16.mxu0 0
      %456 = vmatpush1.bf16.msra.mxu0 0
      %457 = vmatprep.subr.bf16.mxu0 0
      %458 = vmatpush1.bf16.msra.mxu0 0
      %459 = vmatprep.subr.bf16.mxu0 0
      %460 = vmatpush1.bf16.msra.mxu0 0
      %461 = vmatprep.subr.bf16.mxu0 0
      %462 = vmatpush1.bf16.msra.mxu0 0
      %463 = vmatprep.subr.bf16.mxu0 0
      %464 = vmatpush1.bf16.msra.mxu0 0
      %465 = vmatprep.mubr.bf16.mxu0 0
      %466 = vmatmul.mubr.bf16.gmra.mrb[0].mxu0 %v431
      %v467 = vpop.f32.mrb[0].mxu0
      %v468 = vadd.f32 %v407, %v467
      %v469 = vpop.f32.mrb[0].mxu0
      %v470 = vpop.f32.mrb[0].mxu0
      %v471 = vadd.f32 %v410, %v470
      %v472 = vpop.f32.mrb[0].mxu0
      %473 = vdwg.mxu0
      %v474 = vld [vmem:[%s4] sm:$0x1]
      %v476 = vlaneseq
      %v477 = vshrl.u32 %v476, 7
      %v478 = vsub.s32 0, %v477
      %v479 = vrot.slane %v474, %v478
      %v481 = vadd.f32 %v468, %v479
      %v482 = vadd.f32 %v471, %v479
      %v483 = vpack.c.bf16 %v482, %v481
      %v485 = vunpack.c.l.b16 %v483
      %v486 = vunpack.c.h.b16 %v483
      %v487 = vpack.c.b16 %v485, %v485
      %v488 = vpack.c.b16 %v486, %v486
      %vm491 = vcmask 519168
      %492 = vst.msk [vmem:[%s332] sm:$0xf] %vm491, %v487
      %493 = vst.msk [vmem:[%s332 + $0x4] sm:$0xf] %vm491, %v488
      %p494 = scmp.eq.s32.totalorder %s23, 0
      // Predicated region
      $region41: #{attention_block_forward.12} parent=39 // pred_check
        %p495 = pneg %p494
      $region42: #{attention_block_forward.12} parent=39 // pred_check_branch
        %497 = sbr.rel (%p495) target = $region44
      $region43: #{attention_block_forward.12} parent=39 // pred_region
        %vm498 = vcmask 517120
        %499 = vst.msk [vmem:[%s337] sm:$0x3] %vm498, 0.0
      $region44: #{attention_block_forward.12} parent=39 // pred_fallthru
        _
      %vm500 = vcmask 523264
      %v501 = vsel %vm500, %v481, 0.0
      %v502 = vsel %vm500, %v482, 0.0
      %v503 = vadd.f32 %v501, %v502
      %v504 = vrot.slane %v503, 4
      %v505 = vadd.f32 %v503, %v504
      %v506 = vrot.slane %v505, 2
      %v507 = vadd.f32 %v505, %v506
      %v508 = vrot.slane %v507, 1
      %v509 = vadd.f32 %v507, %v508
      %v510 = vmul.f32 %v481, %v481
      %v511 = vmul.f32 %v482, %v482
      %v512 = vsel %vm500, %v510, 0.0
      %v513 = vsel %vm500, %v511, 0.0
      %v514 = vadd.f32 %v512, %v513
      %v515 = vrot.slane %v514, 4
      %v516 = vadd.f32 %v514, %v515
      %v517 = vrot.slane %v516, 2
      %v518 = vadd.f32 %v516, %v517
      %v519 = vrot.slane %v518, 1
      %v520 = vadd.f32 %v518, %v519
      %v521 = vld [vmem:[%s337] sm:$0x3]
      %vm522 = vcmask 1040384
      %v523 = vsel %vm522, %v509, %v520
      %v524 = vadd.f32 %v521, %v523
      %vm525 = vcmask 517120
      %526 = vst.msk [vmem:[%s337] sm:$0x3] %vm525, %v524
      %s527 = smul.u32 2, %s23
      %p528 = scmp.lt.s32.totalorder %s22, 1
      %s529 = scalar_select %p528, %s22, 1
      %p530 = scmp.lt.s32.totalorder %s527, 1
      %s531 = scalar_select %p530, %s527, 1
      %s532 = smul.addr %s529, 2
      %s533 = sadd.s32 %s531, %s532
      %s534 = smul.addr %s533, 4
      %s535 = scalar_lea.vmem %s5, %s534
      %p536 = scmp.lt.s32.totalorder %s22, 1
      %s537 = scalar_select %p536, %s22, 1
      %s538 = smul.addr %s537, 2
      %s539 = scalar_lea.vmem %s6, %s538
      // Predicated region
      $region45: #{attention_block_forward.12} parent=39 // pred_check
        %p540 = pneg %p169
      $region46: #{attention_block_forward.12} parent=39 // pred_check_branch
        %542 = sbr.rel (%p540) target = $region48
      $region47: #{attention_block_forward.12} parent=39 // pred_region
        %s543 = smul.u32 2, %s23
      $region48: #{attention_block_forward.12} parent=39 // pred_fallthru
        _
      // Predicated region
      $region49: #{attention_block_forward.12} parent=39 // pred_check
        %p544 = pneg %p195
      $region50: #{attention_block_forward.12} parent=39 // pred_check_branch
        %546 = sbr.rel (%p544) target = $region52
      $region51: #{attention_block_forward.12} parent=39 // pred_region
        _
      $region52: #{attention_block_forward.12} parent=39 // pred_fallthru
        _
    $region40: #{attention_block_forward.12} parent=5 // pred_fallthru
      _
    %p547 = scmp.le.s32.totalorder 2, %s13
    // Predicated region
    $region53: #{attention_block_forward.12} parent=5 // pred_check
      %p548 = pneg %p547
    $region54: #{attention_block_forward.12} parent=5 // pred_check_branch
      %550 = sbr.rel (%p548) target = $region56
    $region55: #{attention_block_forward.12} parent=5 // pred_region
      %s551 = ssub.s32 %s13, 2
      // Predicated region
      $region57: #{attention_block_forward.12} parent=55 // pred_check
        %p552 = pneg %p175
      $region58: #{attention_block_forward.12} parent=55 // pred_check_branch
        %554 = sbr.rel (%p552) target = $region60
      $region59: #{attention_block_forward.12} parent=55 // pred_region
        %s555 = smul.u32 2, %s25
        %p556 = scmp.lt.s32.totalorder %s24, 1
        %s557 = scalar_select %p556, %s24, 1
        %p558 = scmp.lt.s32.totalorder %s555, 1
        %s559 = scalar_select %p558, %s555, 1
        %s560 = smul.addr %s557, 2
        %s561 = sadd.s32 %s559, %s560
        %s562 = smul.addr %s561, 4
        %s563 = scalar_lea.vmem %s5, %s562
      $region60: #{attention_block_forward.12} parent=55 // pred_fallthru
        _
      // Predicated region
      $region61: #{attention_block_forward.12} parent=55 // pred_check
        %p564 = pneg %p201
      $region62: #{attention_block_forward.12} parent=55 // pred_check_branch
        %566 = sbr.rel (%p564) target = $region64
      $region63: #{attention_block_forward.12} parent=55 // pred_region
        %p567 = scmp.lt.s32.totalorder %s24, 1
        %s568 = scalar_select %p567, %s24, 1
        %s569 = smul.addr %s568, 2
        %s570 = scalar_lea.vmem %s6, %s569
      $region64: #{attention_block_forward.12} parent=55 // pred_fallthru
        _
    $region56: #{attention_block_forward.12} parent=5 // pred_fallthru
      _
  $region6: #{attention_block_forward.12} parent=0 // loop_footer
    %s17 = sadd.s32 1, %s13
  $region7: #{attention_block_forward.12} parent=0 // loop_footer_branch
    %12 = sbr.rel target = $region3
  $region8: #{attention_block_forward.12} parent=0 // loop_exit
    _

// kernel: attention_block_forward.11
$region0: #{attention_block_forward.11}
  #allocation0 [shape = 'u32[]', space=smem, size = 0x4, offset = 0x4, fixed_abs, tag = 'smem constant byte address 0x4 - core index']
  #allocation1 [shape = 'u32[144,128]{1,0:T(1,128)}', space=vmem, size = 0x12000, scoped, tag = 'internal scratch']
  #allocation2 [shape = 'f32[16,32]{1,0:T(8,128)}', space=vmem, size = 0x2000, scoped, tag = 'scratch operand']
  #allocation3 [shape = 'f32[4,16,1]{2,1,0:T(8,128)}', space=vmem, size = 0x8000, scoped, tag = 'scratch operand']
  #allocation4 [shape = 'f32[4,16,1]{2,1,0:T(8,128)}', space=vmem, size = 0x8000, scoped, tag = 'scratch operand']
  %s0 = inlined_call_operand.vmem [shape: bf16[2,16,32], index: 0, kind: input, shape index: {}]
  %s1 = inlined_call_operand.vmem [shape: bf16[2,16,64], index: 1, kind: input, shape index: {}]
  %s2 = inlined_call_operand.vmem [shape: bf16[32,32], index: 2, kind: input, shape index: {}]
  %s3 = inlined_call_operand.vmem [shape: f32[1,32], index: 3, kind: input, shape index: {}]
  %s4 = inlined_call_operand.vmem [shape: bf16[2,16,32], index: 4, kind: output, shape index: {}]
  %s5 = sld [smem:[#allocation0]]
  $region57: #{attention_block_forward.11} parent=0
    _
  %s7 = ssub.s32 1, %s5
  %s8 = scalar_select 0, %s7, %s5
  loop: start=0, step=1, limit=4
  $region2: #{attention_block_forward.11} parent=0 // loop_pre_header
    _
  $region3: #{attention_block_forward.11} parent=0 // loop_header
    %s10 = sphi 0, %s14
    %p11 = scmp.ge.s32.totalorder %s10, 4
    %s17 = sphi 0, %s36
    %s18 = sphi 0, %s32
    %s19 = sphi 0, %s28
    %s20 = sphi 0, %s17
    %s21 = sphi 0, %s18
    %s22 = sphi 0, %s19
    %s23 = sphi 0, %s20
    %s24 = sphi 0, %s21
    %s25 = sphi 0, %s22
    %s41 = sphi 0, %s43
    %s44 = sphi 0, %s41
    %s45 = sphi 0, %s44
    %s61 = sphi 0, %s45
    %s69 = sphi 0, %s71
    %s72 = sphi 0, %s69
    %s73 = sphi 0, %s72
    %s89 = sphi 0, %s73
    %s93 = sphi 0, %s93
    %s95 = sphi 0, %s93
    %s96 = sphi 0, %s95
    %s110 = sphi 0, %s96
    %s114 = sphi 0, %s114
    %s116 = sphi 0, %s114
    %s117 = sphi 0, %s116
    %s131 = sphi 0, %s117
    %s139 = sphi 0, %s141
    %s142 = sphi 0, %s139
    %s143 = sphi 0, %s142
    %s159 = sphi 0, %s143
  $region4: #{attention_block_forward.11} parent=0 // loop_header_branch
    %13 = sbr.rel (%p11) target = $region8
  $region5: #{attention_block_forward.11} parent=0 // loop_body
    %s15 = ssub.s32 %s10, 1
    %s16 = ssub.s32 %s10, 2
    %s26 = sadd.s32 1, %s19
    %p27 = scmp.ge.s32.totalorder %s26, 1
    %s28 = scalar_select %p27, 0, %s26
    %s29 = sadd.s32 1, %s18
    %s30 = scalar_select %p27, %s29, %s18
    %p31 = scmp.ge.s32.totalorder %s30, 1
    %s32 = scalar_select %p31, 0, %s30
    %s33 = sadd.s32 1, %s17
    %s34 = scalar_select %p31, %s33, %s17
    %p35 = scmp.ge.s32.totalorder %s34, 2
    %s36 = scalar_select %p35, 0, %s34
    %s37 = ssub.s32 %s17, %s36
    %s38 = ssub.s32 %s18, %s32
    %s39 = sor.u32 %s37, %s38
    %p40 = scmp.eq.s32.totalorder %s39, 0
    %s42 = sadd.s32 %s41, 1
    %s43 = scalar_select %p40, %s41, %s42
    %p46 = pneg %p40
    %p47 = scmp.eq.s32.totalorder %s10, 1
    %p48 = por %p46, %p47
    %p49 = scmp.ne.s32.totalorder %s41, %s44
    %p50 = scmp.eq.s32.totalorder %s10, 0
    %p51 = por %p49, %p50
    %p52 = scmp.ne.s32.totalorder %s41, %s44
    %p53 = scmp.eq.s32.totalorder %s15, 1
    %p54 = por %p52, %p53
    %p55 = scmp.ne.s32.totalorder %s44, %s45
    %p56 = scmp.eq.s32.totalorder %s15, 0
    %p57 = por %p55, %p56
    %p58 = scmp.ne.s32.totalorder %s44, %s45
    %p59 = scmp.eq.s32.totalorder %s16, 1
    %p60 = por %p58, %p59
    %p62 = scmp.ne.s32.totalorder %s45, %s61
    %p63 = scmp.eq.s32.totalorder %s16, 0
    %p64 = por %p62, %p63
    %s65 = ssub.s32 %s17, %s36
    %s66 = ssub.s32 %s19, %s28
    %s67 = sor.u32 %s65, %s66
    %p68 = scmp.eq.s32.totalorder %s67, 0
    %s70 = sadd.s32 %s69, 1
    %s71 = scalar_select %p68, %s69, %s70
    %p74 = pneg %p68
    %p75 = scmp.eq.s32.totalorder %s10, 1
    %p76 = por %p74, %p75
    %p77 = scmp.ne.s32.totalorder %s69, %s72
    %p78 = scmp.eq.s32.totalorder %s10, 0
    %p79 = por %p77, %p78
    %p80 = scmp.ne.s32.totalorder %s69, %s72
    %p81 = scmp.eq.s32.totalorder %s15, 1
    %p82 = por %p80, %p81
    %p83 = scmp.ne.s32.totalorder %s72, %s73
    %p84 = scmp.eq.s32.totalorder %s15, 0
    %p85 = por %p83, %p84
    %p86 = scmp.ne.s32.totalorder %s72, %s73
    %p87 = scmp.eq.s32.totalorder %s16, 1
    %p88 = por %p86, %p87
    %p90 = scmp.ne.s32.totalorder %s73, %s89
    %p91 = scmp.eq.s32.totalorder %s16, 0
    %p92 = por %p90, %p91
    %s94 = sadd.s32 %s93, 1
    %p97 = scmp.eq.s32.totalorder %s10, 1
    %p98 = scmp.ne.s32.totalorder %s93, %s95
    %p99 = scmp.eq.s32.totalorder %s10, 0
    %p100 = por %p98, %p99
    %p101 = scmp.ne.s32.totalorder %s93, %s95
    %p102 = scmp.eq.s32.totalorder %s15, 1
    %p103 = por %p101, %p102
    %p104 = scmp.ne.s32.totalorder %s95, %s96
    %p105 = scmp.eq.s32.totalorder %s15, 0
    %p106 = por %p104, %p105
    %p107 = scmp.ne.s32.totalorder %s95, %s96
    %p108 = scmp.eq.s32.totalorder %s16, 1
    %p109 = por %p107, %p108
    %p111 = scmp.ne.s32.totalorder %s96, %s110
    %p112 = scmp.eq.s32.totalorder %s16, 0
    %p113 = por %p111, %p112
    %s115 = sadd.s32 %s114, 1
    %p118 = scmp.eq.s32.totalorder %s10, 1
    %p119 = scmp.ne.s32.totalorder %s114, %s116
    %p120 = scmp.eq.s32.totalorder %s10, 0
    %p121 = por %p119, %p120
    %p122 = scmp.ne.s32.totalorder %s114, %s116
    %p123 = scmp.eq.s32.totalorder %s15, 1
    %p124 = por %p122, %p123
    %p125 = scmp.ne.s32.totalorder %s116, %s117
    %p126 = scmp.eq.s32.totalorder %s15, 0
    %p127 = por %p125, %p126
    %p128 = scmp.ne.s32.totalorder %s116, %s117
    %p129 = scmp.eq.s32.totalorder %s16, 1
    %p130 = por %p128, %p129
    %p132 = scmp.ne.s32.totalorder %s117, %s131
    %p133 = scmp.eq.s32.totalorder %s16, 0
    %p134 = por %p132, %p133
    %s135 = ssub.s32 %s17, %s36
    %s136 = ssub.s32 %s18, %s32
    %s137 = sor.u32 %s135, %s136
    %p138 = scmp.eq.s32.totalorder %s137, 0
    %s140 = sadd.s32 %s139, 1
    %s141 = scalar_select %p138, %s139, %s140
    %p144 = pneg %p138
    %p145 = scmp.eq.s32.totalorder %s10, 1
    %p146 = por %p144, %p145
    %p147 = scmp.ne.s32.totalorder %s139, %s142
    %p148 = scmp.eq.s32.totalorder %s10, 0
    %p149 = por %p147, %p148
    %p150 = scmp.ne.s32.totalorder %s139, %s142
    %p151 = scmp.eq.s32.totalorder %s15, 1
    %p152 = por %p150, %p151
    %p153 = scmp.ne.s32.totalorder %s142, %s143
    %p154 = scmp.eq.s32.totalorder %s15, 0
    %p155 = por %p153, %p154
    %p156 = scmp.ne.s32.totalorder %s142, %s143
    %p157 = scmp.eq.s32.totalorder %s16, 1
    %p158 = por %p156, %p157
    %p160 = scmp.ne.s32.totalorder %s143, %s159
    %p161 = scmp.eq.s32.totalorder %s16, 0
    %p162 = por %p160, %p161
    %p163 = scmp.le.s32.totalorder 1, %s10
    %p164 = scmp.lt.s32.totalorder %s10, 3
    %p165 = pnand %p163, %p164
    %p166 = pneg %p165
    // Predicated region
    $region9: #{attention_block_forward.11} parent=5 // pred_check
      _
    $region10: #{attention_block_forward.11} parent=5 // pred_check_branch
      %168 = sbr.rel (%p165) target = $region12
    $region11: #{attention_block_forward.11} parent=5 // pred_region
      %s169 = ssub.s32 %s10, 1
      // Predicated region
      $region13: #{attention_block_forward.11} parent=11 // pred_check
        %p170 = pneg %p106
      $region14: #{attention_block_forward.11} parent=11 // pred_check_branch
        %172 = sbr.rel (%p170) target = $region16
      $region15: #{attention_block_forward.11} parent=11 // pred_region
        _
      $region16: #{attention_block_forward.11} parent=11 // pred_fallthru
        _
      // Predicated region
      $region17: #{attention_block_forward.11} parent=11 // pred_check
        %p173 = pneg %p127
      $region18: #{attention_block_forward.11} parent=11 // pred_check_branch
        %175 = sbr.rel (%p173) target = $region20
      $region19: #{attention_block_forward.11} parent=11 // pred_region
        _
      $region20: #{attention_block_forward.11} parent=11 // pred_fallthru
        _
    $region12: #{attention_block_forward.11} parent=5 // pred_fallthru
      _
    %p176 = scmp.lt.s32.totalorder %s10, 2
    // Predicated region
    $region21: #{attention_block_forward.11} parent=5 // pred_check
      %p177 = pneg %p176
    $region22: #{attention_block_forward.11} parent=5 // pred_check_branch
      %179 = sbr.rel (%p177) target = $region24
    $region23: #{attention_block_forward.11} parent=5 // pred_region
      // Predicated region
      $region25: #{attention_block_forward.11} parent=23 // pred_check
        %p180 = pneg %p51
      $region26: #{attention_block_forward.11} parent=23 // pred_check_branch
        %182 = sbr.rel (%p180) target = $region28
      $region27: #{attention_block_forward.11} parent=23 // pred_region
        %s183 = smul.u32 2, %s18
        %p184 = scmp.lt.s32.totalorder %s17, 1
        %s185 = scalar_select %p184, %s17, 1
        %p186 = scmp.lt.s32.totalorder %s183, 1
        %s187 = scalar_select %p186, %s183, 1
        %s188 = smul.addr %s185, 2
        %s189 = sadd.s32 %s187, %s188
        %s190 = smul.addr %s189, 4
        %s191 = scalar_lea.vmem %s0, %s190
        %s192 = smul.u32 2, %s18
      $region28: #{attention_block_forward.11} parent=23 // pred_fallthru
        _
      // Predicated region
      $region29: #{attention_block_forward.11} parent=23 // pred_check
        %p193 = pneg %p79
      $region30: #{attention_block_forward.11} parent=23 // pred_check_branch
        %195 = sbr.rel (%p193) target = $region32
      $region31: #{attention_block_forward.11} parent=23 // pred_region
        %s196 = smul.u32 2, %s19
        %p197 = scmp.lt.s32.totalorder %s17, 1
        %s198 = scalar_select %p197, %s17, 1
        %p199 = scmp.lt.s32.totalorder %s196, 1
        %s200 = scalar_select %p199, %s196, 1
        %s201 = smul.addr %s198, 2
        %s202 = sadd.s32 %s200, %s201
        %s203 = smul.addr %s202, 4
        %s204 = scalar_lea.vmem %s1, %s203
        %s205 = smul.u32 2, %s19
      $region32: #{attention_block_forward.11} parent=23 // pred_fallthru
        _
    $region24: #{attention_block_forward.11} parent=5 // pred_fallthru
      _
    %p206 = scmp.le.s32.totalorder 1, %s10
    %p207 = scmp.lt.s32.totalorder %s10, 3
    %p208 = pnand %p206, %p207
    %p209 = pneg %p208
    // Predicated region
    $region33: #{attention_block_forward.11} parent=5 // pred_check
      _
    $region34: #{attention_block_forward.11} parent=5 // pred_check_branch
      %211 = sbr.rel (%p208) target = $region36
    $region35: #{attention_block_forward.11} parent=5 // pred_region
      %s212 = ssub.s32 %s10, 1
      %s213 = smul.u32 2, %s21
      %p214 = scmp.lt.s32.totalorder %s20, 1
      %s215 = scalar_select %p214, %s20, 1
      %p216 = scmp.lt.s32.totalorder %s213, 1
      %s217 = scalar_select %p216, %s213, 1
      %s218 = smul.addr %s215, 2
      %s219 = sadd.s32 %s217, %s218
      %s220 = smul.addr %s219, 4
      %s221 = scalar_lea.vmem %s0, %s220
      %p222 = pneg %p57
      %p223 = pneg %p54
      %s224 = smul.u32 2, %s22
      %p225 = scmp.lt.s32.totalorder %s20, 1
      %s226 = scalar_select %p225, %s20, 1
      %p227 = scmp.lt.s32.totalorder %s224, 1
      %s228 = scalar_select %p227, %s224, 1
      %s229 = smul.addr %s226, 2
      %s230 = sadd.s32 %s228, %s229
      %s231 = smul.addr %s230, 4
      %s232 = scalar_lea.vmem %s1, %s231
      %p233 = pneg %p85
      %p234 = pneg %p82
      %p235 = pneg %p106
      %p236 = pneg %p103
      %p237 = pneg %p127
      %p238 = pneg %p124
      %p239 = pneg %p155
      %p240 = pneg %p152
      %s241 = smul.u32 2, %s21
      %p242 = scmp.lt.s32.totalorder %s20, 1
      %s243 = scalar_select %p242, %s20, 1
      %p244 = scmp.lt.s32.totalorder %s241, 1
      %s245 = scalar_select %p244, %s241, 1
      %s246 = smul.addr %s243, 2
      %s247 = sadd.s32 %s245, %s246
      %s248 = smul.addr %s247, 4
      %s249 = scalar_lea.vmem %s4, %s248
      %s250 = smul.u32 2, %s21
      %p251 = scmp.lt.s32.totalorder %s20, 1
      %s252 = scalar_select %p251, %s20, 1
      %p253 = scmp.lt.s32.totalorder %s250, 1
      %s254 = scalar_select %p253, %s250, 1
      %s255 = smul.addr %s252, 2
      %s256 = sadd.s32 %s254, %s255
      %s257 = smul.addr %s256, 4
      %s258 = scalar_lea.vmem %s0, %s257
      %s259 = smul.u32 2, %s21
      %s260 = smul.u32 2, %s22
      %p261 = scmp.lt.s32.totalorder %s20, 1
      %s262 = scalar_select %p261, %s20, 1
      %p263 = scmp.lt.s32.totalorder %s260, 1
      %s264 = scalar_select %p263, %s260, 1
      %s265 = smul.addr %s262, 2
      %s266 = sadd.s32 %s264, %s265
      %s267 = smul.addr %s266, 4
      %s268 = scalar_lea.vmem %s1, %s267
      %s269 = smul.u32 2, %s22
      %s270 = smul.u32 2, %s21
      %p271 = scmp.lt.s32.totalorder %s20, 1
      %s272 = scalar_select %p271, %s20, 1
      %p273 = scmp.lt.s32.totalorder %s270, 1
      %s274 = scalar_select %p273, %s270, 1
      %s275 = smul.addr %s272, 2
      %s276 = sadd.s32 %s274, %s275
      %s277 = smul.addr %s276, 4
      %s278 = scalar_lea.vmem %s4, %s277
      %s279 = smul.u32 2, %s21
      %p281 = scmp.eq.s32.totalorder %s22, 0
      // Predicated region
      $region37: #{attention_block_forward.11} parent=35 // pred_check
        %p282 = pneg %p281
      $region38: #{attention_block_forward.11} parent=35 // pred_check_branch
        %284 = sbr.rel (%p282) target = $region40
      $region39: #{attention_block_forward.11} parent=35 // pred_region
        %vm285 = vcmask 261120
        %286 = vst.msk [vmem:[#allocation2] sm:$0xff] %vm285, 0.0
        %287 = vst.msk [vmem:[#allocation2 + $0x8] sm:$0xff] %vm285, 0.0
        %vm288 = vcmask 7168
        %289 = vst.msk [vmem:[#allocation3] sm:$0xff] %vm288, -1e+30
        %290 = vst.msk [vmem:[#allocation3 + $0x8] sm:$0xff] %vm288, -1e+30
        %291 = vst.msk [vmem:[#allocation3 + $0x10] sm:$0xff] %vm288, -1e+30
        %292 = vst.msk [vmem:[#allocation3 + $0x18] sm:$0xff] %vm288, -1e+30
        %293 = vst.msk [vmem:[#allocation3 + $0x20] sm:$0xff] %vm288, -1e+30
        %294 = vst.msk [vmem:[#allocation3 + $0x28] sm:$0xff] %vm288, -1e+30
        %295 = vst.msk [vmem:[#allocation3 + $0x30] sm:$0xff] %vm288, -1e+30
        %296 = vst.msk [vmem:[#allocation3 + $0x38] sm:$0xff] %vm288, -1e+30
        %297 = vst.msk [vmem:[#allocation4] sm:$0xff] %vm288, 0.0
        %298 = vst.msk [vmem:[#allocation4 + $0x8] sm:$0xff] %vm288, 0.0
        %299 = vst.msk [vmem:[#allocation4 + $0x10] sm:$0xff] %vm288, 0.0
        %300 = vst.msk [vmem:[#allocation4 + $0x18] sm:$0xff] %vm288, 0.0
        %301 = vst.msk [vmem:[#allocation4 + $0x20] sm:$0xff] %vm288, 0.0
        %302 = vst.msk [vmem:[#allocation4 + $0x28] sm:$0xff] %vm288, 0.0
        %303 = vst.msk [vmem:[#allocation4 + $0x30] sm:$0xff] %vm288, 0.0
        %304 = vst.msk [vmem:[#allocation4 + $0x38] sm:$0xff] %vm288, 0.0
      $region40: #{attention_block_forward.11} parent=35 // pred_fallthru
        _
      %v305 = vld [vmem:[%s258] sm:$0xf]
      %v306 = vld [vmem:[%s258 + $0x4] sm:$0xf]
      %v307 = vld [vmem:[%s268] sm:$0xf]
      %v308 = vld [vmem:[%s268 + $0x4] sm:$0xf]
      %v311 = vunpack.c.l.b16 %v305
      %v312 = vunpack.c.l.b16 %v306
      %v313 = vpack.c.b16 %v312, %v311
      %v316 = vunpack.c.l.b16 %v307
      %v317 = vunpack.c.l.b16 %v308
      %v318 = vpack.c.b16 %v317, %v316
      %vm319 = vcmask 64512
      %v321 = vsel %vm319, %v313, 0
      %v324 = vsel %vm319, %v318, 0
      %326 = vmatprep.subr.bf16.mxu0 0
      %327 = vmatpush1.bf16.xpose.msra.mxu0 %v324
      %328 = vmatprep.subr.bf16.mxu0 0
      %329 = vmatpush1.bf16.xpose.msra.mxu0 0
      %330 = vmatprep.subr.bf16.mxu0 0
      %331 = vmatpush1.bf16.xpose.msra.mxu0 0
      %332 = vmatprep.subr.bf16.mxu0 0
      %333 = vmatpush1.bf16.xpose.msra.mxu0 0
      %334 = vmatprep.subr.bf16.mxu0 0
      %335 = vmatpush1.bf16.xpose.msra.mxu0 0
      %336 = vmatprep.subr.bf16.mxu0 0
      %337 = vmatpush1.bf16.xpose.msra.mxu0 0
      %338 = vmatprep.subr.bf16.mxu0 0
      %339 = vmatpush1.bf16.xpose.msra.mxu0 0
      %340 = vmatprep.subr.bf16.mxu0 0
      %341 = vmatpush1.bf16.xpose.msra.mxu0 0
      %342 = vmatprep.subr.bf16.mxu0 0
      %343 = vmatpush1.bf16.xpose.msra.mxu0 0
      %344 = vmatprep.subr.bf16.mxu0 0
      %345 = vmatpush1.bf16.xpose.msra.mxu0 0
      %346 = vmatprep.subr.bf16.mxu0 0
      %347 = vmatpush1.bf16.xpose.msra.mxu0 0
      %348 = vmatprep.subr.bf16.mxu0 0
      %349 = vmatpush1.bf16.xpose.msra.mxu0 0
      %350 = vmatprep.subr.bf16.mxu0 0
      %351 = vmatpush1.bf16.xpose.msra.mxu0 0
      %352 = vmatprep.subr.bf16.mxu0 0
      %353 = vmatpush1.bf16.xpose.msra.mxu0 0
      %354 = vmatprep.subr.bf16.mxu0 0
      %355 = vmatpush1.bf16.xpose.msra.mxu0 0
      %356 = vmatprep.subr.bf16.mxu0 0
      %357 = vmatpush1.bf16.xpose.msra.mxu0 0
      %358 = vmatprep.mubr.bf16.mxu0 0
      %359 = vmatmul.mubr.bf16.gmra.mrb[0].mxu0 %v321
      %v360 = vpop.f32.mrb[0].mxu0
      %v361 = vadd.f32 0.0, %v360
      %v362 = vpop.f32.mrb[0].mxu0
      %v363 = vpop.f32.mrb[0].mxu0
      %v364 = vadd.f32 0.0, %v363
      %v365 = vpop.f32.mrb[0].mxu0
      %366 = vdwg.mxu0
      %v367 = vld [vmem:[#allocation3] sm:$0xff]
      %v368 = vld [vmem:[#allocation3 + $0x8] sm:$0xff]
      %vm369 = vcmask 130048
      %v370 = vsel %vm369, %v361, -inf
      %371 = vmax.xlane.f32.xlu0 %v370
      %v372 = vpop.xlane.xlu0 %371
      %v373 = vsel %vm369, %v364, -inf
      %374 = vmax.xlane.f32.xlu0 %v373
      %v375 = vpop.xlane.xlu0 %374
      %v376 = vmax.f32 %v367, %v372
      %v377 = vmax.f32 %v368, %v375
      %v378 = vsub.f32 %v367, %v376
      %v379 = vsub.f32 %v368, %v377
      %v380 = vmul.f32 %v378, 1.442695
      %v381 = vpow.pop %v380
      %v382 = vmul.f32 %v379, 1.442695
      %v383 = vpow.pop %v382
      %385 = vset.pattern.permute.xlu0 0
      %386 = vperm.xlu0 %385, %v376
      %v387 = vpop.permute.xlu0 %386
      %390 = vset.pattern.permute.xlu0 0
      %391 = vperm.xlu0 %390, %v377
      %v392 = vpop.permute.xlu0 %391
      %v394 = vsub.f32 %v361, %v387
      %v395 = vsub.f32 %v364, %v392
      %v396 = vpack.c.bf16 %v395, %v394
      %v398 = vmul.bf16 %v396, 1069105081
      %v399 = vpow.bf16.pop %v398
      %v400 = vld [vmem:[#allocation4] sm:$0xff]
      %v401 = vld [vmem:[#allocation4 + $0x8] sm:$0xff]
      %v402 = vmul.f32 %v381, %v400
      %v403 = vmul.f32 %v383, %v401
      %v404 = vunpack.c.l.bf16 %v399
      %v405 = vunpack.c.h.bf16 %v399
      %v406 = vsel %vm369, %v404, 0.0
      %407 = vadd.xlane.f32.xlu0 %v406
      %v408 = vpop.xlane.xlu0 %407
      %v409 = vsel %vm369, %v405, 0.0
      %410 = vadd.xlane.f32.xlu0 %v409
      %v411 = vpop.xlane.xlu0 %410
      %v412 = vadd.f32 %v402, %v408
      %v413 = vadd.f32 %v403, %v411
      %vm414 = vcmask 7168
      %415 = vst.msk [vmem:[#allocation4] sm:$0xff] %vm414, %v412
      %416 = vst.msk [vmem:[#allocation4 + $0x8] sm:$0xff] %vm414, %v413
      %v417 = vld [vmem:[#allocation2] sm:$0xff]
      %v418 = vld [vmem:[#allocation2 + $0x8] sm:$0xff]
      %420 = vset.pattern.permute.xlu0 0
      %421 = vperm.xlu0 %420, %v381
      %v422 = vpop.permute.xlu0 %421
      %425 = vset.pattern.permute.xlu0 0
      %426 = vperm.xlu0 %425, %v383
      %v427 = vpop.permute.xlu0 %426
      %v429 = vmul.f32 %v422, %v417
      %v430 = vmul.f32 %v427, %v418
      %431 = vrot.lane.b32.xlu0 %v318, 96
      %v432 = vpop.permute.xlu0 %431
      %v435 = vsel %vm369, %v399, 0
      %437 = vmatprep.subr.bf16.mxu0 0
      %438 = vmatpush1.bf16.msra.mxu0 %v432
      %439 = vmatprep.subr.bf16.mxu0 0
      %440 = vmatpush1.bf16.msra.mxu0 0
      %441 = vmatprep.subr.bf16.mxu0 0
      %442 = vmatpush1.bf16.msra.mxu0 0
      %443 = vmatprep.subr.bf16.mxu0 0
      %444 = vmatpush1.bf16.msra.mxu0 0
      %445 = vmatprep.subr.bf16.mxu0 0
      %446 = vmatpush1.bf16.msra.mxu0 0
      %447 = vmatprep.subr.bf16.mxu0 0
      %448 = vmatpush1.bf16.msra.mxu0 0
      %449 = vmatprep.subr.bf16.mxu0 0
      %450 = vmatpush1.bf16.msra.mxu0 0
      %451 = vmatprep.subr.bf16.mxu0 0
      %452 = vmatpush1.bf16.msra.mxu0 0
      %453 = vmatprep.subr.bf16.mxu0 0
      %454 = vmatpush1.bf16.msra.mxu0 0
      %455 = vmatprep.subr.bf16.mxu0 0
      %456 = vmatpush1.bf16.msra.mxu0 0
      %457 = vmatprep.subr.bf16.mxu0 0
      %458 = vmatpush1.bf16.msra.mxu0 0
      %459 = vmatprep.subr.bf16.mxu0 0
      %460 = vmatpush1.bf16.msra.mxu0 0
      %461 = vmatprep.subr.bf16.mxu0 0
      %462 = vmatpush1.bf16.msra.mxu0 0
      %463 = vmatprep.subr.bf16.mxu0 0
      %464 = vmatpush1.bf16.msra.mxu0 0
      %465 = vmatprep.subr.bf16.mxu0 0
      %466 = vmatpush1.bf16.msra.mxu0 0
      %467 = vmatprep.subr.bf16.mxu0 0
      %468 = vmatpush1.bf16.msra.mxu0 0
      %469 = vmatprep.mubr.bf16.mxu0 0
      %470 = vmatmul.mubr.bf16.gmra.mrb[0].mxu0 %v435
      %v471 = vpop.f32.mrb[0].mxu0
      %v472 = vadd.f32 0.0, %v471
      %v473 = vpop.f32.mrb[0].mxu0
      %v474 = vpop.f32.mrb[0].mxu0
      %v475 = vadd.f32 0.0, %v474
      %v476 = vpop.f32.mrb[0].mxu0
      %477 = vdwg.mxu0
      %v478 = vadd.f32 %v429, %v472
      %v479 = vadd.f32 %v430, %v475
      %480 = vst.msk [vmem:[#allocation2] sm:$0xff] %vm319, %v478
      %481 = vst.msk [vmem:[#allocation2 + $0x8] sm:$0xff] %vm319, %v479
      %482 = vst.msk [vmem:[#allocation3] sm:$0xff] %vm414, %v376
      %483 = vst.msk [vmem:[#allocation3 + $0x8] sm:$0xff] %vm414, %v377
      %484 = vrot.lane.b32.xlu0 %v313, 120
      %v485 = vpop.permute.xlu0 %484
      %486 = vrot.lane.b32.xlu0 %v318, 120
      %v487 = vpop.permute.xlu0 %486
      %v489 = vsel %vm319, %v485, 0
      %v492 = vsel %vm319, %v487, 0
      %494 = vmatprep.subr.bf16.mxu0 0
      %495 = vmatpush1.bf16.xpose.msra.mxu0 %v492
      %496 = vmatprep.subr.bf16.mxu0 0
      %497 = vmatpush1.bf16.xpose.msra.mxu0 0
      %498 = vmatprep.subr.bf16.mxu0 0
      %499 = vmatpush1.bf16.xpose.msra.mxu0 0
      %500 = vmatprep.subr.bf16.mxu0 0
      %501 = vmatpush1.bf16.xpose.msra.mxu0 0
      %502 = vmatprep.subr.bf16.mxu0 0
      %503 = vmatpush1.bf16.xpose.msra.mxu0 0
      %504 = vmatprep.subr.bf16.mxu0 0
      %505 = vmatpush1.bf16.xpose.msra.mxu0 0
      %506 = vmatprep.subr.bf16.mxu0 0
      %507 = vmatpush1.bf16.xpose.msra.mxu0 0
      %508 = vmatprep.subr.bf16.mxu0 0
      %509 = vmatpush1.bf16.xpose.msra.mxu0 0
      %510 = vmatprep.subr.bf16.mxu0 0
      %511 = vmatpush1.bf16.xpose.msra.mxu0 0
      %512 = vmatprep.subr.bf16.mxu0 0
      %513 = vmatpush1.bf16.xpose.msra.mxu0 0
      %514 = vmatprep.subr.bf16.mxu0 0
      %515 = vmatpush1.bf16.xpose.msra.mxu0 0
      %516 = vmatprep.subr.bf16.mxu0 0
      %517 = vmatpush1.bf16.xpose.msra.mxu0 0
      %518 = vmatprep.subr.bf16.mxu0 0
      %519 = vmatpush1.bf16.xpose.msra.mxu0 0
      %520 = vmatprep.subr.bf16.mxu0 0
      %521 = vmatpush1.bf16.xpose.msra.mxu0 0
      %522 = vmatprep.subr.bf16.mxu0 0
      %523 = vmatpush1.bf16.xpose.msra.mxu0 0
      %524 = vmatprep.subr.bf16.mxu0 0
      %525 = vmatpush1.bf16.xpose.msra.mxu0 0
      %526 = vmatprep.mubr.bf16.mxu0 0
      %527 = vmatmul.mubr.bf16.gmra.mrb[0].mxu0 %v489
      %v528 = vpop.f32.mrb[0].mxu0
      %v529 = vadd.f32 0.0, %v528
      %v530 = vpop.f32.mrb[0].mxu0
      %v531 = vpop.f32.mrb[0].mxu0
      %v532 = vadd.f32 0.0, %v531
      %v533 = vpop.f32.mrb[0].mxu0
      %534 = vdwg.mxu0
      %s535 = scalar_lea.vmem [#allocation3], 16
      %v536 = vld [vmem:[%s535] sm:$0xff]
      %v537 = vld [vmem:[%s535 + $0x8] sm:$0xff]
      %v538 = vsel %vm369, %v529, -inf
      %539 = vmax.xlane.f32.xlu0 %v538
      %v540 = vpop.xlane.xlu0 %539
      %v541 = vsel %vm369, %v532, -inf
      %542 = vmax.xlane.f32.xlu0 %v541
      %v543 = vpop.xlane.xlu0 %542
      %v544 = vmax.f32 %v536, %v540
      %v545 = vmax.f32 %v537, %v543
      %v546 = vsub.f32 %v536, %v544
      %v547 = vsub.f32 %v537, %v545
      %v548 = vmul.f32 %v546, 1.442695
      %v549 = vpow.pop %v548
      %v550 = vmul.f32 %v547, 1.442695
      %v551 = vpow.pop %v550
      %553 = vset.pattern.permute.xlu0 0
      %554 = vperm.xlu0 %553, %v544
      %v555 = vpop.permute.xlu0 %554
      %558 = vset.pattern.permute.xlu0 0
      %559 = vperm.xlu0 %558, %v545
      %v560 = vpop.permute.xlu0 %559
      %v562 = vsub.f32 %v529, %v555
      %v563 = vsub.f32 %v532, %v560
      %v564 = vpack.c.bf16 %v563, %v562
      %v566 = vmul.bf16 %v564, 1069105081
      %v567 = vpow.bf16.pop %v566
      %s568 = scalar_lea.vmem [#allocation4], 16
      %v569 = vld [vmem:[%s568] sm:$0xff]
      %v570 = vld [vmem:[%s568 + $0x8] sm:$0xff]
      %v571 = vmul.f32 %v549, %v569
      %v572 = vmul.f32 %v551, %v570
      %v573 = vunpack.c.l.bf16 %v567
      %v574 = vunpack.c.h.bf16 %v567
      %v575 = vsel %vm369, %v573, 0.0
      %576 = vadd.xlane.f32.xlu0 %v575
      %v577 = vpop.xlane.xlu0 %576
      %v578 = vsel %vm369, %v574, 0.0
      %579 = vadd.xlane.f32.xlu0 %v578
      %v580 = vpop.xlane.xlu0 %579
      %v581 = vadd.f32 %v571, %v577
      %v582 = vadd.f32 %v572, %v580
      %583 = vst.msk [vmem:[%s568] sm:$0xff] %vm414, %v581
      %584 = vst.msk [vmem:[%s568 + $0x8] sm:$0xff] %vm414, %v582
      %v585 = vld [vmem:[#allocation2] sm:$0xff]
      %v586 = vld [vmem:[#allocation2 + $0x8] sm:$0xff]
      %588 = vset.pattern.permute.xlu0 0
      %589 = vperm.xlu0 %588, %v549
      %v590 = vpop.permute.xlu0 %589
      %593 = vset.pattern.permute.xlu0 0
      %594 = vperm.xlu0 %593, %v551
      %v595 = vpop.permute.xlu0 %594
      %v597 = vmul.f32 %v590, %v585
      %v598 = vmul.f32 %v595, %v586
      %599 = vrot.lane.b32.xlu0 %v318, 88
      %v600 = vpop.permute.xlu0 %599
      %v603 = vsel %vm369, %v567, 0
      %605 = vmatprep.subr.bf16.mxu0 0
      %606 = vmatpush1.bf16.msra.mxu0 %v600
      %607 = vmatprep.subr.bf16.mxu0 0
      %608 = vmatpush1.bf16.msra.mxu0 0
      %609 = vmatprep.subr.bf16.mxu0 0
      %610 = vmatpush1.bf16.msra.mxu0 0
      %611 = vmatprep.subr.bf16.mxu0 0
      %612 = vmatpush1.bf16.msra.mxu0 0
      %613 = vmatprep.subr.bf16.mxu0 0
      %614 = vmatpush1.bf16.msra.mxu0 0
      %615 = vmatprep.subr.bf16.mxu0 0
      %616 = vmatpush1.bf16.msra.mxu0 0
      %617 = vmatprep.subr.bf16.mxu0 0
      %618 = vmatpush1.bf16.msra.mxu0 0
      %619 = vmatprep.subr.bf16.mxu0 0
      %620 = vmatpush1.bf16.msra.mxu0 0
      %621 = vmatprep.subr.bf16.mxu0 0
      %622 = vmatpush1.bf16.msra.mxu0 0
      %623 = vmatprep.subr.bf16.mxu0 0
      %624 = vmatpush1.bf16.msra.mxu0 0
      %625 = vmatprep.subr.bf16.mxu0 0
      %626 = vmatpush1.bf16.msra.mxu0 0
      %627 = vmatprep.subr.bf16.mxu0 0
      %628 = vmatpush1.bf16.msra.mxu0 0
      %629 = vmatprep.subr.bf16.mxu0 0
      %630 = vmatpush1.bf16.msra.mxu0 0
      %631 = vmatprep.subr.bf16.mxu0 0
      %632 = vmatpush1.bf16.msra.mxu0 0
      %633 = vmatprep.subr.bf16.mxu0 0
      %634 = vmatpush1.bf16.msra.mxu0 0
      %635 = vmatprep.subr.bf16.mxu0 0
      %636 = vmatpush1.bf16.msra.mxu0 0
      %637 = vmatprep.mubr.bf16.mxu0 0
      %638 = vmatmul.mubr.bf16.gmra.mrb[0].mxu0 %v603
      %v639 = vpop.f32.mrb[0].mxu0
      %v640 = vadd.f32 0.0, %v639
      %v641 = vpop.f32.mrb[0].mxu0
      %v642 = vpop.f32.mrb[0].mxu0
      %v643 = vadd.f32 0.0, %v642
      %v644 = vpop.f32.mrb[0].mxu0
      %645 = vdwg.mxu0
      %648 = vrot.lane.b32.xlu0 %v640, 8
      %v649 = vpop.permute.xlu0 %648
      %650 = vrot.lane.b32.xlu0 %v643, 8
      %v651 = vpop.permute.xlu0 %650
      %v654 = vadd.f32 %v597, %v649
      %v655 = vadd.f32 %v598, %v651
      %vm656 = vcmask 130112
      %657 = vst.msk [vmem:[#allocation2] sm:$0xff] %vm656, %v654
      %658 = vst.msk [vmem:[#allocation2 + $0x8] sm:$0xff] %vm656, %v655
      %659 = vst.msk [vmem:[%s535] sm:$0xff] %vm414, %v544
      %660 = vst.msk [vmem:[%s535 + $0x8] sm:$0xff] %vm414, %v545
      %661 = vrot.lane.b32.xlu0 %v313, 112
      %v662 = vpop.permute.xlu0 %661
      %663 = vrot.lane.b32.xlu0 %v318, 112
      %v664 = vpop.permute.xlu0 %663
      %v666 = vsel %vm319, %v662, 0
      %v669 = vsel %vm319, %v664, 0
      %671 = vmatprep.subr.bf16.mxu0 0
      %672 = vmatpush1.bf16.xpose.msra.mxu0 %v669
      %673 = vmatprep.subr.bf16.mxu0 0
      %674 = vmatpush1.bf16.xpose.msra.mxu0 0
      %675 = vmatprep.subr.bf16.mxu0 0
      %676 = vmatpush1.bf16.xpose.msra.mxu0 0
      %677 = vmatprep.subr.bf16.mxu0 0
      %678 = vmatpush1.bf16.xpose.msra.mxu0 0
      %679 = vmatprep.subr.bf16.mxu0 0
      %680 = vmatpush1.bf16.xpose.msra.mxu0 0
      %681 = vmatprep.subr.bf16.mxu0 0
      %682 = vmatpush1.bf16.xpose.msra.mxu0 0
      %683 = vmatprep.subr.bf16.mxu0 0
      %684 = vmatpush1.bf16.xpose.msra.mxu0 0
      %685 = vmatprep.subr.bf16.mxu0 0
      %686 = vmatpush1.bf16.xpose.msra.mxu0 0
      %687 = vmatprep.subr.bf16.mxu0 0
      %688 = vmatpush1.bf16.xpose.msra.mxu0 0
      %689 = vmatprep.subr.bf16.mxu0 0
      %690 = vmatpush1.bf16.xpose.msra.mxu0 0
      %691 = vmatprep.subr.bf16.mxu0 0
      %692 = vmatpush1.bf16.xpose.msra.mxu0 0
      %693 = vmatprep.subr.bf16.mxu0 0
      %694 = vmatpush1.bf16.xpose.msra.mxu0 0
      %695 = vmatprep.subr.bf16.mxu0 0
      %696 = vmatpush1.bf16.xpose.msra.mxu0 0
      %697 = vmatprep.subr.bf16.mxu0 0
      %698 = vmatpush1.bf16.xpose.msra.mxu0 0
      %699 = vmatprep.subr.bf16.mxu0 0
      %700 = vmatpush1.bf16.xpose.msra.mxu0 0
      %701 = vmatprep.subr.bf16.mxu0 0
      %702 = vmatpush1.bf16.xpose.msra.mxu0 0
      %703 = vmatprep.mubr.bf16.mxu0 0
      %704 = vmatmul.mubr.bf16.gmra.mrb[0].mxu0 %v666
      %v705 = vpop.f32.mrb[0].mxu0
      %v706 = vadd.f32 0.0, %v705
      %v707 = vpop.f32.mrb[0].mxu0
      %v708 = vpop.f32.mrb[0].mxu0
      %v709 = vadd.f32 0.0, %v708
      %v710 = vpop.f32.mrb[0].mxu0
      %711 = vdwg.mxu0
      %s712 = scalar_lea.vmem [#allocation3], 32
      %v713 = vld [vmem:[%s712] sm:$0xff]
      %v714 = vld [vmem:[%s712 + $0x8] sm:$0xff]
      %v715 = vsel %vm369, %v706, -inf
      %716 = vmax.xlane.f32.xlu0 %v715
      %v717 = vpop.xlane.xlu0 %716
      %v718 = vsel %vm369, %v709, -inf
      %719 = vmax.xlane.f32.xlu0 %v718
      %v720 = vpop.xlane.xlu0 %719
      %v721 = vmax.f32 %v713, %v717
      %v722 = vmax.f32 %v714, %v720
      %v723 = vsub.f32 %v713, %v721
      %v724 = vsub.f32 %v714, %v722
      %v725 = vmul.f32 %v723, 1.442695
      %v726 = vpow.pop %v725
      %v727 = vmul.f32 %v724, 1.442695
      %v728 = vpow.pop %v727
      %730 = vset.pattern.permute.xlu0 0
      %731 = vperm.xlu0 %730, %v721
      %v732 = vpop.permute.xlu0 %731
      %735 = vset.pattern.permute.xlu0 0
      %736 = vperm.xlu0 %735, %v722
      %v737 = vpop.permute.xlu0 %736
      %v739 = vsub.f32 %v706, %v732
      %v740 = vsub.f32 %v709, %v737
      %v741 = vpack.c.bf16 %v740, %v739
      %v743 = vmul.bf16 %v741, 1069105081
      %v744 = vpow.bf16.pop %v743
      %s745 = scalar_lea.vmem [#allocation4], 32
      %v746 = vld [vmem:[%s745] sm:$0xff]
      %v747 = vld [vmem:[%s745 + $0x8] sm:$0xff]
      %v748 = vmul.f32 %v726, %v746
      %v749 = vmul.f32 %v728, %v747
      %v750 = vunpack.c.l.bf16 %v744
      %v751 = vunpack.c.h.bf16 %v744
      %v752 = vsel %vm369, %v750, 0.0
      %753 = vadd.xlane.f32.xlu0 %v752
      %v754 = vpop.xlane.xlu0 %753
      %v755 = vsel %vm369, %v751, 0.0
      %756 = vadd.xlane.f32.xlu0 %v755
      %v757 = vpop.xlane.xlu0 %756
      %v758 = vadd.f32 %v748, %v754
      %v759 = vadd.f32 %v749, %v757
      %760 = vst.msk [vmem:[%s745] sm:$0xff] %vm414, %v758
      %761 = vst.msk [vmem:[%s745 + $0x8] sm:$0xff] %vm414, %v759
      %v762 = vld [vmem:[#allocation2] sm:$0xff]
      %v763 = vld [vmem:[#allocation2 + $0x8] sm:$0xff]
      %765 = vset.pattern.permute.xlu0 0
      %766 = vperm.xlu0 %765, %v726
      %v767 = vpop.permute.xlu0 %766
      %770 = vset.pattern.permute.xlu0 0
      %771 = vperm.xlu0 %770, %v728
      %v772 = vpop.permute.xlu0 %771
      %v774 = vmul.f32 %v767, %v762
      %v775 = vmul.f32 %v772, %v763
      %776 = vrot.lane.b32.xlu0 %v318, 80
      %v777 = vpop.permute.xlu0 %776
      %v780 = vsel %vm369, %v744, 0
      %782 = vmatprep.subr.bf16.mxu0 0
      %783 = vmatpush1.bf16.msra.mxu0 %v777
      %784 = vmatprep.subr.bf16.mxu0 0
      %785 = vmatpush1.bf16.msra.mxu0 0
      %786 = vmatprep.subr.bf16.mxu0 0
      %787 = vmatpush1.bf16.msra.mxu0 0
      %788 = vmatprep.subr.bf16.mxu0 0
      %789 = vmatpush1.bf16.msra.mxu0 0
      %790 = vmatprep.subr.bf16.mxu0 0
      %791 = vmatpush1.bf16.msra.mxu0 0
      %792 = vmatprep.subr.bf16.mxu0 0
      %793 = vmatpush1.bf16.msra.mxu0 0
      %794 = vmatprep.subr.bf16.mxu0 0
      %795 = vmatpush1.bf16.msra.mxu0 0
      %796 = vmatprep.subr.bf16.mxu0 0
      %797 = vmatpush1.bf16.msra.mxu0 0
      %798 = vmatprep.subr.bf16.mxu0 0
      %799 = vmatpush1.bf16.msra.mxu0 0
      %800 = vmatprep.subr.bf16.mxu0 0
      %801 = vmatpush1.bf16.msra.mxu0 0
      %802 = vmatprep.subr.bf16.mxu0 0
      %803 = vmatpush1.bf16.msra.mxu0 0
      %804 = vmatprep.subr.bf16.mxu0 0
      %805 = vmatpush1.bf16.msra.mxu0 0
      %806 = vmatprep.subr.bf16.mxu0 0
      %807 = vmatpush1.bf16.msra.mxu0 0
      %808 = vmatprep.subr.bf16.mxu0 0
      %809 = vmatpush1.bf16.msra.mxu0 0
      %810 = vmatprep.subr.bf16.mxu0 0
      %811 = vmatpush1.bf16.msra.mxu0 0
      %812 = vmatprep.subr.bf16.mxu0 0
      %813 = vmatpush1.bf16.msra.mxu0 0
      %814 = vmatprep.mubr.bf16.mxu0 0
      %815 = vmatmul.mubr.bf16.gmra.mrb[0].mxu0 %v780
      %v816 = vpop.f32.mrb[0].mxu0
      %v817 = vadd.f32 0.0, %v816
      %v818 = vpop.f32.mrb[0].mxu0
      %v819 = vpop.f32.mrb[0].mxu0
      %v820 = vadd.f32 0.0, %v819
      %v821 = vpop.f32.mrb[0].mxu0
      %822 = vdwg.mxu0
      %825 = vrot.lane.b32.xlu0 %v817, 16
      %v826 = vpop.permute.xlu0 %825
      %827 = vrot.lane.b32.xlu0 %v820, 16
      %v828 = vpop.permute.xlu0 %827
      %v831 = vadd.f32 %v774, %v826
      %v832 = vadd.f32 %v775, %v828
      %vm833 = vcmask 195712
      %834 = vst.msk [vmem:[#allocation2] sm:$0xff] %vm833, %v831
      %835 = vst.msk [vmem:[#allocation2 + $0x8] sm:$0xff] %vm833, %v832
      %836 = vst.msk [vmem:[%s712] sm:$0xff] %vm414, %v721
      %837 = vst.msk [vmem:[%s712 + $0x8] sm:$0xff] %vm414, %v722
      %838 = vrot.lane.b32.xlu0 %v313, 104
      %v839 = vpop.permute.xlu0 %838
      %840 = vrot.lane.b32.xlu0 %v318, 104
      %v841 = vpop.permute.xlu0 %840
      %v843 = vsel %vm319, %v839, 0
      %v846 = vsel %vm319, %v841, 0
      %848 = vmatprep.subr.bf16.mxu0 0
      %849 = vmatpush1.bf16.xpose.msra.mxu0 %v846
      %850 = vmatprep.subr.bf16.mxu0 0
      %851 = vmatpush1.bf16.xpose.msra.mxu0 0
      %852 = vmatprep.subr.bf16.mxu0 0
      %853 = vmatpush1.bf16.xpose.msra.mxu0 0
      %854 = vmatprep.subr.bf16.mxu0 0
      %855 = vmatpush1.bf16.xpose.msra.mxu0 0
      %856 = vmatprep.subr.bf16.mxu0 0
      %857 = vmatpush1.bf16.xpose.msra.mxu0 0
      %858 = vmatprep.subr.bf16.mxu0 0
      %859 = vmatpush1.bf16.xpose.msra.mxu0 0
      %860 = vmatprep.subr.bf16.mxu0 0
      %861 = vmatpush1.bf16.xpose.msra.mxu0 0
      %862 = vmatprep.subr.bf16.mxu0 0
      %863 = vmatpush1.bf16.xpose.msra.mxu0 0
      %864 = vmatprep.subr.bf16.mxu0 0
      %865 = vmatpush1.bf16.xpose.msra.mxu0 0
      %866 = vmatprep.subr.bf16.mxu0 0
      %867 = vmatpush1.bf16.xpose.msra.mxu0 0
      %868 = vmatprep.subr.bf16.mxu0 0
      %869 = vmatpush1.bf16.xpose.msra.mxu0 0
      %870 = vmatprep.subr.bf16.mxu0 0
      %871 = vmatpush1.bf16.xpose.msra.mxu0 0
      %872 = vmatprep.subr.bf16.mxu0 0
      %873 = vmatpush1.bf16.xpose.msra.mxu0 0
      %874 = vmatprep.subr.bf16.mxu0 0
      %875 = vmatpush1.bf16.xpose.msra.mxu0 0
      %876 = vmatprep.subr.bf16.mxu0 0
      %877 = vmatpush1.bf16.xpose.msra.mxu0 0
      %878 = vmatprep.subr.bf16.mxu0 0
      %879 = vmatpush1.bf16.xpose.msra.mxu0 0
      %880 = vmatprep.mubr.bf16.mxu0 0
      %881 = vmatmul.mubr.bf16.gmra.mrb[0].mxu0 %v843
      %v882 = vpop.f32.mrb[0].mxu0
      %v883 = vadd.f32 0.0, %v882
      %v884 = vpop.f32.mrb[0].mxu0
      %v885 = vpop.f32.mrb[0].mxu0
      %v886 = vadd.f32 0.0, %v885
      %v887 = vpop.f32.mrb[0].mxu0
      %888 = vdwg.mxu0
      %s889 = scalar_lea.vmem [#allocation3], 48
      %v890 = vld [vmem:[%s889] sm:$0xff]
      %v891 = vld [vmem:[%s889 + $0x8] sm:$0xff]
      %v892 = vsel %vm369, %v883, -inf
      %893 = vmax.xlane.f32.xlu0 %v892
      %v894 = vpop.xlane.xlu0 %893
      %v895 = vsel %vm369, %v886, -inf
      %896 = vmax.xlane.f32.xlu0 %v895
      %v897 = vpop.xlane.xlu0 %896
      %v898 = vmax.f32 %v890, %v894
      %v899 = vmax.f32 %v891, %v897
      %v900 = vsub.f32 %v890, %v898
      %v901 = vsub.f32 %v891, %v899
      %v902 = vmul.f32 %v900, 1.442695
      %v903 = vpow.pop %v902
      %v904 = vmul.f32 %v901, 1.442695
      %v905 = vpow.pop %v904
      %907 = vset.pattern.permute.xlu0 0
      %908 = vperm.xlu0 %907, %v898
      %v909 = vpop.permute.xlu0 %908
      %912 = vset.pattern.permute.xlu0 0
      %913 = vperm.xlu0 %912, %v899
      %v914 = vpop.permute.xlu0 %913
      %v916 = vsub.f32 %v883, %v909
      %v917 = vsub.f32 %v886, %v914
      %v918 = vpack.c.bf16 %v917, %v916
      %v920 = vmul.bf16 %v918, 1069105081
      %v921 = vpow.bf16.pop %v920
      %s922 = scalar_lea.vmem [#allocation4], 48
      %v923 = vld [vmem:[%s922] sm:$0xff]
      %v924 = vld [vmem:[%s922 + $0x8] sm:$0xff]
      %v925 = vmul.f32 %v903, %v923
      %v926 = vmul.f32 %v905, %v924
      %v927 = vunpack.c.l.bf16 %v921
      %v928 = vunpack.c.h.bf16 %v921
      %v929 = vsel %vm369, %v927, 0.0
      %930 = vadd.xlane.f32.xlu0 %v929
      %v931 = vpop.xlane.xlu0 %930
      %v932 = vsel %vm369, %v928, 0.0
      %933 = vadd.xlane.f32.xlu0 %v932
      %v934 = vpop.xlane.xlu0 %933
      %v935 = vadd.f32 %v925, %v931
      %v936 = vadd.f32 %v926, %v934
      %937 = vst.msk [vmem:[%s922] sm:$0xff] %vm414, %v935
      %938 = vst.msk [vmem:[%s922 + $0x8] sm:$0xff] %vm414, %v936
      %v939 = vld [vmem:[#allocation2] sm:$0xff]
      %v940 = vld [vmem:[#allocation2 + $0x8] sm:$0xff]
      %942 = vset.pattern.permute.xlu0 0
      %943 = vperm.xlu0 %942, %v903
      %v944 = vpop.permute.xlu0 %943
      %947 = vset.pattern.permute.xlu0 0
      %948 = vperm.xlu0 %947, %v905
      %v949 = vpop.permute.xlu0 %948
      %v951 = vmul.f32 %v944, %v939
      %v952 = vmul.f32 %v949, %v940
      %953 = vrot.lane.b32.xlu0 %v318, 72
      %v954 = vpop.permute.xlu0 %953
      %v957 = vsel %vm369, %v921, 0
      %959 = vmatprep.subr.bf16.mxu0 0
      %960 = vmatpush1.bf16.msra.mxu0 %v954
      %961 = vmatprep.subr.bf16.mxu0 0
      %962 = vmatpush1.bf16.msra.mxu0 0
      %963 = vmatprep.subr.bf16.mxu0 0
      %964 = vmatpush1.bf16.msra.mxu0 0
      %965 = vmatprep.subr.bf16.mxu0 0
      %966 = vmatpush1.bf16.msra.mxu0 0
      %967 = vmatprep.subr.bf16.mxu0 0
      %968 = vmatpush1.bf16.msra.mxu0 0
      %969 = vmatprep.subr.bf16.mxu0 0
      %970 = vmatpush1.bf16.msra.mxu0 0
      %971 = vmatprep.subr.bf16.mxu0 0
      %972 = vmatpush1.bf16.msra.mxu0 0
      %973 = vmatprep.subr.bf16.mxu0 0
      %974 = vmatpush1.bf16.msra.mxu0 0
      %975 = vmatprep.subr.bf16.mxu0 0
      %976 = vmatpush1.bf16.msra.mxu0 0
      %977 = vmatprep.subr.bf16.mxu0 0
      %978 = vmatpush1.bf16.msra.mxu0 0
      %979 = vmatprep.subr.bf16.mxu0 0
      %980 = vmatpush1.bf16.msra.mxu0 0
      %981 = vmatprep.subr.bf16.mxu0 0
      %982 = vmatpush1.bf16.msra.mxu0 0
      %983 = vmatprep.subr.bf16.mxu0 0
      %984 = vmatpush1.bf16.msra.mxu0 0
      %985 = vmatprep.subr.bf16.mxu0 0
      %986 = vmatpush1.bf16.msra.mxu0 0
      %987 = vmatprep.subr.bf16.mxu0 0
      %988 = vmatpush1.bf16.msra.mxu0 0
      %989 = vmatprep.subr.bf16.mxu0 0
      %990 = vmatpush1.bf16.msra.mxu0 0
      %991 = vmatprep.mubr.bf16.mxu0 0
      %992 = vmatmul.mubr.bf16.gmra.mrb[0].mxu0 %v957
      %v993 = vpop.f32.mrb[0].mxu0
      %v994 = vadd.f32 0.0, %v993
      %v995 = vpop.f32.mrb[0].mxu0
      %v996 = vpop.f32.mrb[0].mxu0
      %v997 = vadd.f32 0.0, %v996
      %v998 = vpop.f32.mrb[0].mxu0
      %999 = vdwg.mxu0
      %1002 = vrot.lane.b32.xlu0 %v994, 24
      %v1003 = vpop.permute.xlu0 %1002
      %1004 = vrot.lane.b32.xlu0 %v997, 24
      %v1005 = vpop.permute.xlu0 %1004
      %v1008 = vadd.f32 %v951, %v1003
      %v1009 = vadd.f32 %v952, %v1005
      %vm1010 = vcmask 261312
      %1011 = vst.msk [vmem:[#allocation2] sm:$0xff] %vm1010, %v1008
      %1012 = vst.msk [vmem:[#allocation2 + $0x8] sm:$0xff] %vm1010, %v1009
      %1013 = vst.msk [vmem:[%s889] sm:$0xff] %vm414, %v898
      %1014 = vst.msk [vmem:[%s889 + $0x8] sm:$0xff] %vm414, %v899
      // Predicated region
      $region41: #{attention_block_forward.11} parent=35 // pred_check
        %p1015 = pneg %p281
      $region42: #{attention_block_forward.11} parent=35 // pred_check_branch
        %1017 = sbr.rel (%p1015) target = $region44
      $region43: #{attention_block_forward.11} parent=35 // pred_region
        %v1018 = vld [vmem:[#allocation2] sm:$0xff]
        %v1019 = vld [vmem:[#allocation2 + $0x8] sm:$0xff]
        %v1020 = vld [vmem:[#allocation4] sm:$0xff]
        %v1021 = vld [vmem:[#allocation4 + $0x8] sm:$0xff]
        %v1022 = vrcp.pop %v1020
        %v1023 = vrcp.pop %v1021
        %1025 = vset.pattern.permute.xlu0 0
        %1026 = vperm.xlu0 %1025, %v1022
        %v1027 = vpop.permute.xlu0 %1026
        %1030 = vset.pattern.permute.xlu0 0
        %1031 = vperm.xlu0 %1030, %v1023
        %v1032 = vpop.permute.xlu0 %1031
        %v1034 = vmul.f32 %v1018, %v1027
        %v1035 = vmul.f32 %v1019, %v1032
        %1036 = vst.msk [vmem:[#allocation2] sm:$0xff] %vm319, %v1034
        %1037 = vst.msk [vmem:[#allocation2 + $0x8] sm:$0xff] %vm319, %v1035
        %v1038 = vld [vmem:[#allocation2] sm:$0xff]
        %v1039 = vld [vmem:[#allocation2 + $0x8] sm:$0xff]
        %v1040 = vld [vmem:[%s568] sm:$0xff]
        %v1041 = vld [vmem:[%s568 + $0x8] sm:$0xff]
        %v1042 = vrcp.pop %v1040
        %v1043 = vrcp.pop %v1041
        %1045 = vset.pattern.permute.xlu0 0
        %1046 = vperm.xlu0 %1045, %v1042
        %v1047 = vpop.permute.xlu0 %1046
        %1050 = vset.pattern.permute.xlu0 0
        %1051 = vperm.xlu0 %1050, %v1043
        %v1052 = vpop.permute.xlu0 %1051
        %v1054 = vmul.f32 %v1038, %v1047
        %v1055 = vmul.f32 %v1039, %v1052
        %1056 = vst.msk [vmem:[#allocation2] sm:$0xff] %vm656, %v1054
        %1057 = vst.msk [vmem:[#allocation2 + $0x8] sm:$0xff] %vm656, %v1055
        %v1058 = vld [vmem:[#allocation2] sm:$0xff]
        %v1059 = vld [vmem:[#allocation2 + $0x8] sm:$0xff]
        %v1060 = vld [vmem:[%s745] sm:$0xff]
        %v1061 = vld [vmem:[%s745 + $0x8] sm:$0xff]
        %v1062 = vrcp.pop %v1060
        %v1063 = vrcp.pop %v1061
        %1065 = vset.pattern.permute.xlu0 0
        %1066 = vperm.xlu0 %1065, %v1062
        %v1067 = vpop.permute.xlu0 %1066
        %1070 = vset.pattern.permute.xlu0 0
        %1071 = vperm.xlu0 %1070, %v1063
        %v1072 = vpop.permute.xlu0 %1071
        %v1074 = vmul.f32 %v1058, %v1067
        %v1075 = vmul.f32 %v1059, %v1072
        %1076 = vst.msk [vmem:[#allocation2] sm:$0xff] %vm833, %v1074
        %1077 = vst.msk [vmem:[#allocation2 + $0x8] sm:$0xff] %vm833, %v1075
        %v1078 = vld [vmem:[#allocation2] sm:$0xff]
        %v1079 = vld [vmem:[#allocation2 + $0x8] sm:$0xff]
        %v1080 = vld [vmem:[%s922] sm:$0xff]
        %v1081 = vld [vmem:[%s922 + $0x8] sm:$0xff]
        %v1082 = vrcp.pop %v1080
        %v1083 = vrcp.pop %v1081
        %1085 = vset.pattern.permute.xlu0 0
        %1086 = vperm.xlu0 %1085, %v1082
        %v1087 = vpop.permute.xlu0 %1086
        %1090 = vset.pattern.permute.xlu0 0
        %1091 = vperm.xlu0 %1090, %v1083
        %v1092 = vpop.permute.xlu0 %1091
        %v1094 = vmul.f32 %v1078, %v1087
        %v1095 = vmul.f32 %v1079, %v1092
        %1096 = vst.msk [vmem:[#allocation2] sm:$0xff] %vm1010, %v1094
        %1097 = vst.msk [vmem:[#allocation2 + $0x8] sm:$0xff] %vm1010, %v1095
        %v1098 = vld [vmem:[#allocation2] sm:$0xff]
        %v1099 = vld [vmem:[#allocation2 + $0x8] sm:$0xff]
        %v1100 = vpack.c.bf16 %v1099, %v1098
        %v1101 = vld [vmem:[%s2] sm:$0xf]
        %v1102 = vld [vmem:[%s2 + $0x4] sm:$0xf]
        %v1103 = vld [vmem:[%s2 + $0x8] sm:$0xf]
        %v1104 = vld [vmem:[%s2 + $0xc] sm:$0xf]
        %v1105 = vld [vmem:[%s3] sm:$0x1]
        %v1107 = vlaneseq
        %v1108 = vshrl.u32 %v1107, 7
        %v1109 = vsub.s32 0, %v1108
        %v1110 = vrot.slane %v1105, %v1109
        %v1116 = vunpack.c.l.b16 %v1101
        %v1117 = vunpack.c.l.b16 %v1102
        %v1118 = vunpack.c.l.b16 %v1103
        %v1119 = vunpack.c.l.b16 %v1104
        %v1120 = vpack.c.b16 %v1117, %v1116
        %v1121 = vpack.c.b16 %v1119, %v1118
        %vm1124 = vcmask 261120
        %v1126 = vsel %vm1124, %v1100, 0
        %1128 = vmatprep.subr.bf16.mxu0 0
        %1129 = vmatpush1.bf16.msra.mxu0 %v1120
        %1130 = vmatprep.subr.bf16.mxu0 0
        %1131 = vmatpush1.bf16.msra.mxu0 %v1121
        %1132 = vmatprep.subr.bf16.mxu0 0
        %1133 = vmatpush1.bf16.msra.mxu0 0
        %1134 = vmatprep.subr.bf16.mxu0 0
        %1135 = vmatpush1.bf16.msra.mxu0 0
        %1136 = vmatprep.subr.bf16.mxu0 0
        %1137 = vmatpush1.bf16.msra.mxu0 0
        %1138 = vmatprep.subr.bf16.mxu0 0
        %1139 = vmatpush1.bf16.msra.mxu0 0
        %1140 = vmatprep.subr.bf16.mxu0 0
        %1141 = vmatpush1.bf16.msra.mxu0 0
        %1142 = vmatprep.subr.bf16.mxu0 0
        %1143 = vmatpush1.bf16.msra.mxu0 0
        %1144 = vmatprep.subr.bf16.mxu0 0
        %1145 = vmatpush1.bf16.msra.mxu0 0
        %1146 = vmatprep.subr.bf16.mxu0 0
        %1147 = vmatpush1.bf16.msra.mxu0 0
        %1148 = vmatprep.subr.bf16.mxu0 0
        %1149 = vmatpush1.bf16.msra.mxu0 0
        %1150 = vmatprep.subr.bf16.mxu0 0
        %1151 = vmatpush1.bf16.msra.mxu0 0
        %1152 = vmatprep.subr.bf16.mxu0 0
        %1153 = vmatpush1.bf16.msra.mxu0 0
        %1154 = vmatprep.subr.bf16.mxu0 0
        %1155 = vmatpush1.bf16.msra.mxu0 0
        %1156 = vmatprep.subr.bf16.mxu0 0
        %1157 = vmatpush1.bf16.msra.mxu0 0
        %1158 = vmatprep.subr.bf16.mxu0 0
        %1159 = vmatpush1.bf16.msra.mxu0 0
        %1160 = vmatprep.mubr.bf16.mxu0 0
        %1161 = vmatmul.mubr.bf16.gmra.mrb[0].mxu0 %v1126
        %v1162 = vpop.f32.mrb[0].mxu0
        %v1163 = vadd.f32 %v1110, %v1162
        %v1164 = vpop.f32.mrb[0].mxu0
        %v1165 = vpop.f32.mrb[0].mxu0
        %v1166 = vadd.f32 %v1110, %v1165
        %v1167 = vpop.f32.mrb[0].mxu0
        %1168 = vdwg.mxu0
        %v1169 = vpack.c.bf16 %v1166, %v1163
        %v1171 = vunpack.c.l.b16 %v1169
        %v1172 = vunpack.c.h.b16 %v1169
        %v1173 = vpack.c.b16 %v1171, %v1171
        %v1174 = vpack.c.b16 %v1172, %v1172
        %vm1177 = vcmask 257024
        %1178 = vst.msk [vmem:[%s278] sm:$0xf] %vm1177, %v1173
        %1179 = vst.msk [vmem:[%s278 + $0x4] sm:$0xf] %vm1177, %v1174
      $region44: #{attention_block_forward.11} parent=35 // pred_fallthru
        _
      %s1180 = smul.u32 2, %s21
      %p1181 = scmp.lt.s32.totalorder %s20, 1
      %s1182 = scalar_select %p1181, %s20, 1
      %p1183 = scmp.lt.s32.totalorder %s1180, 1
      %s1184 = scalar_select %p1183, %s1180, 1
      %s1185 = smul.addr %s1182, 2
      %s1186 = sadd.s32 %s1184, %s1185
      %s1187 = smul.addr %s1186, 4
      %s1188 = scalar_lea.vmem %s4, %s1187
      // Predicated region
      $region45: #{attention_block_forward.11} parent=35 // pred_check
        %p1189 = pneg %p152
      $region46: #{attention_block_forward.11} parent=35 // pred_check_branch
        %1191 = sbr.rel (%p1189) target = $region48
      $region47: #{attention_block_forward.11} parent=35 // pred_region
        %s1192 = smul.u32 2, %s21
      $region48: #{attention_block_forward.11} parent=35 // pred_fallthru
        _
    $region36: #{attention_block_forward.11} parent=5 // pred_fallthru
      _
    %p1193 = scmp.le.s32.totalorder 2, %s10
    // Predicated region
    $region49: #{attention_block_forward.11} parent=5 // pred_check
      %p1194 = pneg %p1193
    $region50: #{attention_block_forward.11} parent=5 // pred_check_branch
      %1196 = sbr.rel (%p1194) target = $region52
    $region51: #{attention_block_forward.11} parent=5 // pred_region
      %s1197 = ssub.s32 %s10, 2
      // Predicated region
      $region53: #{attention_block_forward.11} parent=51 // pred_check
        %p1198 = pneg %p158
      $region54: #{attention_block_forward.11} parent=51 // pred_check_branch
        %1200 = sbr.rel (%p1198) target = $region56
      $region55: #{attention_block_forward.11} parent=51 // pred_region
        %s1201 = smul.u32 2, %s24
        %p1202 = scmp.lt.s32.totalorder %s23, 1
        %s1203 = scalar_select %p1202, %s23, 1
        %p1204 = scmp.lt.s32.totalorder %s1201, 1
        %s1205 = scalar_select %p1204, %s1201, 1
        %s1206 = smul.addr %s1203, 2
        %s1207 = sadd.s32 %s1205, %s1206
        %s1208 = smul.addr %s1207, 4
        %s1209 = scalar_lea.vmem %s4, %s1208
      $region56: #{attention_block_forward.11} parent=51 // pred_fallthru
        _
    $region52: #{attention_block_forward.11} parent=5 // pred_fallthru
      _
  $region6: #{attention_block_forward.11} parent=0 // loop_footer
    %s14 = sadd.s32 1, %s10
  $region7: #{attention_block_forward.11} parent=0 // loop_footer_branch
    %9 = sbr.rel target = $region3
  $region8: #{attention_block_forward.11} parent=0 // loop_exit
    _

// kernel: attention_block_forward.10
$region0: #{attention_block_forward.10}
  #allocation0 [shape = 'u32[]', space=smem, size = 0x4, offset = 0x4, fixed_abs, tag = 'smem constant byte address 0x4 - core index']
  #allocation1 [shape = 'u32[144,128]{1,0:T(1,128)}', space=vmem, size = 0x12000, scoped, tag = 'internal scratch']
  #allocation2 [shape = 'f32[16,32]{1,0:T(8,128)}', space=vmem, size = 0x2000, scoped, tag = 'scratch operand']
  #allocation3 [shape = 'f32[4,16,1]{2,1,0:T(8,128)}', space=vmem, size = 0x8000, scoped, tag = 'scratch operand']
  #allocation4 [shape = 'f32[4,16,1]{2,1,0:T(8,128)}', space=vmem, size = 0x8000, scoped, tag = 'scratch operand']
  %s0 = inlined_call_operand.vmem [shape: bf16[2,16,32], index: 0, kind: input, shape index: {}]
  %s1 = inlined_call_operand.vmem [shape: bf16[2,16,64], index: 1, kind: input, shape index: {}]
  %s2 = inlined_call_operand.vmem [shape: bf16[32,32], index: 2, kind: input, shape index: {}]
  %s3 = inlined_call_operand.vmem [shape: f32[1,32], index: 3, kind: input, shape index: {}]
  %s4 = inlined_call_operand.vmem [shape: bf16[2,16,32], index: 4, kind: output, shape index: {}]
  %s5 = sld [smem:[#allocation0]]
  $region57: #{attention_block_forward.10} parent=0
    _
  %s7 = ssub.s32 1, %s5
  %s8 = scalar_select 0, %s7, %s5
  loop: start=0, step=1, limit=4
  $region2: #{attention_block_forward.10} parent=0 // loop_pre_header
    _
  $region3: #{attention_block_forward.10} parent=0 // loop_header
    %s10 = sphi 0, %s14
    %p11 = scmp.ge.s32.totalorder %s10, 4
    %s17 = sphi 0, %s36
    %s18 = sphi 0, %s32
    %s19 = sphi 0, %s28
    %s20 = sphi 0, %s17
    %s21 = sphi 0, %s18
    %s22 = sphi 0, %s19
    %s23 = sphi 0, %s20
    %s24 = sphi 0, %s21
    %s25 = sphi 0, %s22
    %s41 = sphi 0, %s43
    %s44 = sphi 0, %s41
    %s45 = sphi 0, %s44
    %s61 = sphi 0, %s45
    %s69 = sphi 0, %s71
    %s72 = sphi 0, %s69
    %s73 = sphi 0, %s72
    %s89 = sphi 0, %s73
    %s93 = sphi 0, %s93
    %s95 = sphi 0, %s93
    %s96 = sphi 0, %s95
    %s110 = sphi 0, %s96
    %s114 = sphi 0, %s114
    %s116 = sphi 0, %s114
    %s117 = sphi 0, %s116
    %s131 = sphi 0, %s117
    %s139 = sphi 0, %s141
    %s142 = sphi 0, %s139
    %s143 = sphi 0, %s142
    %s159 = sphi 0, %s143
  $region4: #{attention_block_forward.10} parent=0 // loop_header_branch
    %13 = sbr.rel (%p11) target = $region8
  $region5: #{attention_block_forward.10} parent=0 // loop_body
    %s15 = ssub.s32 %s10, 1
    %s16 = ssub.s32 %s10, 2
    %s26 = sadd.s32 1, %s19
    %p27 = scmp.ge.s32.totalorder %s26, 1
    %s28 = scalar_select %p27, 0, %s26
    %s29 = sadd.s32 1, %s18
    %s30 = scalar_select %p27, %s29, %s18
    %p31 = scmp.ge.s32.totalorder %s30, 1
    %s32 = scalar_select %p31, 0, %s30
    %s33 = sadd.s32 1, %s17
    %s34 = scalar_select %p31, %s33, %s17
    %p35 = scmp.ge.s32.totalorder %s34, 2
    %s36 = scalar_select %p35, 0, %s34
    %s37 = ssub.s32 %s17, %s36
    %s38 = ssub.s32 %s18, %s32
    %s39 = sor.u32 %s37, %s38
    %p40 = scmp.eq.s32.totalorder %s39, 0
    %s42 = sadd.s32 %s41, 1
    %s43 = scalar_select %p40, %s41, %s42
    %p46 = pneg %p40
    %p47 = scmp.eq.s32.totalorder %s10, 1
    %p48 = por %p46, %p47
    %p49 = scmp.ne.s32.totalorder %s41, %s44
    %p50 = scmp.eq.s32.totalorder %s10, 0
    %p51 = por %p49, %p50
    %p52 = scmp.ne.s32.totalorder %s41, %s44
    %p53 = scmp.eq.s32.totalorder %s15, 1
    %p54 = por %p52, %p53
    %p55 = scmp.ne.s32.totalorder %s44, %s45
    %p56 = scmp.eq.s32.totalorder %s15, 0
    %p57 = por %p55, %p56
    %p58 = scmp.ne.s32.totalorder %s44, %s45
    %p59 = scmp.eq.s32.totalorder %s16, 1
    %p60 = por %p58, %p59
    %p62 = scmp.ne.s32.totalorder %s45, %s61
    %p63 = scmp.eq.s32.totalorder %s16, 0
    %p64 = por %p62, %p63
    %s65 = ssub.s32 %s17, %s36
    %s66 = ssub.s32 %s19, %s28
    %s67 = sor.u32 %s65, %s66
    %p68 = scmp.eq.s32.totalorder %s67, 0
    %s70 = sadd.s32 %s69, 1
    %s71 = scalar_select %p68, %s69, %s70
    %p74 = pneg %p68
    %p75 = scmp.eq.s32.totalorder %s10, 1
    %p76 = por %p74, %p75
    %p77 = scmp.ne.s32.totalorder %s69, %s72
    %p78 = scmp.eq.s32.totalorder %s10, 0
    %p79 = por %p77, %p78
    %p80 = scmp.ne.s32.totalorder %s69, %s72
    %p81 = scmp.eq.s32.totalorder %s15, 1
    %p82 = por %p80, %p81
    %p83 = scmp.ne.s32.totalorder %s72, %s73
    %p84 = scmp.eq.s32.totalorder %s15, 0
    %p85 = por %p83, %p84
    %p86 = scmp.ne.s32.totalorder %s72, %s73
    %p87 = scmp.eq.s32.totalorder %s16, 1
    %p88 = por %p86, %p87
    %p90 = scmp.ne.s32.totalorder %s73, %s89
    %p91 = scmp.eq.s32.totalorder %s16, 0
    %p92 = por %p90, %p91
    %s94 = sadd.s32 %s93, 1
    %p97 = scmp.eq.s32.totalorder %s10, 1
    %p98 = scmp.ne.s32.totalorder %s93, %s95
    %p99 = scmp.eq.s32.totalorder %s10, 0
    %p100 = por %p98, %p99
    %p101 = scmp.ne.s32.totalorder %s93, %s95
    %p102 = scmp.eq.s32.totalorder %s15, 1
    %p103 = por %p101, %p102
    %p104 = scmp.ne.s32.totalorder %s95, %s96
    %p105 = scmp.eq.s32.totalorder %s15, 0
    %p106 = por %p104, %p105
    %p107 = scmp.ne.s32.totalorder %s95, %s96
    %p108 = scmp.eq.s32.totalorder %s16, 1
    %p109 = por %p107, %p108
    %p111 = scmp.ne.s32.totalorder %s96, %s110
    %p112 = scmp.eq.s32.totalorder %s16, 0
    %p113 = por %p111, %p112
    %s115 = sadd.s32 %s114, 1
    %p118 = scmp.eq.s32.totalorder %s10, 1
    %p119 = scmp.ne.s32.totalorder %s114, %s116
    %p120 = scmp.eq.s32.totalorder %s10, 0
    %p121 = por %p119, %p120
    %p122 = scmp.ne.s32.totalorder %s114, %s116
    %p123 = scmp.eq.s32.totalorder %s15, 1
    %p124 = por %p122, %p123
    %p125 = scmp.ne.s32.totalorder %s116, %s117
    %p126 = scmp.eq.s32.totalorder %s15, 0
    %p127 = por %p125, %p126
    %p128 = scmp.ne.s32.totalorder %s116, %s117
    %p129 = scmp.eq.s32.totalorder %s16, 1
    %p130 = por %p128, %p129
    %p132 = scmp.ne.s32.totalorder %s117, %s131
    %p133 = scmp.eq.s32.totalorder %s16, 0
    %p134 = por %p132, %p133
    %s135 = ssub.s32 %s17, %s36
    %s136 = ssub.s32 %s18, %s32
    %s137 = sor.u32 %s135, %s136
    %p138 = scmp.eq.s32.totalorder %s137, 0
    %s140 = sadd.s32 %s139, 1
    %s141 = scalar_select %p138, %s139, %s140
    %p144 = pneg %p138
    %p145 = scmp.eq.s32.totalorder %s10, 1
    %p146 = por %p144, %p145
    %p147 = scmp.ne.s32.totalorder %s139, %s142
    %p148 = scmp.eq.s32.totalorder %s10, 0
    %p149 = por %p147, %p148
    %p150 = scmp.ne.s32.totalorder %s139, %s142
    %p151 = scmp.eq.s32.totalorder %s15, 1
    %p152 = por %p150, %p151
    %p153 = scmp.ne.s32.totalorder %s142, %s143
    %p154 = scmp.eq.s32.totalorder %s15, 0
    %p155 = por %p153, %p154
    %p156 = scmp.ne.s32.totalorder %s142, %s143
    %p157 = scmp.eq.s32.totalorder %s16, 1
    %p158 = por %p156, %p157
    %p160 = scmp.ne.s32.totalorder %s143, %s159
    %p161 = scmp.eq.s32.totalorder %s16, 0
    %p162 = por %p160, %p161
    %p163 = scmp.le.s32.totalorder 1, %s10
    %p164 = scmp.lt.s32.totalorder %s10, 3
    %p165 = pnand %p163, %p164
    %p166 = pneg %p165
    // Predicated region
    $region9: #{attention_block_forward.10} parent=5 // pred_check
      _
    $region10: #{attention_block_forward.10} parent=5 // pred_check_branch
      %168 = sbr.rel (%p165) target = $region12
    $region11: #{attention_block_forward.10} parent=5 // pred_region
      %s169 = ssub.s32 %s10, 1
      // Predicated region
      $region13: #{attention_block_forward.10} parent=11 // pred_check
        %p170 = pneg %p106
      $region14: #{attention_block_forward.10} parent=11 // pred_check_branch
        %172 = sbr.rel (%p170) target = $region16
      $region15: #{attention_block_forward.10} parent=11 // pred_region
        _
      $region16: #{attention_block_forward.10} parent=11 // pred_fallthru
        _
      // Predicated region
      $region17: #{attention_block_forward.10} parent=11 // pred_check
        %p173 = pneg %p127
      $region18: #{attention_block_forward.10} parent=11 // pred_check_branch
        %175 = sbr.rel (%p173) target = $region20
      $region19: #{attention_block_forward.10} parent=11 // pred_region
        _
      $region20: #{attention_block_forward.10} parent=11 // pred_fallthru
        _
    $region12: #{attention_block_forward.10} parent=5 // pred_fallthru
      _
    %p176 = scmp.lt.s32.totalorder %s10, 2
    // Predicated region
    $region21: #{attention_block_forward.10} parent=5 // pred_check
      %p177 = pneg %p176
    $region22: #{attention_block_forward.10} parent=5 // pred_check_branch
      %179 = sbr.rel (%p177) target = $region24
    $region23: #{attention_block_forward.10} parent=5 // pred_region
      // Predicated region
      $region25: #{attention_block_forward.10} parent=23 // pred_check
        %p180 = pneg %p51
      $region26: #{attention_block_forward.10} parent=23 // pred_check_branch
        %182 = sbr.rel (%p180) target = $region28
      $region27: #{attention_block_forward.10} parent=23 // pred_region
        %s183 = smul.u32 2, %s18
        %p184 = scmp.lt.s32.totalorder %s17, 1
        %s185 = scalar_select %p184, %s17, 1
        %p186 = scmp.lt.s32.totalorder %s183, 1
        %s187 = scalar_select %p186, %s183, 1
        %s188 = smul.addr %s185, 2
        %s189 = sadd.s32 %s187, %s188
        %s190 = smul.addr %s189, 4
        %s191 = scalar_lea.vmem %s0, %s190
        %s192 = smul.u32 2, %s18
      $region28: #{attention_block_forward.10} parent=23 // pred_fallthru
        _
      // Predicated region
      $region29: #{attention_block_forward.10} parent=23 // pred_check
        %p193 = pneg %p79
      $region30: #{attention_block_forward.10} parent=23 // pred_check_branch
        %195 = sbr.rel (%p193) target = $region32
      $region31: #{attention_block_forward.10} parent=23 // pred_region
        %s196 = smul.u32 2, %s19
        %p197 = scmp.lt.s32.totalorder %s17, 1
        %s198 = scalar_select %p197, %s17, 1
        %p199 = scmp.lt.s32.totalorder %s196, 1
        %s200 = scalar_select %p199, %s196, 1
        %s201 = smul.addr %s198, 2
        %s202 = sadd.s32 %s200, %s201
        %s203 = smul.addr %s202, 4
        %s204 = scalar_lea.vmem %s1, %s203
        %s205 = smul.u32 2, %s19
      $region32: #{attention_block_forward.10} parent=23 // pred_fallthru
        _
    $region24: #{attention_block_forward.10} parent=5 // pred_fallthru
      _
    %p206 = scmp.le.s32.totalorder 1, %s10
    %p207 = scmp.lt.s32.totalorder %s10, 3
    %p208 = pnand %p206, %p207
    %p209 = pneg %p208
    // Predicated region
    $region33: #{attention_block_forward.10} parent=5 // pred_check
      _
    $region34: #{attention_block_forward.10} parent=5 // pred_check_branch
      %211 = sbr.rel (%p208) target = $region36
    $region35: #{attention_block_forward.10} parent=5 // pred_region
      %s212 = ssub.s32 %s10, 1
      %s213 = smul.u32 2, %s21
      %p214 = scmp.lt.s32.totalorder %s20, 1
      %s215 = scalar_select %p214, %s20, 1
      %p216 = scmp.lt.s32.totalorder %s213, 1
      %s217 = scalar_select %p216, %s213, 1
      %s218 = smul.addr %s215, 2
      %s219 = sadd.s32 %s217, %s218
      %s220 = smul.addr %s219, 4
      %s221 = scalar_lea.vmem %s0, %s220
      %p222 = pneg %p57
      %p223 = pneg %p54
      %s224 = smul.u32 2, %s22
      %p225 = scmp.lt.s32.totalorder %s20, 1
      %s226 = scalar_select %p225, %s20, 1
      %p227 = scmp.lt.s32.totalorder %s224, 1
      %s228 = scalar_select %p227, %s224, 1
      %s229 = smul.addr %s226, 2
      %s230 = sadd.s32 %s228, %s229
      %s231 = smul.addr %s230, 4
      %s232 = scalar_lea.vmem %s1, %s231
      %p233 = pneg %p85
      %p234 = pneg %p82
      %p235 = pneg %p106
      %p236 = pneg %p103
      %p237 = pneg %p127
      %p238 = pneg %p124
      %p239 = pneg %p155
      %p240 = pneg %p152
      %s241 = smul.u32 2, %s21
      %p242 = scmp.lt.s32.totalorder %s20, 1
      %s243 = scalar_select %p242, %s20, 1
      %p244 = scmp.lt.s32.totalorder %s241, 1
      %s245 = scalar_select %p244, %s241, 1
      %s246 = smul.addr %s243, 2
      %s247 = sadd.s32 %s245, %s246
      %s248 = smul.addr %s247, 4
      %s249 = scalar_lea.vmem %s4, %s248
      %s250 = smul.u32 2, %s21
      %p251 = scmp.lt.s32.totalorder %s20, 1
      %s252 = scalar_select %p251, %s20, 1
      %p253 = scmp.lt.s32.totalorder %s250, 1
      %s254 = scalar_select %p253, %s250, 1
      %s255 = smul.addr %s252, 2
      %s256 = sadd.s32 %s254, %s255
      %s257 = smul.addr %s256, 4
      %s258 = scalar_lea.vmem %s0, %s257
      %s259 = smul.u32 2, %s21
      %s260 = smul.u32 2, %s22
      %p261 = scmp.lt.s32.totalorder %s20, 1
      %s262 = scalar_select %p261, %s20, 1
      %p263 = scmp.lt.s32.totalorder %s260, 1
      %s264 = scalar_select %p263, %s260, 1
      %s265 = smul.addr %s262, 2
      %s266 = sadd.s32 %s264, %s265
      %s267 = smul.addr %s266, 4
      %s268 = scalar_lea.vmem %s1, %s267
      %s269 = smul.u32 2, %s22
      %s270 = smul.u32 2, %s21
      %p271 = scmp.lt.s32.totalorder %s20, 1
      %s272 = scalar_select %p271, %s20, 1
      %p273 = scmp.lt.s32.totalorder %s270, 1
      %s274 = scalar_select %p273, %s270, 1
      %s275 = smul.addr %s272, 2
      %s276 = sadd.s32 %s274, %s275
      %s277 = smul.addr %s276, 4
      %s278 = scalar_lea.vmem %s4, %s277
      %s279 = smul.u32 2, %s21
      %p281 = scmp.eq.s32.totalorder %s22, 0
      // Predicated region
      $region37: #{attention_block_forward.10} parent=35 // pred_check
        %p282 = pneg %p281
      $region38: #{attention_block_forward.10} parent=35 // pred_check_branch
        %284 = sbr.rel (%p282) target = $region40
      $region39: #{attention_block_forward.10} parent=35 // pred_region
        %vm285 = vcmask 261120
        %286 = vst.msk [vmem:[#allocation2] sm:$0xff] %vm285, 0.0
        %287 = vst.msk [vmem:[#allocation2 + $0x8] sm:$0xff] %vm285, 0.0
        %vm288 = vcmask 7168
        %289 = vst.msk [vmem:[#allocation3] sm:$0xff] %vm288, -1e+30
        %290 = vst.msk [vmem:[#allocation3 + $0x8] sm:$0xff] %vm288, -1e+30
        %291 = vst.msk [vmem:[#allocation3 + $0x10] sm:$0xff] %vm288, -1e+30
        %292 = vst.msk [vmem:[#allocation3 + $0x18] sm:$0xff] %vm288, -1e+30
        %293 = vst.msk [vmem:[#allocation3 + $0x20] sm:$0xff] %vm288, -1e+30
        %294 = vst.msk [vmem:[#allocation3 + $0x28] sm:$0xff] %vm288, -1e+30
        %295 = vst.msk [vmem:[#allocation3 + $0x30] sm:$0xff] %vm288, -1e+30
        %296 = vst.msk [vmem:[#allocation3 + $0x38] sm:$0xff] %vm288, -1e+30
        %297 = vst.msk [vmem:[#allocation4] sm:$0xff] %vm288, 0.0
        %298 = vst.msk [vmem:[#allocation4 + $0x8] sm:$0xff] %vm288, 0.0
        %299 = vst.msk [vmem:[#allocation4 + $0x10] sm:$0xff] %vm288, 0.0
        %300 = vst.msk [vmem:[#allocation4 + $0x18] sm:$0xff] %vm288, 0.0
        %301 = vst.msk [vmem:[#allocation4 + $0x20] sm:$0xff] %vm288, 0.0
        %302 = vst.msk [vmem:[#allocation4 + $0x28] sm:$0xff] %vm288, 0.0
        %303 = vst.msk [vmem:[#allocation4 + $0x30] sm:$0xff] %vm288, 0.0
        %304 = vst.msk [vmem:[#allocation4 + $0x38] sm:$0xff] %vm288, 0.0
      $region40: #{attention_block_forward.10} parent=35 // pred_fallthru
        _
      %v305 = vld [vmem:[%s258] sm:$0xf]
      %v306 = vld [vmem:[%s258 + $0x4] sm:$0xf]
      %v307 = vld [vmem:[%s268] sm:$0xf]
      %v308 = vld [vmem:[%s268 + $0x4] sm:$0xf]
      %s309 = smul.u32 %s22, 16
      %v310 = vlaneseq
      %v311 = vand.u32 %v310, 127
      %v312 = vstv %s309
      %v313 = vadd.s32 %v312, %v311
      %vm314 = vcmp.lt.s32.totalorder %v313, 12
      %v317 = vunpack.c.l.b16 %v305
      %v318 = vunpack.c.l.b16 %v306
      %v319 = vpack.c.b16 %v318, %v317
      %v322 = vunpack.c.l.b16 %v307
      %v323 = vunpack.c.l.b16 %v308
      %v324 = vpack.c.b16 %v323, %v322
      %vm325 = vcmask 64512
      %v327 = vsel %vm325, %v319, 0
      %v330 = vsel %vm325, %v324, 0
      %332 = vmatprep.subr.bf16.mxu0 0
      %333 = vmatpush1.bf16.xpose.msra.mxu0 %v330
      %334 = vmatprep.subr.bf16.mxu0 0
      %335 = vmatpush1.bf16.xpose.msra.mxu0 0
      %336 = vmatprep.subr.bf16.mxu0 0
      %337 = vmatpush1.bf16.xpose.msra.mxu0 0
      %338 = vmatprep.subr.bf16.mxu0 0
      %339 = vmatpush1.bf16.xpose.msra.mxu0 0
      %340 = vmatprep.subr.bf16.mxu0 0
      %341 = vmatpush1.bf16.xpose.msra.mxu0 0
      %342 = vmatprep.subr.bf16.mxu0 0
      %343 = vmatpush1.bf16.xpose.msra.mxu0 0
      %344 = vmatprep.subr.bf16.mxu0 0
      %345 = vmatpush1.bf16.xpose.msra.mxu0 0
      %346 = vmatprep.subr.bf16.mxu0 0
      %347 = vmatpush1.bf16.xpose.msra.mxu0 0
      %348 = vmatprep.subr.bf16.mxu0 0
      %349 = vmatpush1.bf16.xpose.msra.mxu0 0
      %350 = vmatprep.subr.bf16.mxu0 0
      %351 = vmatpush1.bf16.xpose.msra.mxu0 0
      %352 = vmatprep.subr.bf16.mxu0 0
      %353 = vmatpush1.bf16.xpose.msra.mxu0 0
      %354 = vmatprep.subr.bf16.mxu0 0
      %355 = vmatpush1.bf16.xpose.msra.mxu0 0
      %356 = vmatprep.subr.bf16.mxu0 0
      %357 = vmatpush1.bf16.xpose.msra.mxu0 0
      %358 = vmatprep.subr.bf16.mxu0 0
      %359 = vmatpush1.bf16.xpose.msra.mxu0 0
      %360 = vmatprep.subr.bf16.mxu0 0
      %361 = vmatpush1.bf16.xpose.msra.mxu0 0
      %362 = vmatprep.subr.bf16.mxu0 0
      %363 = vmatpush1.bf16.xpose.msra.mxu0 0
      %364 = vmatprep.mubr.bf16.mxu0 0
      %365 = vmatmul.mubr.bf16.gmra.mrb[0].mxu0 %v327
      %v366 = vpop.f32.mrb[0].mxu0
      %v367 = vadd.f32 0.0, %v366
      %v368 = vpop.f32.mrb[0].mxu0
      %v369 = vpop.f32.mrb[0].mxu0
      %v370 = vadd.f32 0.0, %v369
      %v371 = vpop.f32.mrb[0].mxu0
      %372 = vdwg.mxu0
      %v373 = vsel %vm314, 1, 0
      %vm374 = vcmp.eq.s32.totalorder %v373, 1
      %v375 = vsel %vm374, %v367, -1e+30
      %v376 = vsel %vm374, %v370, -1e+30
      %v377 = vld [vmem:[#allocation3] sm:$0xff]
      %v378 = vld [vmem:[#allocation3 + $0x8] sm:$0xff]
      %vm379 = vcmask 130048
      %v380 = vsel %vm379, %v375, -inf
      %381 = vmax.xlane.f32.xlu0 %v380
      %v382 = vpop.xlane.xlu0 %381
      %v383 = vsel %vm379, %v376, -inf
      %384 = vmax.xlane.f32.xlu0 %v383
      %v385 = vpop.xlane.xlu0 %384
      %v386 = vmax.f32 %v377, %v382
      %v387 = vmax.f32 %v378, %v385
      %v388 = vsub.f32 %v377, %v386
      %v389 = vsub.f32 %v378, %v387
      %v390 = vmul.f32 %v388, 1.442695
      %v391 = vpow.pop %v390
      %v392 = vmul.f32 %v389, 1.442695
      %v393 = vpow.pop %v392
      %395 = vset.pattern.permute.xlu0 0
      %396 = vperm.xlu0 %395, %v386
      %v397 = vpop.permute.xlu0 %396
      %400 = vset.pattern.permute.xlu0 0
      %401 = vperm.xlu0 %400, %v387
      %v402 = vpop.permute.xlu0 %401
      %v404 = vsub.f32 %v375, %v397
      %v405 = vsub.f32 %v376, %v402
      %v406 = vpack.c.bf16 %v405, %v404
      %v408 = vmul.bf16 %v406, 1069105081
      %v409 = vpow.bf16.pop %v408
      %v410 = vld [vmem:[#allocation4] sm:$0xff]
      %v411 = vld [vmem:[#allocation4 + $0x8] sm:$0xff]
      %v412 = vmul.f32 %v391, %v410
      %v413 = vmul.f32 %v393, %v411
      %v414 = vunpack.c.l.bf16 %v409
      %v415 = vunpack.c.h.bf16 %v409
      %v416 = vsel %vm379, %v414, 0.0
      %417 = vadd.xlane.f32.xlu0 %v416
      %v418 = vpop.xlane.xlu0 %417
      %v419 = vsel %vm379, %v415, 0.0
      %420 = vadd.xlane.f32.xlu0 %v419
      %v421 = vpop.xlane.xlu0 %420
      %v422 = vadd.f32 %v412, %v418
      %v423 = vadd.f32 %v413, %v421
      %vm424 = vcmask 7168
      %425 = vst.msk [vmem:[#allocation4] sm:$0xff] %vm424, %v422
      %426 = vst.msk [vmem:[#allocation4 + $0x8] sm:$0xff] %vm424, %v423
      %v427 = vld [vmem:[#allocation2] sm:$0xff]
      %v428 = vld [vmem:[#allocation2 + $0x8] sm:$0xff]
      %430 = vset.pattern.permute.xlu0 0
      %431 = vperm.xlu0 %430, %v391
      %v432 = vpop.permute.xlu0 %431
      %435 = vset.pattern.permute.xlu0 0
      %436 = vperm.xlu0 %435, %v393
      %v437 = vpop.permute.xlu0 %436
      %v439 = vmul.f32 %v432, %v427
      %v440 = vmul.f32 %v437, %v428
      %441 = vrot.lane.b32.xlu0 %v324, 96
      %v442 = vpop.permute.xlu0 %441
      %v445 = vsel %vm379, %v409, 0
      %447 = vmatprep.subr.bf16.mxu0 0
      %448 = vmatpush1.bf16.msra.mxu0 %v442
      %449 = vmatprep.subr.bf16.mxu0 0
      %450 = vmatpush1.bf16.msra.mxu0 0
      %451 = vmatprep.subr.bf16.mxu0 0
      %452 = vmatpush1.bf16.msra.mxu0 0
      %453 = vmatprep.subr.bf16.mxu0 0
      %454 = vmatpush1.bf16.msra.mxu0 0
      %455 = vmatprep.subr.bf16.mxu0 0
      %456 = vmatpush1.bf16.msra.mxu0 0
      %457 = vmatprep.subr.bf16.mxu0 0
      %458 = vmatpush1.bf16.msra.mxu0 0
      %459 = vmatprep.subr.bf16.mxu0 0
      %460 = vmatpush1.bf16.msra.mxu0 0
      %461 = vmatprep.subr.bf16.mxu0 0
      %462 = vmatpush1.bf16.msra.mxu0 0
      %463 = vmatprep.subr.bf16.mxu0 0
      %464 = vmatpush1.bf16.msra.mxu0 0
      %465 = vmatprep.subr.bf16.mxu0 0
      %466 = vmatpush1.bf16.msra.mxu0 0
      %467 = vmatprep.subr.bf16.mxu0 0
      %468 = vmatpush1.bf16.msra.mxu0 0
      %469 = vmatprep.subr.bf16.mxu0 0
      %470 = vmatpush1.bf16.msra.mxu0 0
      %471 = vmatprep.subr.bf16.mxu0 0
      %472 = vmatpush1.bf16.msra.mxu0 0
      %473 = vmatprep.subr.bf16.mxu0 0
      %474 = vmatpush1.bf16.msra.mxu0 0
      %475 = vmatprep.subr.bf16.mxu0 0
      %476 = vmatpush1.bf16.msra.mxu0 0
      %477 = vmatprep.subr.bf16.mxu0 0
      %478 = vmatpush1.bf16.msra.mxu0 0
      %479 = vmatprep.mubr.bf16.mxu0 0
      %480 = vmatmul.mubr.bf16.gmra.mrb[0].mxu0 %v445
      %v481 = vpop.f32.mrb[0].mxu0
      %v482 = vadd.f32 0.0, %v481
      %v483 = vpop.f32.mrb[0].mxu0
      %v484 = vpop.f32.mrb[0].mxu0
      %v485 = vadd.f32 0.0, %v484
      %v486 = vpop.f32.mrb[0].mxu0
      %487 = vdwg.mxu0
      %v488 = vadd.f32 %v439, %v482
      %v489 = vadd.f32 %v440, %v485
      %490 = vst.msk [vmem:[#allocation2] sm:$0xff] %vm325, %v488
      %491 = vst.msk [vmem:[#allocation2 + $0x8] sm:$0xff] %vm325, %v489
      %492 = vst.msk [vmem:[#allocation3] sm:$0xff] %vm424, %v386
      %493 = vst.msk [vmem:[#allocation3 + $0x8] sm:$0xff] %vm424, %v387
      %494 = vrot.lane.b32.xlu0 %v319, 120
      %v495 = vpop.permute.xlu0 %494
      %496 = vrot.lane.b32.xlu0 %v324, 120
      %v497 = vpop.permute.xlu0 %496
      %v499 = vsel %vm325, %v495, 0
      %v502 = vsel %vm325, %v497, 0
      %504 = vmatprep.subr.bf16.mxu0 0
      %505 = vmatpush1.bf16.xpose.msra.mxu0 %v502
      %506 = vmatprep.subr.bf16.mxu0 0
      %507 = vmatpush1.bf16.xpose.msra.mxu0 0
      %508 = vmatprep.subr.bf16.mxu0 0
      %509 = vmatpush1.bf16.xpose.msra.mxu0 0
      %510 = vmatprep.subr.bf16.mxu0 0
      %511 = vmatpush1.bf16.xpose.msra.mxu0 0
      %512 = vmatprep.subr.bf16.mxu0 0
      %513 = vmatpush1.bf16.xpose.msra.mxu0 0
      %514 = vmatprep.subr.bf16.mxu0 0
      %515 = vmatpush1.bf16.xpose.msra.mxu0 0
      %516 = vmatprep.subr.bf16.mxu0 0
      %517 = vmatpush1.bf16.xpose.msra.mxu0 0
      %518 = vmatprep.subr.bf16.mxu0 0
      %519 = vmatpush1.bf16.xpose.msra.mxu0 0
      %520 = vmatprep.subr.bf16.mxu0 0
      %521 = vmatpush1.bf16.xpose.msra.mxu0 0
      %522 = vmatprep.subr.bf16.mxu0 0
      %523 = vmatpush1.bf16.xpose.msra.mxu0 0
      %524 = vmatprep.subr.bf16.mxu0 0
      %525 = vmatpush1.bf16.xpose.msra.mxu0 0
      %526 = vmatprep.subr.bf16.mxu0 0
      %527 = vmatpush1.bf16.xpose.msra.mxu0 0
      %528 = vmatprep.subr.bf16.mxu0 0
      %529 = vmatpush1.bf16.xpose.msra.mxu0 0
      %530 = vmatprep.subr.bf16.mxu0 0
      %531 = vmatpush1.bf16.xpose.msra.mxu0 0
      %532 = vmatprep.subr.bf16.mxu0 0
      %533 = vmatpush1.bf16.xpose.msra.mxu0 0
      %534 = vmatprep.subr.bf16.mxu0 0
      %535 = vmatpush1.bf16.xpose.msra.mxu0 0
      %536 = vmatprep.mubr.bf16.mxu0 0
      %537 = vmatmul.mubr.bf16.gmra.mrb[0].mxu0 %v499
      %v538 = vpop.f32.mrb[0].mxu0
      %v539 = vadd.f32 0.0, %v538
      %v540 = vpop.f32.mrb[0].mxu0
      %v541 = vpop.f32.mrb[0].mxu0
      %v542 = vadd.f32 0.0, %v541
      %v543 = vpop.f32.mrb[0].mxu0
      %544 = vdwg.mxu0
      %v545 = vsel %vm374, %v539, -1e+30
      %v546 = vsel %vm374, %v542, -1e+30
      %s547 = scalar_lea.vmem [#allocation3], 16
      %v548 = vld [vmem:[%s547] sm:$0xff]
      %v549 = vld [vmem:[%s547 + $0x8] sm:$0xff]
      %v550 = vsel %vm379, %v545, -inf
      %551 = vmax.xlane.f32.xlu0 %v550
      %v552 = vpop.xlane.xlu0 %551
      %v553 = vsel %vm379, %v546, -inf
      %554 = vmax.xlane.f32.xlu0 %v553
      %v555 = vpop.xlane.xlu0 %554
      %v556 = vmax.f32 %v548, %v552
      %v557 = vmax.f32 %v549, %v555
      %v558 = vsub.f32 %v548, %v556
      %v559 = vsub.f32 %v549, %v557
      %v560 = vmul.f32 %v558, 1.442695
      %v561 = vpow.pop %v560
      %v562 = vmul.f32 %v559, 1.442695
      %v563 = vpow.pop %v562
      %565 = vset.pattern.permute.xlu0 0
      %566 = vperm.xlu0 %565, %v556
      %v567 = vpop.permute.xlu0 %566
      %570 = vset.pattern.permute.xlu0 0
      %571 = vperm.xlu0 %570, %v557
      %v572 = vpop.permute.xlu0 %571
      %v574 = vsub.f32 %v545, %v567
      %v575 = vsub.f32 %v546, %v572
      %v576 = vpack.c.bf16 %v575, %v574
      %v578 = vmul.bf16 %v576, 1069105081
      %v579 = vpow.bf16.pop %v578
      %s580 = scalar_lea.vmem [#allocation4], 16
      %v581 = vld [vmem:[%s580] sm:$0xff]
      %v582 = vld [vmem:[%s580 + $0x8] sm:$0xff]
      %v583 = vmul.f32 %v561, %v581
      %v584 = vmul.f32 %v563, %v582
      %v585 = vunpack.c.l.bf16 %v579
      %v586 = vunpack.c.h.bf16 %v579
      %v587 = vsel %vm379, %v585, 0.0
      %588 = vadd.xlane.f32.xlu0 %v587
      %v589 = vpop.xlane.xlu0 %588
      %v590 = vsel %vm379, %v586, 0.0
      %591 = vadd.xlane.f32.xlu0 %v590
      %v592 = vpop.xlane.xlu0 %591
      %v593 = vadd.f32 %v583, %v589
      %v594 = vadd.f32 %v584, %v592
      %595 = vst.msk [vmem:[%s580] sm:$0xff] %vm424, %v593
      %596 = vst.msk [vmem:[%s580 + $0x8] sm:$0xff] %vm424, %v594
      %v597 = vld [vmem:[#allocation2] sm:$0xff]
      %v598 = vld [vmem:[#allocation2 + $0x8] sm:$0xff]
      %600 = vset.pattern.permute.xlu0 0
      %601 = vperm.xlu0 %600, %v561
      %v602 = vpop.permute.xlu0 %601
      %605 = vset.pattern.permute.xlu0 0
      %606 = vperm.xlu0 %605, %v563
      %v607 = vpop.permute.xlu0 %606
      %v609 = vmul.f32 %v602, %v597
      %v610 = vmul.f32 %v607, %v598
      %611 = vrot.lane.b32.xlu0 %v324, 88
      %v612 = vpop.permute.xlu0 %611
      %v615 = vsel %vm379, %v579, 0
      %617 = vmatprep.subr.bf16.mxu0 0
      %618 = vmatpush1.bf16.msra.mxu0 %v612
      %619 = vmatprep.subr.bf16.mxu0 0
      %620 = vmatpush1.bf16.msra.mxu0 0
      %621 = vmatprep.subr.bf16.mxu0 0
      %622 = vmatpush1.bf16.msra.mxu0 0
      %623 = vmatprep.subr.bf16.mxu0 0
      %624 = vmatpush1.bf16.msra.mxu0 0
      %625 = vmatprep.subr.bf16.mxu0 0
      %626 = vmatpush1.bf16.msra.mxu0 0
      %627 = vmatprep.subr.bf16.mxu0 0
      %628 = vmatpush1.bf16.msra.mxu0 0
      %629 = vmatprep.subr.bf16.mxu0 0
      %630 = vmatpush1.bf16.msra.mxu0 0
      %631 = vmatprep.subr.bf16.mxu0 0
      %632 = vmatpush1.bf16.msra.mxu0 0
      %633 = vmatprep.subr.bf16.mxu0 0
      %634 = vmatpush1.bf16.msra.mxu0 0
      %635 = vmatprep.subr.bf16.mxu0 0
      %636 = vmatpush1.bf16.msra.mxu0 0
      %637 = vmatprep.subr.bf16.mxu0 0
      %638 = vmatpush1.bf16.msra.mxu0 0
      %639 = vmatprep.subr.bf16.mxu0 0
      %640 = vmatpush1.bf16.msra.mxu0 0
      %641 = vmatprep.subr.bf16.mxu0 0
      %642 = vmatpush1.bf16.msra.mxu0 0
      %643 = vmatprep.subr.bf16.mxu0 0
      %644 = vmatpush1.bf16.msra.mxu0 0
      %645 = vmatprep.subr.bf16.mxu0 0
      %646 = vmatpush1.bf16.msra.mxu0 0
      %647 = vmatprep.subr.bf16.mxu0 0
      %648 = vmatpush1.bf16.msra.mxu0 0
      %649 = vmatprep.mubr.bf16.mxu0 0
      %650 = vmatmul.mubr.bf16.gmra.mrb[0].mxu0 %v615
      %v651 = vpop.f32.mrb[0].mxu0
      %v652 = vadd.f32 0.0, %v651
      %v653 = vpop.f32.mrb[0].mxu0
      %v654 = vpop.f32.mrb[0].mxu0
      %v655 = vadd.f32 0.0, %v654
      %v656 = vpop.f32.mrb[0].mxu0
      %657 = vdwg.mxu0
      %660 = vrot.lane.b32.xlu0 %v652, 8
      %v661 = vpop.permute.xlu0 %660
      %662 = vrot.lane.b32.xlu0 %v655, 8
      %v663 = vpop.permute.xlu0 %662
      %v666 = vadd.f32 %v609, %v661
      %v667 = vadd.f32 %v610, %v663
      %vm668 = vcmask 130112
      %669 = vst.msk [vmem:[#allocation2] sm:$0xff] %vm668, %v666
      %670 = vst.msk [vmem:[#allocation2 + $0x8] sm:$0xff] %vm668, %v667
      %671 = vst.msk [vmem:[%s547] sm:$0xff] %vm424, %v556
      %672 = vst.msk [vmem:[%s547 + $0x8] sm:$0xff] %vm424, %v557
      %673 = vrot.lane.b32.xlu0 %v319, 112
      %v674 = vpop.permute.xlu0 %673
      %675 = vrot.lane.b32.xlu0 %v324, 112
      %v676 = vpop.permute.xlu0 %675
      %v678 = vsel %vm325, %v674, 0
      %v681 = vsel %vm325, %v676, 0
      %683 = vmatprep.subr.bf16.mxu0 0
      %684 = vmatpush1.bf16.xpose.msra.mxu0 %v681
      %685 = vmatprep.subr.bf16.mxu0 0
      %686 = vmatpush1.bf16.xpose.msra.mxu0 0
      %687 = vmatprep.subr.bf16.mxu0 0
      %688 = vmatpush1.bf16.xpose.msra.mxu0 0
      %689 = vmatprep.subr.bf16.mxu0 0
      %690 = vmatpush1.bf16.xpose.msra.mxu0 0
      %691 = vmatprep.subr.bf16.mxu0 0
      %692 = vmatpush1.bf16.xpose.msra.mxu0 0
      %693 = vmatprep.subr.bf16.mxu0 0
      %694 = vmatpush1.bf16.xpose.msra.mxu0 0
      %695 = vmatprep.subr.bf16.mxu0 0
      %696 = vmatpush1.bf16.xpose.msra.mxu0 0
      %697 = vmatprep.subr.bf16.mxu0 0
      %698 = vmatpush1.bf16.xpose.msra.mxu0 0
      %699 = vmatprep.subr.bf16.mxu0 0
      %700 = vmatpush1.bf16.xpose.msra.mxu0 0
      %701 = vmatprep.subr.bf16.mxu0 0
      %702 = vmatpush1.bf16.xpose.msra.mxu0 0
      %703 = vmatprep.subr.bf16.mxu0 0
      %704 = vmatpush1.bf16.xpose.msra.mxu0 0
      %705 = vmatprep.subr.bf16.mxu0 0
      %706 = vmatpush1.bf16.xpose.msra.mxu0 0
      %707 = vmatprep.subr.bf16.mxu0 0
      %708 = vmatpush1.bf16.xpose.msra.mxu0 0
      %709 = vmatprep.subr.bf16.mxu0 0
      %710 = vmatpush1.bf16.xpose.msra.mxu0 0
      %711 = vmatprep.subr.bf16.mxu0 0
      %712 = vmatpush1.bf16.xpose.msra.mxu0 0
      %713 = vmatprep.subr.bf16.mxu0 0
      %714 = vmatpush1.bf16.xpose.msra.mxu0 0
      %715 = vmatprep.mubr.bf16.mxu0 0
      %716 = vmatmul.mubr.bf16.gmra.mrb[0].mxu0 %v678
      %v717 = vpop.f32.mrb[0].mxu0
      %v718 = vadd.f32 0.0, %v717
      %v719 = vpop.f32.mrb[0].mxu0
      %v720 = vpop.f32.mrb[0].mxu0
      %v721 = vadd.f32 0.0, %v720
      %v722 = vpop.f32.mrb[0].mxu0
      %723 = vdwg.mxu0
      %v724 = vsel %vm374, %v718, -1e+30
      %v725 = vsel %vm374, %v721, -1e+30
      %s726 = scalar_lea.vmem [#allocation3], 32
      %v727 = vld [vmem:[%s726] sm:$0xff]
      %v728 = vld [vmem:[%s726 + $0x8] sm:$0xff]
      %v729 = vsel %vm379, %v724, -inf
      %730 = vmax.xlane.f32.xlu0 %v729
      %v731 = vpop.xlane.xlu0 %730
      %v732 = vsel %vm379, %v725, -inf
      %733 = vmax.xlane.f32.xlu0 %v732
      %v734 = vpop.xlane.xlu0 %733
      %v735 = vmax.f32 %v727, %v731
      %v736 = vmax.f32 %v728, %v734
      %v737 = vsub.f32 %v727, %v735
      %v738 = vsub.f32 %v728, %v736
      %v739 = vmul.f32 %v737, 1.442695
      %v740 = vpow.pop %v739
      %v741 = vmul.f32 %v738, 1.442695
      %v742 = vpow.pop %v741
      %744 = vset.pattern.permute.xlu0 0
      %745 = vperm.xlu0 %744, %v735
      %v746 = vpop.permute.xlu0 %745
      %749 = vset.pattern.permute.xlu0 0
      %750 = vperm.xlu0 %749, %v736
      %v751 = vpop.permute.xlu0 %750
      %v753 = vsub.f32 %v724, %v746
      %v754 = vsub.f32 %v725, %v751
      %v755 = vpack.c.bf16 %v754, %v753
      %v757 = vmul.bf16 %v755, 1069105081
      %v758 = vpow.bf16.pop %v757
      %s759 = scalar_lea.vmem [#allocation4], 32
      %v760 = vld [vmem:[%s759] sm:$0xff]
      %v761 = vld [vmem:[%s759 + $0x8] sm:$0xff]
      %v762 = vmul.f32 %v740, %v760
      %v763 = vmul.f32 %v742, %v761
      %v764 = vunpack.c.l.bf16 %v758
      %v765 = vunpack.c.h.bf16 %v758
      %v766 = vsel %vm379, %v764, 0.0
      %767 = vadd.xlane.f32.xlu0 %v766
      %v768 = vpop.xlane.xlu0 %767
      %v769 = vsel %vm379, %v765, 0.0
      %770 = vadd.xlane.f32.xlu0 %v769
      %v771 = vpop.xlane.xlu0 %770
      %v772 = vadd.f32 %v762, %v768
      %v773 = vadd.f32 %v763, %v771
      %774 = vst.msk [vmem:[%s759] sm:$0xff] %vm424, %v772
      %775 = vst.msk [vmem:[%s759 + $0x8] sm:$0xff] %vm424, %v773
      %v776 = vld [vmem:[#allocation2] sm:$0xff]
      %v777 = vld [vmem:[#allocation2 + $0x8] sm:$0xff]
      %779 = vset.pattern.permute.xlu0 0
      %780 = vperm.xlu0 %779, %v740
      %v781 = vpop.permute.xlu0 %780
      %784 = vset.pattern.permute.xlu0 0
      %785 = vperm.xlu0 %784, %v742
      %v786 = vpop.permute.xlu0 %785
      %v788 = vmul.f32 %v781, %v776
      %v789 = vmul.f32 %v786, %v777
      %790 = vrot.lane.b32.xlu0 %v324, 80
      %v791 = vpop.permute.xlu0 %790
      %v794 = vsel %vm379, %v758, 0
      %796 = vmatprep.subr.bf16.mxu0 0
      %797 = vmatpush1.bf16.msra.mxu0 %v791
      %798 = vmatprep.subr.bf16.mxu0 0
      %799 = vmatpush1.bf16.msra.mxu0 0
      %800 = vmatprep.subr.bf16.mxu0 0
      %801 = vmatpush1.bf16.msra.mxu0 0
      %802 = vmatprep.subr.bf16.mxu0 0
      %803 = vmatpush1.bf16.msra.mxu0 0
      %804 = vmatprep.subr.bf16.mxu0 0
      %805 = vmatpush1.bf16.msra.mxu0 0
      %806 = vmatprep.subr.bf16.mxu0 0
      %807 = vmatpush1.bf16.msra.mxu0 0
      %808 = vmatprep.subr.bf16.mxu0 0
      %809 = vmatpush1.bf16.msra.mxu0 0
      %810 = vmatprep.subr.bf16.mxu0 0
      %811 = vmatpush1.bf16.msra.mxu0 0
      %812 = vmatprep.subr.bf16.mxu0 0
      %813 = vmatpush1.bf16.msra.mxu0 0
      %814 = vmatprep.subr.bf16.mxu0 0
      %815 = vmatpush1.bf16.msra.mxu0 0
      %816 = vmatprep.subr.bf16.mxu0 0
      %817 = vmatpush1.bf16.msra.mxu0 0
      %818 = vmatprep.subr.bf16.mxu0 0
      %819 = vmatpush1.bf16.msra.mxu0 0
      %820 = vmatprep.subr.bf16.mxu0 0
      %821 = vmatpush1.bf16.msra.mxu0 0
      %822 = vmatprep.subr.bf16.mxu0 0
      %823 = vmatpush1.bf16.msra.mxu0 0
      %824 = vmatprep.subr.bf16.mxu0 0
      %825 = vmatpush1.bf16.msra.mxu0 0
      %826 = vmatprep.subr.bf16.mxu0 0
      %827 = vmatpush1.bf16.msra.mxu0 0
      %828 = vmatprep.mubr.bf16.mxu0 0
      %829 = vmatmul.mubr.bf16.gmra.mrb[0].mxu0 %v794
      %v830 = vpop.f32.mrb[0].mxu0
      %v831 = vadd.f32 0.0, %v830
      %v832 = vpop.f32.mrb[0].mxu0
      %v833 = vpop.f32.mrb[0].mxu0
      %v834 = vadd.f32 0.0, %v833
      %v835 = vpop.f32.mrb[0].mxu0
      %836 = vdwg.mxu0
      %839 = vrot.lane.b32.xlu0 %v831, 16
      %v840 = vpop.permute.xlu0 %839
      %841 = vrot.lane.b32.xlu0 %v834, 16
      %v842 = vpop.permute.xlu0 %841
      %v845 = vadd.f32 %v788, %v840
      %v846 = vadd.f32 %v789, %v842
      %vm847 = vcmask 195712
      %848 = vst.msk [vmem:[#allocation2] sm:$0xff] %vm847, %v845
      %849 = vst.msk [vmem:[#allocation2 + $0x8] sm:$0xff] %vm847, %v846
      %850 = vst.msk [vmem:[%s726] sm:$0xff] %vm424, %v735
      %851 = vst.msk [vmem:[%s726 + $0x8] sm:$0xff] %vm424, %v736
      %852 = vrot.lane.b32.xlu0 %v319, 104
      %v853 = vpop.permute.xlu0 %852
      %854 = vrot.lane.b32.xlu0 %v324, 104
      %v855 = vpop.permute.xlu0 %854
      %v857 = vsel %vm325, %v853, 0
      %v860 = vsel %vm325, %v855, 0
      %862 = vmatprep.subr.bf16.mxu0 0
      %863 = vmatpush1.bf16.xpose.msra.mxu0 %v860
      %864 = vmatprep.subr.bf16.mxu0 0
      %865 = vmatpush1.bf16.xpose.msra.mxu0 0
      %866 = vmatprep.subr.bf16.mxu0 0
      %867 = vmatpush1.bf16.xpose.msra.mxu0 0
      %868 = vmatprep.subr.bf16.mxu0 0
      %869 = vmatpush1.bf16.xpose.msra.mxu0 0
      %870 = vmatprep.subr.bf16.mxu0 0
      %871 = vmatpush1.bf16.xpose.msra.mxu0 0
      %872 = vmatprep.subr.bf16.mxu0 0
      %873 = vmatpush1.bf16.xpose.msra.mxu0 0
      %874 = vmatprep.subr.bf16.mxu0 0
      %875 = vmatpush1.bf16.xpose.msra.mxu0 0
      %876 = vmatprep.subr.bf16.mxu0 0
      %877 = vmatpush1.bf16.xpose.msra.mxu0 0
      %878 = vmatprep.subr.bf16.mxu0 0
      %879 = vmatpush1.bf16.xpose.msra.mxu0 0
      %880 = vmatprep.subr.bf16.mxu0 0
      %881 = vmatpush1.bf16.xpose.msra.mxu0 0
      %882 = vmatprep.subr.bf16.mxu0 0
      %883 = vmatpush1.bf16.xpose.msra.mxu0 0
      %884 = vmatprep.subr.bf16.mxu0 0
      %885 = vmatpush1.bf16.xpose.msra.mxu0 0
      %886 = vmatprep.subr.bf16.mxu0 0
      %887 = vmatpush1.bf16.xpose.msra.mxu0 0
      %888 = vmatprep.subr.bf16.mxu0 0
      %889 = vmatpush1.bf16.xpose.msra.mxu0 0
      %890 = vmatprep.subr.bf16.mxu0 0
      %891 = vmatpush1.bf16.xpose.msra.mxu0 0
      %892 = vmatprep.subr.bf16.mxu0 0
      %893 = vmatpush1.bf16.xpose.msra.mxu0 0
      %894 = vmatprep.mubr.bf16.mxu0 0
      %895 = vmatmul.mubr.bf16.gmra.mrb[0].mxu0 %v857
      %v896 = vpop.f32.mrb[0].mxu0
      %v897 = vadd.f32 0.0, %v896
      %v898 = vpop.f32.mrb[0].mxu0
      %v899 = vpop.f32.mrb[0].mxu0
      %v900 = vadd.f32 0.0, %v899
      %v901 = vpop.f32.mrb[0].mxu0
      %902 = vdwg.mxu0
      %v903 = vsel %vm374, %v897, -1e+30
      %v904 = vsel %vm374, %v900, -1e+30
      %s905 = scalar_lea.vmem [#allocation3], 48
      %v906 = vld [vmem:[%s905] sm:$0xff]
      %v907 = vld [vmem:[%s905 + $0x8] sm:$0xff]
      %v908 = vsel %vm379, %v903, -inf
      %909 = vmax.xlane.f32.xlu0 %v908
      %v910 = vpop.xlane.xlu0 %909
      %v911 = vsel %vm379, %v904, -inf
      %912 = vmax.xlane.f32.xlu0 %v911
      %v913 = vpop.xlane.xlu0 %912
      %v914 = vmax.f32 %v906, %v910
      %v915 = vmax.f32 %v907, %v913
      %v916 = vsub.f32 %v906, %v914
      %v917 = vsub.f32 %v907, %v915
      %v918 = vmul.f32 %v916, 1.442695
      %v919 = vpow.pop %v918
      %v920 = vmul.f32 %v917, 1.442695
      %v921 = vpow.pop %v920
      %923 = vset.pattern.permute.xlu0 0
      %924 = vperm.xlu0 %923, %v914
      %v925 = vpop.permute.xlu0 %924
      %928 = vset.pattern.permute.xlu0 0
      %929 = vperm.xlu0 %928, %v915
      %v930 = vpop.permute.xlu0 %929
      %v932 = vsub.f32 %v903, %v925
      %v933 = vsub.f32 %v904, %v930
      %v934 = vpack.c.bf16 %v933, %v932
      %v936 = vmul.bf16 %v934, 1069105081
      %v937 = vpow.bf16.pop %v936
      %s938 = scalar_lea.vmem [#allocation4], 48
      %v939 = vld [vmem:[%s938] sm:$0xff]
      %v940 = vld [vmem:[%s938 + $0x8] sm:$0xff]
      %v941 = vmul.f32 %v919, %v939
      %v942 = vmul.f32 %v921, %v940
      %v943 = vunpack.c.l.bf16 %v937
      %v944 = vunpack.c.h.bf16 %v937
      %v945 = vsel %vm379, %v943, 0.0
      %946 = vadd.xlane.f32.xlu0 %v945
      %v947 = vpop.xlane.xlu0 %946
      %v948 = vsel %vm379, %v944, 0.0
      %949 = vadd.xlane.f32.xlu0 %v948
      %v950 = vpop.xlane.xlu0 %949
      %v951 = vadd.f32 %v941, %v947
      %v952 = vadd.f32 %v942, %v950
      %953 = vst.msk [vmem:[%s938] sm:$0xff] %vm424, %v951
      %954 = vst.msk [vmem:[%s938 + $0x8] sm:$0xff] %vm424, %v952
      %v955 = vld [vmem:[#allocation2] sm:$0xff]
      %v956 = vld [vmem:[#allocation2 + $0x8] sm:$0xff]
      %958 = vset.pattern.permute.xlu0 0
      %959 = vperm.xlu0 %958, %v919
      %v960 = vpop.permute.xlu0 %959
      %963 = vset.pattern.permute.xlu0 0
      %964 = vperm.xlu0 %963, %v921
      %v965 = vpop.permute.xlu0 %964
      %v967 = vmul.f32 %v960, %v955
      %v968 = vmul.f32 %v965, %v956
      %969 = vrot.lane.b32.xlu0 %v324, 72
      %v970 = vpop.permute.xlu0 %969
      %v973 = vsel %vm379, %v937, 0
      %975 = vmatprep.subr.bf16.mxu0 0
      %976 = vmatpush1.bf16.msra.mxu0 %v970
      %977 = vmatprep.subr.bf16.mxu0 0
      %978 = vmatpush1.bf16.msra.mxu0 0
      %979 = vmatprep.subr.bf16.mxu0 0
      %980 = vmatpush1.bf16.msra.mxu0 0
      %981 = vmatprep.subr.bf16.mxu0 0
      %982 = vmatpush1.bf16.msra.mxu0 0
      %983 = vmatprep.subr.bf16.mxu0 0
      %984 = vmatpush1.bf16.msra.mxu0 0
      %985 = vmatprep.subr.bf16.mxu0 0
      %986 = vmatpush1.bf16.msra.mxu0 0
      %987 = vmatprep.subr.bf16.mxu0 0
      %988 = vmatpush1.bf16.msra.mxu0 0
      %989 = vmatprep.subr.bf16.mxu0 0
      %990 = vmatpush1.bf16.msra.mxu0 0
      %991 = vmatprep.subr.bf16.mxu0 0
      %992 = vmatpush1.bf16.msra.mxu0 0
      %993 = vmatprep.subr.bf16.mxu0 0
      %994 = vmatpush1.bf16.msra.mxu0 0
      %995 = vmatprep.subr.bf16.mxu0 0
      %996 = vmatpush1.bf16.msra.mxu0 0
      %997 = vmatprep.subr.bf16.mxu0 0
      %998 = vmatpush1.bf16.msra.mxu0 0
      %999 = vmatprep.subr.bf16.mxu0 0
      %1000 = vmatpush1.bf16.msra.mxu0 0
      %1001 = vmatprep.subr.bf16.mxu0 0
      %1002 = vmatpush1.bf16.msra.mxu0 0
      %1003 = vmatprep.subr.bf16.mxu0 0
      %1004 = vmatpush1.bf16.msra.mxu0 0
      %1005 = vmatprep.subr.bf16.mxu0 0
      %1006 = vmatpush1.bf16.msra.mxu0 0
      %1007 = vmatprep.mubr.bf16.mxu0 0
      %1008 = vmatmul.mubr.bf16.gmra.mrb[0].mxu0 %v973
      %v1009 = vpop.f32.mrb[0].mxu0
      %v1010 = vadd.f32 0.0, %v1009
      %v1011 = vpop.f32.mrb[0].mxu0
      %v1012 = vpop.f32.mrb[0].mxu0
      %v1013 = vadd.f32 0.0, %v1012
      %v1014 = vpop.f32.mrb[0].mxu0
      %1015 = vdwg.mxu0
      %1018 = vrot.lane.b32.xlu0 %v1010, 24
      %v1019 = vpop.permute.xlu0 %1018
      %1020 = vrot.lane.b32.xlu0 %v1013, 24
      %v1021 = vpop.permute.xlu0 %1020
      %v1024 = vadd.f32 %v967, %v1019
      %v1025 = vadd.f32 %v968, %v1021
      %vm1026 = vcmask 261312
      %1027 = vst.msk [vmem:[#allocation2] sm:$0xff] %vm1026, %v1024
      %1028 = vst.msk [vmem:[#allocation2 + $0x8] sm:$0xff] %vm1026, %v1025
      %1029 = vst.msk [vmem:[%s905] sm:$0xff] %vm424, %v914
      %1030 = vst.msk [vmem:[%s905 + $0x8] sm:$0xff] %vm424, %v915
      // Predicated region
      $region41: #{attention_block_forward.10} parent=35 // pred_check
        %p1031 = pneg %p281
      $region42: #{attention_block_forward.10} parent=35 // pred_check_branch
        %1033 = sbr.rel (%p1031) target = $region44
      $region43: #{attention_block_forward.10} parent=35 // pred_region
        %v1034 = vld [vmem:[#allocation2] sm:$0xff]
        %v1035 = vld [vmem:[#allocation2 + $0x8] sm:$0xff]
        %v1036 = vld [vmem:[#allocation4] sm:$0xff]
        %v1037 = vld [vmem:[#allocation4 + $0x8] sm:$0xff]
        %v1038 = vrcp.pop %v1036
        %v1039 = vrcp.pop %v1037
        %1041 = vset.pattern.permute.xlu0 0
        %1042 = vperm.xlu0 %1041, %v1038
        %v1043 = vpop.permute.xlu0 %1042
        %1046 = vset.pattern.permute.xlu0 0
        %1047 = vperm.xlu0 %1046, %v1039
        %v1048 = vpop.permute.xlu0 %1047
        %v1050 = vmul.f32 %v1034, %v1043
        %v1051 = vmul.f32 %v1035, %v1048
        %1052 = vst.msk [vmem:[#allocation2] sm:$0xff] %vm325, %v1050
        %1053 = vst.msk [vmem:[#allocation2 + $0x8] sm:$0xff] %vm325, %v1051
        %v1054 = vld [vmem:[#allocation2] sm:$0xff]
        %v1055 = vld [vmem:[#allocation2 + $0x8] sm:$0xff]
        %v1056 = vld [vmem:[%s580] sm:$0xff]
        %v1057 = vld [vmem:[%s580 + $0x8] sm:$0xff]
        %v1058 = vrcp.pop %v1056
        %v1059 = vrcp.pop %v1057
        %1061 = vset.pattern.permute.xlu0 0
        %1062 = vperm.xlu0 %1061, %v1058
        %v1063 = vpop.permute.xlu0 %1062
        %1066 = vset.pattern.permute.xlu0 0
        %1067 = vperm.xlu0 %1066, %v1059
        %v1068 = vpop.permute.xlu0 %1067
        %v1070 = vmul.f32 %v1054, %v1063
        %v1071 = vmul.f32 %v1055, %v1068
        %1072 = vst.msk [vmem:[#allocation2] sm:$0xff] %vm668, %v1070
        %1073 = vst.msk [vmem:[#allocation2 + $0x8] sm:$0xff] %vm668, %v1071
        %v1074 = vld [vmem:[#allocation2] sm:$0xff]
        %v1075 = vld [vmem:[#allocation2 + $0x8] sm:$0xff]
        %v1076 = vld [vmem:[%s759] sm:$0xff]
        %v1077 = vld [vmem:[%s759 + $0x8] sm:$0xff]
        %v1078 = vrcp.pop %v1076
        %v1079 = vrcp.pop %v1077
        %1081 = vset.pattern.permute.xlu0 0
        %1082 = vperm.xlu0 %1081, %v1078
        %v1083 = vpop.permute.xlu0 %1082
        %1086 = vset.pattern.permute.xlu0 0
        %1087 = vperm.xlu0 %1086, %v1079
        %v1088 = vpop.permute.xlu0 %1087
        %v1090 = vmul.f32 %v1074, %v1083
        %v1091 = vmul.f32 %v1075, %v1088
        %1092 = vst.msk [vmem:[#allocation2] sm:$0xff] %vm847, %v1090
        %1093 = vst.msk [vmem:[#allocation2 + $0x8] sm:$0xff] %vm847, %v1091
        %v1094 = vld [vmem:[#allocation2] sm:$0xff]
        %v1095 = vld [vmem:[#allocation2 + $0x8] sm:$0xff]
        %v1096 = vld [vmem:[%s938] sm:$0xff]
        %v1097 = vld [vmem:[%s938 + $0x8] sm:$0xff]
        %v1098 = vrcp.pop %v1096
        %v1099 = vrcp.pop %v1097
        %1101 = vset.pattern.permute.xlu0 0
        %1102 = vperm.xlu0 %1101, %v1098
        %v1103 = vpop.permute.xlu0 %1102
        %1106 = vset.pattern.permute.xlu0 0
        %1107 = vperm.xlu0 %1106, %v1099
        %v1108 = vpop.permute.xlu0 %1107
        %v1110 = vmul.f32 %v1094, %v1103
        %v1111 = vmul.f32 %v1095, %v1108
        %1112 = vst.msk [vmem:[#allocation2] sm:$0xff] %vm1026, %v1110
        %1113 = vst.msk [vmem:[#allocation2 + $0x8] sm:$0xff] %vm1026, %v1111
        %v1114 = vld [vmem:[#allocation2] sm:$0xff]
        %v1115 = vld [vmem:[#allocation2 + $0x8] sm:$0xff]
        %v1116 = vpack.c.bf16 %v1115, %v1114
        %v1117 = vld [vmem:[%s2] sm:$0xf]
        %v1118 = vld [vmem:[%s2 + $0x4] sm:$0xf]
        %v1119 = vld [vmem:[%s2 + $0x8] sm:$0xf]
        %v1120 = vld [vmem:[%s2 + $0xc] sm:$0xf]
        %v1121 = vld [vmem:[%s3] sm:$0x1]
        %v1123 = vlaneseq
        %v1124 = vshrl.u32 %v1123, 7
        %v1125 = vsub.s32 0, %v1124
        %v1126 = vrot.slane %v1121, %v1125
        %v1132 = vunpack.c.l.b16 %v1117
        %v1133 = vunpack.c.l.b16 %v1118
        %v1134 = vunpack.c.l.b16 %v1119
        %v1135 = vunpack.c.l.b16 %v1120
        %v1136 = vpack.c.b16 %v1133, %v1132
        %v1137 = vpack.c.b16 %v1135, %v1134
        %vm1140 = vcmask 261120
        %v1142 = vsel %vm1140, %v1116, 0
        %1144 = vmatprep.subr.bf16.mxu0 0
        %1145 = vmatpush1.bf16.msra.mxu0 %v1136
        %1146 = vmatprep.subr.bf16.mxu0 0
        %1147 = vmatpush1.bf16.msra.mxu0 %v1137
        %1148 = vmatprep.subr.bf16.mxu0 0
        %1149 = vmatpush1.bf16.msra.mxu0 0
        %1150 = vmatprep.subr.bf16.mxu0 0
        %1151 = vmatpush1.bf16.msra.mxu0 0
        %1152 = vmatprep.subr.bf16.mxu0 0
        %1153 = vmatpush1.bf16.msra.mxu0 0
        %1154 = vmatprep.subr.bf16.mxu0 0
        %1155 = vmatpush1.bf16.msra.mxu0 0
        %1156 = vmatprep.subr.bf16.mxu0 0
        %1157 = vmatpush1.bf16.msra.mxu0 0
        %1158 = vmatprep.subr.bf16.mxu0 0
        %1159 = vmatpush1.bf16.msra.mxu0 0
        %1160 = vmatprep.subr.bf16.mxu0 0
        %1161 = vmatpush1.bf16.msra.mxu0 0
        %1162 = vmatprep.subr.bf16.mxu0 0
        %1163 = vmatpush1.bf16.msra.mxu0 0
        %1164 = vmatprep.subr.bf16.mxu0 0
        %1165 = vmatpush1.bf16.msra.mxu0 0
        %1166 = vmatprep.subr.bf16.mxu0 0
        %1167 = vmatpush1.bf16.msra.mxu0 0
        %1168 = vmatprep.subr.bf16.mxu0 0
        %1169 = vmatpush1.bf16.msra.mxu0 0
        %1170 = vmatprep.subr.bf16.mxu0 0
        %1171 = vmatpush1.bf16.msra.mxu0 0
        %1172 = vmatprep.subr.bf16.mxu0 0
        %1173 = vmatpush1.bf16.msra.mxu0 0
        %1174 = vmatprep.subr.bf16.mxu0 0
        %1175 = vmatpush1.bf16.msra.mxu0 0
        %1176 = vmatprep.mubr.bf16.mxu0 0
        %1177 = vmatmul.mubr.bf16.gmra.mrb[0].mxu0 %v1142
        %v1178 = vpop.f32.mrb[0].mxu0
        %v1179 = vadd.f32 %v1126, %v1178
        %v1180 = vpop.f32.mrb[0].mxu0
        %v1181 = vpop.f32.mrb[0].mxu0
        %v1182 = vadd.f32 %v1126, %v1181
        %v1183 = vpop.f32.mrb[0].mxu0
        %1184 = vdwg.mxu0
        %v1185 = vpack.c.bf16 %v1182, %v1179
        %v1187 = vunpack.c.l.b16 %v1185
        %v1188 = vunpack.c.h.b16 %v1185
        %v1189 = vpack.c.b16 %v1187, %v1187
        %v1190 = vpack.c.b16 %v1188, %v1188
        %vm1193 = vcmask 257024
        %1194 = vst.msk [vmem:[%s278] sm:$0xf] %vm1193, %v1189
        %1195 = vst.msk [vmem:[%s278 + $0x4] sm:$0xf] %vm1193, %v1190
      $region44: #{attention_block_forward.10} parent=35 // pred_fallthru
        _
      %s1196 = smul.u32 2, %s21
      %p1197 = scmp.lt.s32.totalorder %s20, 1
      %s1198 = scalar_select %p1197, %s20, 1
      %p1199 = scmp.lt.s32.totalorder %s1196, 1
      %s1200 = scalar_select %p1199, %s1196, 1
      %s1201 = smul.addr %s1198, 2
      %s1202 = sadd.s32 %s1200, %s1201
      %s1203 = smul.addr %s1202, 4
      %s1204 = scalar_lea.vmem %s4, %s1203
      // Predicated region
      $region45: #{attention_block_forward.10} parent=35 // pred_check
        %p1205 = pneg %p152
      $region46: #{attention_block_forward.10} parent=35 // pred_check_branch
        %1207 = sbr.rel (%p1205) target = $region48
      $region47: #{attention_block_forward.10} parent=35 // pred_region
        %s1208 = smul.u32 2, %s21
      $region48: #{attention_block_forward.10} parent=35 // pred_fallthru
        _
    $region36: #{attention_block_forward.10} parent=5 // pred_fallthru
      _
    %p1209 = scmp.le.s32.totalorder 2, %s10
    // Predicated region
    $region49: #{attention_block_forward.10} parent=5 // pred_check
      %p1210 = pneg %p1209
    $region50: #{attention_block_forward.10} parent=5 // pred_check_branch
      %1212 = sbr.rel (%p1210) target = $region52
    $region51: #{attention_block_forward.10} parent=5 // pred_region
      %s1213 = ssub.s32 %s10, 2
      // Predicated region
      $region53: #{attention_block_forward.10} parent=51 // pred_check
        %p1214 = pneg %p158
      $region54: #{attention_block_forward.10} parent=51 // pred_check_branch
        %1216 = sbr.rel (%p1214) target = $region56
      $region55: #{attention_block_forward.10} parent=51 // pred_region
        %s1217 = smul.u32 2, %s24
        %p1218 = scmp.lt.s32.totalorder %s23, 1
        %s1219 = scalar_select %p1218, %s23, 1
        %p1220 = scmp.lt.s32.totalorder %s1217, 1
        %s1221 = scalar_select %p1220, %s1217, 1
        %s1222 = smul.addr %s1219, 2
        %s1223 = sadd.s32 %s1221, %s1222
        %s1224 = smul.addr %s1223, 4
        %s1225 = scalar_lea.vmem %s4, %s1224
      $region56: #{attention_block_forward.10} parent=51 // pred_fallthru
        _
    $region52: #{attention_block_forward.10} parent=5 // pred_fallthru
      _
  $region6: #{attention_block_forward.10} parent=0 // loop_footer
    %s14 = sadd.s32 1, %s10
  $region7: #{attention_block_forward.10} parent=0 // loop_footer_branch
    %9 = sbr.rel target = $region3
  $region8: #{attention_block_forward.10} parent=0 // loop_exit
    _

// kernel: attention_block_forward.15
$region0: #{attention_block_forward.15}
  #allocation0 [shape = 'u32[]', space=smem, size = 0x4, offset = 0x4, fixed_abs, tag = 'smem constant byte address 0x4 - core index']
  #allocation1 [shape = 'u32[144,128]{1,0:T(1,128)}', space=vmem, size = 0x12000, scoped, tag = 'internal scratch']
  %s0 = inlined_call_operand.vmem [shape: bf16[2,16,64], index: 0, kind: input, shape index: {}]
  %s1 = inlined_call_operand.vmem [shape: f32[2,32,16], index: 1, kind: input, shape index: {}]
  %s2 = inlined_call_operand.vmem [shape: f32[1,64], index: 2, kind: input, shape index: {}]
  %s3 = inlined_call_operand.vmem [shape: f32[1,64], index: 3, kind: input, shape index: {}]
  %s4 = inlined_call_operand.vmem [shape: bf16[32,64], index: 4, kind: input, shape index: {}]
  %s5 = inlined_call_operand.vmem [shape: f32[32,1], index: 5, kind: input, shape index: {}]
  %s6 = inlined_call_operand.vmem [shape: f32[2,32,16], index: 6, kind: output, shape index: {}]
  %s7 = sld [smem:[#allocation0]]
  $region57: #{attention_block_forward.15} parent=0
    _
  %s9 = ssub.s32 1, %s7
  %s10 = scalar_select 0, %s9, %s7
  loop: start=0, step=1, limit=4
  $region2: #{attention_block_forward.15} parent=0 // loop_pre_header
    _
  $region3: #{attention_block_forward.15} parent=0 // loop_header
    %s12 = sphi 0, %s16
    %p13 = scmp.ge.s32.totalorder %s12, 4
    %s19 = sphi 0, %s31
    %s20 = sphi 0, %s27
    %s21 = sphi 0, %s19
    %s22 = sphi 0, %s20
    %s23 = sphi 0, %s21
    %s24 = sphi 0, %s22
    %s36 = sphi 0, %s38
    %s39 = sphi 0, %s36
    %s40 = sphi 0, %s39
    %s56 = sphi 0, %s40
    %s64 = sphi 0, %s66
    %s67 = sphi 0, %s64
    %s68 = sphi 0, %s67
    %s84 = sphi 0, %s68
    %s88 = sphi 0, %s88
    %s90 = sphi 0, %s88
    %s91 = sphi 0, %s90
    %s105 = sphi 0, %s91
    %s109 = sphi 0, %s109
    %s111 = sphi 0, %s109
    %s112 = sphi 0, %s111
    %s126 = sphi 0, %s112
    %s130 = sphi 0, %s130
    %s132 = sphi 0, %s130
    %s133 = sphi 0, %s132
    %s147 = sphi 0, %s133
    %s151 = sphi 0, %s151
    %s153 = sphi 0, %s151
    %s154 = sphi 0, %s153
    %s168 = sphi 0, %s154
    %s176 = sphi 0, %s178
    %s179 = sphi 0, %s176
    %s180 = sphi 0, %s179
    %s196 = sphi 0, %s180
  $region4: #{attention_block_forward.15} parent=0 // loop_header_branch
    %15 = sbr.rel (%p13) target = $region8
  $region5: #{attention_block_forward.15} parent=0 // loop_body
    %s17 = ssub.s32 %s12, 1
    %s18 = ssub.s32 %s12, 2
    %s25 = sadd.s32 1, %s20
    %p26 = scmp.ge.s32.totalorder %s25, 1
    %s27 = scalar_select %p26, 0, %s25
    %s28 = sadd.s32 1, %s19
    %s29 = scalar_select %p26, %s28, %s19
    %p30 = scmp.ge.s32.totalorder %s29, 2
    %s31 = scalar_select %p30, 0, %s29
    %s32 = ssub.s32 %s19, %s31
    %s33 = ssub.s32 %s20, %s27
    %s34 = sor.u32 %s32, %s33
    %p35 = scmp.eq.s32.totalorder %s34, 0
    %s37 = sadd.s32 %s36, 1
    %s38 = scalar_select %p35, %s36, %s37
    %p41 = pneg %p35
    %p42 = scmp.eq.s32.totalorder %s12, 1
    %p43 = por %p41, %p42
    %p44 = scmp.ne.s32.totalorder %s36, %s39
    %p45 = scmp.eq.s32.totalorder %s12, 0
    %p46 = por %p44, %p45
    %p47 = scmp.ne.s32.totalorder %s36, %s39
    %p48 = scmp.eq.s32.totalorder %s17, 1
    %p49 = por %p47, %p48
    %p50 = scmp.ne.s32.totalorder %s39, %s40
    %p51 = scmp.eq.s32.totalorder %s17, 0
    %p52 = por %p50, %p51
    %p53 = scmp.ne.s32.totalorder %s39, %s40
    %p54 = scmp.eq.s32.totalorder %s18, 1
    %p55 = por %p53, %p54
    %p57 = scmp.ne.s32.totalorder %s40, %s56
    %p58 = scmp.eq.s32.totalorder %s18, 0
    %p59 = por %p57, %p58
    %s60 = ssub.s32 %s19, %s31
    %s61 = ssub.s32 %s20, %s27
    %s62 = sor.u32 %s60, %s61
    %p63 = scmp.eq.s32.totalorder %s62, 0
    %s65 = sadd.s32 %s64, 1
    %s66 = scalar_select %p63, %s64, %s65
    %p69 = pneg %p63
    %p70 = scmp.eq.s32.totalorder %s12, 1
    %p71 = por %p69, %p70
    %p72 = scmp.ne.s32.totalorder %s64, %s67
    %p73 = scmp.eq.s32.totalorder %s12, 0
    %p74 = por %p72, %p73
    %p75 = scmp.ne.s32.totalorder %s64, %s67
    %p76 = scmp.eq.s32.totalorder %s17, 1
    %p77 = por %p75, %p76
    %p78 = scmp.ne.s32.totalorder %s67, %s68
    %p79 = scmp.eq.s32.totalorder %s17, 0
    %p80 = por %p78, %p79
    %p81 = scmp.ne.s32.totalorder %s67, %s68
    %p82 = scmp.eq.s32.totalorder %s18, 1
    %p83 = por %p81, %p82
    %p85 = scmp.ne.s32.totalorder %s68, %s84
    %p86 = scmp.eq.s32.totalorder %s18, 0
    %p87 = por %p85, %p86
    %s89 = sadd.s32 %s88, 1
    %p92 = scmp.eq.s32.totalorder %s12, 1
    %p93 = scmp.ne.s32.totalorder %s88, %s90
    %p94 = scmp.eq.s32.totalorder %s12, 0
    %p95 = por %p93, %p94
    %p96 = scmp.ne.s32.totalorder %s88, %s90
    %p97 = scmp.eq.s32.totalorder %s17, 1
    %p98 = por %p96, %p97
    %p99 = scmp.ne.s32.totalorder %s90, %s91
    %p100 = scmp.eq.s32.totalorder %s17, 0
    %p101 = por %p99, %p100
    %p102 = scmp.ne.s32.totalorder %s90, %s91
    %p103 = scmp.eq.s32.totalorder %s18, 1
    %p104 = por %p102, %p103
    %p106 = scmp.ne.s32.totalorder %s91, %s105
    %p107 = scmp.eq.s32.totalorder %s18, 0
    %p108 = por %p106, %p107
    %s110 = sadd.s32 %s109, 1
    %p113 = scmp.eq.s32.totalorder %s12, 1
    %p114 = scmp.ne.s32.totalorder %s109, %s111
    %p115 = scmp.eq.s32.totalorder %s12, 0
    %p116 = por %p114, %p115
    %p117 = scmp.ne.s32.totalorder %s109, %s111
    %p118 = scmp.eq.s32.totalorder %s17, 1
    %p119 = por %p117, %p118
    %p120 = scmp.ne.s32.totalorder %s111, %s112
    %p121 = scmp.eq.s32.totalorder %s17, 0
    %p122 = por %p120, %p121
    %p123 = scmp.ne.s32.totalorder %s111, %s112
    %p124 = scmp.eq.s32.totalorder %s18, 1
    %p125 = por %p123, %p124
    %p127 = scmp.ne.s32.totalorder %s112, %s126
    %p128 = scmp.eq.s32.totalorder %s18, 0
    %p129 = por %p127, %p128
    %s131 = sadd.s32 %s130, 1
    %p134 = scmp.eq.s32.totalorder %s12, 1
    %p135 = scmp.ne.s32.totalorder %s130, %s132
    %p136 = scmp.eq.s32.totalorder %s12, 0
    %p137 = por %p135, %p136
    %p138 = scmp.ne.s32.totalorder %s130, %s132
    %p139 = scmp.eq.s32.totalorder %s17, 1
    %p140 = por %p138, %p139
    %p141 = scmp.ne.s32.totalorder %s132, %s133
    %p142 = scmp.eq.s32.totalorder %s17, 0
    %p143 = por %p141, %p142
    %p144 = scmp.ne.s32.totalorder %s132, %s133
    %p145 = scmp.eq.s32.totalorder %s18, 1
    %p146 = por %p144, %p145
    %p148 = scmp.ne.s32.totalorder %s133, %s147
    %p149 = scmp.eq.s32.totalorder %s18, 0
    %p150 = por %p148, %p149
    %s152 = sadd.s32 %s151, 1
    %p155 = scmp.eq.s32.totalorder %s12, 1
    %p156 = scmp.ne.s32.totalorder %s151, %s153
    %p157 = scmp.eq.s32.totalorder %s12, 0
    %p158 = por %p156, %p157
    %p159 = scmp.ne.s32.totalorder %s151, %s153
    %p160 = scmp.eq.s32.totalorder %s17, 1
    %p161 = por %p159, %p160
    %p162 = scmp.ne.s32.totalorder %s153, %s154
    %p163 = scmp.eq.s32.totalorder %s17, 0
    %p164 = por %p162, %p163
    %p165 = scmp.ne.s32.totalorder %s153, %s154
    %p166 = scmp.eq.s32.totalorder %s18, 1
    %p167 = por %p165, %p166
    %p169 = scmp.ne.s32.totalorder %s154, %s168
    %p170 = scmp.eq.s32.totalorder %s18, 0
    %p171 = por %p169, %p170
    %s172 = ssub.s32 %s19, %s31
    %s173 = ssub.s32 %s20, %s27
    %s174 = sor.u32 %s172, %s173
    %p175 = scmp.eq.s32.totalorder %s174, 0
    %s177 = sadd.s32 %s176, 1
    %s178 = scalar_select %p175, %s176, %s177
    %p181 = pneg %p175
    %p182 = scmp.eq.s32.totalorder %s12, 1
    %p183 = por %p181, %p182
    %p184 = scmp.ne.s32.totalorder %s176, %s179
    %p185 = scmp.eq.s32.totalorder %s12, 0
    %p186 = por %p184, %p185
    %p187 = scmp.ne.s32.totalorder %s176, %s179
    %p188 = scmp.eq.s32.totalorder %s17, 1
    %p189 = por %p187, %p188
    %p190 = scmp.ne.s32.totalorder %s179, %s180
    %p191 = scmp.eq.s32.totalorder %s17, 0
    %p192 = por %p190, %p191
    %p193 = scmp.ne.s32.totalorder %s179, %s180
    %p194 = scmp.eq.s32.totalorder %s18, 1
    %p195 = por %p193, %p194
    %p197 = scmp.ne.s32.totalorder %s180, %s196
    %p198 = scmp.eq.s32.totalorder %s18, 0
    %p199 = por %p197, %p198
    %p200 = scmp.le.s32.totalorder 1, %s12
    %p201 = scmp.lt.s32.totalorder %s12, 3
    %p202 = pnand %p200, %p201
    %p203 = pneg %p202
    // Predicated region
    $region9: #{attention_block_forward.15} parent=5 // pred_check
      _
    $region10: #{attention_block_forward.15} parent=5 // pred_check_branch
      %205 = sbr.rel (%p202) target = $region12
    $region11: #{attention_block_forward.15} parent=5 // pred_region
      %s206 = ssub.s32 %s12, 1
      // Predicated region
      $region13: #{attention_block_forward.15} parent=11 // pred_check
        %p207 = pneg %p101
      $region14: #{attention_block_forward.15} parent=11 // pred_check_branch
        %209 = sbr.rel (%p207) target = $region16
      $region15: #{attention_block_forward.15} parent=11 // pred_region
        _
      $region16: #{attention_block_forward.15} parent=11 // pred_fallthru
        _
      // Predicated region
      $region17: #{attention_block_forward.15} parent=11 // pred_check
        %p210 = pneg %p122
      $region18: #{attention_block_forward.15} parent=11 // pred_check_branch
        %212 = sbr.rel (%p210) target = $region20
      $region19: #{attention_block_forward.15} parent=11 // pred_region
        _
      $region20: #{attention_block_forward.15} parent=11 // pred_fallthru
        _
      // Predicated region
      $region21: #{attention_block_forward.15} parent=11 // pred_check
        %p213 = pneg %p143
      $region22: #{attention_block_forward.15} parent=11 // pred_check_branch
        %215 = sbr.rel (%p213) target = $region24
      $region23: #{attention_block_forward.15} parent=11 // pred_region
        _
      $region24: #{attention_block_forward.15} parent=11 // pred_fallthru
        _
      // Predicated region
      $region25: #{attention_block_forward.15} parent=11 // pred_check
        %p216 = pneg %p164
      $region26: #{attention_block_forward.15} parent=11 // pred_check_branch
        %218 = sbr.rel (%p216) target = $region28
      $region27: #{attention_block_forward.15} parent=11 // pred_region
        _
      $region28: #{attention_block_forward.15} parent=11 // pred_fallthru
        _
    $region12: #{attention_block_forward.15} parent=5 // pred_fallthru
      _
    %p219 = scmp.lt.s32.totalorder %s12, 2
    // Predicated region
    $region29: #{attention_block_forward.15} parent=5 // pred_check
      %p220 = pneg %p219
    $region30: #{attention_block_forward.15} parent=5 // pred_check_branch
      %222 = sbr.rel (%p220) target = $region32
    $region31: #{attention_block_forward.15} parent=5 // pred_region
      // Predicated region
      $region33: #{attention_block_forward.15} parent=31 // pred_check
        %p223 = pneg %p46
      $region34: #{attention_block_forward.15} parent=31 // pred_check_branch
        %225 = sbr.rel (%p223) target = $region36
      $region35: #{attention_block_forward.15} parent=31 // pred_region
        %s226 = smul.u32 2, %s20
        %p227 = scmp.lt.s32.totalorder %s19, 1
        %s228 = scalar_select %p227, %s19, 1
        %p229 = scmp.lt.s32.totalorder %s226, 1
        %s230 = scalar_select %p229, %s226, 1
        %s231 = smul.addr %s228, 2
        %s232 = sadd.s32 %s230, %s231
        %s233 = smul.addr %s232, 4
        %s234 = scalar_lea.vmem %s0, %s233
        %s235 = smul.u32 2, %s20
      $region36: #{attention_block_forward.15} parent=31 // pred_fallthru
        _
      // Predicated region
      $region37: #{attention_block_forward.15} parent=31 // pred_check
        %p236 = pneg %p74
      $region38: #{attention_block_forward.15} parent=31 // pred_check_branch
        %238 = sbr.rel (%p236) target = $region40
      $region39: #{attention_block_forward.15} parent=31 // pred_region
        %p239 = scmp.lt.s32.totalorder %s19, 1
        %s240 = scalar_select %p239, %s19, 1
        %p241 = scmp.lt.s32.totalorder %s20, 0
        %s242 = scalar_select %p241, %s20, 0
        %s243 = smul.addr %s240, 4
        %s244 = sadd.s32 %s242, %s243
        %s245 = smul.addr %s244, 8
        %s246 = scalar_lea.vmem %s1, %s245
      $region40: #{attention_block_forward.15} parent=31 // pred_fallthru
        _
    $region32: #{attention_block_forward.15} parent=5 // pred_fallthru
      _
    %p247 = scmp.le.s32.totalorder 1, %s12
    %p248 = scmp.lt.s32.totalorder %s12, 3
    %p249 = pnand %p247, %p248
    %p250 = pneg %p249
    // Predicated region
    $region41: #{attention_block_forward.15} parent=5 // pred_check
      _
    $region42: #{attention_block_forward.15} parent=5 // pred_check_branch
      %252 = sbr.rel (%p249) target = $region44
    $region43: #{attention_block_forward.15} parent=5 // pred_region
      %s253 = ssub.s32 %s12, 1
      %s254 = smul.u32 2, %s22
      %p255 = scmp.lt.s32.totalorder %s21, 1
      %s256 = scalar_select %p255, %s21, 1
      %p257 = scmp.lt.s32.totalorder %s254, 1
      %s258 = scalar_select %p257, %s254, 1
      %s259 = smul.addr %s256, 2
      %s260 = sadd.s32 %s258, %s259
      %s261 = smul.addr %s260, 4
      %s262 = scalar_lea.vmem %s0, %s261
      %p263 = pneg %p52
      %p264 = pneg %p49
      %p265 = scmp.lt.s32.totalorder %s21, 1
      %s266 = scalar_select %p265, %s21, 1
      %p267 = scmp.lt.s32.totalorder %s22, 0
      %s268 = scalar_select %p267, %s22, 0
      %s269 = smul.addr %s266, 4
      %s270 = sadd.s32 %s268, %s269
      %s271 = smul.addr %s270, 8
      %s272 = scalar_lea.vmem %s1, %s271
      %p273 = pneg %p80
      %p274 = pneg %p77
      %p275 = pneg %p101
      %p276 = pneg %p98
      %p277 = pneg %p122
      %p278 = pneg %p119
      %p279 = pneg %p143
      %p280 = pneg %p140
      %p281 = pneg %p164
      %p282 = pneg %p161
      %p283 = pneg %p192
      %p284 = pneg %p189
      %p285 = scmp.lt.s32.totalorder %s21, 1
      %s286 = scalar_select %p285, %s21, 1
      %p287 = scmp.lt.s32.totalorder %s22, 0
      %s288 = scalar_select %p287, %s22, 0
      %s289 = smul.addr %s286, 4
      %s290 = sadd.s32 %s288, %s289
      %s291 = smul.addr %s290, 8
      %s292 = scalar_lea.vmem %s6, %s291
      %s293 = smul.u32 2, %s22
      %p294 = scmp.lt.s32.totalorder %s21, 1
      %s295 = scalar_select %p294, %s21, 1
      %p296 = scmp.lt.s32.totalorder %s293, 1
      %s297 = scalar_select %p296, %s293, 1
      %s298 = smul.addr %s295, 2
      %s299 = sadd.s32 %s297, %s298
      %s300 = smul.addr %s299, 4
      %s301 = scalar_lea.vmem %s0, %s300
      %s302 = smul.u32 2, %s22
      %p303 = scmp.lt.s32.totalorder %s21, 1
      %s304 = scalar_select %p303, %s21, 1
      %p305 = scmp.lt.s32.totalorder %s22, 0
      %s306 = scalar_select %p305, %s22, 0
      %s307 = smul.addr %s304, 4
      %s308 = sadd.s32 %s306, %s307
      %s309 = smul.addr %s308, 8
      %s310 = scalar_lea.vmem %s1, %s309
      %p311 = scmp.lt.s32.totalorder %s21, 1
      %s312 = scalar_select %p311, %s21, 1
      %p313 = scmp.lt.s32.totalorder %s22, 0
      %s314 = scalar_select %p313, %s22, 0
      %s315 = smul.addr %s312, 4
      %s316 = sadd.s32 %s314, %s315
      %s317 = smul.addr %s316, 8
      %s318 = scalar_lea.vmem %s6, %s317
      %v320 = vld [vmem:[%s301] sm:$0xf]
      %v321 = vld [vmem:[%s301 + $0x4] sm:$0xf]
      %v322 = vunpack.c.l.bf16 %v320
      %v323 = vunpack.c.l.bf16 %v321
      %v324 = vld [vmem:[%s2] sm:$0x1]
      %v326 = vlaneseq
      %v327 = vshrl.u32 %v326, 7
      %v328 = vsub.s32 0, %v327
      %v329 = vrot.slane %v324, %v328
      %v331 = vmul.f32 %v322, %v329
      %v332 = vmul.f32 %v323, %v329
      %v333 = vld [vmem:[%s3] sm:$0x1]
      %v335 = vlaneseq
      %v336 = vshrl.u32 %v335, 7
      %v337 = vsub.s32 0, %v336
      %v338 = vrot.slane %v333, %v337
      %v340 = vadd.f32 %v331, %v338
      %v341 = vadd.f32 %v332, %v338
      %v342 = vmax.f32 %v340, 0.0
      %v343 = vmax.f32 %v341, 0.0
      %v344 = vld [vmem:[%s310] sm:$0xff]
      %v345 = vld [vmem:[%s310 + $0x8] sm:$0xff]
      %v346 = vld [vmem:[%s310 + $0x10] sm:$0xff]
      %v347 = vld [vmem:[%s310 + $0x18] sm:$0xff]
      %v348 = vld [vmem:[%s4] sm:$0xf]
      %v349 = vld [vmem:[%s4 + $0x4] sm:$0xf]
      %v350 = vld [vmem:[%s4 + $0x8] sm:$0xf]
      %v351 = vld [vmem:[%s4 + $0xc] sm:$0xf]
      %v352 = vpack.c.bf16 %v343, %v342
      %v357 = vunpack.c.l.b16 %v348
      %v358 = vunpack.c.l.b16 %v349
      %v359 = vunpack.c.l.b16 %v350
      %v360 = vunpack.c.l.b16 %v351
      %v361 = vpack.c.b16 %v358, %v357
      %v362 = vpack.c.b16 %v360, %v359
      %vm363 = vcmask 523264
      %v365 = vsel %vm363, %v361, 0
      %v368 = vsel %vm363, %v362, 0
      %v371 = vsel %vm363, %v352, 0
      %373 = vmatprep.subr.bf16.mxu0 0
      %374 = vmatpush1.bf16.xpose.msra.mxu0 %v371
      %375 = vmatprep.subr.bf16.mxu0 0
      %376 = vmatpush1.bf16.xpose.msra.mxu0 0
      %377 = vmatprep.subr.bf16.mxu0 0
      %378 = vmatpush1.bf16.xpose.msra.mxu0 0
      %379 = vmatprep.subr.bf16.mxu0 0
      %380 = vmatpush1.bf16.xpose.msra.mxu0 0
      %381 = vmatprep.subr.bf16.mxu0 0
      %382 = vmatpush1.bf16.xpose.msra.mxu0 0
      %383 = vmatprep.subr.bf16.mxu0 0
      %384 = vmatpush1.bf16.xpose.msra.mxu0 0
      %385 = vmatprep.subr.bf16.mxu0 0
      %386 = vmatpush1.bf16.xpose.msra.mxu0 0
      %387 = vmatprep.subr.bf16.mxu0 0
      %388 = vmatpush1.bf16.xpose.msra.mxu0 0
      %389 = vmatprep.subr.bf16.mxu0 0
      %390 = vmatpush1.bf16.xpose.msra.mxu0 0
      %391 = vmatprep.subr.bf16.mxu0 0
      %392 = vmatpush1.bf16.xpose.msra.mxu0 0
      %393 = vmatprep.subr.bf16.mxu0 0
      %394 = vmatpush1.bf16.xpose.msra.mxu0 0
      %395 = vmatprep.subr.bf16.mxu0 0
      %396 = vmatpush1.bf16.xpose.msra.mxu0 0
      %397 = vmatprep.subr.bf16.mxu0 0
      %398 = vmatpush1.bf16.xpose.msra.mxu0 0
      %399 = vmatprep.subr.bf16.mxu0 0
      %400 = vmatpush1.bf16.xpose.msra.mxu0 0
      %401 = vmatprep.subr.bf16.mxu0 0
      %402 = vmatpush1.bf16.xpose.msra.mxu0 0
      %403 = vmatprep.subr.bf16.mxu0 0
      %404 = vmatpush1.bf16.xpose.msra.mxu0 0
      %405 = vmatprep.mubr.bf16.mxu0 0
      %406 = vmatmul.mubr.bf16.gmra.mrb[0].mxu0 %v365
      %v407 = vpop.f32.mrb[0].mxu0
      %v408 = vadd.f32 0.0, %v407
      %v409 = vpop.f32.mrb[0].mxu0
      %v410 = vpop.f32.mrb[0].mxu0
      %v411 = vadd.f32 0.0, %v410
      %v412 = vpop.f32.mrb[0].mxu0
      %413 = vmatprep.mubr.bf16.mxu0 0
      %414 = vmatmul.mubr.bf16.gmra.mrb[0].mxu0 %v368
      %v415 = vpop.f32.mrb[0].mxu0
      %v416 = vadd.f32 0.0, %v415
      %v417 = vpop.f32.mrb[0].mxu0
      %v418 = vpop.f32.mrb[0].mxu0
      %v419 = vadd.f32 0.0, %v418
      %v420 = vpop.f32.mrb[0].mxu0
      %421 = vdwg.mxu0
      %v422 = vadd.f32 %v344, %v408
      %v423 = vadd.f32 %v345, %v411
      %v424 = vadd.f32 %v346, %v416
      %v425 = vadd.f32 %v347, %v419
      %v426 = vld [vmem:[%s5] sm:$0xff]
      %v427 = vld [vmem:[%s5 + $0x8] sm:$0xff]
      %v428 = vld [vmem:[%s5 + $0x10] sm:$0xff]
      %v429 = vld [vmem:[%s5 + $0x18] sm:$0xff]
      %431 = vset.pattern.permute.xlu0 0
      %432 = vperm.xlu0 %431, %v426
      %v433 = vpop.permute.xlu0 %432
      %436 = vset.pattern.permute.xlu0 0
      %437 = vperm.xlu0 %436, %v427
      %v438 = vpop.permute.xlu0 %437
      %441 = vset.pattern.permute.xlu0 0
      %442 = vperm.xlu0 %441, %v428
      %v443 = vpop.permute.xlu0 %442
      %446 = vset.pattern.permute.xlu0 0
      %447 = vperm.xlu0 %446, %v429
      %v448 = vpop.permute.xlu0 %447
      %v450 = vadd.f32 %v422, %v433
      %v451 = vadd.f32 %v423, %v438
      %v452 = vadd.f32 %v424, %v443
      %v453 = vadd.f32 %v425, %v448
      %vm454 = vcmask 130048
      %455 = vst.msk [vmem:[%s318] sm:$0xff] %vm454, %v450
      %456 = vst.msk [vmem:[%s318 + $0x8] sm:$0xff] %vm454, %v451
      %457 = vst.msk [vmem:[%s318 + $0x10] sm:$0xff] %vm454, %v452
      %458 = vst.msk [vmem:[%s318 + $0x18] sm:$0xff] %vm454, %v453
      %p459 = scmp.lt.s32.totalorder %s21, 1
      %s460 = scalar_select %p459, %s21, 1
      %p461 = scmp.lt.s32.totalorder %s22, 0
      %s462 = scalar_select %p461, %s22, 0
      %s463 = smul.addr %s460, 4
      %s464 = sadd.s32 %s462, %s463
      %s465 = smul.addr %s464, 8
      %s466 = scalar_lea.vmem %s6, %s465
      // Predicated region
      $region45: #{attention_block_forward.15} parent=43 // pred_check
        %p467 = pneg %p189
      $region46: #{attention_block_forward.15} parent=43 // pred_check_branch
        %469 = sbr.rel (%p467) target = $region48
      $region47: #{attention_block_forward.15} parent=43 // pred_region
        _
      $region48: #{attention_block_forward.15} parent=43 // pred_fallthru
        _
    $region44: #{attention_block_forward.15} parent=5 // pred_fallthru
      _
    %p470 = scmp.le.s32.totalorder 2, %s12
    // Predicated region
    $region49: #{attention_block_forward.15} parent=5 // pred_check
      %p471 = pneg %p470
    $region50: #{attention_block_forward.15} parent=5 // pred_check_branch
      %473 = sbr.rel (%p471) target = $region52
    $region51: #{attention_block_forward.15} parent=5 // pred_region
      %s474 = ssub.s32 %s12, 2
      // Predicated region
      $region53: #{attention_block_forward.15} parent=51 // pred_check
        %p475 = pneg %p195
      $region54: #{attention_block_forward.15} parent=51 // pred_check_branch
        %477 = sbr.rel (%p475) target = $region56
      $region55: #{attention_block_forward.15} parent=51 // pred_region
        %p478 = scmp.lt.s32.totalorder %s23, 1
        %s479 = scalar_select %p478, %s23, 1
        %p480 = scmp.lt.s32.totalorder %s24, 0
        %s481 = scalar_select %p480, %s24, 0
        %s482 = smul.addr %s479, 4
        %s483 = sadd.s32 %s481, %s482
        %s484 = smul.addr %s483, 8
        %s485 = scalar_lea.vmem %s6, %s484
      $region56: #{attention_block_forward.15} parent=51 // pred_fallthru
        _
    $region52: #{attention_block_forward.15} parent=5 // pred_fallthru
      _
  $region6: #{attention_block_forward.15} parent=0 // loop_footer
    %s16 = sadd.s32 1, %s12
  $region7: #{attention_block_forward.15} parent=0 // loop_footer_branch
    %11 = sbr.rel target = $region3
  $region8: #{attention_block_forward.15} parent=0 // loop_exit
    _

</llo_original>
